<compile_context>
chip_gen: v6e
topology: v6e:2x2x1
jax: 0.10.0
libtpu: 0.0.40
codegen_flags: <defaults>
</compile_context>

<pallas_src>
import functools

import jax
import jax.numpy as jnp
from jax.experimental import pallas as pl
from jax.experimental.pallas import tpu as pltpu

BN_EPS = 1e-5


def _round_up(x, m):
    return ((x + m - 1) // m) * m


# ----------------------------------------------------------------------------
# Fused point-branch kernel: conv1 -> conv2 -> conv3 (+BN[+ReLU]) + running max
# Grid: (batch, col_split, point_tiles); output block resident across point_tiles.
# ----------------------------------------------------------------------------
def _point_branch_kernel(x_ref, w1_ref, s1_ref, t1_ref, w2_ref, s2_ref, t2_ref,
                         w3_ref, s3_ref, t3_ref, o_ref, *, relu_last, c3_chunk):
    n_id = pl.program_id(2)
    is_first = n_id == 0
    is_last = n_id == pl.num_programs(2) - 1

    x = x_ref[...].astype(jnp.bfloat16)                                    # (tn, 3)
    h = jnp.dot(x, w1_ref[...], preferred_element_type=jnp.float32)        # (tn, 64)
    h = jnp.maximum(h * s1_ref[...] + t1_ref[...], 0.0)
    h = jnp.dot(h.astype(jnp.bfloat16), w2_ref[...],
                preferred_element_type=jnp.float32)                        # (tn, 128)
    h = jnp.maximum(h * s2_ref[...] + t2_ref[...], 0.0)
    h = h.astype(jnp.bfloat16)                                             # (tn, 128)

    # conv3 chunked along output channels: matmul -> row-max per chunk; no affine/ReLU
    # here (hoisted past the max).  sign(s3) is pre-folded into w3 columns on the host.
    c3 = o_ref.shape[-1]
    n_chunks = c3 // c3_chunk
    for c in range(n_chunks):
        sl = pl.ds(c * c3_chunk, c3_chunk)
        hc = jnp.dot(h, w3_ref[:, sl], preferred_element_type=jnp.float32)  # (tn, chunk)
        local_max = jnp.max(hc, axis=0, keepdims=True)                      # (1, chunk)

        @pl.when(is_first)
        def _():
            o_ref[:, sl] = local_max

        @pl.when(n_id != 0)
        def _():
            o_ref[:, sl] = jnp.maximum(o_ref[:, sl], local_max)

    # Finalize: apply |s3| * max + t3 (+ ReLU) once on the resident (1, C3) block.
    @pl.when(is_last)
    def _():
        g = o_ref[...] * s3_ref[...] + t3_ref[...]
        if relu_last:
            g = jnp.maximum(g, 0.0)
        o_ref[...] = g


def point_branch(x, w1, s1, t1, w2, s2, t2, w3, s3, t3, *,
                 relu_last, per_batch_w1, tn, col_splits=1, c3_chunk=256):
    """x: (B, Np, 3).  Returns max over points of the fused conv chain: (B, Cout3)."""
    B, Np, _ = x.shape
    C1 = w1.shape[-1]
    C2 = w2.shape[-1]
    C3 = w3.shape[-1]
    assert C3 % col_splits == 0
    C3c = C3 // col_splits
    c3_chunk = min(c3_chunk, C3c)
    assert C3c % c3_chunk == 0

    # Fold sign(s3) into the conv3 weight columns so the per-channel affine is exact
    # after the max:  max_n(s*h + t) = |s| * max_n(sign(s)*h) + t.
    sgn = jnp.where(s3 < 0.0, -1.0, 1.0).astype(jnp.float32)
    w3f = (w3 * sgn[None, :]).astype(jnp.bfloat16)
    s3f = jnp.abs(s3).astype(jnp.float32)

    grid = (B, col_splits, Np // tn)

    if per_batch_w1:
        w1_spec = pl.BlockSpec((None, 3, C1), lambda b, g, n: (b, 0, 0))
    else:
        w1_spec = pl.BlockSpec((3, C1), lambda b, g, n: (0, 0))

    cost = pl.CostEstimate(
        flops=int(2 * B * Np * ((3 * C1 + C1 * C2) * col_splits + C2 * C3)),
        transcendentals=0,
        bytes_accessed=int(B * Np * 3 * 4 * col_splits
                           + (3 * C1 + C1 * C2 + C2 * C3) * 2
                           + B * C3 * 4),
    )

    out = pl.pallas_call(
        functools.partial(_point_branch_kernel, relu_last=relu_last, c3_chunk=c3_chunk),
        out_shape=jax.ShapeDtypeStruct((B, 1, C3), jnp.float32),
        grid=grid,
        in_specs=[
            pl.BlockSpec((None, tn, 3), lambda b, g, n: (b, n, 0)),
            w1_spec,
            pl.BlockSpec((1, C1), lambda b, g, n: (0, 0)),
            pl.BlockSpec((1, C1), lambda b, g, n: (0, 0)),
            pl.BlockSpec((C1, C2), lambda b, g, n: (0, 0)),
            pl.BlockSpec((1, C2), lambda b, g, n: (0, 0)),
            pl.BlockSpec((1, C2), lambda b, g, n: (0, 0)),
            pl.BlockSpec((C2, C3c), lambda b, g, n: (0, g)),
            pl.BlockSpec((1, C3c), lambda b, g, n: (0, g)),
            pl.BlockSpec((1, C3c), lambda b, g, n: (0, g)),
        ],
        out_specs=pl.BlockSpec((None, 1, C3c), lambda b, g, n: (b, 0, g)),
        compiler_params=pltpu.CompilerParams(
            dimension_semantics=("parallel", "parallel", "arbitrary"),
            vmem_limit_bytes=32 * 1024 * 1024),
        cost_estimate=cost,
    )(x,
      w1.astype(jnp.bfloat16),
      s1.reshape(1, C1).astype(jnp.float32), t1.reshape(1, C1).astype(jnp.float32),
      w2.astype(jnp.bfloat16),
      s2.reshape(1, C2).astype(jnp.float32), t2.reshape(1, C2).astype(jnp.float32),
      w3f,
      s3f.reshape(1, C3), t3.reshape(1, C3).astype(jnp.float32))
    return out.reshape(B, C3)


# ----------------------------------------------------------------------------
# Fused fc-head kernel: fc1(+BN+ReLU) -> fc2(+BN+ReLU) -> fc3(+bias) [-> log_softmax]
# ----------------------------------------------------------------------------
def _fc_head_kernel(g_ref, w1_ref, s1_ref, t1_ref, w2_ref, s2_ref, t2_ref,
                    w3_ref, b3_ref, o_ref, *, log_softmax_out):
    h = jnp.dot(g_ref[...].astype(jnp.bfloat16), w1_ref[...],
                preferred_element_type=jnp.float32)
    h = jnp.maximum(h * s1_ref[...] + t1_ref[...], 0.0)
    h = jnp.dot(h.astype(jnp.bfloat16), w2_ref[...],
                preferred_element_type=jnp.float32)
    h = jnp.maximum(h * s2_ref[...] + t2_ref[...], 0.0)
    h = jnp.dot(h.astype(jnp.bfloat16), w3_ref[...],
                preferred_element_type=jnp.float32)
    h = h + b3_ref[...]
    if log_softmax_out:
        m = jnp.max(h, axis=-1, keepdims=True)
        s = h - m
        lse = jnp.log(jnp.sum(jnp.exp(s), axis=-1, keepdims=True))
        h = s - lse
    o_ref[...] = h


def fc_head(g, w1, s1, t1, w2, s2, t2, w3, b3, *, log_softmax_out):
    """g: (B, Cin) -> (B, Cout3).  B is small, single-block call."""
    B, Cin = g.shape
    C1 = w1.shape[1]
    C2 = w2.shape[1]
    C3 = w3.shape[1]
    return pl.pallas_call(
        functools.partial(_fc_head_kernel, log_softmax_out=log_softmax_out),
        out_shape=jax.ShapeDtypeStruct((B, C3), jnp.float32),
        grid=(1,),
        in_specs=[
            pl.BlockSpec((B, Cin), lambda i: (0, 0)),
            pl.BlockSpec((Cin, C1), lambda i: (0, 0)),
            pl.BlockSpec((1, C1), lambda i: (0, 0)),
            pl.BlockSpec((1, C1), lambda i: (0, 0)),
            pl.BlockSpec((C1, C2), lambda i: (0, 0)),
            pl.BlockSpec((1, C2), lambda i: (0, 0)),
            pl.BlockSpec((1, C2), lambda i: (0, 0)),
            pl.BlockSpec((C2, C3), lambda i: (0, 0)),
            pl.BlockSpec((1, C3), lambda i: (0, 0)),
        ],
        out_specs=pl.BlockSpec((B, C3), lambda i: (0, 0)),
        compiler_params=pltpu.CompilerParams(
            vmem_limit_bytes=32 * 1024 * 1024),
    )(g,
      w1.astype(jnp.bfloat16), s1.reshape(1, C1), t1.reshape(1, C1),
      w2.astype(jnp.bfloat16), s2.reshape(1, C2), t2.reshape(1, C2),
      w3.astype(jnp.bfloat16), b3.reshape(1, C3))


# ----------------------------------------------------------------------------
# Parameters (deterministic synthetic init) and BN folding
# ----------------------------------------------------------------------------
def _conv_bn_params(key, cin, cout):
    kw, kb, kg, kbe, km, kv = jax.random.split(key, 6)
    return dict(
        w=0.1 * jax.random.normal(kw, (cin, cout), jnp.float32),
        b=0.1 * jax.random.normal(kb, (cout,), jnp.float32),
        gamma=1.0 + 0.1 * jax.random.normal(kg, (cout,), jnp.float32),
        beta=0.1 * jax.random.normal(kbe, (cout,), jnp.float32),
        mean=0.1 * jax.random.normal(km, (cout,), jnp.float32),
        var=jnp.abs(jax.random.normal(kv, (cout,), jnp.float32)) + 0.5,
    )


def _linear_params(key, cin, cout):
    kw, kb = jax.random.split(key, 2)
    return dict(
        w=0.1 * jax.random.normal(kw, (cin, cout), jnp.float32),
        b=0.1 * jax.random.normal(kb, (cout,), jnp.float32),
    )


def init_params(key, k=2):
    layers_bn = [
        ("stn.conv1", 3, 64), ("stn.conv2", 64, 128), ("stn.conv3", 128, 1024),
        ("stn.fc1", 1024, 512), ("stn.fc2", 512, 256),
        ("feat.conv1", 3, 64), ("feat.conv2", 64, 128), ("feat.conv3", 128, 1024),
        ("cls.fc1", 1024, 512), ("cls.fc2", 512, 256),
    ]
    layers_plain = [("stn.fc3", 256, 9), ("cls.fc3", 256, k)]
    keys = jax.random.split(key, len(layers_bn) + len(layers_plain))
    params = {}
    for (name, cin, cout), kk in zip(layers_bn, keys[: len(layers_bn)]):
        params[name] = _conv_bn_params(kk, cin, cout)
    for (name, cin, cout), kk in zip(layers_plain, keys[len(layers_bn):]):
        params[name] = _linear_params(kk, cin, cout)
    return params


def _fold_bn(p):
    # eval-mode BN folded after (xW + b):
    # y = ((xW + b) - mean) * gamma/sqrt(var+eps) + beta = xW*scale + shift
    scale = p["gamma"] / jnp.sqrt(p["var"] + BN_EPS)
    shift = (p["b"] - p["mean"]) * scale + p["beta"]
    return p["w"], scale, shift


# ----------------------------------------------------------------------------
# Full forward (PointNetCls, global_feat=True, feature_transform=False,
#               sample_type='no', use_upsample='no')
# ----------------------------------------------------------------------------
def pointnet_cls(x, params, *, k=2, normal=None):
    """x: (B, N, 3) float (PointNetCls.forward input layout). Returns (log_probs, trans, None)."""
    del normal  # unused when use_upsample='no'
    # TODO(synk): sample_type/use_upsample branches (fps / ffps / wrs / lgp / clgp)
    # are dead code under the defaults 'no'/'no' and are not translated.
    x = x.astype(jnp.float32)
    B, N, C = x.shape
    assert C == 3

    # Points-axis tile: multiple of 128 (clean bf16/MXU granules), capped at 1024 to
    # bound padding while amortizing per-grid-step overhead.  Pad ragged N by
    # duplicating the last point (exact under the max reduction).
    tn = min(1024, _round_up(N, 128))
    Np = _round_up(N, tn)
    if Np != N:
        pad = jnp.broadcast_to(x[:, -1:, :], (B, Np - N, 3))
        xp = jnp.concatenate([x, pad], axis=1)
    else:
        xp = x

    # When B == 1 the batch axis alone would leave a v7x TensorCore idle: split the
    # 1024 output channels across a second parallel grid axis.
    col_splits = 2 if B == 1 else 1

    # ---- STN3d: fused conv1->conv2->conv3 (+BN+ReLU) with running max over points ----
    w1, s1, t1 = _fold_bn(params["stn.conv1"])
    w2, s2, t2 = _fold_bn(params["stn.conv2"])
    w3, s3, t3 = _fold_bn(params["stn.conv3"])
    g_stn = point_branch(xp, w1, s1, t1, w2, s2, t2, w3, s3, t3,
                         relu_last=True, per_batch_w1=False, tn=tn,
                         col_splits=col_splits)                            # (B, 1024)

    # ---- STN3d fc head: fc1->fc2->fc3, identity matrix folded into the fc3 bias ----
    fw1, fs1, ft1 = _fold_bn(params["stn.fc1"])
    fw2, fs2, ft2 = _fold_bn(params["stn.fc2"])
    p3 = params["stn.fc3"]
    b3 = p3["b"] + jnp.eye(3, dtype=jnp.float32).reshape(9)
    t9 = fc_head(g_stn, fw1, fs1, ft1, fw2, fs2, ft2, p3["w"], b3,
                 log_softmax_out=False)                                    # (B, 9)
    trans = t9.reshape(B, 3, 3)

    # ---- PointNetfeat (global_feat=True, idx=None): fold the 3x3 bmm into conv1 ----
    # (x @ T) @ W1 == x @ (T @ W1): precompute a per-batch fused first-layer weight.
    cw1, cs1, ct1 = _fold_bn(params["feat.conv1"])
    w1b = jnp.einsum("bij,jk->bik", trans, cw1)                            # (B, 3, 64)
    cw2, cs2, ct2 = _fold_bn(params["feat.conv2"])
    cw3, cs3, ct3 = _fold_bn(params["feat.conv3"])                         # bn3, no ReLU
    g_feat = point_branch(xp, w1b, cs1, ct1, cw2, cs2, ct2, cw3, cs3, ct3,
                          relu_last=False, per_batch_w1=True, tn=tn,
                          col_splits=col_splits)                           # (B, 1024)

    # ---- Classifier head: fc1+bn1+relu -> (dropout=id in eval) fc2+bn2+relu -> fc3 -> log_softmax ----
    # TODO(synk): Dropout(p=0.3) is identity in eval mode (no RNG mask applied).
    hw1, hs1, ht1 = _fold_bn(params["cls.fc1"])
    hw2, hs2, ht2 = _fold_bn(params["cls.fc2"])
    p_out = params["cls.fc3"]
    out = fc_head(g_feat, hw1, hs1, ht1, hw2, hs2, ht2, p_out["w"], p_out["b"],
                  log_softmax_out=True)                                    # (B, k)

    return out, trans, None  # trans_feat is None (feature_transform=False)


if __name__ == "__main__":
    key = jax.random.PRNGKey(0)
    kx, kn, kp = jax.random.split(key, 3)
    B, N, K = 2, 128, 2
    x = jax.random.normal(kx, (B, N, 3), jnp.float32)        # PointNetCls (B, N, C) input
    normal = jax.random.normal(kn, (B, N, 3), jnp.float32)   # unused ('no' path)
    params = init_params(kp, k=K)

    fwd = jax.jit(lambda xx, pp: pointnet_cls(xx, pp, k=K, normal=normal))
    out, trans, trans_feat = fwd(x, params)
    jax.block_until_ready((out, trans))

    assert out.shape == (B, K) and out.dtype == jnp.float32
    assert trans.shape == (B, 3, 3)
    assert trans_feat is None
    # log_softmax rows must sum (in prob space) to ~1
    assert bool(jnp.all(jnp.abs(jnp.sum(jnp.exp(out), axis=-1) - 1.0) < 1e-4))
    assert bool(jnp.all(jnp.isfinite(out))) and bool(jnp.all(jnp.isfinite(trans)))
    print("KERNEL_OK")
</pallas_src>

<mosaic_0001>
module attributes {stable_mosaic.version = 11 : i64} {
  func.func @_point_branch_kernel(%arg0: i32, %arg1: i32, %arg2: i32, %arg3: memref<1x128x3xf32, #tpu.memory_space<vmem>>, %arg4: memref<3x64xbf16, #tpu.memory_space<vmem>>, %arg5: memref<1x64xf32, #tpu.memory_space<vmem>>, %arg6: memref<1x64xf32, #tpu.memory_space<vmem>>, %arg7: memref<64x128xbf16, #tpu.memory_space<vmem>>, %arg8: memref<1x128xf32, #tpu.memory_space<vmem>>, %arg9: memref<1x128xf32, #tpu.memory_space<vmem>>, %arg10: memref<128x1024xbf16, #tpu.memory_space<vmem>>, %arg11: memref<1x1024xf32, #tpu.memory_space<vmem>>, %arg12: memref<1x1024xf32, #tpu.memory_space<vmem>>, %arg13: memref<1x1x1024xf32, #tpu.memory_space<vmem>>) attributes {dimension_semantics = [#tpu.dimension_semantics<parallel>, #tpu.dimension_semantics<parallel>, #tpu.dimension_semantics<arbitrary>], iteration_bounds = array<i64: 2, 1, 1>, scalar_prefetch = 0 : i64, scratch_operands = 0 : i64, tpu.core_type = #tpu.core_type<tc>, window_params = [{transform_indices = @transform_0, window_bounds = array<i64: 1, 128, 3>}, {pipeline_mode = #tpu.pipeline_mode<synchronous>, transform_indices = @transform_1, window_bounds = array<i64: 3, 64>}, {pipeline_mode = #tpu.pipeline_mode<synchronous>, transform_indices = @transform_2, window_bounds = array<i64: 1, 64>}, {pipeline_mode = #tpu.pipeline_mode<synchronous>, transform_indices = @transform_3, window_bounds = array<i64: 1, 64>}, {pipeline_mode = #tpu.pipeline_mode<synchronous>, transform_indices = @transform_4, window_bounds = array<i64: 64, 128>}, {pipeline_mode = #tpu.pipeline_mode<synchronous>, transform_indices = @transform_5, window_bounds = array<i64: 1, 128>}, {pipeline_mode = #tpu.pipeline_mode<synchronous>, transform_indices = @transform_6, window_bounds = array<i64: 1, 128>}, {transform_indices = @transform_7, window_bounds = array<i64: 128, 1024>}, {transform_indices = @transform_8, window_bounds = array<i64: 1, 1024>}, {transform_indices = @transform_9, window_bounds = array<i64: 1, 1024>}, {transform_indices = @transform_10, window_bounds = array<i64: 1, 1, 1024>}]} {
    %c0_i32 = arith.constant 0 : i32
    %0 = arith.cmpi eq, %arg2, %c0_i32 : i32
    %c0_i32_0 = arith.constant 0 : i32
    %1 = arith.cmpi eq, %arg2, %c0_i32_0 : i32
    %c0 = arith.constant 0 : index
    %c0_1 = arith.constant 0 : index
    %c0_2 = arith.constant 0 : index
    %2 = vector.load %arg3[%c0, %c0_1, %c0_2] : memref<1x128x3xf32, #tpu.memory_space<vmem>>, vector<1x128x3xf32>
    %3 = vector.shape_cast %2 : vector<1x128x3xf32> to vector<128x3xf32>
    %4 = arith.truncf %3 : vector<128x3xf32> to vector<128x3xbf16>
    %c0_3 = arith.constant 0 : index
    %c0_4 = arith.constant 0 : index
    %5 = vector.load %arg4[%c0_3, %c0_4] : memref<3x64xbf16, #tpu.memory_space<vmem>>, vector<3x64xbf16>
    %cst = arith.constant dense<0.000000e+00> : vector<128x64xf32>
    %6 = tpu.matmul %4, %5, %cst {dimension_numbers = #tpu.dot_dimension_numbers<[1], [0], [0], [1], [0, 0, 1, 1], [], []>} : vector<128x3xbf16>, vector<3x64xbf16>, vector<128x64xf32> -> vector<128x64xf32>
    %c0_5 = arith.constant 0 : index
    %c0_6 = arith.constant 0 : index
    %7 = vector.load %arg5[%c0_5, %c0_6] : memref<1x64xf32, #tpu.memory_space<vmem>>, vector<1x64xf32>
    %8 = vector.broadcast %7 : vector<1x64xf32> to vector<128x64xf32>
    %9 = arith.mulf %6, %8 : vector<128x64xf32>
    %c0_7 = arith.constant 0 : index
    %c0_8 = arith.constant 0 : index
    %10 = vector.load %arg6[%c0_7, %c0_8] : memref<1x64xf32, #tpu.memory_space<vmem>>, vector<1x64xf32>
    %11 = vector.broadcast %10 : vector<1x64xf32> to vector<128x64xf32>
    %12 = arith.addf %9, %11 : vector<128x64xf32>
    %cst_9 = arith.constant 0.000000e+00 : f32
    %13 = vector.broadcast %cst_9 : f32 to vector<128x64xf32>
    %14 = arith.maximumf %12, %13 : vector<128x64xf32>
    %15 = arith.truncf %14 : vector<128x64xf32> to vector<128x64xbf16>
    %c0_10 = arith.constant 0 : index
    %c0_11 = arith.constant 0 : index
    %16 = vector.load %arg7[%c0_10, %c0_11] : memref<64x128xbf16, #tpu.memory_space<vmem>>, vector<64x128xbf16>
    %cst_12 = arith.constant dense<0.000000e+00> : vector<128x128xf32>
    %17 = tpu.matmul %15, %16, %cst_12 {dimension_numbers = #tpu.dot_dimension_numbers<[1], [0], [0], [1], [0, 0, 1, 1], [], []>} : vector<128x64xbf16>, vector<64x128xbf16>, vector<128x128xf32> -> vector<128x128xf32>
    %c0_13 = arith.constant 0 : index
    %c0_14 = arith.constant 0 : index
    %18 = vector.load %arg8[%c0_13, %c0_14] : memref<1x128xf32, #tpu.memory_space<vmem>>, vector<1x128xf32>
    %19 = vector.broadcast %18 : vector<1x128xf32> to vector<128x128xf32>
    %20 = arith.mulf %17, %19 : vector<128x128xf32>
    %c0_15 = arith.constant 0 : index
    %c0_16 = arith.constant 0 : index
    %21 = vector.load %arg9[%c0_15, %c0_16] : memref<1x128xf32, #tpu.memory_space<vmem>>, vector<1x128xf32>
    %22 = vector.broadcast %21 : vector<1x128xf32> to vector<128x128xf32>
    %23 = arith.addf %20, %22 : vector<128x128xf32>
    %cst_17 = arith.constant 0.000000e+00 : f32
    %24 = vector.broadcast %cst_17 : f32 to vector<128x128xf32>
    %25 = arith.maximumf %23, %24 : vector<128x128xf32>
    %26 = arith.truncf %25 : vector<128x128xf32> to vector<128x128xbf16>
    %c0_18 = arith.constant 0 : index
    %c0_19 = arith.constant 0 : index
    %27 = vector.load %arg10[%c0_18, %c0_19] : memref<128x1024xbf16, #tpu.memory_space<vmem>>, vector<128x256xbf16>
    %cst_20 = arith.constant dense<0.000000e+00> : vector<128x256xf32>
    %28 = tpu.matmul %26, %27, %cst_20 {dimension_numbers = #tpu.dot_dimension_numbers<[1], [0], [0], [1], [0, 0, 1, 1], [], []>} : vector<128x128xbf16>, vector<128x256xbf16>, vector<128x256xf32> -> vector<128x256xf32>
    %cst_21 = arith.constant dense<0xFF800000> : vector<256xf32>
    %29 = vector.multi_reduction <maximumf>, %28, %cst_21 [0] : vector<128x256xf32> to vector<256xf32>
    %30 = vector.shape_cast %29 : vector<256xf32> to vector<1x256xf32>
    %31 = arith.extui %0 : i1 to i32
    %c0_i32_22 = arith.constant 0 : i32
    %32 = arith.cmpi ne, %31, %c0_i32_22 : i32
    scf.if %32 {
      %c0_44 = arith.constant 0 : index
      %c0_45 = arith.constant 0 : index
      %c0_46 = arith.constant 0 : index
      %65 = vector.load %arg13[%c0_44, %c0_45, %c0_46] : memref<1x1x1024xf32, #tpu.memory_space<vmem>>, vector<1x1x256xf32>
      %66 = vector.shape_cast %65 : vector<1x1x256xf32> to vector<1x256xf32>
      %67 = vector.shape_cast %30 : vector<1x256xf32> to vector<1x1x256xf32>
      tpu.vector_store %arg13[%c0_44, %c0_45, %c0_46], %67 {strides = array<i32>} : memref<1x1x1024xf32, #tpu.memory_space<vmem>>, vector<1x1x256xf32>,
    } else {
    }
    %c0_i32_23 = arith.constant 0 : i32
    %33 = arith.cmpi ne, %arg2, %c0_i32_23 : i32
    %34 = arith.extui %33 : i1 to i32
    %c0_i32_24 = arith.constant 0 : i32
    %35 = arith.cmpi ne, %34, %c0_i32_24 : i32
    scf.if %35 {
      %c0_44 = arith.constant 0 : index
      %c0_45 = arith.constant 0 : index
      %c0_46 = arith.constant 0 : index
      %65 = vector.load %arg13[%c0_44, %c0_45, %c0_46] : memref<1x1x1024xf32, #tpu.memory_space<vmem>>, vector<1x1x256xf32>
      %66 = vector.shape_cast %65 : vector<1x1x256xf32> to vector<1x256xf32>
      %67 = arith.maximumf %66, %30 : vector<1x256xf32>
      %c0_47 = arith.constant 0 : index
      %c0_48 = arith.constant 0 : index
      %c0_49 = arith.constant 0 : index
      %68 = vector.load %arg13[%c0_47, %c0_48, %c0_49] : memref<1x1x1024xf32, #tpu.memory_space<vmem>>, vector<1x1x256xf32>
      %69 = vector.shape_cast %68 : vector<1x1x256xf32> to vector<1x256xf32>
      %70 = vector.shape_cast %67 : vector<1x256xf32> to vector<1x1x256xf32>
      tpu.vector_store %arg13[%c0_47, %c0_48, %c0_49], %70 {strides = array<i32>} : memref<1x1x1024xf32, #tpu.memory_space<vmem>>, vector<1x1x256xf32>,
    } else {
    }
    %c0_25 = arith.constant 0 : index
    %c256 = arith.constant 256 : index
    %36 = vector.load %arg10[%c0_25, %c256] : memref<128x1024xbf16, #tpu.memory_space<vmem>>, vector<128x256xbf16>
    %cst_26 = arith.constant dense<0.000000e+00> : vector<128x256xf32>
    %37 = tpu.matmul %26, %36, %cst_26 {dimension_numbers = #tpu.dot_dimension_numbers<[1], [0], [0], [1], [0, 0, 1, 1], [], []>} : vector<128x128xbf16>, vector<128x256xbf16>, vector<128x256xf32> -> vector<128x256xf32>
    %cst_27 = arith.constant dense<0xFF800000> : vector<256xf32>
    %38 = vector.multi_reduction <maximumf>, %37, %cst_27 [0] : vector<128x256xf32> to vector<256xf32>
    %39 = vector.shape_cast %38 : vector<256xf32> to vector<1x256xf32>
    %40 = arith.extui %0 : i1 to i32
    %c0_i32_28 = arith.constant 0 : i32
    %41 = arith.cmpi ne, %40, %c0_i32_28 : i32
    scf.if %41 {
      %c0_44 = arith.constant 0 : index
      %c0_45 = arith.constant 0 : index
      %c256_46 = arith.constant 256 : index
      %65 = vector.load %arg13[%c0_44, %c0_45, %c256_46] : memref<1x1x1024xf32, #tpu.memory_space<vmem>>, vector<1x1x256xf32>
      %66 = vector.shape_cast %65 : vector<1x1x256xf32> to vector<1x256xf32>
      %67 = vector.shape_cast %39 : vector<1x256xf32> to vector<1x1x256xf32>
      tpu.vector_store %arg13[%c0_44, %c0_45, %c256_46], %67 {strides = array<i32>} : memref<1x1x1024xf32, #tpu.memory_space<vmem>>, vector<1x1x256xf32>,
    } else {
    }
    %c0_i32_29 = arith.constant 0 : i32
    %42 = arith.cmpi ne, %arg2, %c0_i32_29 : i32
    %43 = arith.extui %42 : i1 to i32
    %c0_i32_30 = arith.constant 0 : i32
    %44 = arith.cmpi ne, %43, %c0_i32_30 : i32
    scf.if %44 {
      %c0_44 = arith.constant 0 : index
      %c0_45 = arith.constant 0 : index
      %c256_46 = arith.constant 256 : index
      %65 = vector.load %arg13[%c0_44, %c0_45, %c256_46] : memref<1x1x1024xf32, #tpu.memory_space<vmem>>, vector<1x1x256xf32>
      %66 = vector.shape_cast %65 : vector<1x1x256xf32> to vector<1x256xf32>
      %67 = arith.maximumf %66, %39 : vector<1x256xf32>
      %c0_47 = arith.constant 0 : index
      %c0_48 = arith.constant 0 : index
      %c256_49 = arith.constant 256 : index
      %68 = vector.load %arg13[%c0_47, %c0_48, %c256_49] : memref<1x1x1024xf32, #tpu.memory_space<vmem>>, vector<1x1x256xf32>
      %69 = vector.shape_cast %68 : vector<1x1x256xf32> to vector<1x256xf32>
      %70 = vector.shape_cast %67 : vector<1x256xf32> to vector<1x1x256xf32>
      tpu.vector_store %arg13[%c0_47, %c0_48, %c256_49], %70 {strides = array<i32>} : memref<1x1x1024xf32, #tpu.memory_space<vmem>>, vector<1x1x256xf32>,
    } else {
    }
    %c0_31 = arith.constant 0 : index
    %c512 = arith.constant 512 : index
    %45 = vector.load %arg10[%c0_31, %c512] : memref<128x1024xbf16, #tpu.memory_space<vmem>>, vector<128x256xbf16>
    %cst_32 = arith.constant dense<0.000000e+00> : vector<128x256xf32>
    %46 = tpu.matmul %26, %45, %cst_32 {dimension_numbers = #tpu.dot_dimension_numbers<[1], [0], [0], [1], [0, 0, 1, 1], [], []>} : vector<128x128xbf16>, vector<128x256xbf16>, vector<128x256xf32> -> vector<128x256xf32>
    %cst_33 = arith.constant dense<0xFF800000> : vector<256xf32>
    %47 = vector.multi_reduction <maximumf>, %46, %cst_33 [0] : vector<128x256xf32> to vector<256xf32>
    %48 = vector.shape_cast %47 : vector<256xf32> to vector<1x256xf32>
    %49 = arith.extui %0 : i1 to i32
    %c0_i32_34 = arith.constant 0 : i32
    %50 = arith.cmpi ne, %49, %c0_i32_34 : i32
    scf.if %50 {
      %c0_44 = arith.constant 0 : index
      %c0_45 = arith.constant 0 : index
      %c512_46 = arith.constant 512 : index
      %65 = vector.load %arg13[%c0_44, %c0_45, %c512_46] : memref<1x1x1024xf32, #tpu.memory_space<vmem>>, vector<1x1x256xf32>
      %66 = vector.shape_cast %65 : vector<1x1x256xf32> to vector<1x256xf32>
      %67 = vector.shape_cast %48 : vector<1x256xf32> to vector<1x1x256xf32>
      tpu.vector_store %arg13[%c0_44, %c0_45, %c512_46], %67 {strides = array<i32>} : memref<1x1x1024xf32, #tpu.memory_space<vmem>>, vector<1x1x256xf32>,
    } else {
    }
    %c0_i32_35 = arith.constant 0 : i32
    %51 = arith.cmpi ne, %arg2, %c0_i32_35 : i32
    %52 = arith.extui %51 : i1 to i32
    %c0_i32_36 = arith.constant 0 : i32
    %53 = arith.cmpi ne, %52, %c0_i32_36 : i32
    scf.if %53 {
      %c0_44 = arith.constant 0 : index
      %c0_45 = arith.constant 0 : index
      %c512_46 = arith.constant 512 : index
      %65 = vector.load %arg13[%c0_44, %c0_45, %c512_46] : memref<1x1x1024xf32, #tpu.memory_space<vmem>>, vector<1x1x256xf32>
      %66 = vector.shape_cast %65 : vector<1x1x256xf32> to vector<1x256xf32>
      %67 = arith.maximumf %66, %48 : vector<1x256xf32>
      %c0_47 = arith.constant 0 : index
      %c0_48 = arith.constant 0 : index
      %c512_49 = arith.constant 512 : index
      %68 = vector.load %arg13[%c0_47, %c0_48, %c512_49] : memref<1x1x1024xf32, #tpu.memory_space<vmem>>, vector<1x1x256xf32>
      %69 = vector.shape_cast %68 : vector<1x1x256xf32> to vector<1x256xf32>
      %70 = vector.shape_cast %67 : vector<1x256xf32> to vector<1x1x256xf32>
      tpu.vector_store %arg13[%c0_47, %c0_48, %c512_49], %70 {strides = array<i32>} : memref<1x1x1024xf32, #tpu.memory_space<vmem>>, vector<1x1x256xf32>,
    } else {
    }
    %c0_37 = arith.constant 0 : index
    %c768 = arith.constant 768 : index
    %54 = vector.load %arg10[%c0_37, %c768] : memref<128x1024xbf16, #tpu.memory_space<vmem>>, vector<128x256xbf16>
    %cst_38 = arith.constant dense<0.000000e+00> : vector<128x256xf32>
    %55 = tpu.matmul %26, %54, %cst_38 {dimension_numbers = #tpu.dot_dimension_numbers<[1], [0], [0], [1], [0, 0, 1, 1], [], []>} : vector<128x128xbf16>, vector<128x256xbf16>, vector<128x256xf32> -> vector<128x256xf32>
    %cst_39 = arith.constant dense<0xFF800000> : vector<256xf32>
    %56 = vector.multi_reduction <maximumf>, %55, %cst_39 [0] : vector<128x256xf32> to vector<256xf32>
    %57 = vector.shape_cast %56 : vector<256xf32> to vector<1x256xf32>
    %58 = arith.extui %0 : i1 to i32
    %c0_i32_40 = arith.constant 0 : i32
    %59 = arith.cmpi ne, %58, %c0_i32_40 : i32
    scf.if %59 {
      %c0_44 = arith.constant 0 : index
      %c0_45 = arith.constant 0 : index
      %c768_46 = arith.constant 768 : index
      %65 = vector.load %arg13[%c0_44, %c0_45, %c768_46] : memref<1x1x1024xf32, #tpu.memory_space<vmem>>, vector<1x1x256xf32>
      %66 = vector.shape_cast %65 : vector<1x1x256xf32> to vector<1x256xf32>
      %67 = vector.shape_cast %57 : vector<1x256xf32> to vector<1x1x256xf32>
      tpu.vector_store %arg13[%c0_44, %c0_45, %c768_46], %67 {strides = array<i32>} : memref<1x1x1024xf32, #tpu.memory_space<vmem>>, vector<1x1x256xf32>,
    } else {
    }
    %c0_i32_41 = arith.constant 0 : i32
    %60 = arith.cmpi ne, %arg2, %c0_i32_41 : i32
    %61 = arith.extui %60 : i1 to i32
    %c0_i32_42 = arith.constant 0 : i32
    %62 = arith.cmpi ne, %61, %c0_i32_42 : i32
    scf.if %62 {
      %c0_44 = arith.constant 0 : index
      %c0_45 = arith.constant 0 : index
      %c768_46 = arith.constant 768 : index
      %65 = vector.load %arg13[%c0_44, %c0_45, %c768_46] : memref<1x1x1024xf32, #tpu.memory_space<vmem>>, vector<1x1x256xf32>
      %66 = vector.shape_cast %65 : vector<1x1x256xf32> to vector<1x256xf32>
      %67 = arith.maximumf %66, %57 : vector<1x256xf32>
      %c0_47 = arith.constant 0 : index
      %c0_48 = arith.constant 0 : index
      %c768_49 = arith.constant 768 : index
      %68 = vector.load %arg13[%c0_47, %c0_48, %c768_49] : memref<1x1x1024xf32, #tpu.memory_space<vmem>>, vector<1x1x256xf32>
      %69 = vector.shape_cast %68 : vector<1x1x256xf32> to vector<1x256xf32>
      %70 = vector.shape_cast %67 : vector<1x256xf32> to vector<1x1x256xf32>
      tpu.vector_store %arg13[%c0_47, %c0_48, %c768_49], %70 {strides = array<i32>} : memref<1x1x1024xf32, #tpu.memory_space<vmem>>, vector<1x1x256xf32>,
    } else {
    }
    %63 = arith.extui %1 : i1 to i32
    %c0_i32_43 = arith.constant 0 : i32
    %64 = arith.cmpi ne, %63, %c0_i32_43 : i32
    scf.if %64 {
      %c0_44 = arith.constant 0 : index
      %c0_45 = arith.constant 0 : index
      %c0_46 = arith.constant 0 : index
      %65 = vector.load %arg13[%c0_44, %c0_45, %c0_46] : memref<1x1x1024xf32, #tpu.memory_space<vmem>>, vector<1x1x1024xf32>
      %66 = vector.shape_cast %65 : vector<1x1x1024xf32> to vector<1x1024xf32>
      %c0_47 = arith.constant 0 : index
      %c0_48 = arith.constant 0 : index
      %67 = vector.load %arg11[%c0_47, %c0_48] : memref<1x1024xf32, #tpu.memory_space<vmem>>, vector<1x1024xf32>
      %68 = arith.mulf %66, %67 : vector<1x1024xf32>
      %c0_49 = arith.constant 0 : index
      %c0_50 = arith.constant 0 : index
      %69 = vector.load %arg12[%c0_49, %c0_50] : memref<1x1024xf32, #tpu.memory_space<vmem>>, vector<1x1024xf32>
      %70 = arith.addf %68, %69 : vector<1x1024xf32>
      %cst_51 = arith.constant 0.000000e+00 : f32
      %71 = vector.broadcast %cst_51 : f32 to vector<1x1024xf32>
      %72 = arith.maximumf %70, %71 : vector<1x1024xf32>
      %c0_52 = arith.constant 0 : index
      %c0_53 = arith.constant 0 : index
      %c0_54 = arith.constant 0 : index
      %73 = vector.load %arg13[%c0_52, %c0_53, %c0_54] : memref<1x1x1024xf32, #tpu.memory_space<vmem>>, vector<1x1x1024xf32>
      %74 = vector.shape_cast %73 : vector<1x1x1024xf32> to vector<1x1024xf32>
      %75 = vector.shape_cast %72 : vector<1x1024xf32> to vector<1x1x1024xf32>
      tpu.vector_store %arg13[%c0_52, %c0_53, %c0_54], %75 {strides = array<i32>} : memref<1x1x1024xf32, #tpu.memory_space<vmem>>, vector<1x1x1024xf32>,
    } else {
    }
    return
  }
  func.func @transform_0(%arg0: i32, %arg1: i32, %arg2: i32) -> (i32, i32, i32) {
    %c0_i32 = arith.constant 0 : i32
    %c0_i32_0 = arith.constant 0 : i32
    return %arg0, %arg2, %c0_i32 : i32, i32, i32
  }
  func.func @transform_1(%arg0: i32, %arg1: i32, %arg2: i32) -> (i32, i32) {
    %c0_i32 = arith.constant 0 : i32
    %c0_i32_0 = arith.constant 0 : i32
    %c0_i32_1 = arith.constant 0 : i32
    return %c0_i32, %c0_i32_0 : i32, i32
  }
  func.func @transform_2(%arg0: i32, %arg1: i32, %arg2: i32) -> (i32, i32) {
    %c0_i32 = arith.constant 0 : i32
    %c0_i32_0 = arith.constant 0 : i32
    %c0_i32_1 = arith.constant 0 : i32
    return %c0_i32, %c0_i32_0 : i32, i32
  }
  func.func @transform_3(%arg0: i32, %arg1: i32, %arg2: i32) -> (i32, i32) {
    %c0_i32 = arith.constant 0 : i32
    %c0_i32_0 = arith.constant 0 : i32
    %c0_i32_1 = arith.constant 0 : i32
    return %c0_i32, %c0_i32_0 : i32, i32
  }
  func.func @transform_4(%arg0: i32, %arg1: i32, %arg2: i32) -> (i32, i32) {
    %c0_i32 = arith.constant 0 : i32
    %c0_i32_0 = arith.constant 0 : i32
    %c0_i32_1 = arith.constant 0 : i32
    return %c0_i32, %c0_i32_0 : i32, i32
  }
  func.func @transform_5(%arg0: i32, %arg1: i32, %arg2: i32) -> (i32, i32) {
    %c0_i32 = arith.constant 0 : i32
    %c0_i32_0 = arith.constant 0 : i32
    %c0_i32_1 = arith.constant 0 : i32
    return %c0_i32, %c0_i32_0 : i32, i32
  }
  func.func @transform_6(%arg0: i32, %arg1: i32, %arg2: i32) -> (i32, i32) {
    %c0_i32 = arith.constant 0 : i32
    %c0_i32_0 = arith.constant 0 : i32
    %c0_i32_1 = arith.constant 0 : i32
    return %c0_i32, %c0_i32_0 : i32, i32
  }
  func.func @transform_7(%arg0: i32, %arg1: i32, %arg2: i32) -> (i32, i32) {
    %c0_i32 = arith.constant 0 : i32
    %c0_i32_0 = arith.constant 0 : i32
    return %c0_i32, %arg1 : i32, i32
  }
  func.func @transform_8(%arg0: i32, %arg1: i32, %arg2: i32) -> (i32, i32) {
    %c0_i32 = arith.constant 0 : i32
    %c0_i32_0 = arith.constant 0 : i32
    return %c0_i32, %arg1 : i32, i32
  }
  func.func @transform_9(%arg0: i32, %arg1: i32, %arg2: i32) -> (i32, i32) {
    %c0_i32 = arith.constant 0 : i32
    %c0_i32_0 = arith.constant 0 : i32
    return %c0_i32, %arg1 : i32, i32
  }
  func.func @transform_10(%arg0: i32, %arg1: i32, %arg2: i32) -> (i32, i32, i32) {
    %c0_i32 = arith.constant 0 : i32
    %c0_i32_0 = arith.constant 0 : i32
    return %arg0, %c0_i32, %arg1 : i32, i32, i32
  }
}

module attributes {stable_mosaic.version = 11 : i64} {
  func.func @_fc_head_kernel(%arg0: i32, %arg1: memref<2x1024xf32, #tpu.memory_space<vmem>>, %arg2: memref<1024x512xbf16, #tpu.memory_space<vmem>>, %arg3: memref<1x512xf32, #tpu.memory_space<vmem>>, %arg4: memref<1x512xf32, #tpu.memory_space<vmem>>, %arg5: memref<512x256xbf16, #tpu.memory_space<vmem>>, %arg6: memref<1x256xf32, #tpu.memory_space<vmem>>, %arg7: memref<1x256xf32, #tpu.memory_space<vmem>>, %arg8: memref<256x9xbf16, #tpu.memory_space<vmem>>, %arg9: memref<1x9xf32, #tpu.memory_space<vmem>>, %arg10: memref<2x9xf32, #tpu.memory_space<vmem>>) attributes {dimension_semantics = [#tpu.dimension_semantics<arbitrary>], iteration_bounds = array<i64: 1>, scalar_prefetch = 0 : i64, scratch_operands = 0 : i64, tpu.core_type = #tpu.core_type<tc>, window_params = [{pipeline_mode = #tpu.pipeline_mode<synchronous>, transform_indices = @transform_0, window_bounds = array<i64: 2, 1024>}, {pipeline_mode = #tpu.pipeline_mode<synchronous>, transform_indices = @transform_1, window_bounds = array<i64: 1024, 512>}, {pipeline_mode = #tpu.pipeline_mode<synchronous>, transform_indices = @transform_2, window_bounds = array<i64: 1, 512>}, {pipeline_mode = #tpu.pipeline_mode<synchronous>, transform_indices = @transform_3, window_bounds = array<i64: 1, 512>}, {pipeline_mode = #tpu.pipeline_mode<synchronous>, transform_indices = @transform_4, window_bounds = array<i64: 512, 256>}, {pipeline_mode = #tpu.pipeline_mode<synchronous>, transform_indices = @transform_5, window_bounds = array<i64: 1, 256>}, {pipeline_mode = #tpu.pipeline_mode<synchronous>, transform_indices = @transform_6, window_bounds = array<i64: 1, 256>}, {pipeline_mode = #tpu.pipeline_mode<synchronous>, transform_indices = @transform_7, window_bounds = array<i64: 256, 9>}, {pipeline_mode = #tpu.pipeline_mode<synchronous>, transform_indices = @transform_8, window_bounds = array<i64: 1, 9>}, {pipeline_mode = #tpu.pipeline_mode<synchronous>, transform_indices = @transform_9, window_bounds = array<i64: 2, 9>}]} {
    %c0 = arith.constant 0 : index
    %c0_0 = arith.constant 0 : index
    %0 = vector.load %arg1[%c0, %c0_0] : memref<2x1024xf32, #tpu.memory_space<vmem>>, vector<2x1024xf32>
    %1 = arith.truncf %0 : vector<2x1024xf32> to vector<2x1024xbf16>
    %c0_1 = arith.constant 0 : index
    %c0_2 = arith.constant 0 : index
    %2 = vector.load %arg2[%c0_1, %c0_2] : memref<1024x512xbf16, #tpu.memory_space<vmem>>, vector<1024x512xbf16>
    %cst = arith.constant dense<0.000000e+00> : vector<2x512xf32>
    %3 = tpu.matmul %1, %2, %cst {dimension_numbers = #tpu.dot_dimension_numbers<[1], [0], [0], [1], [0, 0, 1, 1], [], []>} : vector<2x1024xbf16>, vector<1024x512xbf16>, vector<2x512xf32> -> vector<2x512xf32>
    %c0_3 = arith.constant 0 : index
    %c0_4 = arith.constant 0 : index
    %4 = vector.load %arg3[%c0_3, %c0_4] : memref<1x512xf32, #tpu.memory_space<vmem>>, vector<1x512xf32>
    %5 = vector.broadcast %4 : vector<1x512xf32> to vector<2x512xf32>
    %6 = arith.mulf %3, %5 : vector<2x512xf32>
    %c0_5 = arith.constant 0 : index
    %c0_6 = arith.constant 0 : index
    %7 = vector.load %arg4[%c0_5, %c0_6] : memref<1x512xf32, #tpu.memory_space<vmem>>, vector<1x512xf32>
    %8 = vector.broadcast %7 : vector<1x512xf32> to vector<2x512xf32>
    %9 = arith.addf %6, %8 : vector<2x512xf32>
    %cst_7 = arith.constant 0.000000e+00 : f32
    %10 = vector.broadcast %cst_7 : f32 to vector<2x512xf32>
    %11 = arith.maximumf %9, %10 : vector<2x512xf32>
    %12 = arith.truncf %11 : vector<2x512xf32> to vector<2x512xbf16>
    %c0_8 = arith.constant 0 : index
    %c0_9 = arith.constant 0 : index
    %13 = vector.load %arg5[%c0_8, %c0_9] : memref<512x256xbf16, #tpu.memory_space<vmem>>, vector<512x256xbf16>
    %cst_10 = arith.constant dense<0.000000e+00> : vector<2x256xf32>
    %14 = tpu.matmul %12, %13, %cst_10 {dimension_numbers = #tpu.dot_dimension_numbers<[1], [0], [0], [1], [0, 0, 1, 1], [], []>} : vector<2x512xbf16>, vector<512x256xbf16>, vector<2x256xf32> -> vector<2x256xf32>
    %c0_11 = arith.constant 0 : index
    %c0_12 = arith.constant 0 : index
    %15 = vector.load %arg6[%c0_11, %c0_12] : memref<1x256xf32, #tpu.memory_space<vmem>>, vector<1x256xf32>
    %16 = vector.broadcast %15 : vector<1x256xf32> to vector<2x256xf32>
    %17 = arith.mulf %14, %16 : vector<2x256xf32>
    %c0_13 = arith.constant 0 : index
    %c0_14 = arith.constant 0 : index
    %18 = vector.load %arg7[%c0_13, %c0_14] : memref<1x256xf32, #tpu.memory_space<vmem>>, vector<1x256xf32>
    %19 = vector.broadcast %18 : vector<1x256xf32> to vector<2x256xf32>
    %20 = arith.addf %17, %19 : vector<2x256xf32>
    %cst_15 = arith.constant 0.000000e+00 : f32
    %21 = vector.broadcast %cst_15 : f32 to vector<2x256xf32>
    %22 = arith.maximumf %20, %21 : vector<2x256xf32>
    %23 = arith.truncf %22 : vector<2x256xf32> to vector<2x256xbf16>
    %c0_16 = arith.constant 0 : index
    %c0_17 = arith.constant 0 : index
    %24 = vector.load %arg8[%c0_16, %c0_17] : memref<256x9xbf16, #tpu.memory_space<vmem>>, vector<256x9xbf16>
    %cst_18 = arith.constant dense<0.000000e+00> : vector<2x9xf32>
    %25 = tpu.matmul %23, %24, %cst_18 {dimension_numbers = #tpu.dot_dimension_numbers<[1], [0], [0], [1], [0, 0, 1, 1], [], []>} : vector<2x256xbf16>, vector<256x9xbf16>, vector<2x9xf32> -> vector<2x9xf32>
    %c0_19 = arith.constant 0 : index
    %c0_20 = arith.constant 0 : index
    %26 = vector.load %arg9[%c0_19, %c0_20] : memref<1x9xf32, #tpu.memory_space<vmem>>, vector<1x9xf32>
    %27 = vector.broadcast %26 : vector<1x9xf32> to vector<2x9xf32>
    %28 = arith.addf %25, %27 : vector<2x9xf32>
    %c0_21 = arith.constant 0 : index
    %c0_22 = arith.constant 0 : index
    %29 = vector.load %arg10[%c0_21, %c0_22] : memref<2x9xf32, #tpu.memory_space<vmem>>, vector<2x9xf32>
    tpu.vector_store %arg10[%c0_21, %c0_22], %28 {strides = array<i32>} : memref<2x9xf32, #tpu.memory_space<vmem>>, vector<2x9xf32>,
    return
  }
  func.func @transform_0(%arg0: i32) -> (i32, i32) {
    %c0_i32 = arith.constant 0 : i32
    %c0_i32_0 = arith.constant 0 : i32
    %c0_i32_1 = arith.constant 0 : i32
    return %c0_i32, %c0_i32_0 : i32, i32
  }
  func.func @transform_1(%arg0: i32) -> (i32, i32) {
    %c0_i32 = arith.constant 0 : i32
    %c0_i32_0 = arith.constant 0 : i32
    %c0_i32_1 = arith.constant 0 : i32
    return %c0_i32, %c0_i32_0 : i32, i32
  }
  func.func @transform_2(%arg0: i32) -> (i32, i32) {
    %c0_i32 = arith.constant 0 : i32
    %c0_i32_0 = arith.constant 0 : i32
    %c0_i32_1 = arith.constant 0 : i32
    return %c0_i32, %c0_i32_0 : i32, i32
  }
  func.func @transform_3(%arg0: i32) -> (i32, i32) {
    %c0_i32 = arith.constant 0 : i32
    %c0_i32_0 = arith.constant 0 : i32
    %c0_i32_1 = arith.constant 0 : i32
    return %c0_i32, %c0_i32_0 : i32, i32
  }
  func.func @transform_4(%arg0: i32) -> (i32, i32) {
    %c0_i32 = arith.constant 0 : i32
    %c0_i32_0 = arith.constant 0 : i32
    %c0_i32_1 = arith.constant 0 : i32
    return %c0_i32, %c0_i32_0 : i32, i32
  }
  func.func @transform_5(%arg0: i32) -> (i32, i32) {
    %c0_i32 = arith.constant 0 : i32
    %c0_i32_0 = arith.constant 0 : i32
    %c0_i32_1 = arith.constant 0 : i32
    return %c0_i32, %c0_i32_0 : i32, i32
  }
  func.func @transform_6(%arg0: i32) -> (i32, i32) {
    %c0_i32 = arith.constant 0 : i32
    %c0_i32_0 = arith.constant 0 : i32
    %c0_i32_1 = arith.constant 0 : i32
    return %c0_i32, %c0_i32_0 : i32, i32
  }
  func.func @transform_7(%arg0: i32) -> (i32, i32) {
    %c0_i32 = arith.constant 0 : i32
    %c0_i32_0 = arith.constant 0 : i32
    %c0_i32_1 = arith.constant 0 : i32
    return %c0_i32, %c0_i32_0 : i32, i32
  }
  func.func @transform_8(%arg0: i32) -> (i32, i32) {
    %c0_i32 = arith.constant 0 : i32
    %c0_i32_0 = arith.constant 0 : i32
    %c0_i32_1 = arith.constant 0 : i32
    return %c0_i32, %c0_i32_0 : i32, i32
  }
  func.func @transform_9(%arg0: i32) -> (i32, i32) {
    %c0_i32 = arith.constant 0 : i32
    %c0_i32_0 = arith.constant 0 : i32
    %c0_i32_1 = arith.constant 0 : i32
    return %c0_i32, %c0_i32_0 : i32, i32
  }
}

module attributes {stable_mosaic.version = 11 : i64} {
  func.func @_point_branch_kernel(%arg0: i32, %arg1: i32, %arg2: i32, %arg3: memref<1x128x3xf32, #tpu.memory_space<vmem>>, %arg4: memref<1x3x64xbf16, #tpu.memory_space<vmem>>, %arg5: memref<1x64xf32, #tpu.memory_space<vmem>>, %arg6: memref<1x64xf32, #tpu.memory_space<vmem>>, %arg7: memref<64x128xbf16, #tpu.memory_space<vmem>>, %arg8: memref<1x128xf32, #tpu.memory_space<vmem>>, %arg9: memref<1x128xf32, #tpu.memory_space<vmem>>, %arg10: memref<128x1024xbf16, #tpu.memory_space<vmem>>, %arg11: memref<1x1024xf32, #tpu.memory_space<vmem>>, %arg12: memref<1x1024xf32, #tpu.memory_space<vmem>>, %arg13: memref<1x1x1024xf32, #tpu.memory_space<vmem>>) attributes {dimension_semantics = [#tpu.dimension_semantics<parallel>, #tpu.dimension_semantics<parallel>, #tpu.dimension_semantics<arbitrary>], iteration_bounds = array<i64: 2, 1, 1>, scalar_prefetch = 0 : i64, scratch_operands = 0 : i64, tpu.core_type = #tpu.core_type<tc>, window_params = [{transform_indices = @transform_0, window_bounds = array<i64: 1, 128, 3>}, {transform_indices = @transform_1, window_bounds = array<i64: 1, 3, 64>}, {pipeline_mode = #tpu.pipeline_mode<synchronous>, transform_indices = @transform_2, window_bounds = array<i64: 1, 64>}, {pipeline_mode = #tpu.pipeline_mode<synchronous>, transform_indices = @transform_3, window_bounds = array<i64: 1, 64>}, {pipeline_mode = #tpu.pipeline_mode<synchronous>, transform_indices = @transform_4, window_bounds = array<i64: 64, 128>}, {pipeline_mode = #tpu.pipeline_mode<synchronous>, transform_indices = @transform_5, window_bounds = array<i64: 1, 128>}, {pipeline_mode = #tpu.pipeline_mode<synchronous>, transform_indices = @transform_6, window_bounds = array<i64: 1, 128>}, {transform_indices = @transform_7, window_bounds = array<i64: 128, 1024>}, {transform_indices = @transform_8, window_bounds = array<i64: 1, 1024>}, {transform_indices = @transform_9, window_bounds = array<i64: 1, 1024>}, {transform_indices = @transform_10, window_bounds = array<i64: 1, 1, 1024>}]} {
    %c0_i32 = arith.constant 0 : i32
    %0 = arith.cmpi eq, %arg2, %c0_i32 : i32
    %c0_i32_0 = arith.constant 0 : i32
    %1 = arith.cmpi eq, %arg2, %c0_i32_0 : i32
    %c0 = arith.constant 0 : index
    %c0_1 = arith.constant 0 : index
    %c0_2 = arith.constant 0 : index
    %2 = vector.load %arg3[%c0, %c0_1, %c0_2] : memref<1x128x3xf32, #tpu.memory_space<vmem>>, vector<1x128x3xf32>
    %3 = vector.shape_cast %2 : vector<1x128x3xf32> to vector<128x3xf32>
    %4 = arith.truncf %3 : vector<128x3xf32> to vector<128x3xbf16>
    %c0_3 = arith.constant 0 : index
    %c0_4 = arith.constant 0 : index
    %c0_5 = arith.constant 0 : index
    %5 = vector.load %arg4[%c0_3, %c0_4, %c0_5] : memref<1x3x64xbf16, #tpu.memory_space<vmem>>, vector<1x3x64xbf16>
    %6 = vector.shape_cast %5 : vector<1x3x64xbf16> to vector<3x64xbf16>
    %cst = arith.constant dense<0.000000e+00> : vector<128x64xf32>
    %7 = tpu.matmul %4, %6, %cst {dimension_numbers = #tpu.dot_dimension_numbers<[1], [0], [0], [1], [0, 0, 1, 1], [], []>} : vector<128x3xbf16>, vector<3x64xbf16>, vector<128x64xf32> -> vector<128x64xf32>
    %c0_6 = arith.constant 0 : index
    %c0_7 = arith.constant 0 : index
    %8 = vector.load %arg5[%c0_6, %c0_7] : memref<1x64xf32, #tpu.memory_space<vmem>>, vector<1x64xf32>
    %9 = vector.broadcast %8 : vector<1x64xf32> to vector<128x64xf32>
    %10 = arith.mulf %7, %9 : vector<128x64xf32>
    %c0_8 = arith.constant 0 : index
    %c0_9 = arith.constant 0 : index
    %11 = vector.load %arg6[%c0_8, %c0_9] : memref<1x64xf32, #tpu.memory_space<vmem>>, vector<1x64xf32>
    %12 = vector.broadcast %11 : vector<1x64xf32> to vector<128x64xf32>
    %13 = arith.addf %10, %12 : vector<128x64xf32>
    %cst_10 = arith.constant 0.000000e+00 : f32
    %14 = vector.broadcast %cst_10 : f32 to vector<128x64xf32>
    %15 = arith.maximumf %13, %14 : vector<128x64xf32>
    %16 = arith.truncf %15 : vector<128x64xf32> to vector<128x64xbf16>
    %c0_11 = arith.constant 0 : index
    %c0_12 = arith.constant 0 : index
    %17 = vector.load %arg7[%c0_11, %c0_12] : memref<64x128xbf16, #tpu.memory_space<vmem>>, vector<64x128xbf16>
    %cst_13 = arith.constant dense<0.000000e+00> : vector<128x128xf32>
    %18 = tpu.matmul %16, %17, %cst_13 {dimension_numbers = #tpu.dot_dimension_numbers<[1], [0], [0], [1], [0, 0, 1, 1], [], []>} : vector<128x64xbf16>, vector<64x128xbf16>, vector<128x128xf32> -> vector<128x128xf32>
    %c0_14 = arith.constant 0 : index
    %c0_15 = arith.constant 0 : index
    %19 = vector.load %arg8[%c0_14, %c0_15] : memref<1x128xf32, #tpu.memory_space<vmem>>, vector<1x128xf32>
    %20 = vector.broadcast %19 : vector<1x128xf32> to vector<128x128xf32>
    %21 = arith.mulf %18, %20 : vector<128x128xf32>
    %c0_16 = arith.constant 0 : index
    %c0_17 = arith.constant 0 : index
    %22 = vector.load %arg9[%c0_16, %c0_17] : memref<1x128xf32, #tpu.memory_space<vmem>>, vector<1x128xf32>
    %23 = vector.broadcast %22 : vector<1x128xf32> to vector<128x128xf32>
    %24 = arith.addf %21, %23 : vector<128x128xf32>
    %cst_18 = arith.constant 0.000000e+00 : f32
    %25 = vector.broadcast %cst_18 : f32 to vector<128x128xf32>
    %26 = arith.maximumf %24, %25 : vector<128x128xf32>
    %27 = arith.truncf %26 : vector<128x128xf32> to vector<128x128xbf16>
    %c0_19 = arith.constant 0 : index
    %c0_20 = arith.constant 0 : index
    %28 = vector.load %arg10[%c0_19, %c0_20] : memref<128x1024xbf16, #tpu.memory_space<vmem>>, vector<128x256xbf16>
    %cst_21 = arith.constant dense<0.000000e+00> : vector<128x256xf32>
    %29 = tpu.matmul %27, %28, %cst_21 {dimension_numbers = #tpu.dot_dimension_numbers<[1], [0], [0], [1], [0, 0, 1, 1], [], []>} : vector<128x128xbf16>, vector<128x256xbf16>, vector<128x256xf32> -> vector<128x256xf32>
    %cst_22 = arith.constant dense<0xFF800000> : vector<256xf32>
    %30 = vector.multi_reduction <maximumf>, %29, %cst_22 [0] : vector<128x256xf32> to vector<256xf32>
    %31 = vector.shape_cast %30 : vector<256xf32> to vector<1x256xf32>
    %32 = arith.extui %0 : i1 to i32
    %c0_i32_23 = arith.constant 0 : i32
    %33 = arith.cmpi ne, %32, %c0_i32_23 : i32
    scf.if %33 {
      %c0_45 = arith.constant 0 : index
      %c0_46 = arith.constant 0 : index
      %c0_47 = arith.constant 0 : index
      %66 = vector.load %arg13[%c0_45, %c0_46, %c0_47] : memref<1x1x1024xf32, #tpu.memory_space<vmem>>, vector<1x1x256xf32>
      %67 = vector.shape_cast %66 : vector<1x1x256xf32> to vector<1x256xf32>
      %68 = vector.shape_cast %31 : vector<1x256xf32> to vector<1x1x256xf32>
      tpu.vector_store %arg13[%c0_45, %c0_46, %c0_47], %68 {strides = array<i32>} : memref<1x1x1024xf32, #tpu.memory_space<vmem>>, vector<1x1x256xf32>,
    } else {
    }
    %c0_i32_24 = arith.constant 0 : i32
    %34 = arith.cmpi ne, %arg2, %c0_i32_24 : i32
    %35 = arith.extui %34 : i1 to i32
    %c0_i32_25 = arith.constant 0 : i32
    %36 = arith.cmpi ne, %35, %c0_i32_25 : i32
    scf.if %36 {
      %c0_45 = arith.constant 0 : index
      %c0_46 = arith.constant 0 : index
      %c0_47 = arith.constant 0 : index
      %66 = vector.load %arg13[%c0_45, %c0_46, %c0_47] : memref<1x1x1024xf32, #tpu.memory_space<vmem>>, vector<1x1x256xf32>
      %67 = vector.shape_cast %66 : vector<1x1x256xf32> to vector<1x256xf32>
      %68 = arith.maximumf %67, %31 : vector<1x256xf32>
      %c0_48 = arith.constant 0 : index
      %c0_49 = arith.constant 0 : index
      %c0_50 = arith.constant 0 : index
      %69 = vector.load %arg13[%c0_48, %c0_49, %c0_50] : memref<1x1x1024xf32, #tpu.memory_space<vmem>>, vector<1x1x256xf32>
      %70 = vector.shape_cast %69 : vector<1x1x256xf32> to vector<1x256xf32>
      %71 = vector.shape_cast %68 : vector<1x256xf32> to vector<1x1x256xf32>
      tpu.vector_store %arg13[%c0_48, %c0_49, %c0_50], %71 {strides = array<i32>} : memref<1x1x1024xf32, #tpu.memory_space<vmem>>, vector<1x1x256xf32>,
    } else {
    }
    %c0_26 = arith.constant 0 : index
    %c256 = arith.constant 256 : index
    %37 = vector.load %arg10[%c0_26, %c256] : memref<128x1024xbf16, #tpu.memory_space<vmem>>, vector<128x256xbf16>
    %cst_27 = arith.constant dense<0.000000e+00> : vector<128x256xf32>
    %38 = tpu.matmul %27, %37, %cst_27 {dimension_numbers = #tpu.dot_dimension_numbers<[1], [0], [0], [1], [0, 0, 1, 1], [], []>} : vector<128x128xbf16>, vector<128x256xbf16>, vector<128x256xf32> -> vector<128x256xf32>
    %cst_28 = arith.constant dense<0xFF800000> : vector<256xf32>
    %39 = vector.multi_reduction <maximumf>, %38, %cst_28 [0] : vector<128x256xf32> to vector<256xf32>
    %40 = vector.shape_cast %39 : vector<256xf32> to vector<1x256xf32>
    %41 = arith.extui %0 : i1 to i32
    %c0_i32_29 = arith.constant 0 : i32
    %42 = arith.cmpi ne, %41, %c0_i32_29 : i32
    scf.if %42 {
      %c0_45 = arith.constant 0 : index
      %c0_46 = arith.constant 0 : index
      %c256_47 = arith.constant 256 : index
      %66 = vector.load %arg13[%c0_45, %c0_46, %c256_47] : memref<1x1x1024xf32, #tpu.memory_space<vmem>>, vector<1x1x256xf32>
      %67 = vector.shape_cast %66 : vector<1x1x256xf32> to vector<1x256xf32>
      %68 = vector.shape_cast %40 : vector<1x256xf32> to vector<1x1x256xf32>
      tpu.vector_store %arg13[%c0_45, %c0_46, %c256_47], %68 {strides = array<i32>} : memref<1x1x1024xf32, #tpu.memory_space<vmem>>, vector<1x1x256xf32>,
    } else {
    }
    %c0_i32_30 = arith.constant 0 : i32
    %43 = arith.cmpi ne, %arg2, %c0_i32_30 : i32
    %44 = arith.extui %43 : i1 to i32
    %c0_i32_31 = arith.constant 0 : i32
    %45 = arith.cmpi ne, %44, %c0_i32_31 : i32
    scf.if %45 {
      %c0_45 = arith.constant 0 : index
      %c0_46 = arith.constant 0 : index
      %c256_47 = arith.constant 256 : index
      %66 = vector.load %arg13[%c0_45, %c0_46, %c256_47] : memref<1x1x1024xf32, #tpu.memory_space<vmem>>, vector<1x1x256xf32>
      %67 = vector.shape_cast %66 : vector<1x1x256xf32> to vector<1x256xf32>
      %68 = arith.maximumf %67, %40 : vector<1x256xf32>
      %c0_48 = arith.constant 0 : index
      %c0_49 = arith.constant 0 : index
      %c256_50 = arith.constant 256 : index
      %69 = vector.load %arg13[%c0_48, %c0_49, %c256_50] : memref<1x1x1024xf32, #tpu.memory_space<vmem>>, vector<1x1x256xf32>
      %70 = vector.shape_cast %69 : vector<1x1x256xf32> to vector<1x256xf32>
      %71 = vector.shape_cast %68 : vector<1x256xf32> to vector<1x1x256xf32>
      tpu.vector_store %arg13[%c0_48, %c0_49, %c256_50], %71 {strides = array<i32>} : memref<1x1x1024xf32, #tpu.memory_space<vmem>>, vector<1x1x256xf32>,
    } else {
    }
    %c0_32 = arith.constant 0 : index
    %c512 = arith.constant 512 : index
    %46 = vector.load %arg10[%c0_32, %c512] : memref<128x1024xbf16, #tpu.memory_space<vmem>>, vector<128x256xbf16>
    %cst_33 = arith.constant dense<0.000000e+00> : vector<128x256xf32>
    %47 = tpu.matmul %27, %46, %cst_33 {dimension_numbers = #tpu.dot_dimension_numbers<[1], [0], [0], [1], [0, 0, 1, 1], [], []>} : vector<128x128xbf16>, vector<128x256xbf16>, vector<128x256xf32> -> vector<128x256xf32>
    %cst_34 = arith.constant dense<0xFF800000> : vector<256xf32>
    %48 = vector.multi_reduction <maximumf>, %47, %cst_34 [0] : vector<128x256xf32> to vector<256xf32>
    %49 = vector.shape_cast %48 : vector<256xf32> to vector<1x256xf32>
    %50 = arith.extui %0 : i1 to i32
    %c0_i32_35 = arith.constant 0 : i32
    %51 = arith.cmpi ne, %50, %c0_i32_35 : i32
    scf.if %51 {
      %c0_45 = arith.constant 0 : index
      %c0_46 = arith.constant 0 : index
      %c512_47 = arith.constant 512 : index
      %66 = vector.load %arg13[%c0_45, %c0_46, %c512_47] : memref<1x1x1024xf32, #tpu.memory_space<vmem>>, vector<1x1x256xf32>
      %67 = vector.shape_cast %66 : vector<1x1x256xf32> to vector<1x256xf32>
      %68 = vector.shape_cast %49 : vector<1x256xf32> to vector<1x1x256xf32>
      tpu.vector_store %arg13[%c0_45, %c0_46, %c512_47], %68 {strides = array<i32>} : memref<1x1x1024xf32, #tpu.memory_space<vmem>>, vector<1x1x256xf32>,
    } else {
    }
    %c0_i32_36 = arith.constant 0 : i32
    %52 = arith.cmpi ne, %arg2, %c0_i32_36 : i32
    %53 = arith.extui %52 : i1 to i32
    %c0_i32_37 = arith.constant 0 : i32
    %54 = arith.cmpi ne, %53, %c0_i32_37 : i32
    scf.if %54 {
      %c0_45 = arith.constant 0 : index
      %c0_46 = arith.constant 0 : index
      %c512_47 = arith.constant 512 : index
      %66 = vector.load %arg13[%c0_45, %c0_46, %c512_47] : memref<1x1x1024xf32, #tpu.memory_space<vmem>>, vector<1x1x256xf32>
      %67 = vector.shape_cast %66 : vector<1x1x256xf32> to vector<1x256xf32>
      %68 = arith.maximumf %67, %49 : vector<1x256xf32>
      %c0_48 = arith.constant 0 : index
      %c0_49 = arith.constant 0 : index
      %c512_50 = arith.constant 512 : index
      %69 = vector.load %arg13[%c0_48, %c0_49, %c512_50] : memref<1x1x1024xf32, #tpu.memory_space<vmem>>, vector<1x1x256xf32>
      %70 = vector.shape_cast %69 : vector<1x1x256xf32> to vector<1x256xf32>
      %71 = vector.shape_cast %68 : vector<1x256xf32> to vector<1x1x256xf32>
      tpu.vector_store %arg13[%c0_48, %c0_49, %c512_50], %71 {strides = array<i32>} : memref<1x1x1024xf32, #tpu.memory_space<vmem>>, vector<1x1x256xf32>,
    } else {
    }
    %c0_38 = arith.constant 0 : index
    %c768 = arith.constant 768 : index
    %55 = vector.load %arg10[%c0_38, %c768] : memref<128x1024xbf16, #tpu.memory_space<vmem>>, vector<128x256xbf16>
    %cst_39 = arith.constant dense<0.000000e+00> : vector<128x256xf32>
    %56 = tpu.matmul %27, %55, %cst_39 {dimension_numbers = #tpu.dot_dimension_numbers<[1], [0], [0], [1], [0, 0, 1, 1], [], []>} : vector<128x128xbf16>, vector<128x256xbf16>, vector<128x256xf32> -> vector<128x256xf32>
    %cst_40 = arith.constant dense<0xFF800000> : vector<256xf32>
    %57 = vector.multi_reduction <maximumf>, %56, %cst_40 [0] : vector<128x256xf32> to vector<256xf32>
    %58 = vector.shape_cast %57 : vector<256xf32> to vector<1x256xf32>
    %59 = arith.extui %0 : i1 to i32
    %c0_i32_41 = arith.constant 0 : i32
    %60 = arith.cmpi ne, %59, %c0_i32_41 : i32
    scf.if %60 {
      %c0_45 = arith.constant 0 : index
      %c0_46 = arith.constant 0 : index
      %c768_47 = arith.constant 768 : index
      %66 = vector.load %arg13[%c0_45, %c0_46, %c768_47] : memref<1x1x1024xf32, #tpu.memory_space<vmem>>, vector<1x1x256xf32>
      %67 = vector.shape_cast %66 : vector<1x1x256xf32> to vector<1x256xf32>
      %68 = vector.shape_cast %58 : vector<1x256xf32> to vector<1x1x256xf32>
      tpu.vector_store %arg13[%c0_45, %c0_46, %c768_47], %68 {strides = array<i32>} : memref<1x1x1024xf32, #tpu.memory_space<vmem>>, vector<1x1x256xf32>,
    } else {
    }
    %c0_i32_42 = arith.constant 0 : i32
    %61 = arith.cmpi ne, %arg2, %c0_i32_42 : i32
    %62 = arith.extui %61 : i1 to i32
    %c0_i32_43 = arith.constant 0 : i32
    %63 = arith.cmpi ne, %62, %c0_i32_43 : i32
    scf.if %63 {
      %c0_45 = arith.constant 0 : index
      %c0_46 = arith.constant 0 : index
      %c768_47 = arith.constant 768 : index
      %66 = vector.load %arg13[%c0_45, %c0_46, %c768_47] : memref<1x1x1024xf32, #tpu.memory_space<vmem>>, vector<1x1x256xf32>
      %67 = vector.shape_cast %66 : vector<1x1x256xf32> to vector<1x256xf32>
      %68 = arith.maximumf %67, %58 : vector<1x256xf32>
      %c0_48 = arith.constant 0 : index
      %c0_49 = arith.constant 0 : index
      %c768_50 = arith.constant 768 : index
      %69 = vector.load %arg13[%c0_48, %c0_49, %c768_50] : memref<1x1x1024xf32, #tpu.memory_space<vmem>>, vector<1x1x256xf32>
      %70 = vector.shape_cast %69 : vector<1x1x256xf32> to vector<1x256xf32>
      %71 = vector.shape_cast %68 : vector<1x256xf32> to vector<1x1x256xf32>
      tpu.vector_store %arg13[%c0_48, %c0_49, %c768_50], %71 {strides = array<i32>} : memref<1x1x1024xf32, #tpu.memory_space<vmem>>, vector<1x1x256xf32>,
    } else {
    }
    %64 = arith.extui %1 : i1 to i32
    %c0_i32_44 = arith.constant 0 : i32
    %65 = arith.cmpi ne, %64, %c0_i32_44 : i32
    scf.if %65 {
      %c0_45 = arith.constant 0 : index
      %c0_46 = arith.constant 0 : index
      %c0_47 = arith.constant 0 : index
      %66 = vector.load %arg13[%c0_45, %c0_46, %c0_47] : memref<1x1x1024xf32, #tpu.memory_space<vmem>>, vector<1x1x1024xf32>
      %67 = vector.shape_cast %66 : vector<1x1x1024xf32> to vector<1x1024xf32>
      %c0_48 = arith.constant 0 : index
      %c0_49 = arith.constant 0 : index
      %68 = vector.load %arg11[%c0_48, %c0_49] : memref<1x1024xf32, #tpu.memory_space<vmem>>, vector<1x1024xf32>
      %69 = arith.mulf %67, %68 : vector<1x1024xf32>
      %c0_50 = arith.constant 0 : index
      %c0_51 = arith.constant 0 : index
      %70 = vector.load %arg12[%c0_50, %c0_51] : memref<1x1024xf32, #tpu.memory_space<vmem>>, vector<1x1024xf32>
      %71 = arith.addf %69, %70 : vector<1x1024xf32>
      %c0_52 = arith.constant 0 : index
      %c0_53 = arith.constant 0 : index
      %c0_54 = arith.constant 0 : index
      %72 = vector.load %arg13[%c0_52, %c0_53, %c0_54] : memref<1x1x1024xf32, #tpu.memory_space<vmem>>, vector<1x1x1024xf32>
      %73 = vector.shape_cast %72 : vector<1x1x1024xf32> to vector<1x1024xf32>
      %74 = vector.shape_cast %71 : vector<1x1024xf32> to vector<1x1x1024xf32>
      tpu.vector_store %arg13[%c0_52, %c0_53, %c0_54], %74 {strides = array<i32>} : memref<1x1x1024xf32, #tpu.memory_space<vmem>>, vector<1x1x1024xf32>,
    } else {
    }
    return
  }
  func.func @transform_0(%arg0: i32, %arg1: i32, %arg2: i32) -> (i32, i32, i32) {
    %c0_i32 = arith.constant 0 : i32
    %c0_i32_0 = arith.constant 0 : i32
    return %arg0, %arg2, %c0_i32 : i32, i32, i32
  }
  func.func @transform_1(%arg0: i32, %arg1: i32, %arg2: i32) -> (i32, i32, i32) {
    %c0_i32 = arith.constant 0 : i32
    %c0_i32_0 = arith.constant 0 : i32
    %c0_i32_1 = arith.constant 0 : i32
    return %arg0, %c0_i32, %c0_i32_0 : i32, i32, i32
  }
  func.func @transform_2(%arg0: i32, %arg1: i32, %arg2: i32) -> (i32, i32) {
    %c0_i32 = arith.constant 0 : i32
    %c0_i32_0 = arith.constant 0 : i32
    %c0_i32_1 = arith.constant 0 : i32
    return %c0_i32, %c0_i32_0 : i32, i32
  }
  func.func @transform_3(%arg0: i32, %arg1: i32, %arg2: i32) -> (i32, i32) {
    %c0_i32 = arith.constant 0 : i32
    %c0_i32_0 = arith.constant 0 : i32
    %c0_i32_1 = arith.constant 0 : i32
    return %c0_i32, %c0_i32_0 : i32, i32
  }
  func.func @transform_4(%arg0: i32, %arg1: i32, %arg2: i32) -> (i32, i32) {
    %c0_i32 = arith.constant 0 : i32
    %c0_i32_0 = arith.constant 0 : i32
    %c0_i32_1 = arith.constant 0 : i32
    return %c0_i32, %c0_i32_0 : i32, i32
  }
  func.func @transform_5(%arg0: i32, %arg1: i32, %arg2: i32) -> (i32, i32) {
    %c0_i32 = arith.constant 0 : i32
    %c0_i32_0 = arith.constant 0 : i32
    %c0_i32_1 = arith.constant 0 : i32
    return %c0_i32, %c0_i32_0 : i32, i32
  }
  func.func @transform_6(%arg0: i32, %arg1: i32, %arg2: i32) -> (i32, i32) {
    %c0_i32 = arith.constant 0 : i32
    %c0_i32_0 = arith.constant 0 : i32
    %c0_i32_1 = arith.constant 0 : i32
    return %c0_i32, %c0_i32_0 : i32, i32
  }
  func.func @transform_7(%arg0: i32, %arg1: i32, %arg2: i32) -> (i32, i32) {
    %c0_i32 = arith.constant 0 : i32
    %c0_i32_0 = arith.constant 0 : i32
    return %c0_i32, %arg1 : i32, i32
  }
  func.func @transform_8(%arg0: i32, %arg1: i32, %arg2: i32) -> (i32, i32) {
    %c0_i32 = arith.constant 0 : i32
    %c0_i32_0 = arith.constant 0 : i32
    return %c0_i32, %arg1 : i32, i32
  }
  func.func @transform_9(%arg0: i32, %arg1: i32, %arg2: i32) -> (i32, i32) {
    %c0_i32 = arith.constant 0 : i32
    %c0_i32_0 = arith.constant 0 : i32
    return %c0_i32, %arg1 : i32, i32
  }
  func.func @transform_10(%arg0: i32, %arg1: i32, %arg2: i32) -> (i32, i32, i32) {
    %c0_i32 = arith.constant 0 : i32
    %c0_i32_0 = arith.constant 0 : i32
    return %arg0, %c0_i32, %arg1 : i32, i32, i32
  }
}

module attributes {stable_mosaic.version = 11 : i64} {
  func.func @_fc_head_kernel(%arg0: i32, %arg1: memref<2x1024xf32, #tpu.memory_space<vmem>>, %arg2: memref<1024x512xbf16, #tpu.memory_space<vmem>>, %arg3: memref<1x512xf32, #tpu.memory_space<vmem>>, %arg4: memref<1x512xf32, #tpu.memory_space<vmem>>, %arg5: memref<512x256xbf16, #tpu.memory_space<vmem>>, %arg6: memref<1x256xf32, #tpu.memory_space<vmem>>, %arg7: memref<1x256xf32, #tpu.memory_space<vmem>>, %arg8: memref<256x2xbf16, #tpu.memory_space<vmem>>, %arg9: memref<1x2xf32, #tpu.memory_space<vmem>>, %arg10: memref<2x2xf32, #tpu.memory_space<vmem>>) attributes {dimension_semantics = [#tpu.dimension_semantics<arbitrary>], iteration_bounds = array<i64: 1>, scalar_prefetch = 0 : i64, scratch_operands = 0 : i64, tpu.core_type = #tpu.core_type<tc>, window_params = [{pipeline_mode = #tpu.pipeline_mode<synchronous>, transform_indices = @transform_0, window_bounds = array<i64: 2, 1024>}, {pipeline_mode = #tpu.pipeline_mode<synchronous>, transform_indices = @transform_1, window_bounds = array<i64: 1024, 512>}, {pipeline_mode = #tpu.pipeline_mode<synchronous>, transform_indices = @transform_2, window_bounds = array<i64: 1, 512>}, {pipeline_mode = #tpu.pipeline_mode<synchronous>, transform_indices = @transform_3, window_bounds = array<i64: 1, 512>}, {pipeline_mode = #tpu.pipeline_mode<synchronous>, transform_indices = @transform_4, window_bounds = array<i64: 512, 256>}, {pipeline_mode = #tpu.pipeline_mode<synchronous>, transform_indices = @transform_5, window_bounds = array<i64: 1, 256>}, {pipeline_mode = #tpu.pipeline_mode<synchronous>, transform_indices = @transform_6, window_bounds = array<i64: 1, 256>}, {pipeline_mode = #tpu.pipeline_mode<synchronous>, transform_indices = @transform_7, window_bounds = array<i64: 256, 2>}, {pipeline_mode = #tpu.pipeline_mode<synchronous>, transform_indices = @transform_8, window_bounds = array<i64: 1, 2>}, {pipeline_mode = #tpu.pipeline_mode<synchronous>, transform_indices = @transform_9, window_bounds = array<i64: 2, 2>}]} {
    %c0 = arith.constant 0 : index
    %c0_0 = arith.constant 0 : index
    %0 = vector.load %arg1[%c0, %c0_0] : memref<2x1024xf32, #tpu.memory_space<vmem>>, vector<2x1024xf32>
    %1 = arith.truncf %0 : vector<2x1024xf32> to vector<2x1024xbf16>
    %c0_1 = arith.constant 0 : index
    %c0_2 = arith.constant 0 : index
    %2 = vector.load %arg2[%c0_1, %c0_2] : memref<1024x512xbf16, #tpu.memory_space<vmem>>, vector<1024x512xbf16>
    %cst = arith.constant dense<0.000000e+00> : vector<2x512xf32>
    %3 = tpu.matmul %1, %2, %cst {dimension_numbers = #tpu.dot_dimension_numbers<[1], [0], [0], [1], [0, 0, 1, 1], [], []>} : vector<2x1024xbf16>, vector<1024x512xbf16>, vector<2x512xf32> -> vector<2x512xf32>
    %c0_3 = arith.constant 0 : index
    %c0_4 = arith.constant 0 : index
    %4 = vector.load %arg3[%c0_3, %c0_4] : memref<1x512xf32, #tpu.memory_space<vmem>>, vector<1x512xf32>
    %5 = vector.broadcast %4 : vector<1x512xf32> to vector<2x512xf32>
    %6 = arith.mulf %3, %5 : vector<2x512xf32>
    %c0_5 = arith.constant 0 : index
    %c0_6 = arith.constant 0 : index
    %7 = vector.load %arg4[%c0_5, %c0_6] : memref<1x512xf32, #tpu.memory_space<vmem>>, vector<1x512xf32>
    %8 = vector.broadcast %7 : vector<1x512xf32> to vector<2x512xf32>
    %9 = arith.addf %6, %8 : vector<2x512xf32>
    %cst_7 = arith.constant 0.000000e+00 : f32
    %10 = vector.broadcast %cst_7 : f32 to vector<2x512xf32>
    %11 = arith.maximumf %9, %10 : vector<2x512xf32>
    %12 = arith.truncf %11 : vector<2x512xf32> to vector<2x512xbf16>
    %c0_8 = arith.constant 0 : index
    %c0_9 = arith.constant 0 : index
    %13 = vector.load %arg5[%c0_8, %c0_9] : memref<512x256xbf16, #tpu.memory_space<vmem>>, vector<512x256xbf16>
    %cst_10 = arith.constant dense<0.000000e+00> : vector<2x256xf32>
    %14 = tpu.matmul %12, %13, %cst_10 {dimension_numbers = #tpu.dot_dimension_numbers<[1], [0], [0], [1], [0, 0, 1, 1], [], []>} : vector<2x512xbf16>, vector<512x256xbf16>, vector<2x256xf32> -> vector<2x256xf32>
    %c0_11 = arith.constant 0 : index
    %c0_12 = arith.constant 0 : index
    %15 = vector.load %arg6[%c0_11, %c0_12] : memref<1x256xf32, #tpu.memory_space<vmem>>, vector<1x256xf32>
    %16 = vector.broadcast %15 : vector<1x256xf32> to vector<2x256xf32>
    %17 = arith.mulf %14, %16 : vector<2x256xf32>
    %c0_13 = arith.constant 0 : index
    %c0_14 = arith.constant 0 : index
    %18 = vector.load %arg7[%c0_13, %c0_14] : memref<1x256xf32, #tpu.memory_space<vmem>>, vector<1x256xf32>
    %19 = vector.broadcast %18 : vector<1x256xf32> to vector<2x256xf32>
    %20 = arith.addf %17, %19 : vector<2x256xf32>
    %cst_15 = arith.constant 0.000000e+00 : f32
    %21 = vector.broadcast %cst_15 : f32 to vector<2x256xf32>
    %22 = arith.maximumf %20, %21 : vector<2x256xf32>
    %23 = arith.truncf %22 : vector<2x256xf32> to vector<2x256xbf16>
    %c0_16 = arith.constant 0 : index
    %c0_17 = arith.constant 0 : index
    %24 = vector.load %arg8[%c0_16, %c0_17] : memref<256x2xbf16, #tpu.memory_space<vmem>>, vector<256x2xbf16>
    %cst_18 = arith.constant dense<0.000000e+00> : vector<2x2xf32>
    %25 = tpu.matmul %23, %24, %cst_18 {dimension_numbers = #tpu.dot_dimension_numbers<[1], [0], [0], [1], [0, 0, 1, 1], [], []>} : vector<2x256xbf16>, vector<256x2xbf16>, vector<2x2xf32> -> vector<2x2xf32>
    %c0_19 = arith.constant 0 : index
    %c0_20 = arith.constant 0 : index
    %26 = vector.load %arg9[%c0_19, %c0_20] : memref<1x2xf32, #tpu.memory_space<vmem>>, vector<1x2xf32>
    %27 = vector.broadcast %26 : vector<1x2xf32> to vector<2x2xf32>
    %28 = arith.addf %25, %27 : vector<2x2xf32>
    %cst_21 = arith.constant dense<0xFF800000> : vector<2xf32>
    %29 = vector.multi_reduction <maximumf>, %28, %cst_21 [1] : vector<2x2xf32> to vector<2xf32>
    %30 = vector.shape_cast %29 : vector<2xf32> to vector<2x1xf32>
    %31 = vector.broadcast %30 : vector<2x1xf32> to vector<2x2xf32>
    %32 = arith.subf %28, %31 : vector<2x2xf32>
    %33 = math.exp %32 : vector<2x2xf32>
    %cst_22 = arith.constant dense<0.000000e+00> : vector<2xf32>
    %34 = vector.multi_reduction <add>, %33, %cst_22 [1] : vector<2x2xf32> to vector<2xf32>
    %35 = vector.shape_cast %34 : vector<2xf32> to vector<2x1xf32>
    %36 = math.log %35 : vector<2x1xf32>
    %37 = vector.broadcast %36 : vector<2x1xf32> to vector<2x2xf32>
    %38 = arith.subf %32, %37 : vector<2x2xf32>
    %c0_23 = arith.constant 0 : index
    %c0_24 = arith.constant 0 : index
    %39 = vector.load %arg10[%c0_23, %c0_24] : memref<2x2xf32, #tpu.memory_space<vmem>>, vector<2x2xf32>
    tpu.vector_store %arg10[%c0_23, %c0_24], %38 {strides = array<i32>} : memref<2x2xf32, #tpu.memory_space<vmem>>, vector<2x2xf32>,
    return
  }
  func.func @transform_0(%arg0: i32) -> (i32, i32) {
    %c0_i32 = arith.constant 0 : i32
    %c0_i32_0 = arith.constant 0 : i32
    %c0_i32_1 = arith.constant 0 : i32
    return %c0_i32, %c0_i32_0 : i32, i32
  }
  func.func @transform_1(%arg0: i32) -> (i32, i32) {
    %c0_i32 = arith.constant 0 : i32
    %c0_i32_0 = arith.constant 0 : i32
    %c0_i32_1 = arith.constant 0 : i32
    return %c0_i32, %c0_i32_0 : i32, i32
  }
  func.func @transform_2(%arg0: i32) -> (i32, i32) {
    %c0_i32 = arith.constant 0 : i32
    %c0_i32_0 = arith.constant 0 : i32
    %c0_i32_1 = arith.constant 0 : i32
    return %c0_i32, %c0_i32_0 : i32, i32
  }
  func.func @transform_3(%arg0: i32) -> (i32, i32) {
    %c0_i32 = arith.constant 0 : i32
    %c0_i32_0 = arith.constant 0 : i32
    %c0_i32_1 = arith.constant 0 : i32
    return %c0_i32, %c0_i32_0 : i32, i32
  }
  func.func @transform_4(%arg0: i32) -> (i32, i32) {
    %c0_i32 = arith.constant 0 : i32
    %c0_i32_0 = arith.constant 0 : i32
    %c0_i32_1 = arith.constant 0 : i32
    return %c0_i32, %c0_i32_0 : i32, i32
  }
  func.func @transform_5(%arg0: i32) -> (i32, i32) {
    %c0_i32 = arith.constant 0 : i32
    %c0_i32_0 = arith.constant 0 : i32
    %c0_i32_1 = arith.constant 0 : i32
    return %c0_i32, %c0_i32_0 : i32, i32
  }
  func.func @transform_6(%arg0: i32) -> (i32, i32) {
    %c0_i32 = arith.constant 0 : i32
    %c0_i32_0 = arith.constant 0 : i32
    %c0_i32_1 = arith.constant 0 : i32
    return %c0_i32, %c0_i32_0 : i32, i32
  }
  func.func @transform_7(%arg0: i32) -> (i32, i32) {
    %c0_i32 = arith.constant 0 : i32
    %c0_i32_0 = arith.constant 0 : i32
    %c0_i32_1 = arith.constant 0 : i32
    return %c0_i32, %c0_i32_0 : i32, i32
  }
  func.func @transform_8(%arg0: i32) -> (i32, i32) {
    %c0_i32 = arith.constant 0 : i32
    %c0_i32_0 = arith.constant 0 : i32
    %c0_i32_1 = arith.constant 0 : i32
    return %c0_i32, %c0_i32_0 : i32, i32
  }
  func.func @transform_9(%arg0: i32) -> (i32, i32) {
    %c0_i32 = arith.constant 0 : i32
    %c0_i32_0 = arith.constant 0 : i32
    %c0_i32_1 = arith.constant 0 : i32
    return %c0_i32, %c0_i32_0 : i32, i32
  }
}

</mosaic_0001>

<llo_original>
// kernel: _lambda_.4
$region0: #{_lambda_.4}
  #allocation0 [shape = 'u32[]', space=smem, size = 0x4, offset = 0x4, fixed_abs, tag = 'smem constant byte address 0x4 - core index']
  #allocation1 [shape = 'u32[144,128]{1,0:T(1,128)}', space=vmem, size = 0x12000, scoped, tag = 'internal scratch']
  %s0 = inlined_call_operand.vmem [shape: f32[2,128,3], index: 0, kind: input, shape index: {}]
  %s1 = inlined_call_operand.vmem [shape: bf16[3,64], index: 1, kind: input, shape index: {}]
  %s2 = inlined_call_operand.vmem [shape: f32[1,64], index: 2, kind: input, shape index: {}]
  %s3 = inlined_call_operand.vmem [shape: f32[1,64], index: 3, kind: input, shape index: {}]
  %s4 = inlined_call_operand.vmem [shape: bf16[64,128], index: 4, kind: input, shape index: {}]
  %s5 = inlined_call_operand.vmem [shape: f32[1,128], index: 5, kind: input, shape index: {}]
  %s6 = inlined_call_operand.vmem [shape: f32[1,128], index: 6, kind: input, shape index: {}]
  %s7 = inlined_call_operand.vmem [shape: bf16[128,1024], index: 7, kind: input, shape index: {}]
  %s8 = inlined_call_operand.vmem [shape: f32[1,1024], index: 8, kind: input, shape index: {}]
  %s9 = inlined_call_operand.vmem [shape: f32[1,1024], index: 9, kind: input, shape index: {}]
  %s10 = inlined_call_operand.vmem [shape: f32[2,1,1024], index: 10, kind: output, shape index: {}]
  %s11 = sld [smem:[#allocation0]]
  $region109: #{_lambda_.4} parent=0
    _
  %s13 = ssub.s32 1, %s11
  %s14 = scalar_select 0, %s13, %s11
  loop: start=0, step=1, limit=4
  $region2: #{_lambda_.4} parent=0 // loop_pre_header
    _
  $region3: #{_lambda_.4} parent=0 // loop_header
    %s16 = sphi 0, %s20
    %p17 = scmp.ge.s32.totalorder %s16, 4
    %s23 = sphi 0, %s42
    %s24 = sphi 0, %s38
    %s25 = sphi 0, %s34
    %s26 = sphi 0, %s23
    %s27 = sphi 0, %s24
    %s28 = sphi 0, %s25
    %s29 = sphi 0, %s26
    %s30 = sphi 0, %s27
    %s31 = sphi 0, %s28
    %s47 = sphi 0, %s49
    %s50 = sphi 0, %s47
    %s51 = sphi 0, %s50
    %s67 = sphi 0, %s51
    %s71 = sphi 0, %s71
    %s73 = sphi 0, %s71
    %s74 = sphi 0, %s73
    %s88 = sphi 0, %s74
    %s92 = sphi 0, %s92
    %s94 = sphi 0, %s92
    %s95 = sphi 0, %s94
    %s109 = sphi 0, %s95
    %s113 = sphi 0, %s113
    %s115 = sphi 0, %s113
    %s116 = sphi 0, %s115
    %s130 = sphi 0, %s116
    %s134 = sphi 0, %s134
    %s136 = sphi 0, %s134
    %s137 = sphi 0, %s136
    %s151 = sphi 0, %s137
    %s155 = sphi 0, %s155
    %s157 = sphi 0, %s155
    %s158 = sphi 0, %s157
    %s172 = sphi 0, %s158
    %s176 = sphi 0, %s176
    %s178 = sphi 0, %s176
    %s179 = sphi 0, %s178
    %s193 = sphi 0, %s179
    %s199 = sphi 0, %s201
    %s202 = sphi 0, %s199
    %s203 = sphi 0, %s202
    %s219 = sphi 0, %s203
    %s225 = sphi 0, %s227
    %s228 = sphi 0, %s225
    %s229 = sphi 0, %s228
    %s245 = sphi 0, %s229
    %s251 = sphi 0, %s253
    %s254 = sphi 0, %s251
    %s255 = sphi 0, %s254
    %s271 = sphi 0, %s255
    %s279 = sphi 0, %s281
    %s282 = sphi 0, %s279
    %s283 = sphi 0, %s282
    %s299 = sphi 0, %s283
  $region4: #{_lambda_.4} parent=0 // loop_header_branch
    %19 = sbr.rel (%p17) target = $region8
  $region5: #{_lambda_.4} parent=0 // loop_body
    %s21 = ssub.s32 %s16, 1
    %s22 = ssub.s32 %s16, 2
    %s32 = sadd.s32 1, %s25
    %p33 = scmp.ge.s32.totalorder %s32, 1
    %s34 = scalar_select %p33, 0, %s32
    %s35 = sadd.s32 1, %s24
    %s36 = scalar_select %p33, %s35, %s24
    %p37 = scmp.ge.s32.totalorder %s36, 1
    %s38 = scalar_select %p37, 0, %s36
    %s39 = sadd.s32 1, %s23
    %s40 = scalar_select %p37, %s39, %s23
    %p41 = scmp.ge.s32.totalorder %s40, 2
    %s42 = scalar_select %p41, 0, %s40
    %s43 = ssub.s32 %s23, %s42
    %s44 = ssub.s32 %s25, %s34
    %s45 = sor.u32 %s43, %s44
    %p46 = scmp.eq.s32.totalorder %s45, 0
    %s48 = sadd.s32 %s47, 1
    %s49 = scalar_select %p46, %s47, %s48
    %p52 = pneg %p46
    %p53 = scmp.eq.s32.totalorder %s16, 1
    %p54 = por %p52, %p53
    %p55 = scmp.ne.s32.totalorder %s47, %s50
    %p56 = scmp.eq.s32.totalorder %s16, 0
    %p57 = por %p55, %p56
    %p58 = scmp.ne.s32.totalorder %s47, %s50
    %p59 = scmp.eq.s32.totalorder %s21, 1
    %p60 = por %p58, %p59
    %p61 = scmp.ne.s32.totalorder %s50, %s51
    %p62 = scmp.eq.s32.totalorder %s21, 0
    %p63 = por %p61, %p62
    %p64 = scmp.ne.s32.totalorder %s50, %s51
    %p65 = scmp.eq.s32.totalorder %s22, 1
    %p66 = por %p64, %p65
    %p68 = scmp.ne.s32.totalorder %s51, %s67
    %p69 = scmp.eq.s32.totalorder %s22, 0
    %p70 = por %p68, %p69
    %s72 = sadd.s32 %s71, 1
    %p75 = scmp.eq.s32.totalorder %s16, 1
    %p76 = scmp.ne.s32.totalorder %s71, %s73
    %p77 = scmp.eq.s32.totalorder %s16, 0
    %p78 = por %p76, %p77
    %p79 = scmp.ne.s32.totalorder %s71, %s73
    %p80 = scmp.eq.s32.totalorder %s21, 1
    %p81 = por %p79, %p80
    %p82 = scmp.ne.s32.totalorder %s73, %s74
    %p83 = scmp.eq.s32.totalorder %s21, 0
    %p84 = por %p82, %p83
    %p85 = scmp.ne.s32.totalorder %s73, %s74
    %p86 = scmp.eq.s32.totalorder %s22, 1
    %p87 = por %p85, %p86
    %p89 = scmp.ne.s32.totalorder %s74, %s88
    %p90 = scmp.eq.s32.totalorder %s22, 0
    %p91 = por %p89, %p90
    %s93 = sadd.s32 %s92, 1
    %p96 = scmp.eq.s32.totalorder %s16, 1
    %p97 = scmp.ne.s32.totalorder %s92, %s94
    %p98 = scmp.eq.s32.totalorder %s16, 0
    %p99 = por %p97, %p98
    %p100 = scmp.ne.s32.totalorder %s92, %s94
    %p101 = scmp.eq.s32.totalorder %s21, 1
    %p102 = por %p100, %p101
    %p103 = scmp.ne.s32.totalorder %s94, %s95
    %p104 = scmp.eq.s32.totalorder %s21, 0
    %p105 = por %p103, %p104
    %p106 = scmp.ne.s32.totalorder %s94, %s95
    %p107 = scmp.eq.s32.totalorder %s22, 1
    %p108 = por %p106, %p107
    %p110 = scmp.ne.s32.totalorder %s95, %s109
    %p111 = scmp.eq.s32.totalorder %s22, 0
    %p112 = por %p110, %p111
    %s114 = sadd.s32 %s113, 1
    %p117 = scmp.eq.s32.totalorder %s16, 1
    %p118 = scmp.ne.s32.totalorder %s113, %s115
    %p119 = scmp.eq.s32.totalorder %s16, 0
    %p120 = por %p118, %p119
    %p121 = scmp.ne.s32.totalorder %s113, %s115
    %p122 = scmp.eq.s32.totalorder %s21, 1
    %p123 = por %p121, %p122
    %p124 = scmp.ne.s32.totalorder %s115, %s116
    %p125 = scmp.eq.s32.totalorder %s21, 0
    %p126 = por %p124, %p125
    %p127 = scmp.ne.s32.totalorder %s115, %s116
    %p128 = scmp.eq.s32.totalorder %s22, 1
    %p129 = por %p127, %p128
    %p131 = scmp.ne.s32.totalorder %s116, %s130
    %p132 = scmp.eq.s32.totalorder %s22, 0
    %p133 = por %p131, %p132
    %s135 = sadd.s32 %s134, 1
    %p138 = scmp.eq.s32.totalorder %s16, 1
    %p139 = scmp.ne.s32.totalorder %s134, %s136
    %p140 = scmp.eq.s32.totalorder %s16, 0
    %p141 = por %p139, %p140
    %p142 = scmp.ne.s32.totalorder %s134, %s136
    %p143 = scmp.eq.s32.totalorder %s21, 1
    %p144 = por %p142, %p143
    %p145 = scmp.ne.s32.totalorder %s136, %s137
    %p146 = scmp.eq.s32.totalorder %s21, 0
    %p147 = por %p145, %p146
    %p148 = scmp.ne.s32.totalorder %s136, %s137
    %p149 = scmp.eq.s32.totalorder %s22, 1
    %p150 = por %p148, %p149
    %p152 = scmp.ne.s32.totalorder %s137, %s151
    %p153 = scmp.eq.s32.totalorder %s22, 0
    %p154 = por %p152, %p153
    %s156 = sadd.s32 %s155, 1
    %p159 = scmp.eq.s32.totalorder %s16, 1
    %p160 = scmp.ne.s32.totalorder %s155, %s157
    %p161 = scmp.eq.s32.totalorder %s16, 0
    %p162 = por %p160, %p161
    %p163 = scmp.ne.s32.totalorder %s155, %s157
    %p164 = scmp.eq.s32.totalorder %s21, 1
    %p165 = por %p163, %p164
    %p166 = scmp.ne.s32.totalorder %s157, %s158
    %p167 = scmp.eq.s32.totalorder %s21, 0
    %p168 = por %p166, %p167
    %p169 = scmp.ne.s32.totalorder %s157, %s158
    %p170 = scmp.eq.s32.totalorder %s22, 1
    %p171 = por %p169, %p170
    %p173 = scmp.ne.s32.totalorder %s158, %s172
    %p174 = scmp.eq.s32.totalorder %s22, 0
    %p175 = por %p173, %p174
    %s177 = sadd.s32 %s176, 1
    %p180 = scmp.eq.s32.totalorder %s16, 1
    %p181 = scmp.ne.s32.totalorder %s176, %s178
    %p182 = scmp.eq.s32.totalorder %s16, 0
    %p183 = por %p181, %p182
    %p184 = scmp.ne.s32.totalorder %s176, %s178
    %p185 = scmp.eq.s32.totalorder %s21, 1
    %p186 = por %p184, %p185
    %p187 = scmp.ne.s32.totalorder %s178, %s179
    %p188 = scmp.eq.s32.totalorder %s21, 0
    %p189 = por %p187, %p188
    %p190 = scmp.ne.s32.totalorder %s178, %s179
    %p191 = scmp.eq.s32.totalorder %s22, 1
    %p192 = por %p190, %p191
    %p194 = scmp.ne.s32.totalorder %s179, %s193
    %p195 = scmp.eq.s32.totalorder %s22, 0
    %p196 = por %p194, %p195
    %s197 = ssub.s32 %s24, %s38
    %p198 = scmp.eq.s32.totalorder %s197, 0
    %s200 = sadd.s32 %s199, 1
    %s201 = scalar_select %p198, %s199, %s200
    %p204 = pneg %p198
    %p205 = scmp.eq.s32.totalorder %s16, 1
    %p206 = por %p204, %p205
    %p207 = scmp.ne.s32.totalorder %s199, %s202
    %p208 = scmp.eq.s32.totalorder %s16, 0
    %p209 = por %p207, %p208
    %p210 = scmp.ne.s32.totalorder %s199, %s202
    %p211 = scmp.eq.s32.totalorder %s21, 1
    %p212 = por %p210, %p211
    %p213 = scmp.ne.s32.totalorder %s202, %s203
    %p214 = scmp.eq.s32.totalorder %s21, 0
    %p215 = por %p213, %p214
    %p216 = scmp.ne.s32.totalorder %s202, %s203
    %p217 = scmp.eq.s32.totalorder %s22, 1
    %p218 = por %p216, %p217
    %p220 = scmp.ne.s32.totalorder %s203, %s219
    %p221 = scmp.eq.s32.totalorder %s22, 0
    %p222 = por %p220, %p221
    %s223 = ssub.s32 %s24, %s38
    %p224 = scmp.eq.s32.totalorder %s223, 0
    %s226 = sadd.s32 %s225, 1
    %s227 = scalar_select %p224, %s225, %s226
    %p230 = pneg %p224
    %p231 = scmp.eq.s32.totalorder %s16, 1
    %p232 = por %p230, %p231
    %p233 = scmp.ne.s32.totalorder %s225, %s228
    %p234 = scmp.eq.s32.totalorder %s16, 0
    %p235 = por %p233, %p234
    %p236 = scmp.ne.s32.totalorder %s225, %s228
    %p237 = scmp.eq.s32.totalorder %s21, 1
    %p238 = por %p236, %p237
    %p239 = scmp.ne.s32.totalorder %s228, %s229
    %p240 = scmp.eq.s32.totalorder %s21, 0
    %p241 = por %p239, %p240
    %p242 = scmp.ne.s32.totalorder %s228, %s229
    %p243 = scmp.eq.s32.totalorder %s22, 1
    %p244 = por %p242, %p243
    %p246 = scmp.ne.s32.totalorder %s229, %s245
    %p247 = scmp.eq.s32.totalorder %s22, 0
    %p248 = por %p246, %p247
    %s249 = ssub.s32 %s24, %s38
    %p250 = scmp.eq.s32.totalorder %s249, 0
    %s252 = sadd.s32 %s251, 1
    %s253 = scalar_select %p250, %s251, %s252
    %p256 = pneg %p250
    %p257 = scmp.eq.s32.totalorder %s16, 1
    %p258 = por %p256, %p257
    %p259 = scmp.ne.s32.totalorder %s251, %s254
    %p260 = scmp.eq.s32.totalorder %s16, 0
    %p261 = por %p259, %p260
    %p262 = scmp.ne.s32.totalorder %s251, %s254
    %p263 = scmp.eq.s32.totalorder %s21, 1
    %p264 = por %p262, %p263
    %p265 = scmp.ne.s32.totalorder %s254, %s255
    %p266 = scmp.eq.s32.totalorder %s21, 0
    %p267 = por %p265, %p266
    %p268 = scmp.ne.s32.totalorder %s254, %s255
    %p269 = scmp.eq.s32.totalorder %s22, 1
    %p270 = por %p268, %p269
    %p272 = scmp.ne.s32.totalorder %s255, %s271
    %p273 = scmp.eq.s32.totalorder %s22, 0
    %p274 = por %p272, %p273
    %s275 = ssub.s32 %s23, %s42
    %s276 = ssub.s32 %s24, %s38
    %s277 = sor.u32 %s275, %s276
    %p278 = scmp.eq.s32.totalorder %s277, 0
    %s280 = sadd.s32 %s279, 1
    %s281 = scalar_select %p278, %s279, %s280
    %p284 = pneg %p278
    %p285 = scmp.eq.s32.totalorder %s16, 1
    %p286 = por %p284, %p285
    %p287 = scmp.ne.s32.totalorder %s279, %s282
    %p288 = scmp.eq.s32.totalorder %s16, 0
    %p289 = por %p287, %p288
    %p290 = scmp.ne.s32.totalorder %s279, %s282
    %p291 = scmp.eq.s32.totalorder %s21, 1
    %p292 = por %p290, %p291
    %p293 = scmp.ne.s32.totalorder %s282, %s283
    %p294 = scmp.eq.s32.totalorder %s21, 0
    %p295 = por %p293, %p294
    %p296 = scmp.ne.s32.totalorder %s282, %s283
    %p297 = scmp.eq.s32.totalorder %s22, 1
    %p298 = por %p296, %p297
    %p300 = scmp.ne.s32.totalorder %s283, %s299
    %p301 = scmp.eq.s32.totalorder %s22, 0
    %p302 = por %p300, %p301
    %p303 = scmp.le.s32.totalorder 1, %s16
    %p304 = scmp.lt.s32.totalorder %s16, 3
    %p305 = pnand %p303, %p304
    %p306 = pneg %p305
    // Predicated region
    $region9: #{_lambda_.4} parent=5 // pred_check
      _
    $region10: #{_lambda_.4} parent=5 // pred_check_branch
      %308 = sbr.rel (%p305) target = $region12
    $region11: #{_lambda_.4} parent=5 // pred_region
      %s309 = ssub.s32 %s16, 1
      // Predicated region
      $region13: #{_lambda_.4} parent=11 // pred_check
        %p310 = pneg %p84
      $region14: #{_lambda_.4} parent=11 // pred_check_branch
        %312 = sbr.rel (%p310) target = $region16
      $region15: #{_lambda_.4} parent=11 // pred_region
        _
      $region16: #{_lambda_.4} parent=11 // pred_fallthru
        _
      // Predicated region
      $region17: #{_lambda_.4} parent=11 // pred_check
        %p313 = pneg %p105
      $region18: #{_lambda_.4} parent=11 // pred_check_branch
        %315 = sbr.rel (%p313) target = $region20
      $region19: #{_lambda_.4} parent=11 // pred_region
        _
      $region20: #{_lambda_.4} parent=11 // pred_fallthru
        _
      // Predicated region
      $region21: #{_lambda_.4} parent=11 // pred_check
        %p316 = pneg %p126
      $region22: #{_lambda_.4} parent=11 // pred_check_branch
        %318 = sbr.rel (%p316) target = $region24
      $region23: #{_lambda_.4} parent=11 // pred_region
        _
      $region24: #{_lambda_.4} parent=11 // pred_fallthru
        _
      // Predicated region
      $region25: #{_lambda_.4} parent=11 // pred_check
        %p319 = pneg %p147
      $region26: #{_lambda_.4} parent=11 // pred_check_branch
        %321 = sbr.rel (%p319) target = $region28
      $region27: #{_lambda_.4} parent=11 // pred_region
        _
      $region28: #{_lambda_.4} parent=11 // pred_fallthru
        _
      // Predicated region
      $region29: #{_lambda_.4} parent=11 // pred_check
        %p322 = pneg %p168
      $region30: #{_lambda_.4} parent=11 // pred_check_branch
        %324 = sbr.rel (%p322) target = $region32
      $region31: #{_lambda_.4} parent=11 // pred_region
        _
      $region32: #{_lambda_.4} parent=11 // pred_fallthru
        _
      // Predicated region
      $region33: #{_lambda_.4} parent=11 // pred_check
        %p325 = pneg %p189
      $region34: #{_lambda_.4} parent=11 // pred_check_branch
        %327 = sbr.rel (%p325) target = $region36
      $region35: #{_lambda_.4} parent=11 // pred_region
        _
      $region36: #{_lambda_.4} parent=11 // pred_fallthru
        _
      // Predicated region
      $region37: #{_lambda_.4} parent=11 // pred_check
        %p328 = pneg %p215
      $region38: #{_lambda_.4} parent=11 // pred_check_branch
        %330 = sbr.rel (%p328) target = $region40
      $region39: #{_lambda_.4} parent=11 // pred_region
        %s331 = smul.u32 8, %s27
        %p332 = scmp.lt.s32.totalorder %s331, 7
        %s333 = scalar_select %p332, %s331, 7
        %s334 = smul.addr %s333, 4
        %s335 = scalar_lea.vmem %s7, %s334
        %s336 = smul.u32 8, %s27
      $region40: #{_lambda_.4} parent=11 // pred_fallthru
        _
      // Predicated region
      $region41: #{_lambda_.4} parent=11 // pred_check
        %p337 = pneg %p241
      $region42: #{_lambda_.4} parent=11 // pred_check_branch
        %339 = sbr.rel (%p337) target = $region44
      $region43: #{_lambda_.4} parent=11 // pred_region
        %s340 = smul.u32 8, %s27
        %p341 = scmp.lt.s32.totalorder %s340, 7
        %s342 = scalar_select %p341, %s340, 7
        %s343 = scalar_lea.vmem %s8, %s342
        %s344 = smul.u32 8, %s27
      $region44: #{_lambda_.4} parent=11 // pred_fallthru
        _
      // Predicated region
      $region45: #{_lambda_.4} parent=11 // pred_check
        %p345 = pneg %p267
      $region46: #{_lambda_.4} parent=11 // pred_check_branch
        %347 = sbr.rel (%p345) target = $region48
      $region47: #{_lambda_.4} parent=11 // pred_region
        %s348 = smul.u32 8, %s27
        %p349 = scmp.lt.s32.totalorder %s348, 7
        %s350 = scalar_select %p349, %s348, 7
        %s351 = scalar_lea.vmem %s9, %s350
        %s352 = smul.u32 8, %s27
      $region48: #{_lambda_.4} parent=11 // pred_fallthru
        _
    $region12: #{_lambda_.4} parent=5 // pred_fallthru
      _
    %p353 = scmp.lt.s32.totalorder %s16, 2
    // Predicated region
    $region49: #{_lambda_.4} parent=5 // pred_check
      %p354 = pneg %p353
    $region50: #{_lambda_.4} parent=5 // pred_check_branch
      %356 = sbr.rel (%p354) target = $region52
    $region51: #{_lambda_.4} parent=5 // pred_region
      // Predicated region
      $region53: #{_lambda_.4} parent=51 // pred_check
        %p357 = pneg %p57
      $region54: #{_lambda_.4} parent=51 // pred_check_branch
        %359 = sbr.rel (%p357) target = $region56
      $region55: #{_lambda_.4} parent=51 // pred_region
        %s360 = smul.u32 16, %s25
        %p361 = scmp.lt.s32.totalorder %s23, 1
        %s362 = scalar_select %p361, %s23, 1
        %p363 = scmp.lt.s32.totalorder %s360, 15
        %s364 = scalar_select %p363, %s360, 15
        %s365 = smul.addr %s362, 16
        %s366 = sadd.s32 %s364, %s365
        %s367 = smul.addr %s366, 8
        %s368 = scalar_lea.vmem %s0, %s367
        %s369 = smul.u32 16, %s25
      $region56: #{_lambda_.4} parent=51 // pred_fallthru
        _
    $region52: #{_lambda_.4} parent=5 // pred_fallthru
      _
    %p370 = scmp.le.s32.totalorder 1, %s16
    %p371 = scmp.lt.s32.totalorder %s16, 3
    %p372 = pnand %p370, %p371
    %p373 = pneg %p372
    // Predicated region
    $region57: #{_lambda_.4} parent=5 // pred_check
      _
    $region58: #{_lambda_.4} parent=5 // pred_check_branch
      %375 = sbr.rel (%p372) target = $region60
    $region59: #{_lambda_.4} parent=5 // pred_region
      %s376 = ssub.s32 %s16, 1
      %s377 = smul.u32 16, %s28
      %p378 = scmp.lt.s32.totalorder %s26, 1
      %s379 = scalar_select %p378, %s26, 1
      %p380 = scmp.lt.s32.totalorder %s377, 15
      %s381 = scalar_select %p380, %s377, 15
      %s382 = smul.addr %s379, 16
      %s383 = sadd.s32 %s381, %s382
      %s384 = smul.addr %s383, 8
      %s385 = scalar_lea.vmem %s0, %s384
      %p386 = pneg %p63
      %p387 = pneg %p60
      %p388 = pneg %p84
      %p389 = pneg %p81
      %p390 = pneg %p105
      %p391 = pneg %p102
      %p392 = pneg %p126
      %p393 = pneg %p123
      %p394 = pneg %p147
      %p395 = pneg %p144
      %p396 = pneg %p168
      %p397 = pneg %p165
      %p398 = pneg %p189
      %p399 = pneg %p186
      %s400 = smul.u32 8, %s27
      %p401 = scmp.lt.s32.totalorder %s400, 7
      %s402 = scalar_select %p401, %s400, 7
      %s403 = smul.addr %s402, 4
      %s404 = scalar_lea.vmem %s7, %s403
      %p405 = pneg %p215
      %p406 = pneg %p212
      %s407 = smul.u32 8, %s27
      %p408 = scmp.lt.s32.totalorder %s407, 7
      %s409 = scalar_select %p408, %s407, 7
      %s410 = scalar_lea.vmem %s8, %s409
      %p411 = pneg %p241
      %p412 = pneg %p238
      %s413 = smul.u32 8, %s27
      %p414 = scmp.lt.s32.totalorder %s413, 7
      %s415 = scalar_select %p414, %s413, 7
      %s416 = scalar_lea.vmem %s9, %s415
      %p417 = pneg %p267
      %p418 = pneg %p264
      %p419 = pneg %p295
      %p420 = pneg %p292
      %s421 = smul.u32 8, %s27
      %p422 = scmp.lt.s32.totalorder %s26, 1
      %s423 = scalar_select %p422, %s26, 1
      %p424 = scmp.lt.s32.totalorder %s421, 7
      %s425 = scalar_select %p424, %s421, 7
      %s426 = smul.addr %s423, 8
      %s427 = sadd.s32 %s425, %s426
      %s428 = scalar_lea.vmem %s10, %s427
      %s429 = smul.u32 16, %s28
      %p430 = scmp.lt.s32.totalorder %s26, 1
      %s431 = scalar_select %p430, %s26, 1
      %p432 = scmp.lt.s32.totalorder %s429, 15
      %s433 = scalar_select %p432, %s429, 15
      %s434 = smul.addr %s431, 16
      %s435 = sadd.s32 %s433, %s434
      %s436 = smul.addr %s435, 8
      %s437 = scalar_lea.vmem %s0, %s436
      %s438 = smul.u32 16, %s28
      %s439 = smul.u32 8, %s27
      %p440 = scmp.lt.s32.totalorder %s439, 7
      %s441 = scalar_select %p440, %s439, 7
      %s442 = smul.addr %s441, 4
      %s443 = scalar_lea.vmem %s7, %s442
      %s444 = smul.u32 8, %s27
      %s445 = smul.u32 8, %s27
      %p446 = scmp.lt.s32.totalorder %s445, 7
      %s447 = scalar_select %p446, %s445, 7
      %s448 = scalar_lea.vmem %s8, %s447
      %s449 = smul.u32 8, %s27
      %s450 = smul.u32 8, %s27
      %p451 = scmp.lt.s32.totalorder %s450, 7
      %s452 = scalar_select %p451, %s450, 7
      %s453 = scalar_lea.vmem %s9, %s452
      %s454 = smul.u32 8, %s27
      %s455 = smul.u32 8, %s27
      %p456 = scmp.lt.s32.totalorder %s26, 1
      %s457 = scalar_select %p456, %s26, 1
      %p458 = scmp.lt.s32.totalorder %s455, 7
      %s459 = scalar_select %p458, %s455, 7
      %s460 = smul.addr %s457, 8
      %s461 = sadd.s32 %s459, %s460
      %s462 = scalar_lea.vmem %s10, %s461
      %s463 = smul.u32 8, %s27
      %p465 = scmp.eq.s32.totalorder %s28, 0
      %v466 = vld [vmem:[%s437] sm:$0xff]
      %v467 = vld [vmem:[%s437 + $0x8] sm:$0xff]
      %v468 = vld [vmem:[%s437 + $0x10] sm:$0xff]
      %v469 = vld [vmem:[%s437 + $0x18] sm:$0xff]
      %v470 = vld [vmem:[%s437 + $0x20] sm:$0xff]
      %v471 = vld [vmem:[%s437 + $0x28] sm:$0xff]
      %v472 = vld [vmem:[%s437 + $0x30] sm:$0xff]
      %v473 = vld [vmem:[%s437 + $0x38] sm:$0xff]
      %v474 = vld [vmem:[%s437 + $0x40] sm:$0xff]
      %v475 = vld [vmem:[%s437 + $0x48] sm:$0xff]
      %v476 = vld [vmem:[%s437 + $0x50] sm:$0xff]
      %v477 = vld [vmem:[%s437 + $0x58] sm:$0xff]
      %v478 = vld [vmem:[%s437 + $0x60] sm:$0xff]
      %v479 = vld [vmem:[%s437 + $0x68] sm:$0xff]
      %v480 = vld [vmem:[%s437 + $0x70] sm:$0xff]
      %v481 = vld [vmem:[%s437 + $0x78] sm:$0xff]
      %v482 = vpack.c.bf16 %v467, %v466
      %v483 = vpack.c.bf16 %v469, %v468
      %v484 = vpack.c.bf16 %v471, %v470
      %v485 = vpack.c.bf16 %v473, %v472
      %v486 = vpack.c.bf16 %v475, %v474
      %v487 = vpack.c.bf16 %v477, %v476
      %v488 = vpack.c.bf16 %v479, %v478
      %v489 = vpack.c.bf16 %v481, %v480
      %v490 = vld [vmem:[%s1] sm:$0x3]
      %vm491 = vcmask 23552
      %v493 = vsel %vm491, %v482, 0
      %v496 = vsel %vm491, %v483, 0
      %v499 = vsel %vm491, %v484, 0
      %v502 = vsel %vm491, %v485, 0
      %v505 = vsel %vm491, %v486, 0
      %v508 = vsel %vm491, %v487, 0
      %v511 = vsel %vm491, %v488, 0
      %v514 = vsel %vm491, %v489, 0
      %vm516 = vcmask 1040384
      %vm517 = vcmask 1041408
      %v518 = vsel %vm516, 4294967295, 65535
      %v519 = vsel %vm517, %v518, 0
      %v521 = vand.u32 %v490, %v519
      %523 = vmatprep.subr.bf16.mxu0 0
      %524 = vmatpush1.bf16.msra.mxu0 0
      %525 = vmatprep.subr.bf16.mxu0 0
      %526 = vmatpush1.bf16.msra.mxu0 0
      %527 = vmatprep.subr.bf16.mxu0 0
      %528 = vmatpush1.bf16.msra.mxu0 0
      %529 = vmatprep.subr.bf16.mxu0 0
      %530 = vmatpush1.bf16.msra.mxu0 0
      %531 = vmatprep.subr.bf16.mxu0 0
      %532 = vmatpush1.bf16.msra.mxu0 0
      %533 = vmatprep.subr.bf16.mxu0 0
      %534 = vmatpush1.bf16.msra.mxu0 0
      %535 = vmatprep.subr.bf16.mxu0 0
      %536 = vmatpush1.bf16.msra.mxu0 0
      %537 = vmatprep.subr.bf16.mxu0 0
      %538 = vmatpush1.bf16.msra.mxu0 %v521
      %539 = vmatprep.subr.bf16.mxu0 0
      %540 = vmatpush2.bf16.msra.mxu0 0
      %541 = vmatprep.subr.bf16.mxu0 0
      %542 = vmatpush2.bf16.msra.mxu0 0
      %543 = vmatprep.subr.bf16.mxu0 0
      %544 = vmatpush2.bf16.msra.mxu0 0
      %545 = vmatprep.subr.bf16.mxu0 0
      %546 = vmatpush2.bf16.msra.mxu0 0
      %547 = vmatprep.subr.bf16.mxu0 0
      %548 = vmatpush2.bf16.msra.mxu0 0
      %549 = vmatprep.subr.bf16.mxu0 0
      %550 = vmatpush2.bf16.msra.mxu0 0
      %551 = vmatprep.subr.bf16.mxu0 0
      %552 = vmatpush2.bf16.msra.mxu0 0
      %553 = vmatprep.subr.bf16.mxu0 0
      %554 = vmatpush2.bf16.msra.mxu0 0
      %555 = vmatprep.mubr.bf16.mxu0 0
      %556 = vmatmul.mubr.bf16.gmra.mxu0 %v493
      %v557 = vpop.f32.mrf.mxu0
      %v558 = vadd.f32 0.0, %v557
      %v559 = vpop.f32.mrf.mxu0
      %v560 = vpop.f32.mrf.mxu0
      %v561 = vadd.f32 0.0, %v560
      %v562 = vpop.f32.mrf.mxu0
      %563 = vmatprep.mubr.bf16.mxu0 0
      %564 = vmatmul.mubr.bf16.gmra.mxu0 %v496
      %v565 = vpop.f32.mrf.mxu0
      %v566 = vadd.f32 0.0, %v565
      %v567 = vpop.f32.mrf.mxu0
      %v568 = vpop.f32.mrf.mxu0
      %v569 = vadd.f32 0.0, %v568
      %v570 = vpop.f32.mrf.mxu0
      %571 = vmatprep.mubr.bf16.mxu0 0
      %572 = vmatmul.mubr.bf16.gmra.mxu0 %v499
      %v573 = vpop.f32.mrf.mxu0
      %v574 = vadd.f32 0.0, %v573
      %v575 = vpop.f32.mrf.mxu0
      %v576 = vpop.f32.mrf.mxu0
      %v577 = vadd.f32 0.0, %v576
      %v578 = vpop.f32.mrf.mxu0
      %579 = vmatprep.mubr.bf16.mxu0 0
      %580 = vmatmul.mubr.bf16.gmra.mxu0 %v502
      %v581 = vpop.f32.mrf.mxu0
      %v582 = vadd.f32 0.0, %v581
      %v583 = vpop.f32.mrf.mxu0
      %v584 = vpop.f32.mrf.mxu0
      %v585 = vadd.f32 0.0, %v584
      %v586 = vpop.f32.mrf.mxu0
      %587 = vmatprep.mubr.bf16.mxu0 0
      %588 = vmatmul.mubr.bf16.gmra.mxu0 %v505
      %v589 = vpop.f32.mrf.mxu0
      %v590 = vadd.f32 0.0, %v589
      %v591 = vpop.f32.mrf.mxu0
      %v592 = vpop.f32.mrf.mxu0
      %v593 = vadd.f32 0.0, %v592
      %v594 = vpop.f32.mrf.mxu0
      %595 = vmatprep.mubr.bf16.mxu0 0
      %596 = vmatmul.mubr.bf16.gmra.mxu0 %v508
      %v597 = vpop.f32.mrf.mxu0
      %v598 = vadd.f32 0.0, %v597
      %v599 = vpop.f32.mrf.mxu0
      %v600 = vpop.f32.mrf.mxu0
      %v601 = vadd.f32 0.0, %v600
      %v602 = vpop.f32.mrf.mxu0
      %603 = vmatprep.mubr.bf16.mxu0 0
      %604 = vmatmul.mubr.bf16.gmra.mxu0 %v511
      %v605 = vpop.f32.mrf.mxu0
      %v606 = vadd.f32 0.0, %v605
      %v607 = vpop.f32.mrf.mxu0
      %v608 = vpop.f32.mrf.mxu0
      %v609 = vadd.f32 0.0, %v608
      %v610 = vpop.f32.mrf.mxu0
      %611 = vmatprep.mubr.bf16.mxu0 0
      %612 = vmatmul.mubr.bf16.gmra.mxu0 %v514
      %v613 = vpop.f32.mrf.mxu0
      %v614 = vadd.f32 0.0, %v613
      %v615 = vpop.f32.mrf.mxu0
      %v616 = vpop.f32.mrf.mxu0
      %v617 = vadd.f32 0.0, %v616
      %v618 = vpop.f32.mrf.mxu0
      %619 = vdwg.mxu0
      %v620 = vld [vmem:[%s2] sm:$0x1]
      %v622 = vlaneseq
      %v623 = vshrl.u32 %v622, 7
      %v624 = vsub.s32 0, %v623
      %v625 = vrot.slane %v620, %v624
      %v627 = vmul.f32 %v558, %v625
      %v628 = vmul.f32 %v561, %v625
      %v629 = vmul.f32 %v566, %v625
      %v630 = vmul.f32 %v569, %v625
      %v631 = vmul.f32 %v574, %v625
      %v632 = vmul.f32 %v577, %v625
      %v633 = vmul.f32 %v582, %v625
      %v634 = vmul.f32 %v585, %v625
      %v635 = vmul.f32 %v590, %v625
      %v636 = vmul.f32 %v593, %v625
      %v637 = vmul.f32 %v598, %v625
      %v638 = vmul.f32 %v601, %v625
      %v639 = vmul.f32 %v606, %v625
      %v640 = vmul.f32 %v609, %v625
      %v641 = vmul.f32 %v614, %v625
      %v642 = vmul.f32 %v617, %v625
      %v643 = vld [vmem:[%s3] sm:$0x1]
      %v645 = vlaneseq
      %v646 = vshrl.u32 %v645, 7
      %v647 = vsub.s32 0, %v646
      %v648 = vrot.slane %v643, %v647
      %v650 = vadd.f32 %v627, %v648
      %v651 = vadd.f32 %v628, %v648
      %v652 = vadd.f32 %v629, %v648
      %v653 = vadd.f32 %v630, %v648
      %v654 = vadd.f32 %v631, %v648
      %v655 = vadd.f32 %v632, %v648
      %v656 = vadd.f32 %v633, %v648
      %v657 = vadd.f32 %v634, %v648
      %v658 = vadd.f32 %v635, %v648
      %v659 = vadd.f32 %v636, %v648
      %v660 = vadd.f32 %v637, %v648
      %v661 = vadd.f32 %v638, %v648
      %v662 = vadd.f32 %v639, %v648
      %v663 = vadd.f32 %v640, %v648
      %v664 = vadd.f32 %v641, %v648
      %v665 = vadd.f32 %v642, %v648
      %v666 = vmax.f32 %v650, 0.0
      %v667 = vmax.f32 %v651, 0.0
      %v668 = vmax.f32 %v652, 0.0
      %v669 = vmax.f32 %v653, 0.0
      %v670 = vmax.f32 %v654, 0.0
      %v671 = vmax.f32 %v655, 0.0
      %v672 = vmax.f32 %v656, 0.0
      %v673 = vmax.f32 %v657, 0.0
      %v674 = vmax.f32 %v658, 0.0
      %v675 = vmax.f32 %v659, 0.0
      %v676 = vmax.f32 %v660, 0.0
      %v677 = vmax.f32 %v661, 0.0
      %v678 = vmax.f32 %v662, 0.0
      %v679 = vmax.f32 %v663, 0.0
      %v680 = vmax.f32 %v664, 0.0
      %v681 = vmax.f32 %v665, 0.0
      %v682 = vpack.c.bf16 %v667, %v666
      %v683 = vpack.c.bf16 %v669, %v668
      %v684 = vpack.c.bf16 %v671, %v670
      %v685 = vpack.c.bf16 %v673, %v672
      %v686 = vpack.c.bf16 %v675, %v674
      %v687 = vpack.c.bf16 %v677, %v676
      %v688 = vpack.c.bf16 %v679, %v678
      %v689 = vpack.c.bf16 %v681, %v680
      %v690 = vld [vmem:[%s4] sm:$0xf]
      %v691 = vld [vmem:[%s4 + $0x4] sm:$0xf]
      %v692 = vld [vmem:[%s4 + $0x8] sm:$0xf]
      %v693 = vld [vmem:[%s4 + $0xc] sm:$0xf]
      %v694 = vld [vmem:[%s4 + $0x10] sm:$0xf]
      %v695 = vld [vmem:[%s4 + $0x14] sm:$0xf]
      %v696 = vld [vmem:[%s4 + $0x18] sm:$0xf]
      %v697 = vld [vmem:[%s4 + $0x1c] sm:$0xf]
      %v706 = vunpack.c.l.b16 %v690
      %v707 = vunpack.c.l.b16 %v691
      %v708 = vunpack.c.l.b16 %v692
      %v709 = vunpack.c.l.b16 %v693
      %v710 = vunpack.c.l.b16 %v694
      %v711 = vunpack.c.l.b16 %v695
      %v712 = vunpack.c.l.b16 %v696
      %v713 = vunpack.c.l.b16 %v697
      %v714 = vpack.c.b16 %v707, %v706
      %v715 = vpack.c.b16 %v709, %v708
      %v716 = vpack.c.b16 %v711, %v710
      %v717 = vpack.c.b16 %v713, %v712
      %vm722 = vcmask 523264
      %v724 = vsel %vm722, %v682, 0
      %v727 = vsel %vm722, %v683, 0
      %v730 = vsel %vm722, %v684, 0
      %v733 = vsel %vm722, %v685, 0
      %v736 = vsel %vm722, %v686, 0
      %v739 = vsel %vm722, %v687, 0
      %v742 = vsel %vm722, %v688, 0
      %v745 = vsel %vm722, %v689, 0
      %747 = vmatprep.subr.bf16.mxu0 0
      %748 = vmatpush1.bf16.msra.mxu0 0
      %749 = vmatprep.subr.bf16.mxu0 0
      %750 = vmatpush1.bf16.msra.mxu0 0
      %751 = vmatprep.subr.bf16.mxu0 0
      %752 = vmatpush1.bf16.msra.mxu0 0
      %753 = vmatprep.subr.bf16.mxu0 0
      %754 = vmatpush1.bf16.msra.mxu0 0
      %755 = vmatprep.subr.bf16.mxu0 0
      %756 = vmatpush1.bf16.msra.mxu0 %v717
      %757 = vmatprep.subr.bf16.mxu0 0
      %758 = vmatpush1.bf16.msra.mxu0 %v716
      %759 = vmatprep.subr.bf16.mxu0 0
      %760 = vmatpush1.bf16.msra.mxu0 %v715
      %761 = vmatprep.subr.bf16.mxu0 0
      %762 = vmatpush1.bf16.msra.mxu0 %v714
      %763 = vmatprep.subr.bf16.mxu0 0
      %764 = vmatpush2.bf16.msra.mxu0 0
      %765 = vmatprep.subr.bf16.mxu0 0
      %766 = vmatpush2.bf16.msra.mxu0 0
      %767 = vmatprep.subr.bf16.mxu0 0
      %768 = vmatpush2.bf16.msra.mxu0 0
      %769 = vmatprep.subr.bf16.mxu0 0
      %770 = vmatpush2.bf16.msra.mxu0 0
      %771 = vmatprep.subr.bf16.mxu0 0
      %772 = vmatpush2.bf16.msra.mxu0 0
      %773 = vmatprep.subr.bf16.mxu0 0
      %774 = vmatpush2.bf16.msra.mxu0 0
      %775 = vmatprep.subr.bf16.mxu0 0
      %776 = vmatpush2.bf16.msra.mxu0 0
      %777 = vmatprep.subr.bf16.mxu0 0
      %778 = vmatpush2.bf16.msra.mxu0 0
      %779 = vmatprep.mubr.bf16.mxu0 0
      %780 = vmatmul.mubr.bf16.gmra.mxu0 %v724
      %v781 = vpop.f32.mrf.mxu0
      %v782 = vadd.f32 0.0, %v781
      %v783 = vpop.f32.mrf.mxu0
      %v784 = vpop.f32.mrf.mxu0
      %v785 = vadd.f32 0.0, %v784
      %v786 = vpop.f32.mrf.mxu0
      %787 = vmatprep.mubr.bf16.mxu0 0
      %788 = vmatmul.mubr.bf16.gmra.mxu0 %v727
      %v789 = vpop.f32.mrf.mxu0
      %v790 = vadd.f32 0.0, %v789
      %v791 = vpop.f32.mrf.mxu0
      %v792 = vpop.f32.mrf.mxu0
      %v793 = vadd.f32 0.0, %v792
      %v794 = vpop.f32.mrf.mxu0
      %795 = vmatprep.mubr.bf16.mxu0 0
      %796 = vmatmul.mubr.bf16.gmra.mxu0 %v730
      %v797 = vpop.f32.mrf.mxu0
      %v798 = vadd.f32 0.0, %v797
      %v799 = vpop.f32.mrf.mxu0
      %v800 = vpop.f32.mrf.mxu0
      %v801 = vadd.f32 0.0, %v800
      %v802 = vpop.f32.mrf.mxu0
      %803 = vmatprep.mubr.bf16.mxu0 0
      %804 = vmatmul.mubr.bf16.gmra.mxu0 %v733
      %v805 = vpop.f32.mrf.mxu0
      %v806 = vadd.f32 0.0, %v805
      %v807 = vpop.f32.mrf.mxu0
      %v808 = vpop.f32.mrf.mxu0
      %v809 = vadd.f32 0.0, %v808
      %v810 = vpop.f32.mrf.mxu0
      %811 = vmatprep.mubr.bf16.mxu0 0
      %812 = vmatmul.mubr.bf16.gmra.mxu0 %v736
      %v813 = vpop.f32.mrf.mxu0
      %v814 = vadd.f32 0.0, %v813
      %v815 = vpop.f32.mrf.mxu0
      %v816 = vpop.f32.mrf.mxu0
      %v817 = vadd.f32 0.0, %v816
      %v818 = vpop.f32.mrf.mxu0
      %819 = vmatprep.mubr.bf16.mxu0 0
      %820 = vmatmul.mubr.bf16.gmra.mxu0 %v739
      %v821 = vpop.f32.mrf.mxu0
      %v822 = vadd.f32 0.0, %v821
      %v823 = vpop.f32.mrf.mxu0
      %v824 = vpop.f32.mrf.mxu0
      %v825 = vadd.f32 0.0, %v824
      %v826 = vpop.f32.mrf.mxu0
      %827 = vmatprep.mubr.bf16.mxu0 0
      %828 = vmatmul.mubr.bf16.gmra.mxu0 %v742
      %v829 = vpop.f32.mrf.mxu0
      %v830 = vadd.f32 0.0, %v829
      %v831 = vpop.f32.mrf.mxu0
      %v832 = vpop.f32.mrf.mxu0
      %v833 = vadd.f32 0.0, %v832
      %v834 = vpop.f32.mrf.mxu0
      %835 = vmatprep.mubr.bf16.mxu0 0
      %836 = vmatmul.mubr.bf16.gmra.mxu0 %v745
      %v837 = vpop.f32.mrf.mxu0
      %v838 = vadd.f32 0.0, %v837
      %v839 = vpop.f32.mrf.mxu0
      %v840 = vpop.f32.mrf.mxu0
      %v841 = vadd.f32 0.0, %v840
      %v842 = vpop.f32.mrf.mxu0
      %843 = vdwg.mxu0
      %v844 = vld [vmem:[%s5] sm:$0x1]
      %v846 = vlaneseq
      %v847 = vshrl.u32 %v846, 7
      %v848 = vsub.s32 0, %v847
      %v849 = vrot.slane %v844, %v848
      %v851 = vmul.f32 %v782, %v849
      %v852 = vmul.f32 %v785, %v849
      %v853 = vmul.f32 %v790, %v849
      %v854 = vmul.f32 %v793, %v849
      %v855 = vmul.f32 %v798, %v849
      %v856 = vmul.f32 %v801, %v849
      %v857 = vmul.f32 %v806, %v849
      %v858 = vmul.f32 %v809, %v849
      %v859 = vmul.f32 %v814, %v849
      %v860 = vmul.f32 %v817, %v849
      %v861 = vmul.f32 %v822, %v849
      %v862 = vmul.f32 %v825, %v849
      %v863 = vmul.f32 %v830, %v849
      %v864 = vmul.f32 %v833, %v849
      %v865 = vmul.f32 %v838, %v849
      %v866 = vmul.f32 %v841, %v849
      %v867 = vld [vmem:[%s6] sm:$0x1]
      %v869 = vlaneseq
      %v870 = vshrl.u32 %v869, 7
      %v871 = vsub.s32 0, %v870
      %v872 = vrot.slane %v867, %v871
      %v874 = vadd.f32 %v851, %v872
      %v875 = vadd.f32 %v852, %v872
      %v876 = vadd.f32 %v853, %v872
      %v877 = vadd.f32 %v854, %v872
      %v878 = vadd.f32 %v855, %v872
      %v879 = vadd.f32 %v856, %v872
      %v880 = vadd.f32 %v857, %v872
      %v881 = vadd.f32 %v858, %v872
      %v882 = vadd.f32 %v859, %v872
      %v883 = vadd.f32 %v860, %v872
      %v884 = vadd.f32 %v861, %v872
      %v885 = vadd.f32 %v862, %v872
      %v886 = vadd.f32 %v863, %v872
      %v887 = vadd.f32 %v864, %v872
      %v888 = vadd.f32 %v865, %v872
      %v889 = vadd.f32 %v866, %v872
      %v890 = vmax.f32 %v874, 0.0
      %v891 = vmax.f32 %v875, 0.0
      %v892 = vmax.f32 %v876, 0.0
      %v893 = vmax.f32 %v877, 0.0
      %v894 = vmax.f32 %v878, 0.0
      %v895 = vmax.f32 %v879, 0.0
      %v896 = vmax.f32 %v880, 0.0
      %v897 = vmax.f32 %v881, 0.0
      %v898 = vmax.f32 %v882, 0.0
      %v899 = vmax.f32 %v883, 0.0
      %v900 = vmax.f32 %v884, 0.0
      %v901 = vmax.f32 %v885, 0.0
      %v902 = vmax.f32 %v886, 0.0
      %v903 = vmax.f32 %v887, 0.0
      %v904 = vmax.f32 %v888, 0.0
      %v905 = vmax.f32 %v889, 0.0
      %v906 = vpack.c.bf16 %v891, %v890
      %v907 = vpack.c.bf16 %v893, %v892
      %v908 = vpack.c.bf16 %v895, %v894
      %v909 = vpack.c.bf16 %v897, %v896
      %v910 = vpack.c.bf16 %v899, %v898
      %v911 = vpack.c.bf16 %v901, %v900
      %v912 = vpack.c.bf16 %v903, %v902
      %v913 = vpack.c.bf16 %v905, %v904
      %v914 = vld [vmem:[%s443] sm:$0xff]
      %v915 = vld [vmem:[%s443 + $0x20] sm:$0xff]
      %v916 = vld [vmem:[%s443 + $0x40] sm:$0xff]
      %v917 = vld [vmem:[%s443 + $0x60] sm:$0xff]
      %v918 = vld [vmem:[%s443 + $0x80] sm:$0xff]
      %v919 = vld [vmem:[%s443 + $0xa0] sm:$0xff]
      %v920 = vld [vmem:[%s443 + $0xc0] sm:$0xff]
      %v921 = vld [vmem:[%s443 + $0xe0] sm:$0xff]
      %v922 = vld [vmem:[%s443 + $0x100] sm:$0xff]
      %v923 = vld [vmem:[%s443 + $0x120] sm:$0xff]
      %v924 = vld [vmem:[%s443 + $0x140] sm:$0xff]
      %v925 = vld [vmem:[%s443 + $0x160] sm:$0xff]
      %v926 = vld [vmem:[%s443 + $0x180] sm:$0xff]
      %v927 = vld [vmem:[%s443 + $0x1a0] sm:$0xff]
      %v928 = vld [vmem:[%s443 + $0x1c0] sm:$0xff]
      %v929 = vld [vmem:[%s443 + $0x1e0] sm:$0xff]
      %v946 = vunpack.c.l.b16 %v914
      %v947 = vunpack.c.h.b16 %v914
      %v948 = vunpack.c.l.b16 %v915
      %v949 = vunpack.c.h.b16 %v915
      %v950 = vunpack.c.l.b16 %v916
      %v951 = vunpack.c.h.b16 %v916
      %v952 = vunpack.c.l.b16 %v917
      %v953 = vunpack.c.h.b16 %v917
      %v954 = vunpack.c.l.b16 %v918
      %v955 = vunpack.c.h.b16 %v918
      %v956 = vunpack.c.l.b16 %v919
      %v957 = vunpack.c.h.b16 %v919
      %v958 = vunpack.c.l.b16 %v920
      %v959 = vunpack.c.h.b16 %v920
      %v960 = vunpack.c.l.b16 %v921
      %v961 = vunpack.c.h.b16 %v921
      %v962 = vunpack.c.l.b16 %v922
      %v963 = vunpack.c.h.b16 %v922
      %v964 = vunpack.c.l.b16 %v923
      %v965 = vunpack.c.h.b16 %v923
      %v966 = vunpack.c.l.b16 %v924
      %v967 = vunpack.c.h.b16 %v924
      %v968 = vunpack.c.l.b16 %v925
      %v969 = vunpack.c.h.b16 %v925
      %v970 = vunpack.c.l.b16 %v926
      %v971 = vunpack.c.h.b16 %v926
      %v972 = vunpack.c.l.b16 %v927
      %v973 = vunpack.c.h.b16 %v927
      %v974 = vunpack.c.l.b16 %v928
      %v975 = vunpack.c.h.b16 %v928
      %v976 = vunpack.c.l.b16 %v929
      %v977 = vunpack.c.h.b16 %v929
      %v978 = vpack.c.b16 %v948, %v946
      %v979 = vpack.c.b16 %v949, %v947
      %v980 = vpack.c.b16 %v952, %v950
      %v981 = vpack.c.b16 %v953, %v951
      %v982 = vpack.c.b16 %v956, %v954
      %v983 = vpack.c.b16 %v957, %v955
      %v984 = vpack.c.b16 %v960, %v958
      %v985 = vpack.c.b16 %v961, %v959
      %v986 = vpack.c.b16 %v964, %v962
      %v987 = vpack.c.b16 %v965, %v963
      %v988 = vpack.c.b16 %v968, %v966
      %v989 = vpack.c.b16 %v969, %v967
      %v990 = vpack.c.b16 %v972, %v970
      %v991 = vpack.c.b16 %v973, %v971
      %v992 = vpack.c.b16 %v976, %v974
      %v993 = vpack.c.b16 %v977, %v975
      %1010 = vmatprep.subr.bf16.mxu0 %v993
      %1011 = vmatpush1.bf16.msra.mxu0 %v992
      %1012 = vmatprep.subr.bf16.mxu0 %v991
      %1013 = vmatpush1.bf16.msra.mxu0 %v990
      %1014 = vmatprep.subr.bf16.mxu0 %v989
      %1015 = vmatpush1.bf16.msra.mxu0 %v988
      %1016 = vmatprep.subr.bf16.mxu0 %v987
      %1017 = vmatpush1.bf16.msra.mxu0 %v986
      %1018 = vmatprep.subr.bf16.mxu0 %v985
      %1019 = vmatpush1.bf16.msra.mxu0 %v984
      %1020 = vmatprep.subr.bf16.mxu0 %v983
      %1021 = vmatpush1.bf16.msra.mxu0 %v982
      %1022 = vmatprep.subr.bf16.mxu0 %v981
      %1023 = vmatpush1.bf16.msra.mxu0 %v980
      %1024 = vmatprep.subr.bf16.mxu0 %v979
      %1025 = vmatpush1.bf16.msra.mxu0 %v978
      %1026 = vmatprep.subr.bf16.mxu0 0
      %1027 = vmatpush2.bf16.msra.mxu0 0
      %1028 = vmatprep.subr.bf16.mxu0 0
      %1029 = vmatpush2.bf16.msra.mxu0 0
      %1030 = vmatprep.subr.bf16.mxu0 0
      %1031 = vmatpush2.bf16.msra.mxu0 0
      %1032 = vmatprep.subr.bf16.mxu0 0
      %1033 = vmatpush2.bf16.msra.mxu0 0
      %1034 = vmatprep.subr.bf16.mxu0 0
      %1035 = vmatpush2.bf16.msra.mxu0 0
      %1036 = vmatprep.subr.bf16.mxu0 0
      %1037 = vmatpush2.bf16.msra.mxu0 0
      %1038 = vmatprep.subr.bf16.mxu0 0
      %1039 = vmatpush2.bf16.msra.mxu0 0
      %1040 = vmatprep.subr.bf16.mxu0 0
      %1041 = vmatpush2.bf16.msra.mxu0 0
      %1042 = vmatprep.mubr.bf16.mxu0 0
      %1043 = vmatmul.mubr.bf16.gmra.mxu0 %v906
      %v1044 = vpop.f32.mrf.mxu0
      %v1045 = vadd.f32 0.0, %v1044
      %v1046 = vpop.f32.mrf.mxu0
      %v1047 = vadd.f32 0.0, %v1046
      %v1048 = vpop.f32.mrf.mxu0
      %v1049 = vadd.f32 0.0, %v1048
      %v1050 = vpop.f32.mrf.mxu0
      %v1051 = vadd.f32 0.0, %v1050
      %1052 = vmatprep.mubr.bf16.mxu0 0
      %1053 = vmatmul.mubr.bf16.gmra.mxu0 %v907
      %v1054 = vpop.f32.mrf.mxu0
      %v1055 = vadd.f32 0.0, %v1054
      %v1056 = vpop.f32.mrf.mxu0
      %v1057 = vadd.f32 0.0, %v1056
      %v1058 = vpop.f32.mrf.mxu0
      %v1059 = vadd.f32 0.0, %v1058
      %v1060 = vpop.f32.mrf.mxu0
      %v1061 = vadd.f32 0.0, %v1060
      %1062 = vmatprep.mubr.bf16.mxu0 0
      %1063 = vmatmul.mubr.bf16.gmra.mxu0 %v908
      %v1064 = vpop.f32.mrf.mxu0
      %v1065 = vadd.f32 0.0, %v1064
      %v1066 = vpop.f32.mrf.mxu0
      %v1067 = vadd.f32 0.0, %v1066
      %v1068 = vpop.f32.mrf.mxu0
      %v1069 = vadd.f32 0.0, %v1068
      %v1070 = vpop.f32.mrf.mxu0
      %v1071 = vadd.f32 0.0, %v1070
      %1072 = vmatprep.mubr.bf16.mxu0 0
      %1073 = vmatmul.mubr.bf16.gmra.mxu0 %v909
      %v1074 = vpop.f32.mrf.mxu0
      %v1075 = vadd.f32 0.0, %v1074
      %v1076 = vpop.f32.mrf.mxu0
      %v1077 = vadd.f32 0.0, %v1076
      %v1078 = vpop.f32.mrf.mxu0
      %v1079 = vadd.f32 0.0, %v1078
      %v1080 = vpop.f32.mrf.mxu0
      %v1081 = vadd.f32 0.0, %v1080
      %1082 = vmatprep.mubr.bf16.mxu0 0
      %1083 = vmatmul.mubr.bf16.gmra.mxu0 %v910
      %v1084 = vpop.f32.mrf.mxu0
      %v1085 = vadd.f32 0.0, %v1084
      %v1086 = vpop.f32.mrf.mxu0
      %v1087 = vadd.f32 0.0, %v1086
      %v1088 = vpop.f32.mrf.mxu0
      %v1089 = vadd.f32 0.0, %v1088
      %v1090 = vpop.f32.mrf.mxu0
      %v1091 = vadd.f32 0.0, %v1090
      %1092 = vmatprep.mubr.bf16.mxu0 0
      %1093 = vmatmul.mubr.bf16.gmra.mxu0 %v911
      %v1094 = vpop.f32.mrf.mxu0
      %v1095 = vadd.f32 0.0, %v1094
      %v1096 = vpop.f32.mrf.mxu0
      %v1097 = vadd.f32 0.0, %v1096
      %v1098 = vpop.f32.mrf.mxu0
      %v1099 = vadd.f32 0.0, %v1098
      %v1100 = vpop.f32.mrf.mxu0
      %v1101 = vadd.f32 0.0, %v1100
      %1102 = vmatprep.mubr.bf16.mxu0 0
      %1103 = vmatmul.mubr.bf16.gmra.mxu0 %v912
      %v1104 = vpop.f32.mrf.mxu0
      %v1105 = vadd.f32 0.0, %v1104
      %v1106 = vpop.f32.mrf.mxu0
      %v1107 = vadd.f32 0.0, %v1106
      %v1108 = vpop.f32.mrf.mxu0
      %v1109 = vadd.f32 0.0, %v1108
      %v1110 = vpop.f32.mrf.mxu0
      %v1111 = vadd.f32 0.0, %v1110
      %1112 = vmatprep.mubr.bf16.mxu0 0
      %1113 = vmatmul.mubr.bf16.gmra.mxu0 %v913
      %v1114 = vpop.f32.mrf.mxu0
      %v1115 = vadd.f32 0.0, %v1114
      %v1116 = vpop.f32.mrf.mxu0
      %v1117 = vadd.f32 0.0, %v1116
      %v1118 = vpop.f32.mrf.mxu0
      %v1119 = vadd.f32 0.0, %v1118
      %v1120 = vpop.f32.mrf.mxu0
      %v1121 = vadd.f32 0.0, %v1120
      %1122 = vdwg.mxu0
      %v1123 = vmax.f32 %v1045, %v1055
      %v1124 = vmax.f32 %v1049, %v1059
      %v1125 = vmax.f32 %v1123, %v1065
      %v1126 = vmax.f32 %v1124, %v1069
      %v1127 = vmax.f32 %v1125, %v1075
      %v1128 = vmax.f32 %v1126, %v1079
      %v1129 = vmax.f32 %v1127, %v1085
      %v1130 = vmax.f32 %v1128, %v1089
      %v1131 = vmax.f32 %v1129, %v1095
      %v1132 = vmax.f32 %v1130, %v1099
      %v1133 = vmax.f32 %v1131, %v1105
      %v1134 = vmax.f32 %v1132, %v1109
      %v1135 = vmax.f32 %v1133, %v1115
      %v1136 = vmax.f32 %v1134, %v1119
      %v1137 = vmax.f32 %v1135, %v1136
      %v1138 = vrot.slane %v1137, 4
      %v1139 = vmax.f32 %v1137, %v1138
      %v1140 = vrot.slane %v1139, 2
      %v1141 = vmax.f32 %v1139, %v1140
      %v1142 = vrot.slane %v1141, 1
      %v1143 = vmax.f32 %v1141, %v1142
      %v1144 = vmax.f32 %v1047, %v1057
      %v1145 = vmax.f32 %v1051, %v1061
      %v1146 = vmax.f32 %v1144, %v1067
      %v1147 = vmax.f32 %v1145, %v1071
      %v1148 = vmax.f32 %v1146, %v1077
      %v1149 = vmax.f32 %v1147, %v1081
      %v1150 = vmax.f32 %v1148, %v1087
      %v1151 = vmax.f32 %v1149, %v1091
      %v1152 = vmax.f32 %v1150, %v1097
      %v1153 = vmax.f32 %v1151, %v1101
      %v1154 = vmax.f32 %v1152, %v1107
      %v1155 = vmax.f32 %v1153, %v1111
      %v1156 = vmax.f32 %v1154, %v1117
      %v1157 = vmax.f32 %v1155, %v1121
      %v1158 = vmax.f32 %v1156, %v1157
      %v1159 = vrot.slane %v1158, 4
      %v1160 = vmax.f32 %v1158, %v1159
      %v1161 = vrot.slane %v1160, 2
      %v1162 = vmax.f32 %v1160, %v1161
      %v1163 = vrot.slane %v1162, 1
      %v1164 = vmax.f32 %v1162, %v1163
      // Predicated region
      $region61: #{_lambda_.4} parent=59 // pred_check
        %p1165 = pneg %p465
      $region62: #{_lambda_.4} parent=59 // pred_check_branch
        %1167 = sbr.rel (%p1165) target = $region64
      $region63: #{_lambda_.4} parent=59 // pred_region
        %v1170 = vcombine.low %v1143, %v1164
        %v1172 = vunpack.c.l.s4 1966171168
        %v1173 = vunpack.c.0.s8 %v1172
        %v1174 = vlaneseq
        %v1175 = vshrl.u32 %v1174, 7
        %v1176 = vsub.s32 %v1173, %v1175
        %v1177 = vrot.slane %v1170, %v1176
        %v1179 = vunpack.c.l.s4 1966171168
        %v1180 = vunpack.c.0.s8 %v1179
        %v1181 = vlaneseq
        %v1182 = vshrl.u32 %v1181, 7
        %v1183 = vsub.s32 %v1180, %v1182
        %v1184 = vrot.slane %v1177, %v1183
        %v1186 = vlaneseq
        %vm1187 = vcmp.ge.s32.totalorder %v1186, 0
        %vm1188 = vcmp.lt.s32.totalorder %v1186, 256
        %vm1189 = vmand %vm1187, %vm1188
        %1190 = vst.msk [vmem:[%s462] sm:$0x3] %vm1189, %v1184
      $region64: #{_lambda_.4} parent=59 // pred_fallthru
        _
      %p1191 = scmp.ne.s32.totalorder %s28, 0
      // Predicated region
      $region65: #{_lambda_.4} parent=59 // pred_check
        %p1192 = pneg %p1191
      $region66: #{_lambda_.4} parent=59 // pred_check_branch
        %1194 = sbr.rel (%p1192) target = $region68
      $region67: #{_lambda_.4} parent=59 // pred_region
        %v1195 = vld [vmem:[%s462] sm:$0x3]
        %v1198 = vcombine.low %v1143, %v1164
        %v1200 = vunpack.c.l.s4 1966171168
        %v1201 = vunpack.c.0.s8 %v1200
        %v1202 = vlaneseq
        %v1203 = vshrl.u32 %v1202, 7
        %v1204 = vsub.s32 %v1201, %v1203
        %v1205 = vrot.slane %v1198, %v1204
        %v1207 = vunpack.c.l.s4 1966171168
        %v1208 = vunpack.c.0.s8 %v1207
        %v1209 = vlaneseq
        %v1210 = vshrl.u32 %v1209, 7
        %v1211 = vsub.s32 %v1208, %v1210
        %v1212 = vrot.slane %v1205, %v1211
        %v1214 = vmax.f32 %v1195, %v1212
        %v1215 = vlaneseq
        %vm1216 = vcmp.ge.s32.totalorder %v1215, 0
        %vm1217 = vcmp.lt.s32.totalorder %v1215, 256
        %vm1218 = vmand %vm1216, %vm1217
        %1219 = vst.msk [vmem:[%s462] sm:$0x3] %vm1218, %v1214
      $region68: #{_lambda_.4} parent=59 // pred_fallthru
        _
      %v1220 = vld [vmem:[%s443 + $0x8] sm:$0xff]
      %v1221 = vld [vmem:[%s443 + $0x28] sm:$0xff]
      %v1222 = vld [vmem:[%s443 + $0x48] sm:$0xff]
      %v1223 = vld [vmem:[%s443 + $0x68] sm:$0xff]
      %v1224 = vld [vmem:[%s443 + $0x88] sm:$0xff]
      %v1225 = vld [vmem:[%s443 + $0xa8] sm:$0xff]
      %v1226 = vld [vmem:[%s443 + $0xc8] sm:$0xff]
      %v1227 = vld [vmem:[%s443 + $0xe8] sm:$0xff]
      %v1228 = vld [vmem:[%s443 + $0x108] sm:$0xff]
      %v1229 = vld [vmem:[%s443 + $0x128] sm:$0xff]
      %v1230 = vld [vmem:[%s443 + $0x148] sm:$0xff]
      %v1231 = vld [vmem:[%s443 + $0x168] sm:$0xff]
      %v1232 = vld [vmem:[%s443 + $0x188] sm:$0xff]
      %v1233 = vld [vmem:[%s443 + $0x1a8] sm:$0xff]
      %v1234 = vld [vmem:[%s443 + $0x1c8] sm:$0xff]
      %v1235 = vld [vmem:[%s443 + $0x1e8] sm:$0xff]
      %v1252 = vunpack.c.l.b16 %v1220
      %v1253 = vunpack.c.h.b16 %v1220
      %v1254 = vunpack.c.l.b16 %v1221
      %v1255 = vunpack.c.h.b16 %v1221
      %v1256 = vunpack.c.l.b16 %v1222
      %v1257 = vunpack.c.h.b16 %v1222
      %v1258 = vunpack.c.l.b16 %v1223
      %v1259 = vunpack.c.h.b16 %v1223
      %v1260 = vunpack.c.l.b16 %v1224
      %v1261 = vunpack.c.h.b16 %v1224
      %v1262 = vunpack.c.l.b16 %v1225
      %v1263 = vunpack.c.h.b16 %v1225
      %v1264 = vunpack.c.l.b16 %v1226
      %v1265 = vunpack.c.h.b16 %v1226
      %v1266 = vunpack.c.l.b16 %v1227
      %v1267 = vunpack.c.h.b16 %v1227
      %v1268 = vunpack.c.l.b16 %v1228
      %v1269 = vunpack.c.h.b16 %v1228
      %v1270 = vunpack.c.l.b16 %v1229
      %v1271 = vunpack.c.h.b16 %v1229
      %v1272 = vunpack.c.l.b16 %v1230
      %v1273 = vunpack.c.h.b16 %v1230
      %v1274 = vunpack.c.l.b16 %v1231
      %v1275 = vunpack.c.h.b16 %v1231
      %v1276 = vunpack.c.l.b16 %v1232
      %v1277 = vunpack.c.h.b16 %v1232
      %v1278 = vunpack.c.l.b16 %v1233
      %v1279 = vunpack.c.h.b16 %v1233
      %v1280 = vunpack.c.l.b16 %v1234
      %v1281 = vunpack.c.h.b16 %v1234
      %v1282 = vunpack.c.l.b16 %v1235
      %v1283 = vunpack.c.h.b16 %v1235
      %v1284 = vpack.c.b16 %v1254, %v1252
      %v1285 = vpack.c.b16 %v1255, %v1253
      %v1286 = vpack.c.b16 %v1258, %v1256
      %v1287 = vpack.c.b16 %v1259, %v1257
      %v1288 = vpack.c.b16 %v1262, %v1260
      %v1289 = vpack.c.b16 %v1263, %v1261
      %v1290 = vpack.c.b16 %v1266, %v1264
      %v1291 = vpack.c.b16 %v1267, %v1265
      %v1292 = vpack.c.b16 %v1270, %v1268
      %v1293 = vpack.c.b16 %v1271, %v1269
      %v1294 = vpack.c.b16 %v1274, %v1272
      %v1295 = vpack.c.b16 %v1275, %v1273
      %v1296 = vpack.c.b16 %v1278, %v1276
      %v1297 = vpack.c.b16 %v1279, %v1277
      %v1298 = vpack.c.b16 %v1282, %v1280
      %v1299 = vpack.c.b16 %v1283, %v1281
      %1316 = vmatprep.subr.bf16.mxu0 %v1299
      %1317 = vmatpush1.bf16.msra.mxu0 %v1298
      %1318 = vmatprep.subr.bf16.mxu0 %v1297
      %1319 = vmatpush1.bf16.msra.mxu0 %v1296
      %1320 = vmatprep.subr.bf16.mxu0 %v1295
      %1321 = vmatpush1.bf16.msra.mxu0 %v1294
      %1322 = vmatprep.subr.bf16.mxu0 %v1293
      %1323 = vmatpush1.bf16.msra.mxu0 %v1292
      %1324 = vmatprep.subr.bf16.mxu0 %v1291
      %1325 = vmatpush1.bf16.msra.mxu0 %v1290
      %1326 = vmatprep.subr.bf16.mxu0 %v1289
      %1327 = vmatpush1.bf16.msra.mxu0 %v1288
      %1328 = vmatprep.subr.bf16.mxu0 %v1287
      %1329 = vmatpush1.bf16.msra.mxu0 %v1286
      %1330 = vmatprep.subr.bf16.mxu0 %v1285
      %1331 = vmatpush1.bf16.msra.mxu0 %v1284
      %1332 = vmatprep.subr.bf16.mxu0 0
      %1333 = vmatpush2.bf16.msra.mxu0 0
      %1334 = vmatprep.subr.bf16.mxu0 0
      %1335 = vmatpush2.bf16.msra.mxu0 0
      %1336 = vmatprep.subr.bf16.mxu0 0
      %1337 = vmatpush2.bf16.msra.mxu0 0
      %1338 = vmatprep.subr.bf16.mxu0 0
      %1339 = vmatpush2.bf16.msra.mxu0 0
      %1340 = vmatprep.subr.bf16.mxu0 0
      %1341 = vmatpush2.bf16.msra.mxu0 0
      %1342 = vmatprep.subr.bf16.mxu0 0
      %1343 = vmatpush2.bf16.msra.mxu0 0
      %1344 = vmatprep.subr.bf16.mxu0 0
      %1345 = vmatpush2.bf16.msra.mxu0 0
      %1346 = vmatprep.subr.bf16.mxu0 0
      %1347 = vmatpush2.bf16.msra.mxu0 0
      %1348 = vmatprep.mubr.bf16.mxu0 0
      %1349 = vmatmul.mubr.bf16.gmra.mxu0 %v906
      %v1350 = vpop.f32.mrf.mxu0
      %v1351 = vadd.f32 0.0, %v1350
      %v1352 = vpop.f32.mrf.mxu0
      %v1353 = vadd.f32 0.0, %v1352
      %v1354 = vpop.f32.mrf.mxu0
      %v1355 = vadd.f32 0.0, %v1354
      %v1356 = vpop.f32.mrf.mxu0
      %v1357 = vadd.f32 0.0, %v1356
      %1358 = vmatprep.mubr.bf16.mxu0 0
      %1359 = vmatmul.mubr.bf16.gmra.mxu0 %v907
      %v1360 = vpop.f32.mrf.mxu0
      %v1361 = vadd.f32 0.0, %v1360
      %v1362 = vpop.f32.mrf.mxu0
      %v1363 = vadd.f32 0.0, %v1362
      %v1364 = vpop.f32.mrf.mxu0
      %v1365 = vadd.f32 0.0, %v1364
      %v1366 = vpop.f32.mrf.mxu0
      %v1367 = vadd.f32 0.0, %v1366
      %1368 = vmatprep.mubr.bf16.mxu0 0
      %1369 = vmatmul.mubr.bf16.gmra.mxu0 %v908
      %v1370 = vpop.f32.mrf.mxu0
      %v1371 = vadd.f32 0.0, %v1370
      %v1372 = vpop.f32.mrf.mxu0
      %v1373 = vadd.f32 0.0, %v1372
      %v1374 = vpop.f32.mrf.mxu0
      %v1375 = vadd.f32 0.0, %v1374
      %v1376 = vpop.f32.mrf.mxu0
      %v1377 = vadd.f32 0.0, %v1376
      %1378 = vmatprep.mubr.bf16.mxu0 0
      %1379 = vmatmul.mubr.bf16.gmra.mxu0 %v909
      %v1380 = vpop.f32.mrf.mxu0
      %v1381 = vadd.f32 0.0, %v1380
      %v1382 = vpop.f32.mrf.mxu0
      %v1383 = vadd.f32 0.0, %v1382
      %v1384 = vpop.f32.mrf.mxu0
      %v1385 = vadd.f32 0.0, %v1384
      %v1386 = vpop.f32.mrf.mxu0
      %v1387 = vadd.f32 0.0, %v1386
      %1388 = vmatprep.mubr.bf16.mxu0 0
      %1389 = vmatmul.mubr.bf16.gmra.mxu0 %v910
      %v1390 = vpop.f32.mrf.mxu0
      %v1391 = vadd.f32 0.0, %v1390
      %v1392 = vpop.f32.mrf.mxu0
      %v1393 = vadd.f32 0.0, %v1392
      %v1394 = vpop.f32.mrf.mxu0
      %v1395 = vadd.f32 0.0, %v1394
      %v1396 = vpop.f32.mrf.mxu0
      %v1397 = vadd.f32 0.0, %v1396
      %1398 = vmatprep.mubr.bf16.mxu0 0
      %1399 = vmatmul.mubr.bf16.gmra.mxu0 %v911
      %v1400 = vpop.f32.mrf.mxu0
      %v1401 = vadd.f32 0.0, %v1400
      %v1402 = vpop.f32.mrf.mxu0
      %v1403 = vadd.f32 0.0, %v1402
      %v1404 = vpop.f32.mrf.mxu0
      %v1405 = vadd.f32 0.0, %v1404
      %v1406 = vpop.f32.mrf.mxu0
      %v1407 = vadd.f32 0.0, %v1406
      %1408 = vmatprep.mubr.bf16.mxu0 0
      %1409 = vmatmul.mubr.bf16.gmra.mxu0 %v912
      %v1410 = vpop.f32.mrf.mxu0
      %v1411 = vadd.f32 0.0, %v1410
      %v1412 = vpop.f32.mrf.mxu0
      %v1413 = vadd.f32 0.0, %v1412
      %v1414 = vpop.f32.mrf.mxu0
      %v1415 = vadd.f32 0.0, %v1414
      %v1416 = vpop.f32.mrf.mxu0
      %v1417 = vadd.f32 0.0, %v1416
      %1418 = vmatprep.mubr.bf16.mxu0 0
      %1419 = vmatmul.mubr.bf16.gmra.mxu0 %v913
      %v1420 = vpop.f32.mrf.mxu0
      %v1421 = vadd.f32 0.0, %v1420
      %v1422 = vpop.f32.mrf.mxu0
      %v1423 = vadd.f32 0.0, %v1422
      %v1424 = vpop.f32.mrf.mxu0
      %v1425 = vadd.f32 0.0, %v1424
      %v1426 = vpop.f32.mrf.mxu0
      %v1427 = vadd.f32 0.0, %v1426
      %1428 = vdwg.mxu0
      %v1429 = vmax.f32 %v1351, %v1361
      %v1430 = vmax.f32 %v1355, %v1365
      %v1431 = vmax.f32 %v1429, %v1371
      %v1432 = vmax.f32 %v1430, %v1375
      %v1433 = vmax.f32 %v1431, %v1381
      %v1434 = vmax.f32 %v1432, %v1385
      %v1435 = vmax.f32 %v1433, %v1391
      %v1436 = vmax.f32 %v1434, %v1395
      %v1437 = vmax.f32 %v1435, %v1401
      %v1438 = vmax.f32 %v1436, %v1405
      %v1439 = vmax.f32 %v1437, %v1411
      %v1440 = vmax.f32 %v1438, %v1415
      %v1441 = vmax.f32 %v1439, %v1421
      %v1442 = vmax.f32 %v1440, %v1425
      %v1443 = vmax.f32 %v1441, %v1442
      %v1444 = vrot.slane %v1443, 4
      %v1445 = vmax.f32 %v1443, %v1444
      %v1446 = vrot.slane %v1445, 2
      %v1447 = vmax.f32 %v1445, %v1446
      %v1448 = vrot.slane %v1447, 1
      %v1449 = vmax.f32 %v1447, %v1448
      %v1450 = vmax.f32 %v1353, %v1363
      %v1451 = vmax.f32 %v1357, %v1367
      %v1452 = vmax.f32 %v1450, %v1373
      %v1453 = vmax.f32 %v1451, %v1377
      %v1454 = vmax.f32 %v1452, %v1383
      %v1455 = vmax.f32 %v1453, %v1387
      %v1456 = vmax.f32 %v1454, %v1393
      %v1457 = vmax.f32 %v1455, %v1397
      %v1458 = vmax.f32 %v1456, %v1403
      %v1459 = vmax.f32 %v1457, %v1407
      %v1460 = vmax.f32 %v1458, %v1413
      %v1461 = vmax.f32 %v1459, %v1417
      %v1462 = vmax.f32 %v1460, %v1423
      %v1463 = vmax.f32 %v1461, %v1427
      %v1464 = vmax.f32 %v1462, %v1463
      %v1465 = vrot.slane %v1464, 4
      %v1466 = vmax.f32 %v1464, %v1465
      %v1467 = vrot.slane %v1466, 2
      %v1468 = vmax.f32 %v1466, %v1467
      %v1469 = vrot.slane %v1468, 1
      %v1470 = vmax.f32 %v1468, %v1469
      // Predicated region
      $region69: #{_lambda_.4} parent=59 // pred_check
        %p1471 = pneg %p465
      $region70: #{_lambda_.4} parent=59 // pred_check_branch
        %1473 = sbr.rel (%p1471) target = $region72
      $region71: #{_lambda_.4} parent=59 // pred_region
        %v1476 = vcombine.low %v1449, %v1470
        %v1478 = vunpack.c.l.s4 1966171168
        %v1479 = vunpack.c.0.s8 %v1478
        %v1480 = vlaneseq
        %v1481 = vshrl.u32 %v1480, 7
        %v1482 = vsub.s32 %v1479, %v1481
        %v1483 = vrot.slane %v1476, %v1482
        %v1485 = vunpack.c.l.s4 1966171168
        %v1486 = vunpack.c.0.s8 %v1485
        %v1487 = vlaneseq
        %v1488 = vshrl.u32 %v1487, 7
        %v1489 = vsub.s32 %v1486, %v1488
        %v1490 = vrot.slane %v1483, %v1489
        %v1492 = vlaneseq
        %vm1493 = vcmp.ge.s32.totalorder %v1492, 0
        %vm1494 = vcmp.lt.s32.totalorder %v1492, 256
        %vm1495 = vmand %vm1493, %vm1494
        %1496 = vst.msk [vmem:[%s462 + $0x2] sm:$0x3] %vm1495, %v1490
      $region72: #{_lambda_.4} parent=59 // pred_fallthru
        _
      // Predicated region
      $region73: #{_lambda_.4} parent=59 // pred_check
        %p1497 = pneg %p1191
      $region74: #{_lambda_.4} parent=59 // pred_check_branch
        %1499 = sbr.rel (%p1497) target = $region76
      $region75: #{_lambda_.4} parent=59 // pred_region
        %v1500 = vld [vmem:[%s462 + $0x2] sm:$0x3]
        %v1503 = vcombine.low %v1449, %v1470
        %v1505 = vunpack.c.l.s4 1966171168
        %v1506 = vunpack.c.0.s8 %v1505
        %v1507 = vlaneseq
        %v1508 = vshrl.u32 %v1507, 7
        %v1509 = vsub.s32 %v1506, %v1508
        %v1510 = vrot.slane %v1503, %v1509
        %v1512 = vunpack.c.l.s4 1966171168
        %v1513 = vunpack.c.0.s8 %v1512
        %v1514 = vlaneseq
        %v1515 = vshrl.u32 %v1514, 7
        %v1516 = vsub.s32 %v1513, %v1515
        %v1517 = vrot.slane %v1510, %v1516
        %v1519 = vmax.f32 %v1500, %v1517
        %v1520 = vlaneseq
        %vm1521 = vcmp.ge.s32.totalorder %v1520, 0
        %vm1522 = vcmp.lt.s32.totalorder %v1520, 256
        %vm1523 = vmand %vm1521, %vm1522
        %1524 = vst.msk [vmem:[%s462 + $0x2] sm:$0x3] %vm1523, %v1519
      $region76: #{_lambda_.4} parent=59 // pred_fallthru
        _
      %v1525 = vld [vmem:[%s443 + $0x10] sm:$0xff]
      %v1526 = vld [vmem:[%s443 + $0x30] sm:$0xff]
      %v1527 = vld [vmem:[%s443 + $0x50] sm:$0xff]
      %v1528 = vld [vmem:[%s443 + $0x70] sm:$0xff]
      %v1529 = vld [vmem:[%s443 + $0x90] sm:$0xff]
      %v1530 = vld [vmem:[%s443 + $0xb0] sm:$0xff]
      %v1531 = vld [vmem:[%s443 + $0xd0] sm:$0xff]
      %v1532 = vld [vmem:[%s443 + $0xf0] sm:$0xff]
      %v1533 = vld [vmem:[%s443 + $0x110] sm:$0xff]
      %v1534 = vld [vmem:[%s443 + $0x130] sm:$0xff]
      %v1535 = vld [vmem:[%s443 + $0x150] sm:$0xff]
      %v1536 = vld [vmem:[%s443 + $0x170] sm:$0xff]
      %v1537 = vld [vmem:[%s443 + $0x190] sm:$0xff]
      %v1538 = vld [vmem:[%s443 + $0x1b0] sm:$0xff]
      %v1539 = vld [vmem:[%s443 + $0x1d0] sm:$0xff]
      %v1540 = vld [vmem:[%s443 + $0x1f0] sm:$0xff]
      %v1557 = vunpack.c.l.b16 %v1525
      %v1558 = vunpack.c.h.b16 %v1525
      %v1559 = vunpack.c.l.b16 %v1526
      %v1560 = vunpack.c.h.b16 %v1526
      %v1561 = vunpack.c.l.b16 %v1527
      %v1562 = vunpack.c.h.b16 %v1527
      %v1563 = vunpack.c.l.b16 %v1528
      %v1564 = vunpack.c.h.b16 %v1528
      %v1565 = vunpack.c.l.b16 %v1529
      %v1566 = vunpack.c.h.b16 %v1529
      %v1567 = vunpack.c.l.b16 %v1530
      %v1568 = vunpack.c.h.b16 %v1530
      %v1569 = vunpack.c.l.b16 %v1531
      %v1570 = vunpack.c.h.b16 %v1531
      %v1571 = vunpack.c.l.b16 %v1532
      %v1572 = vunpack.c.h.b16 %v1532
      %v1573 = vunpack.c.l.b16 %v1533
      %v1574 = vunpack.c.h.b16 %v1533
      %v1575 = vunpack.c.l.b16 %v1534
      %v1576 = vunpack.c.h.b16 %v1534
      %v1577 = vunpack.c.l.b16 %v1535
      %v1578 = vunpack.c.h.b16 %v1535
      %v1579 = vunpack.c.l.b16 %v1536
      %v1580 = vunpack.c.h.b16 %v1536
      %v1581 = vunpack.c.l.b16 %v1537
      %v1582 = vunpack.c.h.b16 %v1537
      %v1583 = vunpack.c.l.b16 %v1538
      %v1584 = vunpack.c.h.b16 %v1538
      %v1585 = vunpack.c.l.b16 %v1539
      %v1586 = vunpack.c.h.b16 %v1539
      %v1587 = vunpack.c.l.b16 %v1540
      %v1588 = vunpack.c.h.b16 %v1540
      %v1589 = vpack.c.b16 %v1559, %v1557
      %v1590 = vpack.c.b16 %v1560, %v1558
      %v1591 = vpack.c.b16 %v1563, %v1561
      %v1592 = vpack.c.b16 %v1564, %v1562
      %v1593 = vpack.c.b16 %v1567, %v1565
      %v1594 = vpack.c.b16 %v1568, %v1566
      %v1595 = vpack.c.b16 %v1571, %v1569
      %v1596 = vpack.c.b16 %v1572, %v1570
      %v1597 = vpack.c.b16 %v1575, %v1573
      %v1598 = vpack.c.b16 %v1576, %v1574
      %v1599 = vpack.c.b16 %v1579, %v1577
      %v1600 = vpack.c.b16 %v1580, %v1578
      %v1601 = vpack.c.b16 %v1583, %v1581
      %v1602 = vpack.c.b16 %v1584, %v1582
      %v1603 = vpack.c.b16 %v1587, %v1585
      %v1604 = vpack.c.b16 %v1588, %v1586
      %1621 = vmatprep.subr.bf16.mxu0 %v1604
      %1622 = vmatpush1.bf16.msra.mxu0 %v1603
      %1623 = vmatprep.subr.bf16.mxu0 %v1602
      %1624 = vmatpush1.bf16.msra.mxu0 %v1601
      %1625 = vmatprep.subr.bf16.mxu0 %v1600
      %1626 = vmatpush1.bf16.msra.mxu0 %v1599
      %1627 = vmatprep.subr.bf16.mxu0 %v1598
      %1628 = vmatpush1.bf16.msra.mxu0 %v1597
      %1629 = vmatprep.subr.bf16.mxu0 %v1596
      %1630 = vmatpush1.bf16.msra.mxu0 %v1595
      %1631 = vmatprep.subr.bf16.mxu0 %v1594
      %1632 = vmatpush1.bf16.msra.mxu0 %v1593
      %1633 = vmatprep.subr.bf16.mxu0 %v1592
      %1634 = vmatpush1.bf16.msra.mxu0 %v1591
      %1635 = vmatprep.subr.bf16.mxu0 %v1590
      %1636 = vmatpush1.bf16.msra.mxu0 %v1589
      %1637 = vmatprep.subr.bf16.mxu0 0
      %1638 = vmatpush2.bf16.msra.mxu0 0
      %1639 = vmatprep.subr.bf16.mxu0 0
      %1640 = vmatpush2.bf16.msra.mxu0 0
      %1641 = vmatprep.subr.bf16.mxu0 0
      %1642 = vmatpush2.bf16.msra.mxu0 0
      %1643 = vmatprep.subr.bf16.mxu0 0
      %1644 = vmatpush2.bf16.msra.mxu0 0
      %1645 = vmatprep.subr.bf16.mxu0 0
      %1646 = vmatpush2.bf16.msra.mxu0 0
      %1647 = vmatprep.subr.bf16.mxu0 0
      %1648 = vmatpush2.bf16.msra.mxu0 0
      %1649 = vmatprep.subr.bf16.mxu0 0
      %1650 = vmatpush2.bf16.msra.mxu0 0
      %1651 = vmatprep.subr.bf16.mxu0 0
      %1652 = vmatpush2.bf16.msra.mxu0 0
      %1653 = vmatprep.mubr.bf16.mxu0 0
      %1654 = vmatmul.mubr.bf16.gmra.mxu0 %v906
      %v1655 = vpop.f32.mrf.mxu0
      %v1656 = vadd.f32 0.0, %v1655
      %v1657 = vpop.f32.mrf.mxu0
      %v1658 = vadd.f32 0.0, %v1657
      %v1659 = vpop.f32.mrf.mxu0
      %v1660 = vadd.f32 0.0, %v1659
      %v1661 = vpop.f32.mrf.mxu0
      %v1662 = vadd.f32 0.0, %v1661
      %1663 = vmatprep.mubr.bf16.mxu0 0
      %1664 = vmatmul.mubr.bf16.gmra.mxu0 %v907
      %v1665 = vpop.f32.mrf.mxu0
      %v1666 = vadd.f32 0.0, %v1665
      %v1667 = vpop.f32.mrf.mxu0
      %v1668 = vadd.f32 0.0, %v1667
      %v1669 = vpop.f32.mrf.mxu0
      %v1670 = vadd.f32 0.0, %v1669
      %v1671 = vpop.f32.mrf.mxu0
      %v1672 = vadd.f32 0.0, %v1671
      %1673 = vmatprep.mubr.bf16.mxu0 0
      %1674 = vmatmul.mubr.bf16.gmra.mxu0 %v908
      %v1675 = vpop.f32.mrf.mxu0
      %v1676 = vadd.f32 0.0, %v1675
      %v1677 = vpop.f32.mrf.mxu0
      %v1678 = vadd.f32 0.0, %v1677
      %v1679 = vpop.f32.mrf.mxu0
      %v1680 = vadd.f32 0.0, %v1679
      %v1681 = vpop.f32.mrf.mxu0
      %v1682 = vadd.f32 0.0, %v1681
      %1683 = vmatprep.mubr.bf16.mxu0 0
      %1684 = vmatmul.mubr.bf16.gmra.mxu0 %v909
      %v1685 = vpop.f32.mrf.mxu0
      %v1686 = vadd.f32 0.0, %v1685
      %v1687 = vpop.f32.mrf.mxu0
      %v1688 = vadd.f32 0.0, %v1687
      %v1689 = vpop.f32.mrf.mxu0
      %v1690 = vadd.f32 0.0, %v1689
      %v1691 = vpop.f32.mrf.mxu0
      %v1692 = vadd.f32 0.0, %v1691
      %1693 = vmatprep.mubr.bf16.mxu0 0
      %1694 = vmatmul.mubr.bf16.gmra.mxu0 %v910
      %v1695 = vpop.f32.mrf.mxu0
      %v1696 = vadd.f32 0.0, %v1695
      %v1697 = vpop.f32.mrf.mxu0
      %v1698 = vadd.f32 0.0, %v1697
      %v1699 = vpop.f32.mrf.mxu0
      %v1700 = vadd.f32 0.0, %v1699
      %v1701 = vpop.f32.mrf.mxu0
      %v1702 = vadd.f32 0.0, %v1701
      %1703 = vmatprep.mubr.bf16.mxu0 0
      %1704 = vmatmul.mubr.bf16.gmra.mxu0 %v911
      %v1705 = vpop.f32.mrf.mxu0
      %v1706 = vadd.f32 0.0, %v1705
      %v1707 = vpop.f32.mrf.mxu0
      %v1708 = vadd.f32 0.0, %v1707
      %v1709 = vpop.f32.mrf.mxu0
      %v1710 = vadd.f32 0.0, %v1709
      %v1711 = vpop.f32.mrf.mxu0
      %v1712 = vadd.f32 0.0, %v1711
      %1713 = vmatprep.mubr.bf16.mxu0 0
      %1714 = vmatmul.mubr.bf16.gmra.mxu0 %v912
      %v1715 = vpop.f32.mrf.mxu0
      %v1716 = vadd.f32 0.0, %v1715
      %v1717 = vpop.f32.mrf.mxu0
      %v1718 = vadd.f32 0.0, %v1717
      %v1719 = vpop.f32.mrf.mxu0
      %v1720 = vadd.f32 0.0, %v1719
      %v1721 = vpop.f32.mrf.mxu0
      %v1722 = vadd.f32 0.0, %v1721
      %1723 = vmatprep.mubr.bf16.mxu0 0
      %1724 = vmatmul.mubr.bf16.gmra.mxu0 %v913
      %v1725 = vpop.f32.mrf.mxu0
      %v1726 = vadd.f32 0.0, %v1725
      %v1727 = vpop.f32.mrf.mxu0
      %v1728 = vadd.f32 0.0, %v1727
      %v1729 = vpop.f32.mrf.mxu0
      %v1730 = vadd.f32 0.0, %v1729
      %v1731 = vpop.f32.mrf.mxu0
      %v1732 = vadd.f32 0.0, %v1731
      %1733 = vdwg.mxu0
      %v1734 = vmax.f32 %v1656, %v1666
      %v1735 = vmax.f32 %v1660, %v1670
      %v1736 = vmax.f32 %v1734, %v1676
      %v1737 = vmax.f32 %v1735, %v1680
      %v1738 = vmax.f32 %v1736, %v1686
      %v1739 = vmax.f32 %v1737, %v1690
      %v1740 = vmax.f32 %v1738, %v1696
      %v1741 = vmax.f32 %v1739, %v1700
      %v1742 = vmax.f32 %v1740, %v1706
      %v1743 = vmax.f32 %v1741, %v1710
      %v1744 = vmax.f32 %v1742, %v1716
      %v1745 = vmax.f32 %v1743, %v1720
      %v1746 = vmax.f32 %v1744, %v1726
      %v1747 = vmax.f32 %v1745, %v1730
      %v1748 = vmax.f32 %v1746, %v1747
      %v1749 = vrot.slane %v1748, 4
      %v1750 = vmax.f32 %v1748, %v1749
      %v1751 = vrot.slane %v1750, 2
      %v1752 = vmax.f32 %v1750, %v1751
      %v1753 = vrot.slane %v1752, 1
      %v1754 = vmax.f32 %v1752, %v1753
      %v1755 = vmax.f32 %v1658, %v1668
      %v1756 = vmax.f32 %v1662, %v1672
      %v1757 = vmax.f32 %v1755, %v1678
      %v1758 = vmax.f32 %v1756, %v1682
      %v1759 = vmax.f32 %v1757, %v1688
      %v1760 = vmax.f32 %v1758, %v1692
      %v1761 = vmax.f32 %v1759, %v1698
      %v1762 = vmax.f32 %v1760, %v1702
      %v1763 = vmax.f32 %v1761, %v1708
      %v1764 = vmax.f32 %v1762, %v1712
      %v1765 = vmax.f32 %v1763, %v1718
      %v1766 = vmax.f32 %v1764, %v1722
      %v1767 = vmax.f32 %v1765, %v1728
      %v1768 = vmax.f32 %v1766, %v1732
      %v1769 = vmax.f32 %v1767, %v1768
      %v1770 = vrot.slane %v1769, 4
      %v1771 = vmax.f32 %v1769, %v1770
      %v1772 = vrot.slane %v1771, 2
      %v1773 = vmax.f32 %v1771, %v1772
      %v1774 = vrot.slane %v1773, 1
      %v1775 = vmax.f32 %v1773, %v1774
      // Predicated region
      $region77: #{_lambda_.4} parent=59 // pred_check
        %p1776 = pneg %p465
      $region78: #{_lambda_.4} parent=59 // pred_check_branch
        %1778 = sbr.rel (%p1776) target = $region80
      $region79: #{_lambda_.4} parent=59 // pred_region
        %v1781 = vcombine.low %v1754, %v1775
        %v1783 = vunpack.c.l.s4 1966171168
        %v1784 = vunpack.c.0.s8 %v1783
        %v1785 = vlaneseq
        %v1786 = vshrl.u32 %v1785, 7
        %v1787 = vsub.s32 %v1784, %v1786
        %v1788 = vrot.slane %v1781, %v1787
        %v1790 = vunpack.c.l.s4 1966171168
        %v1791 = vunpack.c.0.s8 %v1790
        %v1792 = vlaneseq
        %v1793 = vshrl.u32 %v1792, 7
        %v1794 = vsub.s32 %v1791, %v1793
        %v1795 = vrot.slane %v1788, %v1794
        %v1797 = vlaneseq
        %vm1798 = vcmp.ge.s32.totalorder %v1797, 0
        %vm1799 = vcmp.lt.s32.totalorder %v1797, 256
        %vm1800 = vmand %vm1798, %vm1799
        %1801 = vst.msk [vmem:[%s462 + $0x4] sm:$0x3] %vm1800, %v1795
      $region80: #{_lambda_.4} parent=59 // pred_fallthru
        _
      // Predicated region
      $region81: #{_lambda_.4} parent=59 // pred_check
        %p1802 = pneg %p1191
      $region82: #{_lambda_.4} parent=59 // pred_check_branch
        %1804 = sbr.rel (%p1802) target = $region84
      $region83: #{_lambda_.4} parent=59 // pred_region
        %v1805 = vld [vmem:[%s462 + $0x4] sm:$0x3]
        %v1808 = vcombine.low %v1754, %v1775
        %v1810 = vunpack.c.l.s4 1966171168
        %v1811 = vunpack.c.0.s8 %v1810
        %v1812 = vlaneseq
        %v1813 = vshrl.u32 %v1812, 7
        %v1814 = vsub.s32 %v1811, %v1813
        %v1815 = vrot.slane %v1808, %v1814
        %v1817 = vunpack.c.l.s4 1966171168
        %v1818 = vunpack.c.0.s8 %v1817
        %v1819 = vlaneseq
        %v1820 = vshrl.u32 %v1819, 7
        %v1821 = vsub.s32 %v1818, %v1820
        %v1822 = vrot.slane %v1815, %v1821
        %v1824 = vmax.f32 %v1805, %v1822
        %v1825 = vlaneseq
        %vm1826 = vcmp.ge.s32.totalorder %v1825, 0
        %vm1827 = vcmp.lt.s32.totalorder %v1825, 256
        %vm1828 = vmand %vm1826, %vm1827
        %1829 = vst.msk [vmem:[%s462 + $0x4] sm:$0x3] %vm1828, %v1824
      $region84: #{_lambda_.4} parent=59 // pred_fallthru
        _
      %v1830 = vld [vmem:[%s443 + $0x18] sm:$0xff]
      %v1831 = vld [vmem:[%s443 + $0x38] sm:$0xff]
      %v1832 = vld [vmem:[%s443 + $0x58] sm:$0xff]
      %v1833 = vld [vmem:[%s443 + $0x78] sm:$0xff]
      %v1834 = vld [vmem:[%s443 + $0x98] sm:$0xff]
      %v1835 = vld [vmem:[%s443 + $0xb8] sm:$0xff]
      %v1836 = vld [vmem:[%s443 + $0xd8] sm:$0xff]
      %v1837 = vld [vmem:[%s443 + $0xf8] sm:$0xff]
      %v1838 = vld [vmem:[%s443 + $0x118] sm:$0xff]
      %v1839 = vld [vmem:[%s443 + $0x138] sm:$0xff]
      %v1840 = vld [vmem:[%s443 + $0x158] sm:$0xff]
      %v1841 = vld [vmem:[%s443 + $0x178] sm:$0xff]
      %v1842 = vld [vmem:[%s443 + $0x198] sm:$0xff]
      %v1843 = vld [vmem:[%s443 + $0x1b8] sm:$0xff]
      %v1844 = vld [vmem:[%s443 + $0x1d8] sm:$0xff]
      %v1845 = vld [vmem:[%s443 + $0x1f8] sm:$0xff]
      %v1862 = vunpack.c.l.b16 %v1830
      %v1863 = vunpack.c.h.b16 %v1830
      %v1864 = vunpack.c.l.b16 %v1831
      %v1865 = vunpack.c.h.b16 %v1831
      %v1866 = vunpack.c.l.b16 %v1832
      %v1867 = vunpack.c.h.b16 %v1832
      %v1868 = vunpack.c.l.b16 %v1833
      %v1869 = vunpack.c.h.b16 %v1833
      %v1870 = vunpack.c.l.b16 %v1834
      %v1871 = vunpack.c.h.b16 %v1834
      %v1872 = vunpack.c.l.b16 %v1835
      %v1873 = vunpack.c.h.b16 %v1835
      %v1874 = vunpack.c.l.b16 %v1836
      %v1875 = vunpack.c.h.b16 %v1836
      %v1876 = vunpack.c.l.b16 %v1837
      %v1877 = vunpack.c.h.b16 %v1837
      %v1878 = vunpack.c.l.b16 %v1838
      %v1879 = vunpack.c.h.b16 %v1838
      %v1880 = vunpack.c.l.b16 %v1839
      %v1881 = vunpack.c.h.b16 %v1839
      %v1882 = vunpack.c.l.b16 %v1840
      %v1883 = vunpack.c.h.b16 %v1840
      %v1884 = vunpack.c.l.b16 %v1841
      %v1885 = vunpack.c.h.b16 %v1841
      %v1886 = vunpack.c.l.b16 %v1842
      %v1887 = vunpack.c.h.b16 %v1842
      %v1888 = vunpack.c.l.b16 %v1843
      %v1889 = vunpack.c.h.b16 %v1843
      %v1890 = vunpack.c.l.b16 %v1844
      %v1891 = vunpack.c.h.b16 %v1844
      %v1892 = vunpack.c.l.b16 %v1845
      %v1893 = vunpack.c.h.b16 %v1845
      %v1894 = vpack.c.b16 %v1864, %v1862
      %v1895 = vpack.c.b16 %v1865, %v1863
      %v1896 = vpack.c.b16 %v1868, %v1866
      %v1897 = vpack.c.b16 %v1869, %v1867
      %v1898 = vpack.c.b16 %v1872, %v1870
      %v1899 = vpack.c.b16 %v1873, %v1871
      %v1900 = vpack.c.b16 %v1876, %v1874
      %v1901 = vpack.c.b16 %v1877, %v1875
      %v1902 = vpack.c.b16 %v1880, %v1878
      %v1903 = vpack.c.b16 %v1881, %v1879
      %v1904 = vpack.c.b16 %v1884, %v1882
      %v1905 = vpack.c.b16 %v1885, %v1883
      %v1906 = vpack.c.b16 %v1888, %v1886
      %v1907 = vpack.c.b16 %v1889, %v1887
      %v1908 = vpack.c.b16 %v1892, %v1890
      %v1909 = vpack.c.b16 %v1893, %v1891
      %1926 = vmatprep.subr.bf16.mxu0 %v1909
      %1927 = vmatpush1.bf16.msra.mxu0 %v1908
      %1928 = vmatprep.subr.bf16.mxu0 %v1907
      %1929 = vmatpush1.bf16.msra.mxu0 %v1906
      %1930 = vmatprep.subr.bf16.mxu0 %v1905
      %1931 = vmatpush1.bf16.msra.mxu0 %v1904
      %1932 = vmatprep.subr.bf16.mxu0 %v1903
      %1933 = vmatpush1.bf16.msra.mxu0 %v1902
      %1934 = vmatprep.subr.bf16.mxu0 %v1901
      %1935 = vmatpush1.bf16.msra.mxu0 %v1900
      %1936 = vmatprep.subr.bf16.mxu0 %v1899
      %1937 = vmatpush1.bf16.msra.mxu0 %v1898
      %1938 = vmatprep.subr.bf16.mxu0 %v1897
      %1939 = vmatpush1.bf16.msra.mxu0 %v1896
      %1940 = vmatprep.subr.bf16.mxu0 %v1895
      %1941 = vmatpush1.bf16.msra.mxu0 %v1894
      %1942 = vmatprep.subr.bf16.mxu0 0
      %1943 = vmatpush2.bf16.msra.mxu0 0
      %1944 = vmatprep.subr.bf16.mxu0 0
      %1945 = vmatpush2.bf16.msra.mxu0 0
      %1946 = vmatprep.subr.bf16.mxu0 0
      %1947 = vmatpush2.bf16.msra.mxu0 0
      %1948 = vmatprep.subr.bf16.mxu0 0
      %1949 = vmatpush2.bf16.msra.mxu0 0
      %1950 = vmatprep.subr.bf16.mxu0 0
      %1951 = vmatpush2.bf16.msra.mxu0 0
      %1952 = vmatprep.subr.bf16.mxu0 0
      %1953 = vmatpush2.bf16.msra.mxu0 0
      %1954 = vmatprep.subr.bf16.mxu0 0
      %1955 = vmatpush2.bf16.msra.mxu0 0
      %1956 = vmatprep.subr.bf16.mxu0 0
      %1957 = vmatpush2.bf16.msra.mxu0 0
      %1958 = vmatprep.mubr.bf16.mxu0 0
      %1959 = vmatmul.mubr.bf16.gmra.mxu0 %v906
      %v1960 = vpop.f32.mrf.mxu0
      %v1961 = vadd.f32 0.0, %v1960
      %v1962 = vpop.f32.mrf.mxu0
      %v1963 = vadd.f32 0.0, %v1962
      %v1964 = vpop.f32.mrf.mxu0
      %v1965 = vadd.f32 0.0, %v1964
      %v1966 = vpop.f32.mrf.mxu0
      %v1967 = vadd.f32 0.0, %v1966
      %1968 = vmatprep.mubr.bf16.mxu0 0
      %1969 = vmatmul.mubr.bf16.gmra.mxu0 %v907
      %v1970 = vpop.f32.mrf.mxu0
      %v1971 = vadd.f32 0.0, %v1970
      %v1972 = vpop.f32.mrf.mxu0
      %v1973 = vadd.f32 0.0, %v1972
      %v1974 = vpop.f32.mrf.mxu0
      %v1975 = vadd.f32 0.0, %v1974
      %v1976 = vpop.f32.mrf.mxu0
      %v1977 = vadd.f32 0.0, %v1976
      %1978 = vmatprep.mubr.bf16.mxu0 0
      %1979 = vmatmul.mubr.bf16.gmra.mxu0 %v908
      %v1980 = vpop.f32.mrf.mxu0
      %v1981 = vadd.f32 0.0, %v1980
      %v1982 = vpop.f32.mrf.mxu0
      %v1983 = vadd.f32 0.0, %v1982
      %v1984 = vpop.f32.mrf.mxu0
      %v1985 = vadd.f32 0.0, %v1984
      %v1986 = vpop.f32.mrf.mxu0
      %v1987 = vadd.f32 0.0, %v1986
      %1988 = vmatprep.mubr.bf16.mxu0 0
      %1989 = vmatmul.mubr.bf16.gmra.mxu0 %v909
      %v1990 = vpop.f32.mrf.mxu0
      %v1991 = vadd.f32 0.0, %v1990
      %v1992 = vpop.f32.mrf.mxu0
      %v1993 = vadd.f32 0.0, %v1992
      %v1994 = vpop.f32.mrf.mxu0
      %v1995 = vadd.f32 0.0, %v1994
      %v1996 = vpop.f32.mrf.mxu0
      %v1997 = vadd.f32 0.0, %v1996
      %1998 = vmatprep.mubr.bf16.mxu0 0
      %1999 = vmatmul.mubr.bf16.gmra.mxu0 %v910
      %v2000 = vpop.f32.mrf.mxu0
      %v2001 = vadd.f32 0.0, %v2000
      %v2002 = vpop.f32.mrf.mxu0
      %v2003 = vadd.f32 0.0, %v2002
      %v2004 = vpop.f32.mrf.mxu0
      %v2005 = vadd.f32 0.0, %v2004
      %v2006 = vpop.f32.mrf.mxu0
      %v2007 = vadd.f32 0.0, %v2006
      %2008 = vmatprep.mubr.bf16.mxu0 0
      %2009 = vmatmul.mubr.bf16.gmra.mxu0 %v911
      %v2010 = vpop.f32.mrf.mxu0
      %v2011 = vadd.f32 0.0, %v2010
      %v2012 = vpop.f32.mrf.mxu0
      %v2013 = vadd.f32 0.0, %v2012
      %v2014 = vpop.f32.mrf.mxu0
      %v2015 = vadd.f32 0.0, %v2014
      %v2016 = vpop.f32.mrf.mxu0
      %v2017 = vadd.f32 0.0, %v2016
      %2018 = vmatprep.mubr.bf16.mxu0 0
      %2019 = vmatmul.mubr.bf16.gmra.mxu0 %v912
      %v2020 = vpop.f32.mrf.mxu0
      %v2021 = vadd.f32 0.0, %v2020
      %v2022 = vpop.f32.mrf.mxu0
      %v2023 = vadd.f32 0.0, %v2022
      %v2024 = vpop.f32.mrf.mxu0
      %v2025 = vadd.f32 0.0, %v2024
      %v2026 = vpop.f32.mrf.mxu0
      %v2027 = vadd.f32 0.0, %v2026
      %2028 = vmatprep.mubr.bf16.mxu0 0
      %2029 = vmatmul.mubr.bf16.gmra.mxu0 %v913
      %v2030 = vpop.f32.mrf.mxu0
      %v2031 = vadd.f32 0.0, %v2030
      %v2032 = vpop.f32.mrf.mxu0
      %v2033 = vadd.f32 0.0, %v2032
      %v2034 = vpop.f32.mrf.mxu0
      %v2035 = vadd.f32 0.0, %v2034
      %v2036 = vpop.f32.mrf.mxu0
      %v2037 = vadd.f32 0.0, %v2036
      %2038 = vdwg.mxu0
      %v2039 = vmax.f32 %v1961, %v1971
      %v2040 = vmax.f32 %v1965, %v1975
      %v2041 = vmax.f32 %v2039, %v1981
      %v2042 = vmax.f32 %v2040, %v1985
      %v2043 = vmax.f32 %v2041, %v1991
      %v2044 = vmax.f32 %v2042, %v1995
      %v2045 = vmax.f32 %v2043, %v2001
      %v2046 = vmax.f32 %v2044, %v2005
      %v2047 = vmax.f32 %v2045, %v2011
      %v2048 = vmax.f32 %v2046, %v2015
      %v2049 = vmax.f32 %v2047, %v2021
      %v2050 = vmax.f32 %v2048, %v2025
      %v2051 = vmax.f32 %v2049, %v2031
      %v2052 = vmax.f32 %v2050, %v2035
      %v2053 = vmax.f32 %v2051, %v2052
      %v2054 = vrot.slane %v2053, 4
      %v2055 = vmax.f32 %v2053, %v2054
      %v2056 = vrot.slane %v2055, 2
      %v2057 = vmax.f32 %v2055, %v2056
      %v2058 = vrot.slane %v2057, 1
      %v2059 = vmax.f32 %v2057, %v2058
      %v2060 = vmax.f32 %v1963, %v1973
      %v2061 = vmax.f32 %v1967, %v1977
      %v2062 = vmax.f32 %v2060, %v1983
      %v2063 = vmax.f32 %v2061, %v1987
      %v2064 = vmax.f32 %v2062, %v1993
      %v2065 = vmax.f32 %v2063, %v1997
      %v2066 = vmax.f32 %v2064, %v2003
      %v2067 = vmax.f32 %v2065, %v2007
      %v2068 = vmax.f32 %v2066, %v2013
      %v2069 = vmax.f32 %v2067, %v2017
      %v2070 = vmax.f32 %v2068, %v2023
      %v2071 = vmax.f32 %v2069, %v2027
      %v2072 = vmax.f32 %v2070, %v2033
      %v2073 = vmax.f32 %v2071, %v2037
      %v2074 = vmax.f32 %v2072, %v2073
      %v2075 = vrot.slane %v2074, 4
      %v2076 = vmax.f32 %v2074, %v2075
      %v2077 = vrot.slane %v2076, 2
      %v2078 = vmax.f32 %v2076, %v2077
      %v2079 = vrot.slane %v2078, 1
      %v2080 = vmax.f32 %v2078, %v2079
      // Predicated region
      $region85: #{_lambda_.4} parent=59 // pred_check
        %p2081 = pneg %p465
      $region86: #{_lambda_.4} parent=59 // pred_check_branch
        %2083 = sbr.rel (%p2081) target = $region88
      $region87: #{_lambda_.4} parent=59 // pred_region
        %v2086 = vcombine.low %v2059, %v2080
        %v2088 = vunpack.c.l.s4 1966171168
        %v2089 = vunpack.c.0.s8 %v2088
        %v2090 = vlaneseq
        %v2091 = vshrl.u32 %v2090, 7
        %v2092 = vsub.s32 %v2089, %v2091
        %v2093 = vrot.slane %v2086, %v2092
        %v2095 = vunpack.c.l.s4 1966171168
        %v2096 = vunpack.c.0.s8 %v2095
        %v2097 = vlaneseq
        %v2098 = vshrl.u32 %v2097, 7
        %v2099 = vsub.s32 %v2096, %v2098
        %v2100 = vrot.slane %v2093, %v2099
        %v2102 = vlaneseq
        %vm2103 = vcmp.ge.s32.totalorder %v2102, 0
        %vm2104 = vcmp.lt.s32.totalorder %v2102, 256
        %vm2105 = vmand %vm2103, %vm2104
        %2106 = vst.msk [vmem:[%s462 + $0x6] sm:$0x3] %vm2105, %v2100
      $region88: #{_lambda_.4} parent=59 // pred_fallthru
        _
      // Predicated region
      $region89: #{_lambda_.4} parent=59 // pred_check
        %p2107 = pneg %p1191
      $region90: #{_lambda_.4} parent=59 // pred_check_branch
        %2109 = sbr.rel (%p2107) target = $region92
      $region91: #{_lambda_.4} parent=59 // pred_region
        %v2110 = vld [vmem:[%s462 + $0x6] sm:$0x3]
        %v2113 = vcombine.low %v2059, %v2080
        %v2115 = vunpack.c.l.s4 1966171168
        %v2116 = vunpack.c.0.s8 %v2115
        %v2117 = vlaneseq
        %v2118 = vshrl.u32 %v2117, 7
        %v2119 = vsub.s32 %v2116, %v2118
        %v2120 = vrot.slane %v2113, %v2119
        %v2122 = vunpack.c.l.s4 1966171168
        %v2123 = vunpack.c.0.s8 %v2122
        %v2124 = vlaneseq
        %v2125 = vshrl.u32 %v2124, 7
        %v2126 = vsub.s32 %v2123, %v2125
        %v2127 = vrot.slane %v2120, %v2126
        %v2129 = vmax.f32 %v2110, %v2127
        %v2130 = vlaneseq
        %vm2131 = vcmp.ge.s32.totalorder %v2130, 0
        %vm2132 = vcmp.lt.s32.totalorder %v2130, 256
        %vm2133 = vmand %vm2131, %vm2132
        %2134 = vst.msk [vmem:[%s462 + $0x6] sm:$0x3] %vm2133, %v2129
      $region92: #{_lambda_.4} parent=59 // pred_fallthru
        _
      // Predicated region
      $region93: #{_lambda_.4} parent=59 // pred_check
        %p2135 = pneg %p465
      $region94: #{_lambda_.4} parent=59 // pred_check_branch
        %2137 = sbr.rel (%p2135) target = $region96
      $region95: #{_lambda_.4} parent=59 // pred_region
        %v2138 = vld [vmem:[%s462] sm:$0xff]
        %v2139 = vld [vmem:[%s448] sm:$0xff]
        %v2140 = vmul.f32 %v2138, %v2139
        %v2141 = vld [vmem:[%s453] sm:$0xff]
        %v2142 = vadd.f32 %v2140, %v2141
        %v2143 = vmax.f32 %v2142, 0.0
        %2144 = vst [vmem:[%s462] sm:$0xff] %v2143
      $region96: #{_lambda_.4} parent=59 // pred_fallthru
        _
      %s2145 = smul.u32 8, %s27
      %p2146 = scmp.lt.s32.totalorder %s26, 1
      %s2147 = scalar_select %p2146, %s26, 1
      %p2148 = scmp.lt.s32.totalorder %s2145, 7
      %s2149 = scalar_select %p2148, %s2145, 7
      %s2150 = smul.addr %s2147, 8
      %s2151 = sadd.s32 %s2149, %s2150
      %s2152 = scalar_lea.vmem %s10, %s2151
      // Predicated region
      $region97: #{_lambda_.4} parent=59 // pred_check
        %p2153 = pneg %p292
      $region98: #{_lambda_.4} parent=59 // pred_check_branch
        %2155 = sbr.rel (%p2153) target = $region100
      $region99: #{_lambda_.4} parent=59 // pred_region
        %s2156 = smul.u32 8, %s27
      $region100: #{_lambda_.4} parent=59 // pred_fallthru
        _
    $region60: #{_lambda_.4} parent=5 // pred_fallthru
      _
    %p2157 = scmp.le.s32.totalorder 2, %s16
    // Predicated region
    $region101: #{_lambda_.4} parent=5 // pred_check
      %p2158 = pneg %p2157
    $region102: #{_lambda_.4} parent=5 // pred_check_branch
      %2160 = sbr.rel (%p2158) target = $region104
    $region103: #{_lambda_.4} parent=5 // pred_region
      %s2161 = ssub.s32 %s16, 2
      // Predicated region
      $region105: #{_lambda_.4} parent=103 // pred_check
        %p2162 = pneg %p298
      $region106: #{_lambda_.4} parent=103 // pred_check_branch
        %2164 = sbr.rel (%p2162) target = $region108
      $region107: #{_lambda_.4} parent=103 // pred_region
        %s2165 = smul.u32 8, %s30
        %p2166 = scmp.lt.s32.totalorder %s29, 1
        %s2167 = scalar_select %p2166, %s29, 1
        %p2168 = scmp.lt.s32.totalorder %s2165, 7
        %s2169 = scalar_select %p2168, %s2165, 7
        %s2170 = smul.addr %s2167, 8
        %s2171 = sadd.s32 %s2169, %s2170
        %s2172 = scalar_lea.vmem %s10, %s2171
      $region108: #{_lambda_.4} parent=103 // pred_fallthru
        _
    $region104: #{_lambda_.4} parent=5 // pred_fallthru
      _
  $region6: #{_lambda_.4} parent=0 // loop_footer
    %s20 = sadd.s32 1, %s16
  $region7: #{_lambda_.4} parent=0 // loop_footer_branch
    %15 = sbr.rel target = $region3
  $region8: #{_lambda_.4} parent=0 // loop_exit
    _

// kernel: _lambda_.5
$region0: #{_lambda_.5}
  #allocation0 [shape = 'u32[]', space=smem, size = 0x4, offset = 0x4, fixed_abs, tag = 'smem constant byte address 0x4 - core index']
  #allocation1 [shape = 'u32[144,128]{1,0:T(1,128)}', space=vmem, size = 0x12000, scoped, tag = 'internal scratch']
  %s0 = inlined_call_operand.vmem [shape: f32[2,1024], index: 0, kind: input, shape index: {}]
  %s1 = inlined_call_operand.vmem [shape: bf16[1024,512], index: 1, kind: input, shape index: {}]
  %s2 = inlined_call_operand.vmem [shape: f32[1,512], index: 2, kind: input, shape index: {}]
  %s3 = inlined_call_operand.vmem [shape: f32[1,512], index: 3, kind: input, shape index: {}]
  %s4 = inlined_call_operand.vmem [shape: bf16[512,256], index: 4, kind: input, shape index: {}]
  %s5 = inlined_call_operand.vmem [shape: f32[1,256], index: 5, kind: input, shape index: {}]
  %s6 = inlined_call_operand.vmem [shape: f32[1,256], index: 6, kind: input, shape index: {}]
  %s7 = inlined_call_operand.vmem [shape: bf16[256,9], index: 7, kind: input, shape index: {}]
  %s8 = inlined_call_operand.vmem [shape: f32[1,9], index: 8, kind: input, shape index: {}]
  %s9 = inlined_call_operand.vmem [shape: f32[2,9], index: 9, kind: output, shape index: {}]
  %s10 = sld [smem:[#allocation0]]
  $region46: #{_lambda_.5} parent=0
    _
  %s12 = ssub.s32 1, %s10
  %s13 = scalar_select 0, %s12, %s10
  // Predicated region
  $region2: #{_lambda_.5} parent=0 // pred_check
    _
  $region3: #{_lambda_.5} parent=0 // pred_check_branch
    %15 = sbr.rel (0) target = $region5
  $region4: #{_lambda_.5} parent=0 // pred_region
    _
  $region5: #{_lambda_.5} parent=0 // pred_fallthru
    _
  // Predicated region
  $region6: #{_lambda_.5} parent=0 // pred_check
    _
  $region7: #{_lambda_.5} parent=0 // pred_check_branch
    %17 = sbr.rel (0) target = $region9
  $region8: #{_lambda_.5} parent=0 // pred_region
    _
  $region9: #{_lambda_.5} parent=0 // pred_fallthru
    _
  // Predicated region
  $region10: #{_lambda_.5} parent=0 // pred_check
    _
  $region11: #{_lambda_.5} parent=0 // pred_check_branch
    %19 = sbr.rel (0) target = $region13
  $region12: #{_lambda_.5} parent=0 // pred_region
    _
  $region13: #{_lambda_.5} parent=0 // pred_fallthru
    _
  // Predicated region
  $region14: #{_lambda_.5} parent=0 // pred_check
    _
  $region15: #{_lambda_.5} parent=0 // pred_check_branch
    %21 = sbr.rel (0) target = $region17
  $region16: #{_lambda_.5} parent=0 // pred_region
    _
  $region17: #{_lambda_.5} parent=0 // pred_fallthru
    _
  // Predicated region
  $region18: #{_lambda_.5} parent=0 // pred_check
    _
  $region19: #{_lambda_.5} parent=0 // pred_check_branch
    %23 = sbr.rel (0) target = $region21
  $region20: #{_lambda_.5} parent=0 // pred_region
    _
  $region21: #{_lambda_.5} parent=0 // pred_fallthru
    _
  // Predicated region
  $region22: #{_lambda_.5} parent=0 // pred_check
    _
  $region23: #{_lambda_.5} parent=0 // pred_check_branch
    %25 = sbr.rel (0) target = $region25
  $region24: #{_lambda_.5} parent=0 // pred_region
    _
  $region25: #{_lambda_.5} parent=0 // pred_fallthru
    _
  // Predicated region
  $region26: #{_lambda_.5} parent=0 // pred_check
    _
  $region27: #{_lambda_.5} parent=0 // pred_check_branch
    %27 = sbr.rel (0) target = $region29
  $region28: #{_lambda_.5} parent=0 // pred_region
    _
  $region29: #{_lambda_.5} parent=0 // pred_fallthru
    _
  // Predicated region
  $region30: #{_lambda_.5} parent=0 // pred_check
    _
  $region31: #{_lambda_.5} parent=0 // pred_check_branch
    %29 = sbr.rel (0) target = $region33
  $region32: #{_lambda_.5} parent=0 // pred_region
    _
  $region33: #{_lambda_.5} parent=0 // pred_fallthru
    _
  // Predicated region
  $region34: #{_lambda_.5} parent=0 // pred_check
    _
  $region35: #{_lambda_.5} parent=0 // pred_check_branch
    %31 = sbr.rel (0) target = $region37
  $region36: #{_lambda_.5} parent=0 // pred_region
    _
  $region37: #{_lambda_.5} parent=0 // pred_fallthru
    _
  %v33 = vld [vmem:[%s0] sm:$0xff]
  %v34 = vld [vmem:[%s0 + $0x8] sm:$0xff]
  %v37 = vcombine.high %v33, %v33
  %v39 = vunpack.c.l.s4 1983009808
  %v40 = vunpack.c.0.s8 %v39
  %v41 = vlaneseq
  %v42 = vshrl.u32 %v41, 7
  %v43 = vsub.s32 %v40, %v42
  %v44 = vrot.slane %v33, %v43
  %v46 = vunpack.c.l.s4 1983009808
  %v47 = vunpack.c.0.s8 %v46
  %v48 = vlaneseq
  %v49 = vshrl.u32 %v48, 7
  %v50 = vsub.s32 %v47, %v49
  %v51 = vrot.slane %v37, %v50
  %v52 = vcombine.high %v44, %v44
  %v53 = vcombine.high %v51, %v51
  %v54 = vcombine.high %v34, %v34
  %v56 = vunpack.c.l.s4 1983009808
  %v57 = vunpack.c.0.s8 %v56
  %v58 = vlaneseq
  %v59 = vshrl.u32 %v58, 7
  %v60 = vsub.s32 %v57, %v59
  %v61 = vrot.slane %v34, %v60
  %v63 = vunpack.c.l.s4 1983009808
  %v64 = vunpack.c.0.s8 %v63
  %v65 = vlaneseq
  %v66 = vshrl.u32 %v65, 7
  %v67 = vsub.s32 %v64, %v66
  %v68 = vrot.slane %v54, %v67
  %v69 = vcombine.high %v61, %v61
  %v70 = vcombine.high %v68, %v68
  %v79 = vpack.c.bf16 %v44, %v44
  %v80 = vpack.c.bf16 %v52, %v52
  %v81 = vpack.c.bf16 %v51, %v51
  %v82 = vpack.c.bf16 %v53, %v53
  %v83 = vpack.c.bf16 %v61, %v61
  %v84 = vpack.c.bf16 %v69, %v69
  %v85 = vpack.c.bf16 %v68, %v68
  %v86 = vpack.c.bf16 %v70, %v70
  %v87 = vld [vmem:[%s1] sm:$0xff]
  %v88 = vld [vmem:[%s1 + $0x8] sm:$0xff]
  %v89 = vld [vmem:[%s1 + $0x10] sm:$0xff]
  %v90 = vld [vmem:[%s1 + $0x18] sm:$0xff]
  %v91 = vld [vmem:[%s1 + $0x20] sm:$0xff]
  %v92 = vld [vmem:[%s1 + $0x28] sm:$0xff]
  %v93 = vld [vmem:[%s1 + $0x30] sm:$0xff]
  %v94 = vld [vmem:[%s1 + $0x38] sm:$0xff]
  %v95 = vld [vmem:[%s1 + $0x40] sm:$0xff]
  %v96 = vld [vmem:[%s1 + $0x48] sm:$0xff]
  %v97 = vld [vmem:[%s1 + $0x50] sm:$0xff]
  %v98 = vld [vmem:[%s1 + $0x58] sm:$0xff]
  %v99 = vld [vmem:[%s1 + $0x60] sm:$0xff]
  %v100 = vld [vmem:[%s1 + $0x68] sm:$0xff]
  %v101 = vld [vmem:[%s1 + $0x70] sm:$0xff]
  %v102 = vld [vmem:[%s1 + $0x78] sm:$0xff]
  %v103 = vld [vmem:[%s1 + $0x80] sm:$0xff]
  %v104 = vld [vmem:[%s1 + $0x88] sm:$0xff]
  %v105 = vld [vmem:[%s1 + $0x90] sm:$0xff]
  %v106 = vld [vmem:[%s1 + $0x98] sm:$0xff]
  %v107 = vld [vmem:[%s1 + $0xa0] sm:$0xff]
  %v108 = vld [vmem:[%s1 + $0xa8] sm:$0xff]
  %v109 = vld [vmem:[%s1 + $0xb0] sm:$0xff]
  %v110 = vld [vmem:[%s1 + $0xb8] sm:$0xff]
  %v111 = vld [vmem:[%s1 + $0xc0] sm:$0xff]
  %v112 = vld [vmem:[%s1 + $0xc8] sm:$0xff]
  %v113 = vld [vmem:[%s1 + $0xd0] sm:$0xff]
  %v114 = vld [vmem:[%s1 + $0xd8] sm:$0xff]
  %v115 = vld [vmem:[%s1 + $0xe0] sm:$0xff]
  %v116 = vld [vmem:[%s1 + $0xe8] sm:$0xff]
  %v117 = vld [vmem:[%s1 + $0xf0] sm:$0xff]
  %v118 = vld [vmem:[%s1 + $0xf8] sm:$0xff]
  %v119 = vld [vmem:[%s1 + $0x100] sm:$0xff]
  %v120 = vld [vmem:[%s1 + $0x108] sm:$0xff]
  %v121 = vld [vmem:[%s1 + $0x110] sm:$0xff]
  %v122 = vld [vmem:[%s1 + $0x118] sm:$0xff]
  %v123 = vld [vmem:[%s1 + $0x120] sm:$0xff]
  %v124 = vld [vmem:[%s1 + $0x128] sm:$0xff]
  %v125 = vld [vmem:[%s1 + $0x130] sm:$0xff]
  %v126 = vld [vmem:[%s1 + $0x138] sm:$0xff]
  %v127 = vld [vmem:[%s1 + $0x140] sm:$0xff]
  %v128 = vld [vmem:[%s1 + $0x148] sm:$0xff]
  %v129 = vld [vmem:[%s1 + $0x150] sm:$0xff]
  %v130 = vld [vmem:[%s1 + $0x158] sm:$0xff]
  %v131 = vld [vmem:[%s1 + $0x160] sm:$0xff]
  %v132 = vld [vmem:[%s1 + $0x168] sm:$0xff]
  %v133 = vld [vmem:[%s1 + $0x170] sm:$0xff]
  %v134 = vld [vmem:[%s1 + $0x178] sm:$0xff]
  %v135 = vld [vmem:[%s1 + $0x180] sm:$0xff]
  %v136 = vld [vmem:[%s1 + $0x188] sm:$0xff]
  %v137 = vld [vmem:[%s1 + $0x190] sm:$0xff]
  %v138 = vld [vmem:[%s1 + $0x198] sm:$0xff]
  %v139 = vld [vmem:[%s1 + $0x1a0] sm:$0xff]
  %v140 = vld [vmem:[%s1 + $0x1a8] sm:$0xff]
  %v141 = vld [vmem:[%s1 + $0x1b0] sm:$0xff]
  %v142 = vld [vmem:[%s1 + $0x1b8] sm:$0xff]
  %v143 = vld [vmem:[%s1 + $0x1c0] sm:$0xff]
  %v144 = vld [vmem:[%s1 + $0x1c8] sm:$0xff]
  %v145 = vld [vmem:[%s1 + $0x1d0] sm:$0xff]
  %v146 = vld [vmem:[%s1 + $0x1d8] sm:$0xff]
  %v147 = vld [vmem:[%s1 + $0x1e0] sm:$0xff]
  %v148 = vld [vmem:[%s1 + $0x1e8] sm:$0xff]
  %v149 = vld [vmem:[%s1 + $0x1f0] sm:$0xff]
  %v150 = vld [vmem:[%s1 + $0x1f8] sm:$0xff]
  %v151 = vld [vmem:[%s1 + $0x200] sm:$0xff]
  %v152 = vld [vmem:[%s1 + $0x208] sm:$0xff]
  %v153 = vld [vmem:[%s1 + $0x210] sm:$0xff]
  %v154 = vld [vmem:[%s1 + $0x218] sm:$0xff]
  %v155 = vld [vmem:[%s1 + $0x220] sm:$0xff]
  %v156 = vld [vmem:[%s1 + $0x228] sm:$0xff]
  %v157 = vld [vmem:[%s1 + $0x230] sm:$0xff]
  %v158 = vld [vmem:[%s1 + $0x238] sm:$0xff]
  %v159 = vld [vmem:[%s1 + $0x240] sm:$0xff]
  %v160 = vld [vmem:[%s1 + $0x248] sm:$0xff]
  %v161 = vld [vmem:[%s1 + $0x250] sm:$0xff]
  %v162 = vld [vmem:[%s1 + $0x258] sm:$0xff]
  %v163 = vld [vmem:[%s1 + $0x260] sm:$0xff]
  %v164 = vld [vmem:[%s1 + $0x268] sm:$0xff]
  %v165 = vld [vmem:[%s1 + $0x270] sm:$0xff]
  %v166 = vld [vmem:[%s1 + $0x278] sm:$0xff]
  %v167 = vld [vmem:[%s1 + $0x280] sm:$0xff]
  %v168 = vld [vmem:[%s1 + $0x288] sm:$0xff]
  %v169 = vld [vmem:[%s1 + $0x290] sm:$0xff]
  %v170 = vld [vmem:[%s1 + $0x298] sm:$0xff]
  %v171 = vld [vmem:[%s1 + $0x2a0] sm:$0xff]
  %v172 = vld [vmem:[%s1 + $0x2a8] sm:$0xff]
  %v173 = vld [vmem:[%s1 + $0x2b0] sm:$0xff]
  %v174 = vld [vmem:[%s1 + $0x2b8] sm:$0xff]
  %v175 = vld [vmem:[%s1 + $0x2c0] sm:$0xff]
  %v176 = vld [vmem:[%s1 + $0x2c8] sm:$0xff]
  %v177 = vld [vmem:[%s1 + $0x2d0] sm:$0xff]
  %v178 = vld [vmem:[%s1 + $0x2d8] sm:$0xff]
  %v179 = vld [vmem:[%s1 + $0x2e0] sm:$0xff]
  %v180 = vld [vmem:[%s1 + $0x2e8] sm:$0xff]
  %v181 = vld [vmem:[%s1 + $0x2f0] sm:$0xff]
  %v182 = vld [vmem:[%s1 + $0x2f8] sm:$0xff]
  %v183 = vld [vmem:[%s1 + $0x300] sm:$0xff]
  %v184 = vld [vmem:[%s1 + $0x308] sm:$0xff]
  %v185 = vld [vmem:[%s1 + $0x310] sm:$0xff]
  %v186 = vld [vmem:[%s1 + $0x318] sm:$0xff]
  %v187 = vld [vmem:[%s1 + $0x320] sm:$0xff]
  %v188 = vld [vmem:[%s1 + $0x328] sm:$0xff]
  %v189 = vld [vmem:[%s1 + $0x330] sm:$0xff]
  %v190 = vld [vmem:[%s1 + $0x338] sm:$0xff]
  %v191 = vld [vmem:[%s1 + $0x340] sm:$0xff]
  %v192 = vld [vmem:[%s1 + $0x348] sm:$0xff]
  %v193 = vld [vmem:[%s1 + $0x350] sm:$0xff]
  %v194 = vld [vmem:[%s1 + $0x358] sm:$0xff]
  %v195 = vld [vmem:[%s1 + $0x360] sm:$0xff]
  %v196 = vld [vmem:[%s1 + $0x368] sm:$0xff]
  %v197 = vld [vmem:[%s1 + $0x370] sm:$0xff]
  %v198 = vld [vmem:[%s1 + $0x378] sm:$0xff]
  %v199 = vld [vmem:[%s1 + $0x380] sm:$0xff]
  %v200 = vld [vmem:[%s1 + $0x388] sm:$0xff]
  %v201 = vld [vmem:[%s1 + $0x390] sm:$0xff]
  %v202 = vld [vmem:[%s1 + $0x398] sm:$0xff]
  %v203 = vld [vmem:[%s1 + $0x3a0] sm:$0xff]
  %v204 = vld [vmem:[%s1 + $0x3a8] sm:$0xff]
  %v205 = vld [vmem:[%s1 + $0x3b0] sm:$0xff]
  %v206 = vld [vmem:[%s1 + $0x3b8] sm:$0xff]
  %v207 = vld [vmem:[%s1 + $0x3c0] sm:$0xff]
  %v208 = vld [vmem:[%s1 + $0x3c8] sm:$0xff]
  %v209 = vld [vmem:[%s1 + $0x3d0] sm:$0xff]
  %v210 = vld [vmem:[%s1 + $0x3d8] sm:$0xff]
  %v211 = vld [vmem:[%s1 + $0x3e0] sm:$0xff]
  %v212 = vld [vmem:[%s1 + $0x3e8] sm:$0xff]
  %v213 = vld [vmem:[%s1 + $0x3f0] sm:$0xff]
  %v214 = vld [vmem:[%s1 + $0x3f8] sm:$0xff]
  %v215 = vld [vmem:[%s1 + $0x400] sm:$0xff]
  %v216 = vld [vmem:[%s1 + $0x408] sm:$0xff]
  %v217 = vld [vmem:[%s1 + $0x410] sm:$0xff]
  %v218 = vld [vmem:[%s1 + $0x418] sm:$0xff]
  %v219 = vld [vmem:[%s1 + $0x420] sm:$0xff]
  %v220 = vld [vmem:[%s1 + $0x428] sm:$0xff]
  %v221 = vld [vmem:[%s1 + $0x430] sm:$0xff]
  %v222 = vld [vmem:[%s1 + $0x438] sm:$0xff]
  %v223 = vld [vmem:[%s1 + $0x440] sm:$0xff]
  %v224 = vld [vmem:[%s1 + $0x448] sm:$0xff]
  %v225 = vld [vmem:[%s1 + $0x450] sm:$0xff]
  %v226 = vld [vmem:[%s1 + $0x458] sm:$0xff]
  %v227 = vld [vmem:[%s1 + $0x460] sm:$0xff]
  %v228 = vld [vmem:[%s1 + $0x468] sm:$0xff]
  %v229 = vld [vmem:[%s1 + $0x470] sm:$0xff]
  %v230 = vld [vmem:[%s1 + $0x478] sm:$0xff]
  %v231 = vld [vmem:[%s1 + $0x480] sm:$0xff]
  %v232 = vld [vmem:[%s1 + $0x488] sm:$0xff]
  %v233 = vld [vmem:[%s1 + $0x490] sm:$0xff]
  %v234 = vld [vmem:[%s1 + $0x498] sm:$0xff]
  %v235 = vld [vmem:[%s1 + $0x4a0] sm:$0xff]
  %v236 = vld [vmem:[%s1 + $0x4a8] sm:$0xff]
  %v237 = vld [vmem:[%s1 + $0x4b0] sm:$0xff]
  %v238 = vld [vmem:[%s1 + $0x4b8] sm:$0xff]
  %v239 = vld [vmem:[%s1 + $0x4c0] sm:$0xff]
  %v240 = vld [vmem:[%s1 + $0x4c8] sm:$0xff]
  %v241 = vld [vmem:[%s1 + $0x4d0] sm:$0xff]
  %v242 = vld [vmem:[%s1 + $0x4d8] sm:$0xff]
  %v243 = vld [vmem:[%s1 + $0x4e0] sm:$0xff]
  %v244 = vld [vmem:[%s1 + $0x4e8] sm:$0xff]
  %v245 = vld [vmem:[%s1 + $0x4f0] sm:$0xff]
  %v246 = vld [vmem:[%s1 + $0x4f8] sm:$0xff]
  %v247 = vld [vmem:[%s1 + $0x500] sm:$0xff]
  %v248 = vld [vmem:[%s1 + $0x508] sm:$0xff]
  %v249 = vld [vmem:[%s1 + $0x510] sm:$0xff]
  %v250 = vld [vmem:[%s1 + $0x518] sm:$0xff]
  %v251 = vld [vmem:[%s1 + $0x520] sm:$0xff]
  %v252 = vld [vmem:[%s1 + $0x528] sm:$0xff]
  %v253 = vld [vmem:[%s1 + $0x530] sm:$0xff]
  %v254 = vld [vmem:[%s1 + $0x538] sm:$0xff]
  %v255 = vld [vmem:[%s1 + $0x540] sm:$0xff]
  %v256 = vld [vmem:[%s1 + $0x548] sm:$0xff]
  %v257 = vld [vmem:[%s1 + $0x550] sm:$0xff]
  %v258 = vld [vmem:[%s1 + $0x558] sm:$0xff]
  %v259 = vld [vmem:[%s1 + $0x560] sm:$0xff]
  %v260 = vld [vmem:[%s1 + $0x568] sm:$0xff]
  %v261 = vld [vmem:[%s1 + $0x570] sm:$0xff]
  %v262 = vld [vmem:[%s1 + $0x578] sm:$0xff]
  %v263 = vld [vmem:[%s1 + $0x580] sm:$0xff]
  %v264 = vld [vmem:[%s1 + $0x588] sm:$0xff]
  %v265 = vld [vmem:[%s1 + $0x590] sm:$0xff]
  %v266 = vld [vmem:[%s1 + $0x598] sm:$0xff]
  %v267 = vld [vmem:[%s1 + $0x5a0] sm:$0xff]
  %v268 = vld [vmem:[%s1 + $0x5a8] sm:$0xff]
  %v269 = vld [vmem:[%s1 + $0x5b0] sm:$0xff]
  %v270 = vld [vmem:[%s1 + $0x5b8] sm:$0xff]
  %v271 = vld [vmem:[%s1 + $0x5c0] sm:$0xff]
  %v272 = vld [vmem:[%s1 + $0x5c8] sm:$0xff]
  %v273 = vld [vmem:[%s1 + $0x5d0] sm:$0xff]
  %v274 = vld [vmem:[%s1 + $0x5d8] sm:$0xff]
  %v275 = vld [vmem:[%s1 + $0x5e0] sm:$0xff]
  %v276 = vld [vmem:[%s1 + $0x5e8] sm:$0xff]
  %v277 = vld [vmem:[%s1 + $0x5f0] sm:$0xff]
  %v278 = vld [vmem:[%s1 + $0x5f8] sm:$0xff]
  %v279 = vld [vmem:[%s1 + $0x600] sm:$0xff]
  %v280 = vld [vmem:[%s1 + $0x608] sm:$0xff]
  %v281 = vld [vmem:[%s1 + $0x610] sm:$0xff]
  %v282 = vld [vmem:[%s1 + $0x618] sm:$0xff]
  %v283 = vld [vmem:[%s1 + $0x620] sm:$0xff]
  %v284 = vld [vmem:[%s1 + $0x628] sm:$0xff]
  %v285 = vld [vmem:[%s1 + $0x630] sm:$0xff]
  %v286 = vld [vmem:[%s1 + $0x638] sm:$0xff]
  %v287 = vld [vmem:[%s1 + $0x640] sm:$0xff]
  %v288 = vld [vmem:[%s1 + $0x648] sm:$0xff]
  %v289 = vld [vmem:[%s1 + $0x650] sm:$0xff]
  %v290 = vld [vmem:[%s1 + $0x658] sm:$0xff]
  %v291 = vld [vmem:[%s1 + $0x660] sm:$0xff]
  %v292 = vld [vmem:[%s1 + $0x668] sm:$0xff]
  %v293 = vld [vmem:[%s1 + $0x670] sm:$0xff]
  %v294 = vld [vmem:[%s1 + $0x678] sm:$0xff]
  %v295 = vld [vmem:[%s1 + $0x680] sm:$0xff]
  %v296 = vld [vmem:[%s1 + $0x688] sm:$0xff]
  %v297 = vld [vmem:[%s1 + $0x690] sm:$0xff]
  %v298 = vld [vmem:[%s1 + $0x698] sm:$0xff]
  %v299 = vld [vmem:[%s1 + $0x6a0] sm:$0xff]
  %v300 = vld [vmem:[%s1 + $0x6a8] sm:$0xff]
  %v301 = vld [vmem:[%s1 + $0x6b0] sm:$0xff]
  %v302 = vld [vmem:[%s1 + $0x6b8] sm:$0xff]
  %v303 = vld [vmem:[%s1 + $0x6c0] sm:$0xff]
  %v304 = vld [vmem:[%s1 + $0x6c8] sm:$0xff]
  %v305 = vld [vmem:[%s1 + $0x6d0] sm:$0xff]
  %v306 = vld [vmem:[%s1 + $0x6d8] sm:$0xff]
  %v307 = vld [vmem:[%s1 + $0x6e0] sm:$0xff]
  %v308 = vld [vmem:[%s1 + $0x6e8] sm:$0xff]
  %v309 = vld [vmem:[%s1 + $0x6f0] sm:$0xff]
  %v310 = vld [vmem:[%s1 + $0x6f8] sm:$0xff]
  %v311 = vld [vmem:[%s1 + $0x700] sm:$0xff]
  %v312 = vld [vmem:[%s1 + $0x708] sm:$0xff]
  %v313 = vld [vmem:[%s1 + $0x710] sm:$0xff]
  %v314 = vld [vmem:[%s1 + $0x718] sm:$0xff]
  %v315 = vld [vmem:[%s1 + $0x720] sm:$0xff]
  %v316 = vld [vmem:[%s1 + $0x728] sm:$0xff]
  %v317 = vld [vmem:[%s1 + $0x730] sm:$0xff]
  %v318 = vld [vmem:[%s1 + $0x738] sm:$0xff]
  %v319 = vld [vmem:[%s1 + $0x740] sm:$0xff]
  %v320 = vld [vmem:[%s1 + $0x748] sm:$0xff]
  %v321 = vld [vmem:[%s1 + $0x750] sm:$0xff]
  %v322 = vld [vmem:[%s1 + $0x758] sm:$0xff]
  %v323 = vld [vmem:[%s1 + $0x760] sm:$0xff]
  %v324 = vld [vmem:[%s1 + $0x768] sm:$0xff]
  %v325 = vld [vmem:[%s1 + $0x770] sm:$0xff]
  %v326 = vld [vmem:[%s1 + $0x778] sm:$0xff]
  %v327 = vld [vmem:[%s1 + $0x780] sm:$0xff]
  %v328 = vld [vmem:[%s1 + $0x788] sm:$0xff]
  %v329 = vld [vmem:[%s1 + $0x790] sm:$0xff]
  %v330 = vld [vmem:[%s1 + $0x798] sm:$0xff]
  %v331 = vld [vmem:[%s1 + $0x7a0] sm:$0xff]
  %v332 = vld [vmem:[%s1 + $0x7a8] sm:$0xff]
  %v333 = vld [vmem:[%s1 + $0x7b0] sm:$0xff]
  %v334 = vld [vmem:[%s1 + $0x7b8] sm:$0xff]
  %v335 = vld [vmem:[%s1 + $0x7c0] sm:$0xff]
  %v336 = vld [vmem:[%s1 + $0x7c8] sm:$0xff]
  %v337 = vld [vmem:[%s1 + $0x7d0] sm:$0xff]
  %v338 = vld [vmem:[%s1 + $0x7d8] sm:$0xff]
  %v339 = vld [vmem:[%s1 + $0x7e0] sm:$0xff]
  %v340 = vld [vmem:[%s1 + $0x7e8] sm:$0xff]
  %v341 = vld [vmem:[%s1 + $0x7f0] sm:$0xff]
  %v342 = vld [vmem:[%s1 + $0x7f8] sm:$0xff]
  %v599 = vunpack.c.l.b16 %v87
  %v600 = vunpack.c.h.b16 %v87
  %v601 = vunpack.c.l.b16 %v88
  %v602 = vunpack.c.h.b16 %v88
  %v603 = vunpack.c.l.b16 %v89
  %v604 = vunpack.c.h.b16 %v89
  %v605 = vunpack.c.l.b16 %v90
  %v606 = vunpack.c.h.b16 %v90
  %v607 = vunpack.c.l.b16 %v91
  %v608 = vunpack.c.h.b16 %v91
  %v609 = vunpack.c.l.b16 %v92
  %v610 = vunpack.c.h.b16 %v92
  %v611 = vunpack.c.l.b16 %v93
  %v612 = vunpack.c.h.b16 %v93
  %v613 = vunpack.c.l.b16 %v94
  %v614 = vunpack.c.h.b16 %v94
  %v615 = vunpack.c.l.b16 %v95
  %v616 = vunpack.c.h.b16 %v95
  %v617 = vunpack.c.l.b16 %v96
  %v618 = vunpack.c.h.b16 %v96
  %v619 = vunpack.c.l.b16 %v97
  %v620 = vunpack.c.h.b16 %v97
  %v621 = vunpack.c.l.b16 %v98
  %v622 = vunpack.c.h.b16 %v98
  %v623 = vunpack.c.l.b16 %v99
  %v624 = vunpack.c.h.b16 %v99
  %v625 = vunpack.c.l.b16 %v100
  %v626 = vunpack.c.h.b16 %v100
  %v627 = vunpack.c.l.b16 %v101
  %v628 = vunpack.c.h.b16 %v101
  %v629 = vunpack.c.l.b16 %v102
  %v630 = vunpack.c.h.b16 %v102
  %v631 = vunpack.c.l.b16 %v103
  %v632 = vunpack.c.h.b16 %v103
  %v633 = vunpack.c.l.b16 %v104
  %v634 = vunpack.c.h.b16 %v104
  %v635 = vunpack.c.l.b16 %v105
  %v636 = vunpack.c.h.b16 %v105
  %v637 = vunpack.c.l.b16 %v106
  %v638 = vunpack.c.h.b16 %v106
  %v639 = vunpack.c.l.b16 %v107
  %v640 = vunpack.c.h.b16 %v107
  %v641 = vunpack.c.l.b16 %v108
  %v642 = vunpack.c.h.b16 %v108
  %v643 = vunpack.c.l.b16 %v109
  %v644 = vunpack.c.h.b16 %v109
  %v645 = vunpack.c.l.b16 %v110
  %v646 = vunpack.c.h.b16 %v110
  %v647 = vunpack.c.l.b16 %v111
  %v648 = vunpack.c.h.b16 %v111
  %v649 = vunpack.c.l.b16 %v112
  %v650 = vunpack.c.h.b16 %v112
  %v651 = vunpack.c.l.b16 %v113
  %v652 = vunpack.c.h.b16 %v113
  %v653 = vunpack.c.l.b16 %v114
  %v654 = vunpack.c.h.b16 %v114
  %v655 = vunpack.c.l.b16 %v115
  %v656 = vunpack.c.h.b16 %v115
  %v657 = vunpack.c.l.b16 %v116
  %v658 = vunpack.c.h.b16 %v116
  %v659 = vunpack.c.l.b16 %v117
  %v660 = vunpack.c.h.b16 %v117
  %v661 = vunpack.c.l.b16 %v118
  %v662 = vunpack.c.h.b16 %v118
  %v663 = vunpack.c.l.b16 %v119
  %v664 = vunpack.c.h.b16 %v119
  %v665 = vunpack.c.l.b16 %v120
  %v666 = vunpack.c.h.b16 %v120
  %v667 = vunpack.c.l.b16 %v121
  %v668 = vunpack.c.h.b16 %v121
  %v669 = vunpack.c.l.b16 %v122
  %v670 = vunpack.c.h.b16 %v122
  %v671 = vunpack.c.l.b16 %v123
  %v672 = vunpack.c.h.b16 %v123
  %v673 = vunpack.c.l.b16 %v124
  %v674 = vunpack.c.h.b16 %v124
  %v675 = vunpack.c.l.b16 %v125
  %v676 = vunpack.c.h.b16 %v125
  %v677 = vunpack.c.l.b16 %v126
  %v678 = vunpack.c.h.b16 %v126
  %v679 = vunpack.c.l.b16 %v127
  %v680 = vunpack.c.h.b16 %v127
  %v681 = vunpack.c.l.b16 %v128
  %v682 = vunpack.c.h.b16 %v128
  %v683 = vunpack.c.l.b16 %v129
  %v684 = vunpack.c.h.b16 %v129
  %v685 = vunpack.c.l.b16 %v130
  %v686 = vunpack.c.h.b16 %v130
  %v687 = vunpack.c.l.b16 %v131
  %v688 = vunpack.c.h.b16 %v131
  %v689 = vunpack.c.l.b16 %v132
  %v690 = vunpack.c.h.b16 %v132
  %v691 = vunpack.c.l.b16 %v133
  %v692 = vunpack.c.h.b16 %v133
  %v693 = vunpack.c.l.b16 %v134
  %v694 = vunpack.c.h.b16 %v134
  %v695 = vunpack.c.l.b16 %v135
  %v696 = vunpack.c.h.b16 %v135
  %v697 = vunpack.c.l.b16 %v136
  %v698 = vunpack.c.h.b16 %v136
  %v699 = vunpack.c.l.b16 %v137
  %v700 = vunpack.c.h.b16 %v137
  %v701 = vunpack.c.l.b16 %v138
  %v702 = vunpack.c.h.b16 %v138
  %v703 = vunpack.c.l.b16 %v139
  %v704 = vunpack.c.h.b16 %v139
  %v705 = vunpack.c.l.b16 %v140
  %v706 = vunpack.c.h.b16 %v140
  %v707 = vunpack.c.l.b16 %v141
  %v708 = vunpack.c.h.b16 %v141
  %v709 = vunpack.c.l.b16 %v142
  %v710 = vunpack.c.h.b16 %v142
  %v711 = vunpack.c.l.b16 %v143
  %v712 = vunpack.c.h.b16 %v143
  %v713 = vunpack.c.l.b16 %v144
  %v714 = vunpack.c.h.b16 %v144
  %v715 = vunpack.c.l.b16 %v145
  %v716 = vunpack.c.h.b16 %v145
  %v717 = vunpack.c.l.b16 %v146
  %v718 = vunpack.c.h.b16 %v146
  %v719 = vunpack.c.l.b16 %v147
  %v720 = vunpack.c.h.b16 %v147
  %v721 = vunpack.c.l.b16 %v148
  %v722 = vunpack.c.h.b16 %v148
  %v723 = vunpack.c.l.b16 %v149
  %v724 = vunpack.c.h.b16 %v149
  %v725 = vunpack.c.l.b16 %v150
  %v726 = vunpack.c.h.b16 %v150
  %v727 = vunpack.c.l.b16 %v151
  %v728 = vunpack.c.h.b16 %v151
  %v729 = vunpack.c.l.b16 %v152
  %v730 = vunpack.c.h.b16 %v152
  %v731 = vunpack.c.l.b16 %v153
  %v732 = vunpack.c.h.b16 %v153
  %v733 = vunpack.c.l.b16 %v154
  %v734 = vunpack.c.h.b16 %v154
  %v735 = vunpack.c.l.b16 %v155
  %v736 = vunpack.c.h.b16 %v155
  %v737 = vunpack.c.l.b16 %v156
  %v738 = vunpack.c.h.b16 %v156
  %v739 = vunpack.c.l.b16 %v157
  %v740 = vunpack.c.h.b16 %v157
  %v741 = vunpack.c.l.b16 %v158
  %v742 = vunpack.c.h.b16 %v158
  %v743 = vunpack.c.l.b16 %v159
  %v744 = vunpack.c.h.b16 %v159
  %v745 = vunpack.c.l.b16 %v160
  %v746 = vunpack.c.h.b16 %v160
  %v747 = vunpack.c.l.b16 %v161
  %v748 = vunpack.c.h.b16 %v161
  %v749 = vunpack.c.l.b16 %v162
  %v750 = vunpack.c.h.b16 %v162
  %v751 = vunpack.c.l.b16 %v163
  %v752 = vunpack.c.h.b16 %v163
  %v753 = vunpack.c.l.b16 %v164
  %v754 = vunpack.c.h.b16 %v164
  %v755 = vunpack.c.l.b16 %v165
  %v756 = vunpack.c.h.b16 %v165
  %v757 = vunpack.c.l.b16 %v166
  %v758 = vunpack.c.h.b16 %v166
  %v759 = vunpack.c.l.b16 %v167
  %v760 = vunpack.c.h.b16 %v167
  %v761 = vunpack.c.l.b16 %v168
  %v762 = vunpack.c.h.b16 %v168
  %v763 = vunpack.c.l.b16 %v169
  %v764 = vunpack.c.h.b16 %v169
  %v765 = vunpack.c.l.b16 %v170
  %v766 = vunpack.c.h.b16 %v170
  %v767 = vunpack.c.l.b16 %v171
  %v768 = vunpack.c.h.b16 %v171
  %v769 = vunpack.c.l.b16 %v172
  %v770 = vunpack.c.h.b16 %v172
  %v771 = vunpack.c.l.b16 %v173
  %v772 = vunpack.c.h.b16 %v173
  %v773 = vunpack.c.l.b16 %v174
  %v774 = vunpack.c.h.b16 %v174
  %v775 = vunpack.c.l.b16 %v175
  %v776 = vunpack.c.h.b16 %v175
  %v777 = vunpack.c.l.b16 %v176
  %v778 = vunpack.c.h.b16 %v176
  %v779 = vunpack.c.l.b16 %v177
  %v780 = vunpack.c.h.b16 %v177
  %v781 = vunpack.c.l.b16 %v178
  %v782 = vunpack.c.h.b16 %v178
  %v783 = vunpack.c.l.b16 %v179
  %v784 = vunpack.c.h.b16 %v179
  %v785 = vunpack.c.l.b16 %v180
  %v786 = vunpack.c.h.b16 %v180
  %v787 = vunpack.c.l.b16 %v181
  %v788 = vunpack.c.h.b16 %v181
  %v789 = vunpack.c.l.b16 %v182
  %v790 = vunpack.c.h.b16 %v182
  %v791 = vunpack.c.l.b16 %v183
  %v792 = vunpack.c.h.b16 %v183
  %v793 = vunpack.c.l.b16 %v184
  %v794 = vunpack.c.h.b16 %v184
  %v795 = vunpack.c.l.b16 %v185
  %v796 = vunpack.c.h.b16 %v185
  %v797 = vunpack.c.l.b16 %v186
  %v798 = vunpack.c.h.b16 %v186
  %v799 = vunpack.c.l.b16 %v187
  %v800 = vunpack.c.h.b16 %v187
  %v801 = vunpack.c.l.b16 %v188
  %v802 = vunpack.c.h.b16 %v188
  %v803 = vunpack.c.l.b16 %v189
  %v804 = vunpack.c.h.b16 %v189
  %v805 = vunpack.c.l.b16 %v190
  %v806 = vunpack.c.h.b16 %v190
  %v807 = vunpack.c.l.b16 %v191
  %v808 = vunpack.c.h.b16 %v191
  %v809 = vunpack.c.l.b16 %v192
  %v810 = vunpack.c.h.b16 %v192
  %v811 = vunpack.c.l.b16 %v193
  %v812 = vunpack.c.h.b16 %v193
  %v813 = vunpack.c.l.b16 %v194
  %v814 = vunpack.c.h.b16 %v194
  %v815 = vunpack.c.l.b16 %v195
  %v816 = vunpack.c.h.b16 %v195
  %v817 = vunpack.c.l.b16 %v196
  %v818 = vunpack.c.h.b16 %v196
  %v819 = vunpack.c.l.b16 %v197
  %v820 = vunpack.c.h.b16 %v197
  %v821 = vunpack.c.l.b16 %v198
  %v822 = vunpack.c.h.b16 %v198
  %v823 = vunpack.c.l.b16 %v199
  %v824 = vunpack.c.h.b16 %v199
  %v825 = vunpack.c.l.b16 %v200
  %v826 = vunpack.c.h.b16 %v200
  %v827 = vunpack.c.l.b16 %v201
  %v828 = vunpack.c.h.b16 %v201
  %v829 = vunpack.c.l.b16 %v202
  %v830 = vunpack.c.h.b16 %v202
  %v831 = vunpack.c.l.b16 %v203
  %v832 = vunpack.c.h.b16 %v203
  %v833 = vunpack.c.l.b16 %v204
  %v834 = vunpack.c.h.b16 %v204
  %v835 = vunpack.c.l.b16 %v205
  %v836 = vunpack.c.h.b16 %v205
  %v837 = vunpack.c.l.b16 %v206
  %v838 = vunpack.c.h.b16 %v206
  %v839 = vunpack.c.l.b16 %v207
  %v840 = vunpack.c.h.b16 %v207
  %v841 = vunpack.c.l.b16 %v208
  %v842 = vunpack.c.h.b16 %v208
  %v843 = vunpack.c.l.b16 %v209
  %v844 = vunpack.c.h.b16 %v209
  %v845 = vunpack.c.l.b16 %v210
  %v846 = vunpack.c.h.b16 %v210
  %v847 = vunpack.c.l.b16 %v211
  %v848 = vunpack.c.h.b16 %v211
  %v849 = vunpack.c.l.b16 %v212
  %v850 = vunpack.c.h.b16 %v212
  %v851 = vunpack.c.l.b16 %v213
  %v852 = vunpack.c.h.b16 %v213
  %v853 = vunpack.c.l.b16 %v214
  %v854 = vunpack.c.h.b16 %v214
  %v855 = vunpack.c.l.b16 %v215
  %v856 = vunpack.c.h.b16 %v215
  %v857 = vunpack.c.l.b16 %v216
  %v858 = vunpack.c.h.b16 %v216
  %v859 = vunpack.c.l.b16 %v217
  %v860 = vunpack.c.h.b16 %v217
  %v861 = vunpack.c.l.b16 %v218
  %v862 = vunpack.c.h.b16 %v218
  %v863 = vunpack.c.l.b16 %v219
  %v864 = vunpack.c.h.b16 %v219
  %v865 = vunpack.c.l.b16 %v220
  %v866 = vunpack.c.h.b16 %v220
  %v867 = vunpack.c.l.b16 %v221
  %v868 = vunpack.c.h.b16 %v221
  %v869 = vunpack.c.l.b16 %v222
  %v870 = vunpack.c.h.b16 %v222
  %v871 = vunpack.c.l.b16 %v223
  %v872 = vunpack.c.h.b16 %v223
  %v873 = vunpack.c.l.b16 %v224
  %v874 = vunpack.c.h.b16 %v224
  %v875 = vunpack.c.l.b16 %v225
  %v876 = vunpack.c.h.b16 %v225
  %v877 = vunpack.c.l.b16 %v226
  %v878 = vunpack.c.h.b16 %v226
  %v879 = vunpack.c.l.b16 %v227
  %v880 = vunpack.c.h.b16 %v227
  %v881 = vunpack.c.l.b16 %v228
  %v882 = vunpack.c.h.b16 %v228
  %v883 = vunpack.c.l.b16 %v229
  %v884 = vunpack.c.h.b16 %v229
  %v885 = vunpack.c.l.b16 %v230
  %v886 = vunpack.c.h.b16 %v230
  %v887 = vunpack.c.l.b16 %v231
  %v888 = vunpack.c.h.b16 %v231
  %v889 = vunpack.c.l.b16 %v232
  %v890 = vunpack.c.h.b16 %v232
  %v891 = vunpack.c.l.b16 %v233
  %v892 = vunpack.c.h.b16 %v233
  %v893 = vunpack.c.l.b16 %v234
  %v894 = vunpack.c.h.b16 %v234
  %v895 = vunpack.c.l.b16 %v235
  %v896 = vunpack.c.h.b16 %v235
  %v897 = vunpack.c.l.b16 %v236
  %v898 = vunpack.c.h.b16 %v236
  %v899 = vunpack.c.l.b16 %v237
  %v900 = vunpack.c.h.b16 %v237
  %v901 = vunpack.c.l.b16 %v238
  %v902 = vunpack.c.h.b16 %v238
  %v903 = vunpack.c.l.b16 %v239
  %v904 = vunpack.c.h.b16 %v239
  %v905 = vunpack.c.l.b16 %v240
  %v906 = vunpack.c.h.b16 %v240
  %v907 = vunpack.c.l.b16 %v241
  %v908 = vunpack.c.h.b16 %v241
  %v909 = vunpack.c.l.b16 %v242
  %v910 = vunpack.c.h.b16 %v242
  %v911 = vunpack.c.l.b16 %v243
  %v912 = vunpack.c.h.b16 %v243
  %v913 = vunpack.c.l.b16 %v244
  %v914 = vunpack.c.h.b16 %v244
  %v915 = vunpack.c.l.b16 %v245
  %v916 = vunpack.c.h.b16 %v245
  %v917 = vunpack.c.l.b16 %v246
  %v918 = vunpack.c.h.b16 %v246
  %v919 = vunpack.c.l.b16 %v247
  %v920 = vunpack.c.h.b16 %v247
  %v921 = vunpack.c.l.b16 %v248
  %v922 = vunpack.c.h.b16 %v248
  %v923 = vunpack.c.l.b16 %v249
  %v924 = vunpack.c.h.b16 %v249
  %v925 = vunpack.c.l.b16 %v250
  %v926 = vunpack.c.h.b16 %v250
  %v927 = vunpack.c.l.b16 %v251
  %v928 = vunpack.c.h.b16 %v251
  %v929 = vunpack.c.l.b16 %v252
  %v930 = vunpack.c.h.b16 %v252
  %v931 = vunpack.c.l.b16 %v253
  %v932 = vunpack.c.h.b16 %v253
  %v933 = vunpack.c.l.b16 %v254
  %v934 = vunpack.c.h.b16 %v254
  %v935 = vunpack.c.l.b16 %v255
  %v936 = vunpack.c.h.b16 %v255
  %v937 = vunpack.c.l.b16 %v256
  %v938 = vunpack.c.h.b16 %v256
  %v939 = vunpack.c.l.b16 %v257
  %v940 = vunpack.c.h.b16 %v257
  %v941 = vunpack.c.l.b16 %v258
  %v942 = vunpack.c.h.b16 %v258
  %v943 = vunpack.c.l.b16 %v259
  %v944 = vunpack.c.h.b16 %v259
  %v945 = vunpack.c.l.b16 %v260
  %v946 = vunpack.c.h.b16 %v260
  %v947 = vunpack.c.l.b16 %v261
  %v948 = vunpack.c.h.b16 %v261
  %v949 = vunpack.c.l.b16 %v262
  %v950 = vunpack.c.h.b16 %v262
  %v951 = vunpack.c.l.b16 %v263
  %v952 = vunpack.c.h.b16 %v263
  %v953 = vunpack.c.l.b16 %v264
  %v954 = vunpack.c.h.b16 %v264
  %v955 = vunpack.c.l.b16 %v265
  %v956 = vunpack.c.h.b16 %v265
  %v957 = vunpack.c.l.b16 %v266
  %v958 = vunpack.c.h.b16 %v266
  %v959 = vunpack.c.l.b16 %v267
  %v960 = vunpack.c.h.b16 %v267
  %v961 = vunpack.c.l.b16 %v268
  %v962 = vunpack.c.h.b16 %v268
  %v963 = vunpack.c.l.b16 %v269
  %v964 = vunpack.c.h.b16 %v269
  %v965 = vunpack.c.l.b16 %v270
  %v966 = vunpack.c.h.b16 %v270
  %v967 = vunpack.c.l.b16 %v271
  %v968 = vunpack.c.h.b16 %v271
  %v969 = vunpack.c.l.b16 %v272
  %v970 = vunpack.c.h.b16 %v272
  %v971 = vunpack.c.l.b16 %v273
  %v972 = vunpack.c.h.b16 %v273
  %v973 = vunpack.c.l.b16 %v274
  %v974 = vunpack.c.h.b16 %v274
  %v975 = vunpack.c.l.b16 %v275
  %v976 = vunpack.c.h.b16 %v275
  %v977 = vunpack.c.l.b16 %v276
  %v978 = vunpack.c.h.b16 %v276
  %v979 = vunpack.c.l.b16 %v277
  %v980 = vunpack.c.h.b16 %v277
  %v981 = vunpack.c.l.b16 %v278
  %v982 = vunpack.c.h.b16 %v278
  %v983 = vunpack.c.l.b16 %v279
  %v984 = vunpack.c.h.b16 %v279
  %v985 = vunpack.c.l.b16 %v280
  %v986 = vunpack.c.h.b16 %v280
  %v987 = vunpack.c.l.b16 %v281
  %v988 = vunpack.c.h.b16 %v281
  %v989 = vunpack.c.l.b16 %v282
  %v990 = vunpack.c.h.b16 %v282
  %v991 = vunpack.c.l.b16 %v283
  %v992 = vunpack.c.h.b16 %v283
  %v993 = vunpack.c.l.b16 %v284
  %v994 = vunpack.c.h.b16 %v284
  %v995 = vunpack.c.l.b16 %v285
  %v996 = vunpack.c.h.b16 %v285
  %v997 = vunpack.c.l.b16 %v286
  %v998 = vunpack.c.h.b16 %v286
  %v999 = vunpack.c.l.b16 %v287
  %v1000 = vunpack.c.h.b16 %v287
  %v1001 = vunpack.c.l.b16 %v288
  %v1002 = vunpack.c.h.b16 %v288
  %v1003 = vunpack.c.l.b16 %v289
  %v1004 = vunpack.c.h.b16 %v289
  %v1005 = vunpack.c.l.b16 %v290
  %v1006 = vunpack.c.h.b16 %v290
  %v1007 = vunpack.c.l.b16 %v291
  %v1008 = vunpack.c.h.b16 %v291
  %v1009 = vunpack.c.l.b16 %v292
  %v1010 = vunpack.c.h.b16 %v292
  %v1011 = vunpack.c.l.b16 %v293
  %v1012 = vunpack.c.h.b16 %v293
  %v1013 = vunpack.c.l.b16 %v294
  %v1014 = vunpack.c.h.b16 %v294
  %v1015 = vunpack.c.l.b16 %v295
  %v1016 = vunpack.c.h.b16 %v295
  %v1017 = vunpack.c.l.b16 %v296
  %v1018 = vunpack.c.h.b16 %v296
  %v1019 = vunpack.c.l.b16 %v297
  %v1020 = vunpack.c.h.b16 %v297
  %v1021 = vunpack.c.l.b16 %v298
  %v1022 = vunpack.c.h.b16 %v298
  %v1023 = vunpack.c.l.b16 %v299
  %v1024 = vunpack.c.h.b16 %v299
  %v1025 = vunpack.c.l.b16 %v300
  %v1026 = vunpack.c.h.b16 %v300
  %v1027 = vunpack.c.l.b16 %v301
  %v1028 = vunpack.c.h.b16 %v301
  %v1029 = vunpack.c.l.b16 %v302
  %v1030 = vunpack.c.h.b16 %v302
  %v1031 = vunpack.c.l.b16 %v303
  %v1032 = vunpack.c.h.b16 %v303
  %v1033 = vunpack.c.l.b16 %v304
  %v1034 = vunpack.c.h.b16 %v304
  %v1035 = vunpack.c.l.b16 %v305
  %v1036 = vunpack.c.h.b16 %v305
  %v1037 = vunpack.c.l.b16 %v306
  %v1038 = vunpack.c.h.b16 %v306
  %v1039 = vunpack.c.l.b16 %v307
  %v1040 = vunpack.c.h.b16 %v307
  %v1041 = vunpack.c.l.b16 %v308
  %v1042 = vunpack.c.h.b16 %v308
  %v1043 = vunpack.c.l.b16 %v309
  %v1044 = vunpack.c.h.b16 %v309
  %v1045 = vunpack.c.l.b16 %v310
  %v1046 = vunpack.c.h.b16 %v310
  %v1047 = vunpack.c.l.b16 %v311
  %v1048 = vunpack.c.h.b16 %v311
  %v1049 = vunpack.c.l.b16 %v312
  %v1050 = vunpack.c.h.b16 %v312
  %v1051 = vunpack.c.l.b16 %v313
  %v1052 = vunpack.c.h.b16 %v313
  %v1053 = vunpack.c.l.b16 %v314
  %v1054 = vunpack.c.h.b16 %v314
  %v1055 = vunpack.c.l.b16 %v315
  %v1056 = vunpack.c.h.b16 %v315
  %v1057 = vunpack.c.l.b16 %v316
  %v1058 = vunpack.c.h.b16 %v316
  %v1059 = vunpack.c.l.b16 %v317
  %v1060 = vunpack.c.h.b16 %v317
  %v1061 = vunpack.c.l.b16 %v318
  %v1062 = vunpack.c.h.b16 %v318
  %v1063 = vunpack.c.l.b16 %v319
  %v1064 = vunpack.c.h.b16 %v319
  %v1065 = vunpack.c.l.b16 %v320
  %v1066 = vunpack.c.h.b16 %v320
  %v1067 = vunpack.c.l.b16 %v321
  %v1068 = vunpack.c.h.b16 %v321
  %v1069 = vunpack.c.l.b16 %v322
  %v1070 = vunpack.c.h.b16 %v322
  %v1071 = vunpack.c.l.b16 %v323
  %v1072 = vunpack.c.h.b16 %v323
  %v1073 = vunpack.c.l.b16 %v324
  %v1074 = vunpack.c.h.b16 %v324
  %v1075 = vunpack.c.l.b16 %v325
  %v1076 = vunpack.c.h.b16 %v325
  %v1077 = vunpack.c.l.b16 %v326
  %v1078 = vunpack.c.h.b16 %v326
  %v1079 = vunpack.c.l.b16 %v327
  %v1080 = vunpack.c.h.b16 %v327
  %v1081 = vunpack.c.l.b16 %v328
  %v1082 = vunpack.c.h.b16 %v328
  %v1083 = vunpack.c.l.b16 %v329
  %v1084 = vunpack.c.h.b16 %v329
  %v1085 = vunpack.c.l.b16 %v330
  %v1086 = vunpack.c.h.b16 %v330
  %v1087 = vunpack.c.l.b16 %v331
  %v1088 = vunpack.c.h.b16 %v331
  %v1089 = vunpack.c.l.b16 %v332
  %v1090 = vunpack.c.h.b16 %v332
  %v1091 = vunpack.c.l.b16 %v333
  %v1092 = vunpack.c.h.b16 %v333
  %v1093 = vunpack.c.l.b16 %v334
  %v1094 = vunpack.c.h.b16 %v334
  %v1095 = vunpack.c.l.b16 %v335
  %v1096 = vunpack.c.h.b16 %v335
  %v1097 = vunpack.c.l.b16 %v336
  %v1098 = vunpack.c.h.b16 %v336
  %v1099 = vunpack.c.l.b16 %v337
  %v1100 = vunpack.c.h.b16 %v337
  %v1101 = vunpack.c.l.b16 %v338
  %v1102 = vunpack.c.h.b16 %v338
  %v1103 = vunpack.c.l.b16 %v339
  %v1104 = vunpack.c.h.b16 %v339
  %v1105 = vunpack.c.l.b16 %v340
  %v1106 = vunpack.c.h.b16 %v340
  %v1107 = vunpack.c.l.b16 %v341
  %v1108 = vunpack.c.h.b16 %v341
  %v1109 = vunpack.c.l.b16 %v342
  %v1110 = vunpack.c.h.b16 %v342
  %v1111 = vpack.c.b16 %v603, %v599
  %v1112 = vpack.c.b16 %v604, %v600
  %v1113 = vpack.c.b16 %v605, %v601
  %v1114 = vpack.c.b16 %v606, %v602
  %v1115 = vpack.c.b16 %v611, %v607
  %v1116 = vpack.c.b16 %v612, %v608
  %v1117 = vpack.c.b16 %v613, %v609
  %v1118 = vpack.c.b16 %v614, %v610
  %v1119 = vpack.c.b16 %v619, %v615
  %v1120 = vpack.c.b16 %v620, %v616
  %v1121 = vpack.c.b16 %v621, %v617
  %v1122 = vpack.c.b16 %v622, %v618
  %v1123 = vpack.c.b16 %v627, %v623
  %v1124 = vpack.c.b16 %v628, %v624
  %v1125 = vpack.c.b16 %v629, %v625
  %v1126 = vpack.c.b16 %v630, %v626
  %v1127 = vpack.c.b16 %v635, %v631
  %v1128 = vpack.c.b16 %v636, %v632
  %v1129 = vpack.c.b16 %v637, %v633
  %v1130 = vpack.c.b16 %v638, %v634
  %v1131 = vpack.c.b16 %v643, %v639
  %v1132 = vpack.c.b16 %v644, %v640
  %v1133 = vpack.c.b16 %v645, %v641
  %v1134 = vpack.c.b16 %v646, %v642
  %v1135 = vpack.c.b16 %v651, %v647
  %v1136 = vpack.c.b16 %v652, %v648
  %v1137 = vpack.c.b16 %v653, %v649
  %v1138 = vpack.c.b16 %v654, %v650
  %v1139 = vpack.c.b16 %v659, %v655
  %v1140 = vpack.c.b16 %v660, %v656
  %v1141 = vpack.c.b16 %v661, %v657
  %v1142 = vpack.c.b16 %v662, %v658
  %v1143 = vpack.c.b16 %v667, %v663
  %v1144 = vpack.c.b16 %v668, %v664
  %v1145 = vpack.c.b16 %v669, %v665
  %v1146 = vpack.c.b16 %v670, %v666
  %v1147 = vpack.c.b16 %v675, %v671
  %v1148 = vpack.c.b16 %v676, %v672
  %v1149 = vpack.c.b16 %v677, %v673
  %v1150 = vpack.c.b16 %v678, %v674
  %v1151 = vpack.c.b16 %v683, %v679
  %v1152 = vpack.c.b16 %v684, %v680
  %v1153 = vpack.c.b16 %v685, %v681
  %v1154 = vpack.c.b16 %v686, %v682
  %v1155 = vpack.c.b16 %v691, %v687
  %v1156 = vpack.c.b16 %v692, %v688
  %v1157 = vpack.c.b16 %v693, %v689
  %v1158 = vpack.c.b16 %v694, %v690
  %v1159 = vpack.c.b16 %v699, %v695
  %v1160 = vpack.c.b16 %v700, %v696
  %v1161 = vpack.c.b16 %v701, %v697
  %v1162 = vpack.c.b16 %v702, %v698
  %v1163 = vpack.c.b16 %v707, %v703
  %v1164 = vpack.c.b16 %v708, %v704
  %v1165 = vpack.c.b16 %v709, %v705
  %v1166 = vpack.c.b16 %v710, %v706
  %v1167 = vpack.c.b16 %v715, %v711
  %v1168 = vpack.c.b16 %v716, %v712
  %v1169 = vpack.c.b16 %v717, %v713
  %v1170 = vpack.c.b16 %v718, %v714
  %v1171 = vpack.c.b16 %v723, %v719
  %v1172 = vpack.c.b16 %v724, %v720
  %v1173 = vpack.c.b16 %v725, %v721
  %v1174 = vpack.c.b16 %v726, %v722
  %v1175 = vpack.c.b16 %v731, %v727
  %v1176 = vpack.c.b16 %v732, %v728
  %v1177 = vpack.c.b16 %v733, %v729
  %v1178 = vpack.c.b16 %v734, %v730
  %v1179 = vpack.c.b16 %v739, %v735
  %v1180 = vpack.c.b16 %v740, %v736
  %v1181 = vpack.c.b16 %v741, %v737
  %v1182 = vpack.c.b16 %v742, %v738
  %v1183 = vpack.c.b16 %v747, %v743
  %v1184 = vpack.c.b16 %v748, %v744
  %v1185 = vpack.c.b16 %v749, %v745
  %v1186 = vpack.c.b16 %v750, %v746
  %v1187 = vpack.c.b16 %v755, %v751
  %v1188 = vpack.c.b16 %v756, %v752
  %v1189 = vpack.c.b16 %v757, %v753
  %v1190 = vpack.c.b16 %v758, %v754
  %v1191 = vpack.c.b16 %v763, %v759
  %v1192 = vpack.c.b16 %v764, %v760
  %v1193 = vpack.c.b16 %v765, %v761
  %v1194 = vpack.c.b16 %v766, %v762
  %v1195 = vpack.c.b16 %v771, %v767
  %v1196 = vpack.c.b16 %v772, %v768
  %v1197 = vpack.c.b16 %v773, %v769
  %v1198 = vpack.c.b16 %v774, %v770
  %v1199 = vpack.c.b16 %v779, %v775
  %v1200 = vpack.c.b16 %v780, %v776
  %v1201 = vpack.c.b16 %v781, %v777
  %v1202 = vpack.c.b16 %v782, %v778
  %v1203 = vpack.c.b16 %v787, %v783
  %v1204 = vpack.c.b16 %v788, %v784
  %v1205 = vpack.c.b16 %v789, %v785
  %v1206 = vpack.c.b16 %v790, %v786
  %v1207 = vpack.c.b16 %v795, %v791
  %v1208 = vpack.c.b16 %v796, %v792
  %v1209 = vpack.c.b16 %v797, %v793
  %v1210 = vpack.c.b16 %v798, %v794
  %v1211 = vpack.c.b16 %v803, %v799
  %v1212 = vpack.c.b16 %v804, %v800
  %v1213 = vpack.c.b16 %v805, %v801
  %v1214 = vpack.c.b16 %v806, %v802
  %v1215 = vpack.c.b16 %v811, %v807
  %v1216 = vpack.c.b16 %v812, %v808
  %v1217 = vpack.c.b16 %v813, %v809
  %v1218 = vpack.c.b16 %v814, %v810
  %v1219 = vpack.c.b16 %v819, %v815
  %v1220 = vpack.c.b16 %v820, %v816
  %v1221 = vpack.c.b16 %v821, %v817
  %v1222 = vpack.c.b16 %v822, %v818
  %v1223 = vpack.c.b16 %v827, %v823
  %v1224 = vpack.c.b16 %v828, %v824
  %v1225 = vpack.c.b16 %v829, %v825
  %v1226 = vpack.c.b16 %v830, %v826
  %v1227 = vpack.c.b16 %v835, %v831
  %v1228 = vpack.c.b16 %v836, %v832
  %v1229 = vpack.c.b16 %v837, %v833
  %v1230 = vpack.c.b16 %v838, %v834
  %v1231 = vpack.c.b16 %v843, %v839
  %v1232 = vpack.c.b16 %v844, %v840
  %v1233 = vpack.c.b16 %v845, %v841
  %v1234 = vpack.c.b16 %v846, %v842
  %v1235 = vpack.c.b16 %v851, %v847
  %v1236 = vpack.c.b16 %v852, %v848
  %v1237 = vpack.c.b16 %v853, %v849
  %v1238 = vpack.c.b16 %v854, %v850
  %v1239 = vpack.c.b16 %v859, %v855
  %v1240 = vpack.c.b16 %v860, %v856
  %v1241 = vpack.c.b16 %v861, %v857
  %v1242 = vpack.c.b16 %v862, %v858
  %v1243 = vpack.c.b16 %v867, %v863
  %v1244 = vpack.c.b16 %v868, %v864
  %v1245 = vpack.c.b16 %v869, %v865
  %v1246 = vpack.c.b16 %v870, %v866
  %v1247 = vpack.c.b16 %v875, %v871
  %v1248 = vpack.c.b16 %v876, %v872
  %v1249 = vpack.c.b16 %v877, %v873
  %v1250 = vpack.c.b16 %v878, %v874
  %v1251 = vpack.c.b16 %v883, %v879
  %v1252 = vpack.c.b16 %v884, %v880
  %v1253 = vpack.c.b16 %v885, %v881
  %v1254 = vpack.c.b16 %v886, %v882
  %v1255 = vpack.c.b16 %v891, %v887
  %v1256 = vpack.c.b16 %v892, %v888
  %v1257 = vpack.c.b16 %v893, %v889
  %v1258 = vpack.c.b16 %v894, %v890
  %v1259 = vpack.c.b16 %v899, %v895
  %v1260 = vpack.c.b16 %v900, %v896
  %v1261 = vpack.c.b16 %v901, %v897
  %v1262 = vpack.c.b16 %v902, %v898
  %v1263 = vpack.c.b16 %v907, %v903
  %v1264 = vpack.c.b16 %v908, %v904
  %v1265 = vpack.c.b16 %v909, %v905
  %v1266 = vpack.c.b16 %v910, %v906
  %v1267 = vpack.c.b16 %v915, %v911
  %v1268 = vpack.c.b16 %v916, %v912
  %v1269 = vpack.c.b16 %v917, %v913
  %v1270 = vpack.c.b16 %v918, %v914
  %v1271 = vpack.c.b16 %v923, %v919
  %v1272 = vpack.c.b16 %v924, %v920
  %v1273 = vpack.c.b16 %v925, %v921
  %v1274 = vpack.c.b16 %v926, %v922
  %v1275 = vpack.c.b16 %v931, %v927
  %v1276 = vpack.c.b16 %v932, %v928
  %v1277 = vpack.c.b16 %v933, %v929
  %v1278 = vpack.c.b16 %v934, %v930
  %v1279 = vpack.c.b16 %v939, %v935
  %v1280 = vpack.c.b16 %v940, %v936
  %v1281 = vpack.c.b16 %v941, %v937
  %v1282 = vpack.c.b16 %v942, %v938
  %v1283 = vpack.c.b16 %v947, %v943
  %v1284 = vpack.c.b16 %v948, %v944
  %v1285 = vpack.c.b16 %v949, %v945
  %v1286 = vpack.c.b16 %v950, %v946
  %v1287 = vpack.c.b16 %v955, %v951
  %v1288 = vpack.c.b16 %v956, %v952
  %v1289 = vpack.c.b16 %v957, %v953
  %v1290 = vpack.c.b16 %v958, %v954
  %v1291 = vpack.c.b16 %v963, %v959
  %v1292 = vpack.c.b16 %v964, %v960
  %v1293 = vpack.c.b16 %v965, %v961
  %v1294 = vpack.c.b16 %v966, %v962
  %v1295 = vpack.c.b16 %v971, %v967
  %v1296 = vpack.c.b16 %v972, %v968
  %v1297 = vpack.c.b16 %v973, %v969
  %v1298 = vpack.c.b16 %v974, %v970
  %v1299 = vpack.c.b16 %v979, %v975
  %v1300 = vpack.c.b16 %v980, %v976
  %v1301 = vpack.c.b16 %v981, %v977
  %v1302 = vpack.c.b16 %v982, %v978
  %v1303 = vpack.c.b16 %v987, %v983
  %v1304 = vpack.c.b16 %v988, %v984
  %v1305 = vpack.c.b16 %v989, %v985
  %v1306 = vpack.c.b16 %v990, %v986
  %v1307 = vpack.c.b16 %v995, %v991
  %v1308 = vpack.c.b16 %v996, %v992
  %v1309 = vpack.c.b16 %v997, %v993
  %v1310 = vpack.c.b16 %v998, %v994
  %v1311 = vpack.c.b16 %v1003, %v999
  %v1312 = vpack.c.b16 %v1004, %v1000
  %v1313 = vpack.c.b16 %v1005, %v1001
  %v1314 = vpack.c.b16 %v1006, %v1002
  %v1315 = vpack.c.b16 %v1011, %v1007
  %v1316 = vpack.c.b16 %v1012, %v1008
  %v1317 = vpack.c.b16 %v1013, %v1009
  %v1318 = vpack.c.b16 %v1014, %v1010
  %v1319 = vpack.c.b16 %v1019, %v1015
  %v1320 = vpack.c.b16 %v1020, %v1016
  %v1321 = vpack.c.b16 %v1021, %v1017
  %v1322 = vpack.c.b16 %v1022, %v1018
  %v1323 = vpack.c.b16 %v1027, %v1023
  %v1324 = vpack.c.b16 %v1028, %v1024
  %v1325 = vpack.c.b16 %v1029, %v1025
  %v1326 = vpack.c.b16 %v1030, %v1026
  %v1327 = vpack.c.b16 %v1035, %v1031
  %v1328 = vpack.c.b16 %v1036, %v1032
  %v1329 = vpack.c.b16 %v1037, %v1033
  %v1330 = vpack.c.b16 %v1038, %v1034
  %v1331 = vpack.c.b16 %v1043, %v1039
  %v1332 = vpack.c.b16 %v1044, %v1040
  %v1333 = vpack.c.b16 %v1045, %v1041
  %v1334 = vpack.c.b16 %v1046, %v1042
  %v1335 = vpack.c.b16 %v1051, %v1047
  %v1336 = vpack.c.b16 %v1052, %v1048
  %v1337 = vpack.c.b16 %v1053, %v1049
  %v1338 = vpack.c.b16 %v1054, %v1050
  %v1339 = vpack.c.b16 %v1059, %v1055
  %v1340 = vpack.c.b16 %v1060, %v1056
  %v1341 = vpack.c.b16 %v1061, %v1057
  %v1342 = vpack.c.b16 %v1062, %v1058
  %v1343 = vpack.c.b16 %v1067, %v1063
  %v1344 = vpack.c.b16 %v1068, %v1064
  %v1345 = vpack.c.b16 %v1069, %v1065
  %v1346 = vpack.c.b16 %v1070, %v1066
  %v1347 = vpack.c.b16 %v1075, %v1071
  %v1348 = vpack.c.b16 %v1076, %v1072
  %v1349 = vpack.c.b16 %v1077, %v1073
  %v1350 = vpack.c.b16 %v1078, %v1074
  %v1351 = vpack.c.b16 %v1083, %v1079
  %v1352 = vpack.c.b16 %v1084, %v1080
  %v1353 = vpack.c.b16 %v1085, %v1081
  %v1354 = vpack.c.b16 %v1086, %v1082
  %v1355 = vpack.c.b16 %v1091, %v1087
  %v1356 = vpack.c.b16 %v1092, %v1088
  %v1357 = vpack.c.b16 %v1093, %v1089
  %v1358 = vpack.c.b16 %v1094, %v1090
  %v1359 = vpack.c.b16 %v1099, %v1095
  %v1360 = vpack.c.b16 %v1100, %v1096
  %v1361 = vpack.c.b16 %v1101, %v1097
  %v1362 = vpack.c.b16 %v1102, %v1098
  %v1363 = vpack.c.b16 %v1107, %v1103
  %v1364 = vpack.c.b16 %v1108, %v1104
  %v1365 = vpack.c.b16 %v1109, %v1105
  %v1366 = vpack.c.b16 %v1110, %v1106
  %1623 = vmatprep.subr.bf16.mxu0 %v1140
  %1624 = vmatpush1.bf16.msra.mxu0 %v1139
  %1625 = vmatprep.subr.bf16.mxu0 %v1136
  %1626 = vmatpush1.bf16.msra.mxu0 %v1135
  %1627 = vmatprep.subr.bf16.mxu0 %v1132
  %1628 = vmatpush1.bf16.msra.mxu0 %v1131
  %1629 = vmatprep.subr.bf16.mxu0 %v1128
  %1630 = vmatpush1.bf16.msra.mxu0 %v1127
  %1631 = vmatprep.subr.bf16.mxu0 %v1124
  %1632 = vmatpush1.bf16.msra.mxu0 %v1123
  %1633 = vmatprep.subr.bf16.mxu0 %v1120
  %1634 = vmatpush1.bf16.msra.mxu0 %v1119
  %1635 = vmatprep.subr.bf16.mxu0 %v1116
  %1636 = vmatpush1.bf16.msra.mxu0 %v1115
  %1637 = vmatprep.subr.bf16.mxu0 %v1112
  %1638 = vmatpush1.bf16.msra.mxu0 %v1111
  %1639 = vmatprep.subr.bf16.mxu0 %v1172
  %1640 = vmatpush2.bf16.msra.mxu0 %v1171
  %1641 = vmatprep.subr.bf16.mxu0 %v1168
  %1642 = vmatpush2.bf16.msra.mxu0 %v1167
  %1643 = vmatprep.subr.bf16.mxu0 %v1164
  %1644 = vmatpush2.bf16.msra.mxu0 %v1163
  %1645 = vmatprep.subr.bf16.mxu0 %v1160
  %1646 = vmatpush2.bf16.msra.mxu0 %v1159
  %1647 = vmatprep.subr.bf16.mxu0 %v1156
  %1648 = vmatpush2.bf16.msra.mxu0 %v1155
  %1649 = vmatprep.subr.bf16.mxu0 %v1152
  %1650 = vmatpush2.bf16.msra.mxu0 %v1151
  %1651 = vmatprep.subr.bf16.mxu0 %v1148
  %1652 = vmatpush2.bf16.msra.mxu0 %v1147
  %1653 = vmatprep.subr.bf16.mxu0 %v1144
  %1654 = vmatpush2.bf16.msra.mxu0 %v1143
  %1655 = vmatprep.mubr.bf16.mxu0 %v80
  %1656 = vmatmul.mubr.bf16.gmra.mxu0 %v79
  %v1657 = vpop.f32.mrf.mxu0
  %v1658 = vadd.f32 0.0, %v1657
  %v1659 = vpop.f32.mrf.mxu0
  %v1660 = vadd.f32 0.0, %v1659
  %v1661 = vpop.f32.mrf.mxu0
  %v1662 = vpop.f32.mrf.mxu0
  %1663 = vdwg.mxu0
  %1664 = vmatprep.subr.bf16.mxu0 %v1204
  %1665 = vmatpush1.bf16.msra.mxu0 %v1203
  %1666 = vmatprep.subr.bf16.mxu0 %v1200
  %1667 = vmatpush1.bf16.msra.mxu0 %v1199
  %1668 = vmatprep.subr.bf16.mxu0 %v1196
  %1669 = vmatpush1.bf16.msra.mxu0 %v1195
  %1670 = vmatprep.subr.bf16.mxu0 %v1192
  %1671 = vmatpush1.bf16.msra.mxu0 %v1191
  %1672 = vmatprep.subr.bf16.mxu0 %v1188
  %1673 = vmatpush1.bf16.msra.mxu0 %v1187
  %1674 = vmatprep.subr.bf16.mxu0 %v1184
  %1675 = vmatpush1.bf16.msra.mxu0 %v1183
  %1676 = vmatprep.subr.bf16.mxu0 %v1180
  %1677 = vmatpush1.bf16.msra.mxu0 %v1179
  %1678 = vmatprep.subr.bf16.mxu0 %v1176
  %1679 = vmatpush1.bf16.msra.mxu0 %v1175
  %1680 = vmatprep.subr.bf16.mxu0 %v1236
  %1681 = vmatpush2.bf16.msra.mxu0 %v1235
  %1682 = vmatprep.subr.bf16.mxu0 %v1232
  %1683 = vmatpush2.bf16.msra.mxu0 %v1231
  %1684 = vmatprep.subr.bf16.mxu0 %v1228
  %1685 = vmatpush2.bf16.msra.mxu0 %v1227
  %1686 = vmatprep.subr.bf16.mxu0 %v1224
  %1687 = vmatpush2.bf16.msra.mxu0 %v1223
  %1688 = vmatprep.subr.bf16.mxu0 %v1220
  %1689 = vmatpush2.bf16.msra.mxu0 %v1219
  %1690 = vmatprep.subr.bf16.mxu0 %v1216
  %1691 = vmatpush2.bf16.msra.mxu0 %v1215
  %1692 = vmatprep.subr.bf16.mxu0 %v1212
  %1693 = vmatpush2.bf16.msra.mxu0 %v1211
  %1694 = vmatprep.subr.bf16.mxu0 %v1208
  %1695 = vmatpush2.bf16.msra.mxu0 %v1207
  %1696 = vmatprep.mubr.bf16.mxu0 %v82
  %1697 = vmatmul.mubr.bf16.gmra.mxu0 %v81
  %v1698 = vpop.f32.mrf.mxu0
  %v1699 = vadd.f32 %v1658, %v1698
  %v1700 = vpop.f32.mrf.mxu0
  %v1701 = vadd.f32 %v1660, %v1700
  %v1702 = vpop.f32.mrf.mxu0
  %v1703 = vpop.f32.mrf.mxu0
  %1704 = vdwg.mxu0
  %1705 = vmatprep.subr.bf16.mxu0 %v1268
  %1706 = vmatpush1.bf16.msra.mxu0 %v1267
  %1707 = vmatprep.subr.bf16.mxu0 %v1264
  %1708 = vmatpush1.bf16.msra.mxu0 %v1263
  %1709 = vmatprep.subr.bf16.mxu0 %v1260
  %1710 = vmatpush1.bf16.msra.mxu0 %v1259
  %1711 = vmatprep.subr.bf16.mxu0 %v1256
  %1712 = vmatpush1.bf16.msra.mxu0 %v1255
  %1713 = vmatprep.subr.bf16.mxu0 %v1252
  %1714 = vmatpush1.bf16.msra.mxu0 %v1251
  %1715 = vmatprep.subr.bf16.mxu0 %v1248
  %1716 = vmatpush1.bf16.msra.mxu0 %v1247
  %1717 = vmatprep.subr.bf16.mxu0 %v1244
  %1718 = vmatpush1.bf16.msra.mxu0 %v1243
  %1719 = vmatprep.subr.bf16.mxu0 %v1240
  %1720 = vmatpush1.bf16.msra.mxu0 %v1239
  %1721 = vmatprep.subr.bf16.mxu0 %v1300
  %1722 = vmatpush2.bf16.msra.mxu0 %v1299
  %1723 = vmatprep.subr.bf16.mxu0 %v1296
  %1724 = vmatpush2.bf16.msra.mxu0 %v1295
  %1725 = vmatprep.subr.bf16.mxu0 %v1292
  %1726 = vmatpush2.bf16.msra.mxu0 %v1291
  %1727 = vmatprep.subr.bf16.mxu0 %v1288
  %1728 = vmatpush2.bf16.msra.mxu0 %v1287
  %1729 = vmatprep.subr.bf16.mxu0 %v1284
  %1730 = vmatpush2.bf16.msra.mxu0 %v1283
  %1731 = vmatprep.subr.bf16.mxu0 %v1280
  %1732 = vmatpush2.bf16.msra.mxu0 %v1279
  %1733 = vmatprep.subr.bf16.mxu0 %v1276
  %1734 = vmatpush2.bf16.msra.mxu0 %v1275
  %1735 = vmatprep.subr.bf16.mxu0 %v1272
  %1736 = vmatpush2.bf16.msra.mxu0 %v1271
  %1737 = vmatprep.mubr.bf16.mxu0 %v84
  %1738 = vmatmul.mubr.bf16.gmra.mxu0 %v83
  %v1739 = vpop.f32.mrf.mxu0
  %v1740 = vadd.f32 %v1699, %v1739
  %v1741 = vpop.f32.mrf.mxu0
  %v1742 = vadd.f32 %v1701, %v1741
  %v1743 = vpop.f32.mrf.mxu0
  %v1744 = vpop.f32.mrf.mxu0
  %1745 = vdwg.mxu0
  %1746 = vmatprep.subr.bf16.mxu0 %v1332
  %1747 = vmatpush1.bf16.msra.mxu0 %v1331
  %1748 = vmatprep.subr.bf16.mxu0 %v1328
  %1749 = vmatpush1.bf16.msra.mxu0 %v1327
  %1750 = vmatprep.subr.bf16.mxu0 %v1324
  %1751 = vmatpush1.bf16.msra.mxu0 %v1323
  %1752 = vmatprep.subr.bf16.mxu0 %v1320
  %1753 = vmatpush1.bf16.msra.mxu0 %v1319
  %1754 = vmatprep.subr.bf16.mxu0 %v1316
  %1755 = vmatpush1.bf16.msra.mxu0 %v1315
  %1756 = vmatprep.subr.bf16.mxu0 %v1312
  %1757 = vmatpush1.bf16.msra.mxu0 %v1311
  %1758 = vmatprep.subr.bf16.mxu0 %v1308
  %1759 = vmatpush1.bf16.msra.mxu0 %v1307
  %1760 = vmatprep.subr.bf16.mxu0 %v1304
  %1761 = vmatpush1.bf16.msra.mxu0 %v1303
  %1762 = vmatprep.subr.bf16.mxu0 %v1364
  %1763 = vmatpush2.bf16.msra.mxu0 %v1363
  %1764 = vmatprep.subr.bf16.mxu0 %v1360
  %1765 = vmatpush2.bf16.msra.mxu0 %v1359
  %1766 = vmatprep.subr.bf16.mxu0 %v1356
  %1767 = vmatpush2.bf16.msra.mxu0 %v1355
  %1768 = vmatprep.subr.bf16.mxu0 %v1352
  %1769 = vmatpush2.bf16.msra.mxu0 %v1351
  %1770 = vmatprep.subr.bf16.mxu0 %v1348
  %1771 = vmatpush2.bf16.msra.mxu0 %v1347
  %1772 = vmatprep.subr.bf16.mxu0 %v1344
  %1773 = vmatpush2.bf16.msra.mxu0 %v1343
  %1774 = vmatprep.subr.bf16.mxu0 %v1340
  %1775 = vmatpush2.bf16.msra.mxu0 %v1339
  %1776 = vmatprep.subr.bf16.mxu0 %v1336
  %1777 = vmatpush2.bf16.msra.mxu0 %v1335
  %1778 = vmatprep.mubr.bf16.mxu0 %v86
  %1779 = vmatmul.mubr.bf16.gmra.mxu0 %v85
  %v1780 = vpop.f32.mrf.mxu0
  %v1781 = vadd.f32 %v1740, %v1780
  %v1782 = vpop.f32.mrf.mxu0
  %v1783 = vadd.f32 %v1742, %v1782
  %v1784 = vpop.f32.mrf.mxu0
  %v1785 = vpop.f32.mrf.mxu0
  %1786 = vdwg.mxu0
  %1787 = vmatprep.subr.bf16.mxu0 %v1142
  %1788 = vmatpush1.bf16.msra.mxu0 %v1141
  %1789 = vmatprep.subr.bf16.mxu0 %v1138
  %1790 = vmatpush1.bf16.msra.mxu0 %v1137
  %1791 = vmatprep.subr.bf16.mxu0 %v1134
  %1792 = vmatpush1.bf16.msra.mxu0 %v1133
  %1793 = vmatprep.subr.bf16.mxu0 %v1130
  %1794 = vmatpush1.bf16.msra.mxu0 %v1129
  %1795 = vmatprep.subr.bf16.mxu0 %v1126
  %1796 = vmatpush1.bf16.msra.mxu0 %v1125
  %1797 = vmatprep.subr.bf16.mxu0 %v1122
  %1798 = vmatpush1.bf16.msra.mxu0 %v1121
  %1799 = vmatprep.subr.bf16.mxu0 %v1118
  %1800 = vmatpush1.bf16.msra.mxu0 %v1117
  %1801 = vmatprep.subr.bf16.mxu0 %v1114
  %1802 = vmatpush1.bf16.msra.mxu0 %v1113
  %1803 = vmatprep.subr.bf16.mxu0 %v1174
  %1804 = vmatpush2.bf16.msra.mxu0 %v1173
  %1805 = vmatprep.subr.bf16.mxu0 %v1170
  %1806 = vmatpush2.bf16.msra.mxu0 %v1169
  %1807 = vmatprep.subr.bf16.mxu0 %v1166
  %1808 = vmatpush2.bf16.msra.mxu0 %v1165
  %1809 = vmatprep.subr.bf16.mxu0 %v1162
  %1810 = vmatpush2.bf16.msra.mxu0 %v1161
  %1811 = vmatprep.subr.bf16.mxu0 %v1158
  %1812 = vmatpush2.bf16.msra.mxu0 %v1157
  %1813 = vmatprep.subr.bf16.mxu0 %v1154
  %1814 = vmatpush2.bf16.msra.mxu0 %v1153
  %1815 = vmatprep.subr.bf16.mxu0 %v1150
  %1816 = vmatpush2.bf16.msra.mxu0 %v1149
  %1817 = vmatprep.subr.bf16.mxu0 %v1146
  %1818 = vmatpush2.bf16.msra.mxu0 %v1145
  %1819 = vmatprep.mubr.bf16.mxu0 %v80
  %1820 = vmatmul.mubr.bf16.gmra.mxu0 %v79
  %v1821 = vpop.f32.mrf.mxu0
  %v1822 = vadd.f32 0.0, %v1821
  %v1823 = vpop.f32.mrf.mxu0
  %v1824 = vadd.f32 0.0, %v1823
  %v1825 = vpop.f32.mrf.mxu0
  %v1826 = vpop.f32.mrf.mxu0
  %1827 = vdwg.mxu0
  %1828 = vmatprep.subr.bf16.mxu0 %v1206
  %1829 = vmatpush1.bf16.msra.mxu0 %v1205
  %1830 = vmatprep.subr.bf16.mxu0 %v1202
  %1831 = vmatpush1.bf16.msra.mxu0 %v1201
  %1832 = vmatprep.subr.bf16.mxu0 %v1198
  %1833 = vmatpush1.bf16.msra.mxu0 %v1197
  %1834 = vmatprep.subr.bf16.mxu0 %v1194
  %1835 = vmatpush1.bf16.msra.mxu0 %v1193
  %1836 = vmatprep.subr.bf16.mxu0 %v1190
  %1837 = vmatpush1.bf16.msra.mxu0 %v1189
  %1838 = vmatprep.subr.bf16.mxu0 %v1186
  %1839 = vmatpush1.bf16.msra.mxu0 %v1185
  %1840 = vmatprep.subr.bf16.mxu0 %v1182
  %1841 = vmatpush1.bf16.msra.mxu0 %v1181
  %1842 = vmatprep.subr.bf16.mxu0 %v1178
  %1843 = vmatpush1.bf16.msra.mxu0 %v1177
  %1844 = vmatprep.subr.bf16.mxu0 %v1238
  %1845 = vmatpush2.bf16.msra.mxu0 %v1237
  %1846 = vmatprep.subr.bf16.mxu0 %v1234
  %1847 = vmatpush2.bf16.msra.mxu0 %v1233
  %1848 = vmatprep.subr.bf16.mxu0 %v1230
  %1849 = vmatpush2.bf16.msra.mxu0 %v1229
  %1850 = vmatprep.subr.bf16.mxu0 %v1226
  %1851 = vmatpush2.bf16.msra.mxu0 %v1225
  %1852 = vmatprep.subr.bf16.mxu0 %v1222
  %1853 = vmatpush2.bf16.msra.mxu0 %v1221
  %1854 = vmatprep.subr.bf16.mxu0 %v1218
  %1855 = vmatpush2.bf16.msra.mxu0 %v1217
  %1856 = vmatprep.subr.bf16.mxu0 %v1214
  %1857 = vmatpush2.bf16.msra.mxu0 %v1213
  %1858 = vmatprep.subr.bf16.mxu0 %v1210
  %1859 = vmatpush2.bf16.msra.mxu0 %v1209
  %1860 = vmatprep.mubr.bf16.mxu0 %v82
  %1861 = vmatmul.mubr.bf16.gmra.mxu0 %v81
  %v1862 = vpop.f32.mrf.mxu0
  %v1863 = vadd.f32 %v1822, %v1862
  %v1864 = vpop.f32.mrf.mxu0
  %v1865 = vadd.f32 %v1824, %v1864
  %v1866 = vpop.f32.mrf.mxu0
  %v1867 = vpop.f32.mrf.mxu0
  %1868 = vdwg.mxu0
  %1869 = vmatprep.subr.bf16.mxu0 %v1270
  %1870 = vmatpush1.bf16.msra.mxu0 %v1269
  %1871 = vmatprep.subr.bf16.mxu0 %v1266
  %1872 = vmatpush1.bf16.msra.mxu0 %v1265
  %1873 = vmatprep.subr.bf16.mxu0 %v1262
  %1874 = vmatpush1.bf16.msra.mxu0 %v1261
  %1875 = vmatprep.subr.bf16.mxu0 %v1258
  %1876 = vmatpush1.bf16.msra.mxu0 %v1257
  %1877 = vmatprep.subr.bf16.mxu0 %v1254
  %1878 = vmatpush1.bf16.msra.mxu0 %v1253
  %1879 = vmatprep.subr.bf16.mxu0 %v1250
  %1880 = vmatpush1.bf16.msra.mxu0 %v1249
  %1881 = vmatprep.subr.bf16.mxu0 %v1246
  %1882 = vmatpush1.bf16.msra.mxu0 %v1245
  %1883 = vmatprep.subr.bf16.mxu0 %v1242
  %1884 = vmatpush1.bf16.msra.mxu0 %v1241
  %1885 = vmatprep.subr.bf16.mxu0 %v1302
  %1886 = vmatpush2.bf16.msra.mxu0 %v1301
  %1887 = vmatprep.subr.bf16.mxu0 %v1298
  %1888 = vmatpush2.bf16.msra.mxu0 %v1297
  %1889 = vmatprep.subr.bf16.mxu0 %v1294
  %1890 = vmatpush2.bf16.msra.mxu0 %v1293
  %1891 = vmatprep.subr.bf16.mxu0 %v1290
  %1892 = vmatpush2.bf16.msra.mxu0 %v1289
  %1893 = vmatprep.subr.bf16.mxu0 %v1286
  %1894 = vmatpush2.bf16.msra.mxu0 %v1285
  %1895 = vmatprep.subr.bf16.mxu0 %v1282
  %1896 = vmatpush2.bf16.msra.mxu0 %v1281
  %1897 = vmatprep.subr.bf16.mxu0 %v1278
  %1898 = vmatpush2.bf16.msra.mxu0 %v1277
  %1899 = vmatprep.subr.bf16.mxu0 %v1274
  %1900 = vmatpush2.bf16.msra.mxu0 %v1273
  %1901 = vmatprep.mubr.bf16.mxu0 %v84
  %1902 = vmatmul.mubr.bf16.gmra.mxu0 %v83
  %v1903 = vpop.f32.mrf.mxu0
  %v1904 = vadd.f32 %v1863, %v1903
  %v1905 = vpop.f32.mrf.mxu0
  %v1906 = vadd.f32 %v1865, %v1905
  %v1907 = vpop.f32.mrf.mxu0
  %v1908 = vpop.f32.mrf.mxu0
  %1909 = vdwg.mxu0
  %1910 = vmatprep.subr.bf16.mxu0 %v1334
  %1911 = vmatpush1.bf16.msra.mxu0 %v1333
  %1912 = vmatprep.subr.bf16.mxu0 %v1330
  %1913 = vmatpush1.bf16.msra.mxu0 %v1329
  %1914 = vmatprep.subr.bf16.mxu0 %v1326
  %1915 = vmatpush1.bf16.msra.mxu0 %v1325
  %1916 = vmatprep.subr.bf16.mxu0 %v1322
  %1917 = vmatpush1.bf16.msra.mxu0 %v1321
  %1918 = vmatprep.subr.bf16.mxu0 %v1318
  %1919 = vmatpush1.bf16.msra.mxu0 %v1317
  %1920 = vmatprep.subr.bf16.mxu0 %v1314
  %1921 = vmatpush1.bf16.msra.mxu0 %v1313
  %1922 = vmatprep.subr.bf16.mxu0 %v1310
  %1923 = vmatpush1.bf16.msra.mxu0 %v1309
  %1924 = vmatprep.subr.bf16.mxu0 %v1306
  %1925 = vmatpush1.bf16.msra.mxu0 %v1305
  %1926 = vmatprep.subr.bf16.mxu0 %v1366
  %1927 = vmatpush2.bf16.msra.mxu0 %v1365
  %1928 = vmatprep.subr.bf16.mxu0 %v1362
  %1929 = vmatpush2.bf16.msra.mxu0 %v1361
  %1930 = vmatprep.subr.bf16.mxu0 %v1358
  %1931 = vmatpush2.bf16.msra.mxu0 %v1357
  %1932 = vmatprep.subr.bf16.mxu0 %v1354
  %1933 = vmatpush2.bf16.msra.mxu0 %v1353
  %1934 = vmatprep.subr.bf16.mxu0 %v1350
  %1935 = vmatpush2.bf16.msra.mxu0 %v1349
  %1936 = vmatprep.subr.bf16.mxu0 %v1346
  %1937 = vmatpush2.bf16.msra.mxu0 %v1345
  %1938 = vmatprep.subr.bf16.mxu0 %v1342
  %1939 = vmatpush2.bf16.msra.mxu0 %v1341
  %1940 = vmatprep.subr.bf16.mxu0 %v1338
  %1941 = vmatpush2.bf16.msra.mxu0 %v1337
  %1942 = vmatprep.mubr.bf16.mxu0 %v86
  %1943 = vmatmul.mubr.bf16.gmra.mxu0 %v85
  %v1944 = vpop.f32.mrf.mxu0
  %v1945 = vadd.f32 %v1904, %v1944
  %v1946 = vpop.f32.mrf.mxu0
  %v1947 = vadd.f32 %v1906, %v1946
  %v1948 = vpop.f32.mrf.mxu0
  %v1949 = vpop.f32.mrf.mxu0
  %1950 = vdwg.mxu0
  %v1951 = vld [vmem:[%s2] sm:$0xf]
  %v1953 = vlaneseq
  %v1954 = vshrl.u32 %v1953, 7
  %v1955 = vsub.s32 0, %v1954
  %v1956 = vrot.slane %v1951, %v1955
  %v1957 = vlaneseq
  %v1958 = vshrl.u32 %v1957, 7
  %v1959 = vsub.s32 1, %v1958
  %v1960 = vrot.slane %v1951, %v1959
  %v1961 = vlaneseq
  %v1962 = vshrl.u32 %v1961, 7
  %v1963 = vsub.s32 2, %v1962
  %v1964 = vrot.slane %v1951, %v1963
  %v1965 = vlaneseq
  %v1966 = vshrl.u32 %v1965, 7
  %v1967 = vsub.s32 3, %v1966
  %v1968 = vrot.slane %v1951, %v1967
  %v1973 = vmul.f32 %v1781, %v1956
  %v1974 = vmul.f32 %v1783, %v1960
  %v1975 = vmul.f32 %v1945, %v1964
  %v1976 = vmul.f32 %v1947, %v1968
  %v1977 = vld [vmem:[%s3] sm:$0xf]
  %v1979 = vlaneseq
  %v1980 = vshrl.u32 %v1979, 7
  %v1981 = vsub.s32 0, %v1980
  %v1982 = vrot.slane %v1977, %v1981
  %v1983 = vlaneseq
  %v1984 = vshrl.u32 %v1983, 7
  %v1985 = vsub.s32 1, %v1984
  %v1986 = vrot.slane %v1977, %v1985
  %v1987 = vlaneseq
  %v1988 = vshrl.u32 %v1987, 7
  %v1989 = vsub.s32 2, %v1988
  %v1990 = vrot.slane %v1977, %v1989
  %v1991 = vlaneseq
  %v1992 = vshrl.u32 %v1991, 7
  %v1993 = vsub.s32 3, %v1992
  %v1994 = vrot.slane %v1977, %v1993
  %v1999 = vadd.f32 %v1973, %v1982
  %v2000 = vadd.f32 %v1974, %v1986
  %v2001 = vadd.f32 %v1975, %v1990
  %v2002 = vadd.f32 %v1976, %v1994
  %v2003 = vmax.f32 %v1999, 0.0
  %v2004 = vmax.f32 %v2000, 0.0
  %v2005 = vmax.f32 %v2001, 0.0
  %v2006 = vmax.f32 %v2002, 0.0
  %v2007 = vpack.c.bf16 %v2003, %v2003
  %v2008 = vpack.c.bf16 %v2004, %v2004
  %v2009 = vpack.c.bf16 %v2005, %v2005
  %v2010 = vpack.c.bf16 %v2006, %v2006
  %v2011 = vld [vmem:[%s4] sm:$0xff]
  %v2012 = vld [vmem:[%s4 + $0x8] sm:$0xff]
  %v2013 = vld [vmem:[%s4 + $0x10] sm:$0xff]
  %v2014 = vld [vmem:[%s4 + $0x18] sm:$0xff]
  %v2015 = vld [vmem:[%s4 + $0x20] sm:$0xff]
  %v2016 = vld [vmem:[%s4 + $0x28] sm:$0xff]
  %v2017 = vld [vmem:[%s4 + $0x30] sm:$0xff]
  %v2018 = vld [vmem:[%s4 + $0x38] sm:$0xff]
  %v2019 = vld [vmem:[%s4 + $0x40] sm:$0xff]
  %v2020 = vld [vmem:[%s4 + $0x48] sm:$0xff]
  %v2021 = vld [vmem:[%s4 + $0x50] sm:$0xff]
  %v2022 = vld [vmem:[%s4 + $0x58] sm:$0xff]
  %v2023 = vld [vmem:[%s4 + $0x60] sm:$0xff]
  %v2024 = vld [vmem:[%s4 + $0x68] sm:$0xff]
  %v2025 = vld [vmem:[%s4 + $0x70] sm:$0xff]
  %v2026 = vld [vmem:[%s4 + $0x78] sm:$0xff]
  %v2027 = vld [vmem:[%s4 + $0x80] sm:$0xff]
  %v2028 = vld [vmem:[%s4 + $0x88] sm:$0xff]
  %v2029 = vld [vmem:[%s4 + $0x90] sm:$0xff]
  %v2030 = vld [vmem:[%s4 + $0x98] sm:$0xff]
  %v2031 = vld [vmem:[%s4 + $0xa0] sm:$0xff]
  %v2032 = vld [vmem:[%s4 + $0xa8] sm:$0xff]
  %v2033 = vld [vmem:[%s4 + $0xb0] sm:$0xff]
  %v2034 = vld [vmem:[%s4 + $0xb8] sm:$0xff]
  %v2035 = vld [vmem:[%s4 + $0xc0] sm:$0xff]
  %v2036 = vld [vmem:[%s4 + $0xc8] sm:$0xff]
  %v2037 = vld [vmem:[%s4 + $0xd0] sm:$0xff]
  %v2038 = vld [vmem:[%s4 + $0xd8] sm:$0xff]
  %v2039 = vld [vmem:[%s4 + $0xe0] sm:$0xff]
  %v2040 = vld [vmem:[%s4 + $0xe8] sm:$0xff]
  %v2041 = vld [vmem:[%s4 + $0xf0] sm:$0xff]
  %v2042 = vld [vmem:[%s4 + $0xf8] sm:$0xff]
  %v2043 = vld [vmem:[%s4 + $0x100] sm:$0xff]
  %v2044 = vld [vmem:[%s4 + $0x108] sm:$0xff]
  %v2045 = vld [vmem:[%s4 + $0x110] sm:$0xff]
  %v2046 = vld [vmem:[%s4 + $0x118] sm:$0xff]
  %v2047 = vld [vmem:[%s4 + $0x120] sm:$0xff]
  %v2048 = vld [vmem:[%s4 + $0x128] sm:$0xff]
  %v2049 = vld [vmem:[%s4 + $0x130] sm:$0xff]
  %v2050 = vld [vmem:[%s4 + $0x138] sm:$0xff]
  %v2051 = vld [vmem:[%s4 + $0x140] sm:$0xff]
  %v2052 = vld [vmem:[%s4 + $0x148] sm:$0xff]
  %v2053 = vld [vmem:[%s4 + $0x150] sm:$0xff]
  %v2054 = vld [vmem:[%s4 + $0x158] sm:$0xff]
  %v2055 = vld [vmem:[%s4 + $0x160] sm:$0xff]
  %v2056 = vld [vmem:[%s4 + $0x168] sm:$0xff]
  %v2057 = vld [vmem:[%s4 + $0x170] sm:$0xff]
  %v2058 = vld [vmem:[%s4 + $0x178] sm:$0xff]
  %v2059 = vld [vmem:[%s4 + $0x180] sm:$0xff]
  %v2060 = vld [vmem:[%s4 + $0x188] sm:$0xff]
  %v2061 = vld [vmem:[%s4 + $0x190] sm:$0xff]
  %v2062 = vld [vmem:[%s4 + $0x198] sm:$0xff]
  %v2063 = vld [vmem:[%s4 + $0x1a0] sm:$0xff]
  %v2064 = vld [vmem:[%s4 + $0x1a8] sm:$0xff]
  %v2065 = vld [vmem:[%s4 + $0x1b0] sm:$0xff]
  %v2066 = vld [vmem:[%s4 + $0x1b8] sm:$0xff]
  %v2067 = vld [vmem:[%s4 + $0x1c0] sm:$0xff]
  %v2068 = vld [vmem:[%s4 + $0x1c8] sm:$0xff]
  %v2069 = vld [vmem:[%s4 + $0x1d0] sm:$0xff]
  %v2070 = vld [vmem:[%s4 + $0x1d8] sm:$0xff]
  %v2071 = vld [vmem:[%s4 + $0x1e0] sm:$0xff]
  %v2072 = vld [vmem:[%s4 + $0x1e8] sm:$0xff]
  %v2073 = vld [vmem:[%s4 + $0x1f0] sm:$0xff]
  %v2074 = vld [vmem:[%s4 + $0x1f8] sm:$0xff]
  %v2139 = vunpack.c.l.b16 %v2011
  %v2140 = vunpack.c.h.b16 %v2011
  %v2141 = vunpack.c.l.b16 %v2012
  %v2142 = vunpack.c.h.b16 %v2012
  %v2143 = vunpack.c.l.b16 %v2013
  %v2144 = vunpack.c.h.b16 %v2013
  %v2145 = vunpack.c.l.b16 %v2014
  %v2146 = vunpack.c.h.b16 %v2014
  %v2147 = vunpack.c.l.b16 %v2015
  %v2148 = vunpack.c.h.b16 %v2015
  %v2149 = vunpack.c.l.b16 %v2016
  %v2150 = vunpack.c.h.b16 %v2016
  %v2151 = vunpack.c.l.b16 %v2017
  %v2152 = vunpack.c.h.b16 %v2017
  %v2153 = vunpack.c.l.b16 %v2018
  %v2154 = vunpack.c.h.b16 %v2018
  %v2155 = vunpack.c.l.b16 %v2019
  %v2156 = vunpack.c.h.b16 %v2019
  %v2157 = vunpack.c.l.b16 %v2020
  %v2158 = vunpack.c.h.b16 %v2020
  %v2159 = vunpack.c.l.b16 %v2021
  %v2160 = vunpack.c.h.b16 %v2021
  %v2161 = vunpack.c.l.b16 %v2022
  %v2162 = vunpack.c.h.b16 %v2022
  %v2163 = vunpack.c.l.b16 %v2023
  %v2164 = vunpack.c.h.b16 %v2023
  %v2165 = vunpack.c.l.b16 %v2024
  %v2166 = vunpack.c.h.b16 %v2024
  %v2167 = vunpack.c.l.b16 %v2025
  %v2168 = vunpack.c.h.b16 %v2025
  %v2169 = vunpack.c.l.b16 %v2026
  %v2170 = vunpack.c.h.b16 %v2026
  %v2171 = vunpack.c.l.b16 %v2027
  %v2172 = vunpack.c.h.b16 %v2027
  %v2173 = vunpack.c.l.b16 %v2028
  %v2174 = vunpack.c.h.b16 %v2028
  %v2175 = vunpack.c.l.b16 %v2029
  %v2176 = vunpack.c.h.b16 %v2029
  %v2177 = vunpack.c.l.b16 %v2030
  %v2178 = vunpack.c.h.b16 %v2030
  %v2179 = vunpack.c.l.b16 %v2031
  %v2180 = vunpack.c.h.b16 %v2031
  %v2181 = vunpack.c.l.b16 %v2032
  %v2182 = vunpack.c.h.b16 %v2032
  %v2183 = vunpack.c.l.b16 %v2033
  %v2184 = vunpack.c.h.b16 %v2033
  %v2185 = vunpack.c.l.b16 %v2034
  %v2186 = vunpack.c.h.b16 %v2034
  %v2187 = vunpack.c.l.b16 %v2035
  %v2188 = vunpack.c.h.b16 %v2035
  %v2189 = vunpack.c.l.b16 %v2036
  %v2190 = vunpack.c.h.b16 %v2036
  %v2191 = vunpack.c.l.b16 %v2037
  %v2192 = vunpack.c.h.b16 %v2037
  %v2193 = vunpack.c.l.b16 %v2038
  %v2194 = vunpack.c.h.b16 %v2038
  %v2195 = vunpack.c.l.b16 %v2039
  %v2196 = vunpack.c.h.b16 %v2039
  %v2197 = vunpack.c.l.b16 %v2040
  %v2198 = vunpack.c.h.b16 %v2040
  %v2199 = vunpack.c.l.b16 %v2041
  %v2200 = vunpack.c.h.b16 %v2041
  %v2201 = vunpack.c.l.b16 %v2042
  %v2202 = vunpack.c.h.b16 %v2042
  %v2203 = vunpack.c.l.b16 %v2043
  %v2204 = vunpack.c.h.b16 %v2043
  %v2205 = vunpack.c.l.b16 %v2044
  %v2206 = vunpack.c.h.b16 %v2044
  %v2207 = vunpack.c.l.b16 %v2045
  %v2208 = vunpack.c.h.b16 %v2045
  %v2209 = vunpack.c.l.b16 %v2046
  %v2210 = vunpack.c.h.b16 %v2046
  %v2211 = vunpack.c.l.b16 %v2047
  %v2212 = vunpack.c.h.b16 %v2047
  %v2213 = vunpack.c.l.b16 %v2048
  %v2214 = vunpack.c.h.b16 %v2048
  %v2215 = vunpack.c.l.b16 %v2049
  %v2216 = vunpack.c.h.b16 %v2049
  %v2217 = vunpack.c.l.b16 %v2050
  %v2218 = vunpack.c.h.b16 %v2050
  %v2219 = vunpack.c.l.b16 %v2051
  %v2220 = vunpack.c.h.b16 %v2051
  %v2221 = vunpack.c.l.b16 %v2052
  %v2222 = vunpack.c.h.b16 %v2052
  %v2223 = vunpack.c.l.b16 %v2053
  %v2224 = vunpack.c.h.b16 %v2053
  %v2225 = vunpack.c.l.b16 %v2054
  %v2226 = vunpack.c.h.b16 %v2054
  %v2227 = vunpack.c.l.b16 %v2055
  %v2228 = vunpack.c.h.b16 %v2055
  %v2229 = vunpack.c.l.b16 %v2056
  %v2230 = vunpack.c.h.b16 %v2056
  %v2231 = vunpack.c.l.b16 %v2057
  %v2232 = vunpack.c.h.b16 %v2057
  %v2233 = vunpack.c.l.b16 %v2058
  %v2234 = vunpack.c.h.b16 %v2058
  %v2235 = vunpack.c.l.b16 %v2059
  %v2236 = vunpack.c.h.b16 %v2059
  %v2237 = vunpack.c.l.b16 %v2060
  %v2238 = vunpack.c.h.b16 %v2060
  %v2239 = vunpack.c.l.b16 %v2061
  %v2240 = vunpack.c.h.b16 %v2061
  %v2241 = vunpack.c.l.b16 %v2062
  %v2242 = vunpack.c.h.b16 %v2062
  %v2243 = vunpack.c.l.b16 %v2063
  %v2244 = vunpack.c.h.b16 %v2063
  %v2245 = vunpack.c.l.b16 %v2064
  %v2246 = vunpack.c.h.b16 %v2064
  %v2247 = vunpack.c.l.b16 %v2065
  %v2248 = vunpack.c.h.b16 %v2065
  %v2249 = vunpack.c.l.b16 %v2066
  %v2250 = vunpack.c.h.b16 %v2066
  %v2251 = vunpack.c.l.b16 %v2067
  %v2252 = vunpack.c.h.b16 %v2067
  %v2253 = vunpack.c.l.b16 %v2068
  %v2254 = vunpack.c.h.b16 %v2068
  %v2255 = vunpack.c.l.b16 %v2069
  %v2256 = vunpack.c.h.b16 %v2069
  %v2257 = vunpack.c.l.b16 %v2070
  %v2258 = vunpack.c.h.b16 %v2070
  %v2259 = vunpack.c.l.b16 %v2071
  %v2260 = vunpack.c.h.b16 %v2071
  %v2261 = vunpack.c.l.b16 %v2072
  %v2262 = vunpack.c.h.b16 %v2072
  %v2263 = vunpack.c.l.b16 %v2073
  %v2264 = vunpack.c.h.b16 %v2073
  %v2265 = vunpack.c.l.b16 %v2074
  %v2266 = vunpack.c.h.b16 %v2074
  %v2267 = vpack.c.b16 %v2141, %v2139
  %v2268 = vpack.c.b16 %v2142, %v2140
  %v2269 = vpack.c.b16 %v2145, %v2143
  %v2270 = vpack.c.b16 %v2146, %v2144
  %v2271 = vpack.c.b16 %v2149, %v2147
  %v2272 = vpack.c.b16 %v2150, %v2148
  %v2273 = vpack.c.b16 %v2153, %v2151
  %v2274 = vpack.c.b16 %v2154, %v2152
  %v2275 = vpack.c.b16 %v2157, %v2155
  %v2276 = vpack.c.b16 %v2158, %v2156
  %v2277 = vpack.c.b16 %v2161, %v2159
  %v2278 = vpack.c.b16 %v2162, %v2160
  %v2279 = vpack.c.b16 %v2165, %v2163
  %v2280 = vpack.c.b16 %v2166, %v2164
  %v2281 = vpack.c.b16 %v2169, %v2167
  %v2282 = vpack.c.b16 %v2170, %v2168
  %v2283 = vpack.c.b16 %v2173, %v2171
  %v2284 = vpack.c.b16 %v2174, %v2172
  %v2285 = vpack.c.b16 %v2177, %v2175
  %v2286 = vpack.c.b16 %v2178, %v2176
  %v2287 = vpack.c.b16 %v2181, %v2179
  %v2288 = vpack.c.b16 %v2182, %v2180
  %v2289 = vpack.c.b16 %v2185, %v2183
  %v2290 = vpack.c.b16 %v2186, %v2184
  %v2291 = vpack.c.b16 %v2189, %v2187
  %v2292 = vpack.c.b16 %v2190, %v2188
  %v2293 = vpack.c.b16 %v2193, %v2191
  %v2294 = vpack.c.b16 %v2194, %v2192
  %v2295 = vpack.c.b16 %v2197, %v2195
  %v2296 = vpack.c.b16 %v2198, %v2196
  %v2297 = vpack.c.b16 %v2201, %v2199
  %v2298 = vpack.c.b16 %v2202, %v2200
  %v2299 = vpack.c.b16 %v2205, %v2203
  %v2300 = vpack.c.b16 %v2206, %v2204
  %v2301 = vpack.c.b16 %v2209, %v2207
  %v2302 = vpack.c.b16 %v2210, %v2208
  %v2303 = vpack.c.b16 %v2213, %v2211
  %v2304 = vpack.c.b16 %v2214, %v2212
  %v2305 = vpack.c.b16 %v2217, %v2215
  %v2306 = vpack.c.b16 %v2218, %v2216
  %v2307 = vpack.c.b16 %v2221, %v2219
  %v2308 = vpack.c.b16 %v2222, %v2220
  %v2309 = vpack.c.b16 %v2225, %v2223
  %v2310 = vpack.c.b16 %v2226, %v2224
  %v2311 = vpack.c.b16 %v2229, %v2227
  %v2312 = vpack.c.b16 %v2230, %v2228
  %v2313 = vpack.c.b16 %v2233, %v2231
  %v2314 = vpack.c.b16 %v2234, %v2232
  %v2315 = vpack.c.b16 %v2237, %v2235
  %v2316 = vpack.c.b16 %v2238, %v2236
  %v2317 = vpack.c.b16 %v2241, %v2239
  %v2318 = vpack.c.b16 %v2242, %v2240
  %v2319 = vpack.c.b16 %v2245, %v2243
  %v2320 = vpack.c.b16 %v2246, %v2244
  %v2321 = vpack.c.b16 %v2249, %v2247
  %v2322 = vpack.c.b16 %v2250, %v2248
  %v2323 = vpack.c.b16 %v2253, %v2251
  %v2324 = vpack.c.b16 %v2254, %v2252
  %v2325 = vpack.c.b16 %v2257, %v2255
  %v2326 = vpack.c.b16 %v2258, %v2256
  %v2327 = vpack.c.b16 %v2261, %v2259
  %v2328 = vpack.c.b16 %v2262, %v2260
  %v2329 = vpack.c.b16 %v2265, %v2263
  %v2330 = vpack.c.b16 %v2266, %v2264
  %2395 = vmatprep.subr.bf16.mxu0 %v2282
  %2396 = vmatpush1.bf16.msra.mxu0 %v2281
  %2397 = vmatprep.subr.bf16.mxu0 %v2280
  %2398 = vmatpush1.bf16.msra.mxu0 %v2279
  %2399 = vmatprep.subr.bf16.mxu0 %v2278
  %2400 = vmatpush1.bf16.msra.mxu0 %v2277
  %2401 = vmatprep.subr.bf16.mxu0 %v2276
  %2402 = vmatpush1.bf16.msra.mxu0 %v2275
  %2403 = vmatprep.subr.bf16.mxu0 %v2274
  %2404 = vmatpush1.bf16.msra.mxu0 %v2273
  %2405 = vmatprep.subr.bf16.mxu0 %v2272
  %2406 = vmatpush1.bf16.msra.mxu0 %v2271
  %2407 = vmatprep.subr.bf16.mxu0 %v2270
  %2408 = vmatpush1.bf16.msra.mxu0 %v2269
  %2409 = vmatprep.subr.bf16.mxu0 %v2268
  %2410 = vmatpush1.bf16.msra.mxu0 %v2267
  %2411 = vmatprep.subr.bf16.mxu0 %v2298
  %2412 = vmatpush2.bf16.msra.mxu0 %v2297
  %2413 = vmatprep.subr.bf16.mxu0 %v2296
  %2414 = vmatpush2.bf16.msra.mxu0 %v2295
  %2415 = vmatprep.subr.bf16.mxu0 %v2294
  %2416 = vmatpush2.bf16.msra.mxu0 %v2293
  %2417 = vmatprep.subr.bf16.mxu0 %v2292
  %2418 = vmatpush2.bf16.msra.mxu0 %v2291
  %2419 = vmatprep.subr.bf16.mxu0 %v2290
  %2420 = vmatpush2.bf16.msra.mxu0 %v2289
  %2421 = vmatprep.subr.bf16.mxu0 %v2288
  %2422 = vmatpush2.bf16.msra.mxu0 %v2287
  %2423 = vmatprep.subr.bf16.mxu0 %v2286
  %2424 = vmatpush2.bf16.msra.mxu0 %v2285
  %2425 = vmatprep.subr.bf16.mxu0 %v2284
  %2426 = vmatpush2.bf16.msra.mxu0 %v2283
  %2427 = vmatprep.mubr.bf16.mxu0 %v2008
  %2428 = vmatmul.mubr.bf16.gmra.mxu0 %v2007
  %v2429 = vpop.f32.mrf.mxu0
  %v2430 = vadd.f32 0.0, %v2429
  %v2431 = vpop.f32.mrf.mxu0
  %v2432 = vadd.f32 0.0, %v2431
  %v2433 = vpop.f32.mrf.mxu0
  %v2434 = vpop.f32.mrf.mxu0
  %2435 = vdwg.mxu0
  %2436 = vmatprep.subr.bf16.mxu0 %v2314
  %2437 = vmatpush1.bf16.msra.mxu0 %v2313
  %2438 = vmatprep.subr.bf16.mxu0 %v2312
  %2439 = vmatpush1.bf16.msra.mxu0 %v2311
  %2440 = vmatprep.subr.bf16.mxu0 %v2310
  %2441 = vmatpush1.bf16.msra.mxu0 %v2309
  %2442 = vmatprep.subr.bf16.mxu0 %v2308
  %2443 = vmatpush1.bf16.msra.mxu0 %v2307
  %2444 = vmatprep.subr.bf16.mxu0 %v2306
  %2445 = vmatpush1.bf16.msra.mxu0 %v2305
  %2446 = vmatprep.subr.bf16.mxu0 %v2304
  %2447 = vmatpush1.bf16.msra.mxu0 %v2303
  %2448 = vmatprep.subr.bf16.mxu0 %v2302
  %2449 = vmatpush1.bf16.msra.mxu0 %v2301
  %2450 = vmatprep.subr.bf16.mxu0 %v2300
  %2451 = vmatpush1.bf16.msra.mxu0 %v2299
  %2452 = vmatprep.subr.bf16.mxu0 %v2330
  %2453 = vmatpush2.bf16.msra.mxu0 %v2329
  %2454 = vmatprep.subr.bf16.mxu0 %v2328
  %2455 = vmatpush2.bf16.msra.mxu0 %v2327
  %2456 = vmatprep.subr.bf16.mxu0 %v2326
  %2457 = vmatpush2.bf16.msra.mxu0 %v2325
  %2458 = vmatprep.subr.bf16.mxu0 %v2324
  %2459 = vmatpush2.bf16.msra.mxu0 %v2323
  %2460 = vmatprep.subr.bf16.mxu0 %v2322
  %2461 = vmatpush2.bf16.msra.mxu0 %v2321
  %2462 = vmatprep.subr.bf16.mxu0 %v2320
  %2463 = vmatpush2.bf16.msra.mxu0 %v2319
  %2464 = vmatprep.subr.bf16.mxu0 %v2318
  %2465 = vmatpush2.bf16.msra.mxu0 %v2317
  %2466 = vmatprep.subr.bf16.mxu0 %v2316
  %2467 = vmatpush2.bf16.msra.mxu0 %v2315
  %2468 = vmatprep.mubr.bf16.mxu0 %v2010
  %2469 = vmatmul.mubr.bf16.gmra.mxu0 %v2009
  %v2470 = vpop.f32.mrf.mxu0
  %v2471 = vadd.f32 %v2430, %v2470
  %v2472 = vpop.f32.mrf.mxu0
  %v2473 = vadd.f32 %v2432, %v2472
  %v2474 = vpop.f32.mrf.mxu0
  %v2475 = vpop.f32.mrf.mxu0
  %2476 = vdwg.mxu0
  %v2477 = vld [vmem:[%s5] sm:$0x3]
  %v2479 = vlaneseq
  %v2480 = vshrl.u32 %v2479, 7
  %v2481 = vsub.s32 0, %v2480
  %v2482 = vrot.slane %v2477, %v2481
  %v2483 = vlaneseq
  %v2484 = vshrl.u32 %v2483, 7
  %v2485 = vsub.s32 1, %v2484
  %v2486 = vrot.slane %v2477, %v2485
  %v2489 = vmul.f32 %v2471, %v2482
  %v2490 = vmul.f32 %v2473, %v2486
  %v2491 = vld [vmem:[%s6] sm:$0x3]
  %v2493 = vlaneseq
  %v2494 = vshrl.u32 %v2493, 7
  %v2495 = vsub.s32 0, %v2494
  %v2496 = vrot.slane %v2491, %v2495
  %v2497 = vlaneseq
  %v2498 = vshrl.u32 %v2497, 7
  %v2499 = vsub.s32 1, %v2498
  %v2500 = vrot.slane %v2491, %v2499
  %v2503 = vadd.f32 %v2489, %v2496
  %v2504 = vadd.f32 %v2490, %v2500
  %v2505 = vmax.f32 %v2503, 0.0
  %v2506 = vmax.f32 %v2504, 0.0
  %v2507 = vpack.c.bf16 %v2505, %v2505
  %v2508 = vpack.c.bf16 %v2506, %v2506
  %v2509 = vld [vmem:[%s7] sm:$0xf]
  %v2510 = vld [vmem:[%s7 + $0x4] sm:$0xf]
  %v2511 = vld [vmem:[%s7 + $0x8] sm:$0xf]
  %v2512 = vld [vmem:[%s7 + $0xc] sm:$0xf]
  %v2513 = vld [vmem:[%s7 + $0x10] sm:$0xf]
  %v2514 = vld [vmem:[%s7 + $0x14] sm:$0xf]
  %v2515 = vld [vmem:[%s7 + $0x18] sm:$0xf]
  %v2516 = vld [vmem:[%s7 + $0x1c] sm:$0xf]
  %v2517 = vld [vmem:[%s7 + $0x20] sm:$0xf]
  %v2518 = vld [vmem:[%s7 + $0x24] sm:$0xf]
  %v2519 = vld [vmem:[%s7 + $0x28] sm:$0xf]
  %v2520 = vld [vmem:[%s7 + $0x2c] sm:$0xf]
  %v2521 = vld [vmem:[%s7 + $0x30] sm:$0xf]
  %v2522 = vld [vmem:[%s7 + $0x34] sm:$0xf]
  %v2523 = vld [vmem:[%s7 + $0x38] sm:$0xf]
  %v2524 = vld [vmem:[%s7 + $0x3c] sm:$0xf]
  %v2525 = vld [vmem:[%s7 + $0x40] sm:$0xf]
  %v2526 = vld [vmem:[%s7 + $0x44] sm:$0xf]
  %v2527 = vld [vmem:[%s7 + $0x48] sm:$0xf]
  %v2528 = vld [vmem:[%s7 + $0x4c] sm:$0xf]
  %v2529 = vld [vmem:[%s7 + $0x50] sm:$0xf]
  %v2530 = vld [vmem:[%s7 + $0x54] sm:$0xf]
  %v2531 = vld [vmem:[%s7 + $0x58] sm:$0xf]
  %v2532 = vld [vmem:[%s7 + $0x5c] sm:$0xf]
  %v2533 = vld [vmem:[%s7 + $0x60] sm:$0xf]
  %v2534 = vld [vmem:[%s7 + $0x64] sm:$0xf]
  %v2535 = vld [vmem:[%s7 + $0x68] sm:$0xf]
  %v2536 = vld [vmem:[%s7 + $0x6c] sm:$0xf]
  %v2537 = vld [vmem:[%s7 + $0x70] sm:$0xf]
  %v2538 = vld [vmem:[%s7 + $0x74] sm:$0xf]
  %v2539 = vld [vmem:[%s7 + $0x78] sm:$0xf]
  %v2540 = vld [vmem:[%s7 + $0x7c] sm:$0xf]
  %v2541 = vld [vmem:[%s8] sm:$0x1]
  %v2543 = vlaneseq
  %v2544 = vshrl.u32 %v2543, 7
  %v2545 = vsub.s32 0, %v2544
  %v2546 = vrot.slane %v2541, %v2545
  %v2580 = vunpack.c.l.b16 %v2509
  %v2581 = vunpack.c.l.b16 %v2510
  %v2582 = vunpack.c.l.b16 %v2511
  %v2583 = vunpack.c.l.b16 %v2512
  %v2584 = vunpack.c.l.b16 %v2513
  %v2585 = vunpack.c.l.b16 %v2514
  %v2586 = vunpack.c.l.b16 %v2515
  %v2587 = vunpack.c.l.b16 %v2516
  %v2588 = vunpack.c.l.b16 %v2517
  %v2589 = vunpack.c.l.b16 %v2518
  %v2590 = vunpack.c.l.b16 %v2519
  %v2591 = vunpack.c.l.b16 %v2520
  %v2592 = vunpack.c.l.b16 %v2521
  %v2593 = vunpack.c.l.b16 %v2522
  %v2594 = vunpack.c.l.b16 %v2523
  %v2595 = vunpack.c.l.b16 %v2524
  %v2596 = vunpack.c.l.b16 %v2525
  %v2597 = vunpack.c.l.b16 %v2526
  %v2598 = vunpack.c.l.b16 %v2527
  %v2599 = vunpack.c.l.b16 %v2528
  %v2600 = vunpack.c.l.b16 %v2529
  %v2601 = vunpack.c.l.b16 %v2530
  %v2602 = vunpack.c.l.b16 %v2531
  %v2603 = vunpack.c.l.b16 %v2532
  %v2604 = vunpack.c.l.b16 %v2533
  %v2605 = vunpack.c.l.b16 %v2534
  %v2606 = vunpack.c.l.b16 %v2535
  %v2607 = vunpack.c.l.b16 %v2536
  %v2608 = vunpack.c.l.b16 %v2537
  %v2609 = vunpack.c.l.b16 %v2538
  %v2610 = vunpack.c.l.b16 %v2539
  %v2611 = vunpack.c.l.b16 %v2540
  %v2612 = vpack.c.b16 %v2581, %v2580
  %v2613 = vpack.c.b16 %v2583, %v2582
  %v2614 = vpack.c.b16 %v2585, %v2584
  %v2615 = vpack.c.b16 %v2587, %v2586
  %v2616 = vpack.c.b16 %v2589, %v2588
  %v2617 = vpack.c.b16 %v2591, %v2590
  %v2618 = vpack.c.b16 %v2593, %v2592
  %v2619 = vpack.c.b16 %v2595, %v2594
  %v2620 = vpack.c.b16 %v2597, %v2596
  %v2621 = vpack.c.b16 %v2599, %v2598
  %v2622 = vpack.c.b16 %v2601, %v2600
  %v2623 = vpack.c.b16 %v2603, %v2602
  %v2624 = vpack.c.b16 %v2605, %v2604
  %v2625 = vpack.c.b16 %v2607, %v2606
  %v2626 = vpack.c.b16 %v2609, %v2608
  %v2627 = vpack.c.b16 %v2611, %v2610
  %2644 = vmatprep.subr.bf16.mxu0 0
  %2645 = vmatpush1.bf16.msra.mxu0 %v2619
  %2646 = vmatprep.subr.bf16.mxu0 0
  %2647 = vmatpush1.bf16.msra.mxu0 %v2618
  %2648 = vmatprep.subr.bf16.mxu0 0
  %2649 = vmatpush1.bf16.msra.mxu0 %v2617
  %2650 = vmatprep.subr.bf16.mxu0 0
  %2651 = vmatpush1.bf16.msra.mxu0 %v2616
  %2652 = vmatprep.subr.bf16.mxu0 0
  %2653 = vmatpush1.bf16.msra.mxu0 %v2615
  %2654 = vmatprep.subr.bf16.mxu0 0
  %2655 = vmatpush1.bf16.msra.mxu0 %v2614
  %2656 = vmatprep.subr.bf16.mxu0 0
  %2657 = vmatpush1.bf16.msra.mxu0 %v2613
  %2658 = vmatprep.subr.bf16.mxu0 0
  %2659 = vmatpush1.bf16.msra.mxu0 %v2612
  %2660 = vmatprep.subr.bf16.mxu0 0
  %2661 = vmatpush2.bf16.msra.mxu0 %v2627
  %2662 = vmatprep.subr.bf16.mxu0 0
  %2663 = vmatpush2.bf16.msra.mxu0 %v2626
  %2664 = vmatprep.subr.bf16.mxu0 0
  %2665 = vmatpush2.bf16.msra.mxu0 %v2625
  %2666 = vmatprep.subr.bf16.mxu0 0
  %2667 = vmatpush2.bf16.msra.mxu0 %v2624
  %2668 = vmatprep.subr.bf16.mxu0 0
  %2669 = vmatpush2.bf16.msra.mxu0 %v2623
  %2670 = vmatprep.subr.bf16.mxu0 0
  %2671 = vmatpush2.bf16.msra.mxu0 %v2622
  %2672 = vmatprep.subr.bf16.mxu0 0
  %2673 = vmatpush2.bf16.msra.mxu0 %v2621
  %2674 = vmatprep.subr.bf16.mxu0 0
  %2675 = vmatpush2.bf16.msra.mxu0 %v2620
  %2676 = vmatprep.mubr.bf16.mxu0 %v2508
  %2677 = vmatmul.mubr.bf16.gmra.mxu0 %v2507
  %v2678 = vpop.f32.mrf.mxu0
  %v2679 = vadd.f32 %v2546, %v2678
  %v2680 = vpop.f32.mrf.mxu0
  %v2681 = vpop.f32.mrf.mxu0
  %v2682 = vpop.f32.mrf.mxu0
  %2683 = vdwg.mxu0
  %vm2684 = vcmask 66560
  %2685 = vst.msk [vmem:[%s9] sm:$0x3] %vm2684, %v2679
  // Predicated region
  $region38: #{_lambda_.5} parent=0 // pred_check
    _
  $region39: #{_lambda_.5} parent=0 // pred_check_branch
    %2687 = sbr.rel (0) target = $region41
  $region40: #{_lambda_.5} parent=0 // pred_region
    _
  $region41: #{_lambda_.5} parent=0 // pred_fallthru
    _
  // Predicated region
  $region42: #{_lambda_.5} parent=0 // pred_check
    _
  $region43: #{_lambda_.5} parent=0 // pred_check_branch
    %2689 = sbr.rel (0) target = $region45
  $region44: #{_lambda_.5} parent=0 // pred_region
    _
  $region45: #{_lambda_.5} parent=0 // pred_fallthru
    _

// kernel: _lambda_.6
$region0: #{_lambda_.6}
  #allocation0 [shape = 'u32[]', space=smem, size = 0x4, offset = 0x4, fixed_abs, tag = 'smem constant byte address 0x4 - core index']
  #allocation1 [shape = 'u32[144,128]{1,0:T(1,128)}', space=vmem, size = 0x12000, scoped, tag = 'internal scratch']
  %s0 = inlined_call_operand.vmem [shape: f32[2,128,3], index: 0, kind: input, shape index: {}]
  %s1 = inlined_call_operand.vmem [shape: bf16[2,3,64], index: 1, kind: input, shape index: {}]
  %s2 = inlined_call_operand.vmem [shape: f32[1,64], index: 2, kind: input, shape index: {}]
  %s3 = inlined_call_operand.vmem [shape: f32[1,64], index: 3, kind: input, shape index: {}]
  %s4 = inlined_call_operand.vmem [shape: bf16[64,128], index: 4, kind: input, shape index: {}]
  %s5 = inlined_call_operand.vmem [shape: f32[1,128], index: 5, kind: input, shape index: {}]
  %s6 = inlined_call_operand.vmem [shape: f32[1,128], index: 6, kind: input, shape index: {}]
  %s7 = inlined_call_operand.vmem [shape: bf16[128,1024], index: 7, kind: input, shape index: {}]
  %s8 = inlined_call_operand.vmem [shape: f32[1,1024], index: 8, kind: input, shape index: {}]
  %s9 = inlined_call_operand.vmem [shape: f32[1,1024], index: 9, kind: input, shape index: {}]
  %s10 = inlined_call_operand.vmem [shape: f32[2,1,1024], index: 10, kind: output, shape index: {}]
  %s11 = sld [smem:[#allocation0]]
  $region109: #{_lambda_.6} parent=0
    _
  %s13 = ssub.s32 1, %s11
  %s14 = scalar_select 0, %s13, %s11
  loop: start=0, step=1, limit=4
  $region2: #{_lambda_.6} parent=0 // loop_pre_header
    _
  $region3: #{_lambda_.6} parent=0 // loop_header
    %s16 = sphi 0, %s20
    %p17 = scmp.ge.s32.totalorder %s16, 4
    %s23 = sphi 0, %s42
    %s24 = sphi 0, %s38
    %s25 = sphi 0, %s34
    %s26 = sphi 0, %s23
    %s27 = sphi 0, %s24
    %s28 = sphi 0, %s25
    %s29 = sphi 0, %s26
    %s30 = sphi 0, %s27
    %s31 = sphi 0, %s28
    %s47 = sphi 0, %s49
    %s50 = sphi 0, %s47
    %s51 = sphi 0, %s50
    %s67 = sphi 0, %s51
    %s73 = sphi 0, %s75
    %s76 = sphi 0, %s73
    %s77 = sphi 0, %s76
    %s93 = sphi 0, %s77
    %s97 = sphi 0, %s97
    %s99 = sphi 0, %s97
    %s100 = sphi 0, %s99
    %s114 = sphi 0, %s100
    %s118 = sphi 0, %s118
    %s120 = sphi 0, %s118
    %s121 = sphi 0, %s120
    %s135 = sphi 0, %s121
    %s139 = sphi 0, %s139
    %s141 = sphi 0, %s139
    %s142 = sphi 0, %s141
    %s156 = sphi 0, %s142
    %s160 = sphi 0, %s160
    %s162 = sphi 0, %s160
    %s163 = sphi 0, %s162
    %s177 = sphi 0, %s163
    %s181 = sphi 0, %s181
    %s183 = sphi 0, %s181
    %s184 = sphi 0, %s183
    %s198 = sphi 0, %s184
    %s204 = sphi 0, %s206
    %s207 = sphi 0, %s204
    %s208 = sphi 0, %s207
    %s224 = sphi 0, %s208
    %s230 = sphi 0, %s232
    %s233 = sphi 0, %s230
    %s234 = sphi 0, %s233
    %s250 = sphi 0, %s234
    %s256 = sphi 0, %s258
    %s259 = sphi 0, %s256
    %s260 = sphi 0, %s259
    %s276 = sphi 0, %s260
    %s284 = sphi 0, %s286
    %s287 = sphi 0, %s284
    %s288 = sphi 0, %s287
    %s304 = sphi 0, %s288
  $region4: #{_lambda_.6} parent=0 // loop_header_branch
    %19 = sbr.rel (%p17) target = $region8
  $region5: #{_lambda_.6} parent=0 // loop_body
    %s21 = ssub.s32 %s16, 1
    %s22 = ssub.s32 %s16, 2
    %s32 = sadd.s32 1, %s25
    %p33 = scmp.ge.s32.totalorder %s32, 1
    %s34 = scalar_select %p33, 0, %s32
    %s35 = sadd.s32 1, %s24
    %s36 = scalar_select %p33, %s35, %s24
    %p37 = scmp.ge.s32.totalorder %s36, 1
    %s38 = scalar_select %p37, 0, %s36
    %s39 = sadd.s32 1, %s23
    %s40 = scalar_select %p37, %s39, %s23
    %p41 = scmp.ge.s32.totalorder %s40, 2
    %s42 = scalar_select %p41, 0, %s40
    %s43 = ssub.s32 %s23, %s42
    %s44 = ssub.s32 %s25, %s34
    %s45 = sor.u32 %s43, %s44
    %p46 = scmp.eq.s32.totalorder %s45, 0
    %s48 = sadd.s32 %s47, 1
    %s49 = scalar_select %p46, %s47, %s48
    %p52 = pneg %p46
    %p53 = scmp.eq.s32.totalorder %s16, 1
    %p54 = por %p52, %p53
    %p55 = scmp.ne.s32.totalorder %s47, %s50
    %p56 = scmp.eq.s32.totalorder %s16, 0
    %p57 = por %p55, %p56
    %p58 = scmp.ne.s32.totalorder %s47, %s50
    %p59 = scmp.eq.s32.totalorder %s21, 1
    %p60 = por %p58, %p59
    %p61 = scmp.ne.s32.totalorder %s50, %s51
    %p62 = scmp.eq.s32.totalorder %s21, 0
    %p63 = por %p61, %p62
    %p64 = scmp.ne.s32.totalorder %s50, %s51
    %p65 = scmp.eq.s32.totalorder %s22, 1
    %p66 = por %p64, %p65
    %p68 = scmp.ne.s32.totalorder %s51, %s67
    %p69 = scmp.eq.s32.totalorder %s22, 0
    %p70 = por %p68, %p69
    %s71 = ssub.s32 %s23, %s42
    %p72 = scmp.eq.s32.totalorder %s71, 0
    %s74 = sadd.s32 %s73, 1
    %s75 = scalar_select %p72, %s73, %s74
    %p78 = pneg %p72
    %p79 = scmp.eq.s32.totalorder %s16, 1
    %p80 = por %p78, %p79
    %p81 = scmp.ne.s32.totalorder %s73, %s76
    %p82 = scmp.eq.s32.totalorder %s16, 0
    %p83 = por %p81, %p82
    %p84 = scmp.ne.s32.totalorder %s73, %s76
    %p85 = scmp.eq.s32.totalorder %s21, 1
    %p86 = por %p84, %p85
    %p87 = scmp.ne.s32.totalorder %s76, %s77
    %p88 = scmp.eq.s32.totalorder %s21, 0
    %p89 = por %p87, %p88
    %p90 = scmp.ne.s32.totalorder %s76, %s77
    %p91 = scmp.eq.s32.totalorder %s22, 1
    %p92 = por %p90, %p91
    %p94 = scmp.ne.s32.totalorder %s77, %s93
    %p95 = scmp.eq.s32.totalorder %s22, 0
    %p96 = por %p94, %p95
    %s98 = sadd.s32 %s97, 1
    %p101 = scmp.eq.s32.totalorder %s16, 1
    %p102 = scmp.ne.s32.totalorder %s97, %s99
    %p103 = scmp.eq.s32.totalorder %s16, 0
    %p104 = por %p102, %p103
    %p105 = scmp.ne.s32.totalorder %s97, %s99
    %p106 = scmp.eq.s32.totalorder %s21, 1
    %p107 = por %p105, %p106
    %p108 = scmp.ne.s32.totalorder %s99, %s100
    %p109 = scmp.eq.s32.totalorder %s21, 0
    %p110 = por %p108, %p109
    %p111 = scmp.ne.s32.totalorder %s99, %s100
    %p112 = scmp.eq.s32.totalorder %s22, 1
    %p113 = por %p111, %p112
    %p115 = scmp.ne.s32.totalorder %s100, %s114
    %p116 = scmp.eq.s32.totalorder %s22, 0
    %p117 = por %p115, %p116
    %s119 = sadd.s32 %s118, 1
    %p122 = scmp.eq.s32.totalorder %s16, 1
    %p123 = scmp.ne.s32.totalorder %s118, %s120
    %p124 = scmp.eq.s32.totalorder %s16, 0
    %p125 = por %p123, %p124
    %p126 = scmp.ne.s32.totalorder %s118, %s120
    %p127 = scmp.eq.s32.totalorder %s21, 1
    %p128 = por %p126, %p127
    %p129 = scmp.ne.s32.totalorder %s120, %s121
    %p130 = scmp.eq.s32.totalorder %s21, 0
    %p131 = por %p129, %p130
    %p132 = scmp.ne.s32.totalorder %s120, %s121
    %p133 = scmp.eq.s32.totalorder %s22, 1
    %p134 = por %p132, %p133
    %p136 = scmp.ne.s32.totalorder %s121, %s135
    %p137 = scmp.eq.s32.totalorder %s22, 0
    %p138 = por %p136, %p137
    %s140 = sadd.s32 %s139, 1
    %p143 = scmp.eq.s32.totalorder %s16, 1
    %p144 = scmp.ne.s32.totalorder %s139, %s141
    %p145 = scmp.eq.s32.totalorder %s16, 0
    %p146 = por %p144, %p145
    %p147 = scmp.ne.s32.totalorder %s139, %s141
    %p148 = scmp.eq.s32.totalorder %s21, 1
    %p149 = por %p147, %p148
    %p150 = scmp.ne.s32.totalorder %s141, %s142
    %p151 = scmp.eq.s32.totalorder %s21, 0
    %p152 = por %p150, %p151
    %p153 = scmp.ne.s32.totalorder %s141, %s142
    %p154 = scmp.eq.s32.totalorder %s22, 1
    %p155 = por %p153, %p154
    %p157 = scmp.ne.s32.totalorder %s142, %s156
    %p158 = scmp.eq.s32.totalorder %s22, 0
    %p159 = por %p157, %p158
    %s161 = sadd.s32 %s160, 1
    %p164 = scmp.eq.s32.totalorder %s16, 1
    %p165 = scmp.ne.s32.totalorder %s160, %s162
    %p166 = scmp.eq.s32.totalorder %s16, 0
    %p167 = por %p165, %p166
    %p168 = scmp.ne.s32.totalorder %s160, %s162
    %p169 = scmp.eq.s32.totalorder %s21, 1
    %p170 = por %p168, %p169
    %p171 = scmp.ne.s32.totalorder %s162, %s163
    %p172 = scmp.eq.s32.totalorder %s21, 0
    %p173 = por %p171, %p172
    %p174 = scmp.ne.s32.totalorder %s162, %s163
    %p175 = scmp.eq.s32.totalorder %s22, 1
    %p176 = por %p174, %p175
    %p178 = scmp.ne.s32.totalorder %s163, %s177
    %p179 = scmp.eq.s32.totalorder %s22, 0
    %p180 = por %p178, %p179
    %s182 = sadd.s32 %s181, 1
    %p185 = scmp.eq.s32.totalorder %s16, 1
    %p186 = scmp.ne.s32.totalorder %s181, %s183
    %p187 = scmp.eq.s32.totalorder %s16, 0
    %p188 = por %p186, %p187
    %p189 = scmp.ne.s32.totalorder %s181, %s183
    %p190 = scmp.eq.s32.totalorder %s21, 1
    %p191 = por %p189, %p190
    %p192 = scmp.ne.s32.totalorder %s183, %s184
    %p193 = scmp.eq.s32.totalorder %s21, 0
    %p194 = por %p192, %p193
    %p195 = scmp.ne.s32.totalorder %s183, %s184
    %p196 = scmp.eq.s32.totalorder %s22, 1
    %p197 = por %p195, %p196
    %p199 = scmp.ne.s32.totalorder %s184, %s198
    %p200 = scmp.eq.s32.totalorder %s22, 0
    %p201 = por %p199, %p200
    %s202 = ssub.s32 %s24, %s38
    %p203 = scmp.eq.s32.totalorder %s202, 0
    %s205 = sadd.s32 %s204, 1
    %s206 = scalar_select %p203, %s204, %s205
    %p209 = pneg %p203
    %p210 = scmp.eq.s32.totalorder %s16, 1
    %p211 = por %p209, %p210
    %p212 = scmp.ne.s32.totalorder %s204, %s207
    %p213 = scmp.eq.s32.totalorder %s16, 0
    %p214 = por %p212, %p213
    %p215 = scmp.ne.s32.totalorder %s204, %s207
    %p216 = scmp.eq.s32.totalorder %s21, 1
    %p217 = por %p215, %p216
    %p218 = scmp.ne.s32.totalorder %s207, %s208
    %p219 = scmp.eq.s32.totalorder %s21, 0
    %p220 = por %p218, %p219
    %p221 = scmp.ne.s32.totalorder %s207, %s208
    %p222 = scmp.eq.s32.totalorder %s22, 1
    %p223 = por %p221, %p222
    %p225 = scmp.ne.s32.totalorder %s208, %s224
    %p226 = scmp.eq.s32.totalorder %s22, 0
    %p227 = por %p225, %p226
    %s228 = ssub.s32 %s24, %s38
    %p229 = scmp.eq.s32.totalorder %s228, 0
    %s231 = sadd.s32 %s230, 1
    %s232 = scalar_select %p229, %s230, %s231
    %p235 = pneg %p229
    %p236 = scmp.eq.s32.totalorder %s16, 1
    %p237 = por %p235, %p236
    %p238 = scmp.ne.s32.totalorder %s230, %s233
    %p239 = scmp.eq.s32.totalorder %s16, 0
    %p240 = por %p238, %p239
    %p241 = scmp.ne.s32.totalorder %s230, %s233
    %p242 = scmp.eq.s32.totalorder %s21, 1
    %p243 = por %p241, %p242
    %p244 = scmp.ne.s32.totalorder %s233, %s234
    %p245 = scmp.eq.s32.totalorder %s21, 0
    %p246 = por %p244, %p245
    %p247 = scmp.ne.s32.totalorder %s233, %s234
    %p248 = scmp.eq.s32.totalorder %s22, 1
    %p249 = por %p247, %p248
    %p251 = scmp.ne.s32.totalorder %s234, %s250
    %p252 = scmp.eq.s32.totalorder %s22, 0
    %p253 = por %p251, %p252
    %s254 = ssub.s32 %s24, %s38
    %p255 = scmp.eq.s32.totalorder %s254, 0
    %s257 = sadd.s32 %s256, 1
    %s258 = scalar_select %p255, %s256, %s257
    %p261 = pneg %p255
    %p262 = scmp.eq.s32.totalorder %s16, 1
    %p263 = por %p261, %p262
    %p264 = scmp.ne.s32.totalorder %s256, %s259
    %p265 = scmp.eq.s32.totalorder %s16, 0
    %p266 = por %p264, %p265
    %p267 = scmp.ne.s32.totalorder %s256, %s259
    %p268 = scmp.eq.s32.totalorder %s21, 1
    %p269 = por %p267, %p268
    %p270 = scmp.ne.s32.totalorder %s259, %s260
    %p271 = scmp.eq.s32.totalorder %s21, 0
    %p272 = por %p270, %p271
    %p273 = scmp.ne.s32.totalorder %s259, %s260
    %p274 = scmp.eq.s32.totalorder %s22, 1
    %p275 = por %p273, %p274
    %p277 = scmp.ne.s32.totalorder %s260, %s276
    %p278 = scmp.eq.s32.totalorder %s22, 0
    %p279 = por %p277, %p278
    %s280 = ssub.s32 %s23, %s42
    %s281 = ssub.s32 %s24, %s38
    %s282 = sor.u32 %s280, %s281
    %p283 = scmp.eq.s32.totalorder %s282, 0
    %s285 = sadd.s32 %s284, 1
    %s286 = scalar_select %p283, %s284, %s285
    %p289 = pneg %p283
    %p290 = scmp.eq.s32.totalorder %s16, 1
    %p291 = por %p289, %p290
    %p292 = scmp.ne.s32.totalorder %s284, %s287
    %p293 = scmp.eq.s32.totalorder %s16, 0
    %p294 = por %p292, %p293
    %p295 = scmp.ne.s32.totalorder %s284, %s287
    %p296 = scmp.eq.s32.totalorder %s21, 1
    %p297 = por %p295, %p296
    %p298 = scmp.ne.s32.totalorder %s287, %s288
    %p299 = scmp.eq.s32.totalorder %s21, 0
    %p300 = por %p298, %p299
    %p301 = scmp.ne.s32.totalorder %s287, %s288
    %p302 = scmp.eq.s32.totalorder %s22, 1
    %p303 = por %p301, %p302
    %p305 = scmp.ne.s32.totalorder %s288, %s304
    %p306 = scmp.eq.s32.totalorder %s22, 0
    %p307 = por %p305, %p306
    %p308 = scmp.le.s32.totalorder 1, %s16
    %p309 = scmp.lt.s32.totalorder %s16, 3
    %p310 = pnand %p308, %p309
    %p311 = pneg %p310
    // Predicated region
    $region9: #{_lambda_.6} parent=5 // pred_check
      _
    $region10: #{_lambda_.6} parent=5 // pred_check_branch
      %313 = sbr.rel (%p310) target = $region12
    $region11: #{_lambda_.6} parent=5 // pred_region
      %s314 = ssub.s32 %s16, 1
      // Predicated region
      $region13: #{_lambda_.6} parent=11 // pred_check
        %p315 = pneg %p110
      $region14: #{_lambda_.6} parent=11 // pred_check_branch
        %317 = sbr.rel (%p315) target = $region16
      $region15: #{_lambda_.6} parent=11 // pred_region
        _
      $region16: #{_lambda_.6} parent=11 // pred_fallthru
        _
      // Predicated region
      $region17: #{_lambda_.6} parent=11 // pred_check
        %p318 = pneg %p131
      $region18: #{_lambda_.6} parent=11 // pred_check_branch
        %320 = sbr.rel (%p318) target = $region20
      $region19: #{_lambda_.6} parent=11 // pred_region
        _
      $region20: #{_lambda_.6} parent=11 // pred_fallthru
        _
      // Predicated region
      $region21: #{_lambda_.6} parent=11 // pred_check
        %p321 = pneg %p152
      $region22: #{_lambda_.6} parent=11 // pred_check_branch
        %323 = sbr.rel (%p321) target = $region24
      $region23: #{_lambda_.6} parent=11 // pred_region
        _
      $region24: #{_lambda_.6} parent=11 // pred_fallthru
        _
      // Predicated region
      $region25: #{_lambda_.6} parent=11 // pred_check
        %p324 = pneg %p173
      $region26: #{_lambda_.6} parent=11 // pred_check_branch
        %326 = sbr.rel (%p324) target = $region28
      $region27: #{_lambda_.6} parent=11 // pred_region
        _
      $region28: #{_lambda_.6} parent=11 // pred_fallthru
        _
      // Predicated region
      $region29: #{_lambda_.6} parent=11 // pred_check
        %p327 = pneg %p194
      $region30: #{_lambda_.6} parent=11 // pred_check_branch
        %329 = sbr.rel (%p327) target = $region32
      $region31: #{_lambda_.6} parent=11 // pred_region
        _
      $region32: #{_lambda_.6} parent=11 // pred_fallthru
        _
      // Predicated region
      $region33: #{_lambda_.6} parent=11 // pred_check
        %p330 = pneg %p220
      $region34: #{_lambda_.6} parent=11 // pred_check_branch
        %332 = sbr.rel (%p330) target = $region36
      $region35: #{_lambda_.6} parent=11 // pred_region
        %s333 = smul.u32 8, %s27
        %p334 = scmp.lt.s32.totalorder %s333, 7
        %s335 = scalar_select %p334, %s333, 7
        %s336 = smul.addr %s335, 4
        %s337 = scalar_lea.vmem %s7, %s336
        %s338 = smul.u32 8, %s27
      $region36: #{_lambda_.6} parent=11 // pred_fallthru
        _
      // Predicated region
      $region37: #{_lambda_.6} parent=11 // pred_check
        %p339 = pneg %p246
      $region38: #{_lambda_.6} parent=11 // pred_check_branch
        %341 = sbr.rel (%p339) target = $region40
      $region39: #{_lambda_.6} parent=11 // pred_region
        %s342 = smul.u32 8, %s27
        %p343 = scmp.lt.s32.totalorder %s342, 7
        %s344 = scalar_select %p343, %s342, 7
        %s345 = scalar_lea.vmem %s8, %s344
        %s346 = smul.u32 8, %s27
      $region40: #{_lambda_.6} parent=11 // pred_fallthru
        _
      // Predicated region
      $region41: #{_lambda_.6} parent=11 // pred_check
        %p347 = pneg %p272
      $region42: #{_lambda_.6} parent=11 // pred_check_branch
        %349 = sbr.rel (%p347) target = $region44
      $region43: #{_lambda_.6} parent=11 // pred_region
        %s350 = smul.u32 8, %s27
        %p351 = scmp.lt.s32.totalorder %s350, 7
        %s352 = scalar_select %p351, %s350, 7
        %s353 = scalar_lea.vmem %s9, %s352
        %s354 = smul.u32 8, %s27
      $region44: #{_lambda_.6} parent=11 // pred_fallthru
        _
    $region12: #{_lambda_.6} parent=5 // pred_fallthru
      _
    %p355 = scmp.lt.s32.totalorder %s16, 2
    // Predicated region
    $region45: #{_lambda_.6} parent=5 // pred_check
      %p356 = pneg %p355
    $region46: #{_lambda_.6} parent=5 // pred_check_branch
      %358 = sbr.rel (%p356) target = $region48
    $region47: #{_lambda_.6} parent=5 // pred_region
      // Predicated region
      $region49: #{_lambda_.6} parent=47 // pred_check
        %p359 = pneg %p57
      $region50: #{_lambda_.6} parent=47 // pred_check_branch
        %361 = sbr.rel (%p359) target = $region52
      $region51: #{_lambda_.6} parent=47 // pred_region
        %s362 = smul.u32 16, %s25
        %p363 = scmp.lt.s32.totalorder %s23, 1
        %s364 = scalar_select %p363, %s23, 1
        %p365 = scmp.lt.s32.totalorder %s362, 15
        %s366 = scalar_select %p365, %s362, 15
        %s367 = smul.addr %s364, 16
        %s368 = sadd.s32 %s366, %s367
        %s369 = smul.addr %s368, 8
        %s370 = scalar_lea.vmem %s0, %s369
        %s371 = smul.u32 16, %s25
      $region52: #{_lambda_.6} parent=47 // pred_fallthru
        _
      // Predicated region
      $region53: #{_lambda_.6} parent=47 // pred_check
        %p372 = pneg %p83
      $region54: #{_lambda_.6} parent=47 // pred_check_branch
        %374 = sbr.rel (%p372) target = $region56
      $region55: #{_lambda_.6} parent=47 // pred_region
        %p375 = scmp.lt.s32.totalorder %s23, 1
        %s376 = scalar_select %p375, %s23, 1
        %s377 = smul.addr %s376, 2
        %s378 = scalar_lea.vmem %s1, %s377
      $region56: #{_lambda_.6} parent=47 // pred_fallthru
        _
    $region48: #{_lambda_.6} parent=5 // pred_fallthru
      _
    %p379 = scmp.le.s32.totalorder 1, %s16
    %p380 = scmp.lt.s32.totalorder %s16, 3
    %p381 = pnand %p379, %p380
    %p382 = pneg %p381
    // Predicated region
    $region57: #{_lambda_.6} parent=5 // pred_check
      _
    $region58: #{_lambda_.6} parent=5 // pred_check_branch
      %384 = sbr.rel (%p381) target = $region60
    $region59: #{_lambda_.6} parent=5 // pred_region
      %s385 = ssub.s32 %s16, 1
      %s386 = smul.u32 16, %s28
      %p387 = scmp.lt.s32.totalorder %s26, 1
      %s388 = scalar_select %p387, %s26, 1
      %p389 = scmp.lt.s32.totalorder %s386, 15
      %s390 = scalar_select %p389, %s386, 15
      %s391 = smul.addr %s388, 16
      %s392 = sadd.s32 %s390, %s391
      %s393 = smul.addr %s392, 8
      %s394 = scalar_lea.vmem %s0, %s393
      %p395 = pneg %p63
      %p396 = pneg %p60
      %p397 = scmp.lt.s32.totalorder %s26, 1
      %s398 = scalar_select %p397, %s26, 1
      %s399 = smul.addr %s398, 2
      %s400 = scalar_lea.vmem %s1, %s399
      %p401 = pneg %p89
      %p402 = pneg %p86
      %p403 = pneg %p110
      %p404 = pneg %p107
      %p405 = pneg %p131
      %p406 = pneg %p128
      %p407 = pneg %p152
      %p408 = pneg %p149
      %p409 = pneg %p173
      %p410 = pneg %p170
      %p411 = pneg %p194
      %p412 = pneg %p191
      %s413 = smul.u32 8, %s27
      %p414 = scmp.lt.s32.totalorder %s413, 7
      %s415 = scalar_select %p414, %s413, 7
      %s416 = smul.addr %s415, 4
      %s417 = scalar_lea.vmem %s7, %s416
      %p418 = pneg %p220
      %p419 = pneg %p217
      %s420 = smul.u32 8, %s27
      %p421 = scmp.lt.s32.totalorder %s420, 7
      %s422 = scalar_select %p421, %s420, 7
      %s423 = scalar_lea.vmem %s8, %s422
      %p424 = pneg %p246
      %p425 = pneg %p243
      %s426 = smul.u32 8, %s27
      %p427 = scmp.lt.s32.totalorder %s426, 7
      %s428 = scalar_select %p427, %s426, 7
      %s429 = scalar_lea.vmem %s9, %s428
      %p430 = pneg %p272
      %p431 = pneg %p269
      %p432 = pneg %p300
      %p433 = pneg %p297
      %s434 = smul.u32 8, %s27
      %p435 = scmp.lt.s32.totalorder %s26, 1
      %s436 = scalar_select %p435, %s26, 1
      %p437 = scmp.lt.s32.totalorder %s434, 7
      %s438 = scalar_select %p437, %s434, 7
      %s439 = smul.addr %s436, 8
      %s440 = sadd.s32 %s438, %s439
      %s441 = scalar_lea.vmem %s10, %s440
      %s442 = smul.u32 16, %s28
      %p443 = scmp.lt.s32.totalorder %s26, 1
      %s444 = scalar_select %p443, %s26, 1
      %p445 = scmp.lt.s32.totalorder %s442, 15
      %s446 = scalar_select %p445, %s442, 15
      %s447 = smul.addr %s444, 16
      %s448 = sadd.s32 %s446, %s447
      %s449 = smul.addr %s448, 8
      %s450 = scalar_lea.vmem %s0, %s449
      %s451 = smul.u32 16, %s28
      %p452 = scmp.lt.s32.totalorder %s26, 1
      %s453 = scalar_select %p452, %s26, 1
      %s454 = smul.addr %s453, 2
      %s455 = scalar_lea.vmem %s1, %s454
      %s456 = smul.u32 8, %s27
      %p457 = scmp.lt.s32.totalorder %s456, 7
      %s458 = scalar_select %p457, %s456, 7
      %s459 = smul.addr %s458, 4
      %s460 = scalar_lea.vmem %s7, %s459
      %s461 = smul.u32 8, %s27
      %s462 = smul.u32 8, %s27
      %p463 = scmp.lt.s32.totalorder %s462, 7
      %s464 = scalar_select %p463, %s462, 7
      %s465 = scalar_lea.vmem %s8, %s464
      %s466 = smul.u32 8, %s27
      %s467 = smul.u32 8, %s27
      %p468 = scmp.lt.s32.totalorder %s467, 7
      %s469 = scalar_select %p468, %s467, 7
      %s470 = scalar_lea.vmem %s9, %s469
      %s471 = smul.u32 8, %s27
      %s472 = smul.u32 8, %s27
      %p473 = scmp.lt.s32.totalorder %s26, 1
      %s474 = scalar_select %p473, %s26, 1
      %p475 = scmp.lt.s32.totalorder %s472, 7
      %s476 = scalar_select %p475, %s472, 7
      %s477 = smul.addr %s474, 8
      %s478 = sadd.s32 %s476, %s477
      %s479 = scalar_lea.vmem %s10, %s478
      %s480 = smul.u32 8, %s27
      %p482 = scmp.eq.s32.totalorder %s28, 0
      %v483 = vld [vmem:[%s450] sm:$0xff]
      %v484 = vld [vmem:[%s450 + $0x8] sm:$0xff]
      %v485 = vld [vmem:[%s450 + $0x10] sm:$0xff]
      %v486 = vld [vmem:[%s450 + $0x18] sm:$0xff]
      %v487 = vld [vmem:[%s450 + $0x20] sm:$0xff]
      %v488 = vld [vmem:[%s450 + $0x28] sm:$0xff]
      %v489 = vld [vmem:[%s450 + $0x30] sm:$0xff]
      %v490 = vld [vmem:[%s450 + $0x38] sm:$0xff]
      %v491 = vld [vmem:[%s450 + $0x40] sm:$0xff]
      %v492 = vld [vmem:[%s450 + $0x48] sm:$0xff]
      %v493 = vld [vmem:[%s450 + $0x50] sm:$0xff]
      %v494 = vld [vmem:[%s450 + $0x58] sm:$0xff]
      %v495 = vld [vmem:[%s450 + $0x60] sm:$0xff]
      %v496 = vld [vmem:[%s450 + $0x68] sm:$0xff]
      %v497 = vld [vmem:[%s450 + $0x70] sm:$0xff]
      %v498 = vld [vmem:[%s450 + $0x78] sm:$0xff]
      %v499 = vpack.c.bf16 %v484, %v483
      %v500 = vpack.c.bf16 %v486, %v485
      %v501 = vpack.c.bf16 %v488, %v487
      %v502 = vpack.c.bf16 %v490, %v489
      %v503 = vpack.c.bf16 %v492, %v491
      %v504 = vpack.c.bf16 %v494, %v493
      %v505 = vpack.c.bf16 %v496, %v495
      %v506 = vpack.c.bf16 %v498, %v497
      %v507 = vld [vmem:[%s455] sm:$0x3]
      %vm508 = vcmask 23552
      %v510 = vsel %vm508, %v499, 0
      %v513 = vsel %vm508, %v500, 0
      %v516 = vsel %vm508, %v501, 0
      %v519 = vsel %vm508, %v502, 0
      %v522 = vsel %vm508, %v503, 0
      %v525 = vsel %vm508, %v504, 0
      %v528 = vsel %vm508, %v505, 0
      %v531 = vsel %vm508, %v506, 0
      %vm533 = vcmask 1040384
      %vm534 = vcmask 1041408
      %v535 = vsel %vm533, 4294967295, 65535
      %v536 = vsel %vm534, %v535, 0
      %v538 = vand.u32 %v507, %v536
      %540 = vmatprep.subr.bf16.mxu0 0
      %541 = vmatpush1.bf16.msra.mxu0 0
      %542 = vmatprep.subr.bf16.mxu0 0
      %543 = vmatpush1.bf16.msra.mxu0 0
      %544 = vmatprep.subr.bf16.mxu0 0
      %545 = vmatpush1.bf16.msra.mxu0 0
      %546 = vmatprep.subr.bf16.mxu0 0
      %547 = vmatpush1.bf16.msra.mxu0 0
      %548 = vmatprep.subr.bf16.mxu0 0
      %549 = vmatpush1.bf16.msra.mxu0 0
      %550 = vmatprep.subr.bf16.mxu0 0
      %551 = vmatpush1.bf16.msra.mxu0 0
      %552 = vmatprep.subr.bf16.mxu0 0
      %553 = vmatpush1.bf16.msra.mxu0 0
      %554 = vmatprep.subr.bf16.mxu0 0
      %555 = vmatpush1.bf16.msra.mxu0 %v538
      %556 = vmatprep.subr.bf16.mxu0 0
      %557 = vmatpush2.bf16.msra.mxu0 0
      %558 = vmatprep.subr.bf16.mxu0 0
      %559 = vmatpush2.bf16.msra.mxu0 0
      %560 = vmatprep.subr.bf16.mxu0 0
      %561 = vmatpush2.bf16.msra.mxu0 0
      %562 = vmatprep.subr.bf16.mxu0 0
      %563 = vmatpush2.bf16.msra.mxu0 0
      %564 = vmatprep.subr.bf16.mxu0 0
      %565 = vmatpush2.bf16.msra.mxu0 0
      %566 = vmatprep.subr.bf16.mxu0 0
      %567 = vmatpush2.bf16.msra.mxu0 0
      %568 = vmatprep.subr.bf16.mxu0 0
      %569 = vmatpush2.bf16.msra.mxu0 0
      %570 = vmatprep.subr.bf16.mxu0 0
      %571 = vmatpush2.bf16.msra.mxu0 0
      %572 = vmatprep.mubr.bf16.mxu0 0
      %573 = vmatmul.mubr.bf16.gmra.mxu0 %v510
      %v574 = vpop.f32.mrf.mxu0
      %v575 = vadd.f32 0.0, %v574
      %v576 = vpop.f32.mrf.mxu0
      %v577 = vpop.f32.mrf.mxu0
      %v578 = vadd.f32 0.0, %v577
      %v579 = vpop.f32.mrf.mxu0
      %580 = vmatprep.mubr.bf16.mxu0 0
      %581 = vmatmul.mubr.bf16.gmra.mxu0 %v513
      %v582 = vpop.f32.mrf.mxu0
      %v583 = vadd.f32 0.0, %v582
      %v584 = vpop.f32.mrf.mxu0
      %v585 = vpop.f32.mrf.mxu0
      %v586 = vadd.f32 0.0, %v585
      %v587 = vpop.f32.mrf.mxu0
      %588 = vmatprep.mubr.bf16.mxu0 0
      %589 = vmatmul.mubr.bf16.gmra.mxu0 %v516
      %v590 = vpop.f32.mrf.mxu0
      %v591 = vadd.f32 0.0, %v590
      %v592 = vpop.f32.mrf.mxu0
      %v593 = vpop.f32.mrf.mxu0
      %v594 = vadd.f32 0.0, %v593
      %v595 = vpop.f32.mrf.mxu0
      %596 = vmatprep.mubr.bf16.mxu0 0
      %597 = vmatmul.mubr.bf16.gmra.mxu0 %v519
      %v598 = vpop.f32.mrf.mxu0
      %v599 = vadd.f32 0.0, %v598
      %v600 = vpop.f32.mrf.mxu0
      %v601 = vpop.f32.mrf.mxu0
      %v602 = vadd.f32 0.0, %v601
      %v603 = vpop.f32.mrf.mxu0
      %604 = vmatprep.mubr.bf16.mxu0 0
      %605 = vmatmul.mubr.bf16.gmra.mxu0 %v522
      %v606 = vpop.f32.mrf.mxu0
      %v607 = vadd.f32 0.0, %v606
      %v608 = vpop.f32.mrf.mxu0
      %v609 = vpop.f32.mrf.mxu0
      %v610 = vadd.f32 0.0, %v609
      %v611 = vpop.f32.mrf.mxu0
      %612 = vmatprep.mubr.bf16.mxu0 0
      %613 = vmatmul.mubr.bf16.gmra.mxu0 %v525
      %v614 = vpop.f32.mrf.mxu0
      %v615 = vadd.f32 0.0, %v614
      %v616 = vpop.f32.mrf.mxu0
      %v617 = vpop.f32.mrf.mxu0
      %v618 = vadd.f32 0.0, %v617
      %v619 = vpop.f32.mrf.mxu0
      %620 = vmatprep.mubr.bf16.mxu0 0
      %621 = vmatmul.mubr.bf16.gmra.mxu0 %v528
      %v622 = vpop.f32.mrf.mxu0
      %v623 = vadd.f32 0.0, %v622
      %v624 = vpop.f32.mrf.mxu0
      %v625 = vpop.f32.mrf.mxu0
      %v626 = vadd.f32 0.0, %v625
      %v627 = vpop.f32.mrf.mxu0
      %628 = vmatprep.mubr.bf16.mxu0 0
      %629 = vmatmul.mubr.bf16.gmra.mxu0 %v531
      %v630 = vpop.f32.mrf.mxu0
      %v631 = vadd.f32 0.0, %v630
      %v632 = vpop.f32.mrf.mxu0
      %v633 = vpop.f32.mrf.mxu0
      %v634 = vadd.f32 0.0, %v633
      %v635 = vpop.f32.mrf.mxu0
      %636 = vdwg.mxu0
      %v637 = vld [vmem:[%s2] sm:$0x1]
      %v639 = vlaneseq
      %v640 = vshrl.u32 %v639, 7
      %v641 = vsub.s32 0, %v640
      %v642 = vrot.slane %v637, %v641
      %v644 = vmul.f32 %v575, %v642
      %v645 = vmul.f32 %v578, %v642
      %v646 = vmul.f32 %v583, %v642
      %v647 = vmul.f32 %v586, %v642
      %v648 = vmul.f32 %v591, %v642
      %v649 = vmul.f32 %v594, %v642
      %v650 = vmul.f32 %v599, %v642
      %v651 = vmul.f32 %v602, %v642
      %v652 = vmul.f32 %v607, %v642
      %v653 = vmul.f32 %v610, %v642
      %v654 = vmul.f32 %v615, %v642
      %v655 = vmul.f32 %v618, %v642
      %v656 = vmul.f32 %v623, %v642
      %v657 = vmul.f32 %v626, %v642
      %v658 = vmul.f32 %v631, %v642
      %v659 = vmul.f32 %v634, %v642
      %v660 = vld [vmem:[%s3] sm:$0x1]
      %v662 = vlaneseq
      %v663 = vshrl.u32 %v662, 7
      %v664 = vsub.s32 0, %v663
      %v665 = vrot.slane %v660, %v664
      %v667 = vadd.f32 %v644, %v665
      %v668 = vadd.f32 %v645, %v665
      %v669 = vadd.f32 %v646, %v665
      %v670 = vadd.f32 %v647, %v665
      %v671 = vadd.f32 %v648, %v665
      %v672 = vadd.f32 %v649, %v665
      %v673 = vadd.f32 %v650, %v665
      %v674 = vadd.f32 %v651, %v665
      %v675 = vadd.f32 %v652, %v665
      %v676 = vadd.f32 %v653, %v665
      %v677 = vadd.f32 %v654, %v665
      %v678 = vadd.f32 %v655, %v665
      %v679 = vadd.f32 %v656, %v665
      %v680 = vadd.f32 %v657, %v665
      %v681 = vadd.f32 %v658, %v665
      %v682 = vadd.f32 %v659, %v665
      %v683 = vmax.f32 %v667, 0.0
      %v684 = vmax.f32 %v668, 0.0
      %v685 = vmax.f32 %v669, 0.0
      %v686 = vmax.f32 %v670, 0.0
      %v687 = vmax.f32 %v671, 0.0
      %v688 = vmax.f32 %v672, 0.0
      %v689 = vmax.f32 %v673, 0.0
      %v690 = vmax.f32 %v674, 0.0
      %v691 = vmax.f32 %v675, 0.0
      %v692 = vmax.f32 %v676, 0.0
      %v693 = vmax.f32 %v677, 0.0
      %v694 = vmax.f32 %v678, 0.0
      %v695 = vmax.f32 %v679, 0.0
      %v696 = vmax.f32 %v680, 0.0
      %v697 = vmax.f32 %v681, 0.0
      %v698 = vmax.f32 %v682, 0.0
      %v699 = vpack.c.bf16 %v684, %v683
      %v700 = vpack.c.bf16 %v686, %v685
      %v701 = vpack.c.bf16 %v688, %v687
      %v702 = vpack.c.bf16 %v690, %v689
      %v703 = vpack.c.bf16 %v692, %v691
      %v704 = vpack.c.bf16 %v694, %v693
      %v705 = vpack.c.bf16 %v696, %v695
      %v706 = vpack.c.bf16 %v698, %v697
      %v707 = vld [vmem:[%s4] sm:$0xf]
      %v708 = vld [vmem:[%s4 + $0x4] sm:$0xf]
      %v709 = vld [vmem:[%s4 + $0x8] sm:$0xf]
      %v710 = vld [vmem:[%s4 + $0xc] sm:$0xf]
      %v711 = vld [vmem:[%s4 + $0x10] sm:$0xf]
      %v712 = vld [vmem:[%s4 + $0x14] sm:$0xf]
      %v713 = vld [vmem:[%s4 + $0x18] sm:$0xf]
      %v714 = vld [vmem:[%s4 + $0x1c] sm:$0xf]
      %v723 = vunpack.c.l.b16 %v707
      %v724 = vunpack.c.l.b16 %v708
      %v725 = vunpack.c.l.b16 %v709
      %v726 = vunpack.c.l.b16 %v710
      %v727 = vunpack.c.l.b16 %v711
      %v728 = vunpack.c.l.b16 %v712
      %v729 = vunpack.c.l.b16 %v713
      %v730 = vunpack.c.l.b16 %v714
      %v731 = vpack.c.b16 %v724, %v723
      %v732 = vpack.c.b16 %v726, %v725
      %v733 = vpack.c.b16 %v728, %v727
      %v734 = vpack.c.b16 %v730, %v729
      %vm739 = vcmask 523264
      %v741 = vsel %vm739, %v699, 0
      %v744 = vsel %vm739, %v700, 0
      %v747 = vsel %vm739, %v701, 0
      %v750 = vsel %vm739, %v702, 0
      %v753 = vsel %vm739, %v703, 0
      %v756 = vsel %vm739, %v704, 0
      %v759 = vsel %vm739, %v705, 0
      %v762 = vsel %vm739, %v706, 0
      %764 = vmatprep.subr.bf16.mxu0 0
      %765 = vmatpush1.bf16.msra.mxu0 0
      %766 = vmatprep.subr.bf16.mxu0 0
      %767 = vmatpush1.bf16.msra.mxu0 0
      %768 = vmatprep.subr.bf16.mxu0 0
      %769 = vmatpush1.bf16.msra.mxu0 0
      %770 = vmatprep.subr.bf16.mxu0 0
      %771 = vmatpush1.bf16.msra.mxu0 0
      %772 = vmatprep.subr.bf16.mxu0 0
      %773 = vmatpush1.bf16.msra.mxu0 %v734
      %774 = vmatprep.subr.bf16.mxu0 0
      %775 = vmatpush1.bf16.msra.mxu0 %v733
      %776 = vmatprep.subr.bf16.mxu0 0
      %777 = vmatpush1.bf16.msra.mxu0 %v732
      %778 = vmatprep.subr.bf16.mxu0 0
      %779 = vmatpush1.bf16.msra.mxu0 %v731
      %780 = vmatprep.subr.bf16.mxu0 0
      %781 = vmatpush2.bf16.msra.mxu0 0
      %782 = vmatprep.subr.bf16.mxu0 0
      %783 = vmatpush2.bf16.msra.mxu0 0
      %784 = vmatprep.subr.bf16.mxu0 0
      %785 = vmatpush2.bf16.msra.mxu0 0
      %786 = vmatprep.subr.bf16.mxu0 0
      %787 = vmatpush2.bf16.msra.mxu0 0
      %788 = vmatprep.subr.bf16.mxu0 0
      %789 = vmatpush2.bf16.msra.mxu0 0
      %790 = vmatprep.subr.bf16.mxu0 0
      %791 = vmatpush2.bf16.msra.mxu0 0
      %792 = vmatprep.subr.bf16.mxu0 0
      %793 = vmatpush2.bf16.msra.mxu0 0
      %794 = vmatprep.subr.bf16.mxu0 0
      %795 = vmatpush2.bf16.msra.mxu0 0
      %796 = vmatprep.mubr.bf16.mxu0 0
      %797 = vmatmul.mubr.bf16.gmra.mxu0 %v741
      %v798 = vpop.f32.mrf.mxu0
      %v799 = vadd.f32 0.0, %v798
      %v800 = vpop.f32.mrf.mxu0
      %v801 = vpop.f32.mrf.mxu0
      %v802 = vadd.f32 0.0, %v801
      %v803 = vpop.f32.mrf.mxu0
      %804 = vmatprep.mubr.bf16.mxu0 0
      %805 = vmatmul.mubr.bf16.gmra.mxu0 %v744
      %v806 = vpop.f32.mrf.mxu0
      %v807 = vadd.f32 0.0, %v806
      %v808 = vpop.f32.mrf.mxu0
      %v809 = vpop.f32.mrf.mxu0
      %v810 = vadd.f32 0.0, %v809
      %v811 = vpop.f32.mrf.mxu0
      %812 = vmatprep.mubr.bf16.mxu0 0
      %813 = vmatmul.mubr.bf16.gmra.mxu0 %v747
      %v814 = vpop.f32.mrf.mxu0
      %v815 = vadd.f32 0.0, %v814
      %v816 = vpop.f32.mrf.mxu0
      %v817 = vpop.f32.mrf.mxu0
      %v818 = vadd.f32 0.0, %v817
      %v819 = vpop.f32.mrf.mxu0
      %820 = vmatprep.mubr.bf16.mxu0 0
      %821 = vmatmul.mubr.bf16.gmra.mxu0 %v750
      %v822 = vpop.f32.mrf.mxu0
      %v823 = vadd.f32 0.0, %v822
      %v824 = vpop.f32.mrf.mxu0
      %v825 = vpop.f32.mrf.mxu0
      %v826 = vadd.f32 0.0, %v825
      %v827 = vpop.f32.mrf.mxu0
      %828 = vmatprep.mubr.bf16.mxu0 0
      %829 = vmatmul.mubr.bf16.gmra.mxu0 %v753
      %v830 = vpop.f32.mrf.mxu0
      %v831 = vadd.f32 0.0, %v830
      %v832 = vpop.f32.mrf.mxu0
      %v833 = vpop.f32.mrf.mxu0
      %v834 = vadd.f32 0.0, %v833
      %v835 = vpop.f32.mrf.mxu0
      %836 = vmatprep.mubr.bf16.mxu0 0
      %837 = vmatmul.mubr.bf16.gmra.mxu0 %v756
      %v838 = vpop.f32.mrf.mxu0
      %v839 = vadd.f32 0.0, %v838
      %v840 = vpop.f32.mrf.mxu0
      %v841 = vpop.f32.mrf.mxu0
      %v842 = vadd.f32 0.0, %v841
      %v843 = vpop.f32.mrf.mxu0
      %844 = vmatprep.mubr.bf16.mxu0 0
      %845 = vmatmul.mubr.bf16.gmra.mxu0 %v759
      %v846 = vpop.f32.mrf.mxu0
      %v847 = vadd.f32 0.0, %v846
      %v848 = vpop.f32.mrf.mxu0
      %v849 = vpop.f32.mrf.mxu0
      %v850 = vadd.f32 0.0, %v849
      %v851 = vpop.f32.mrf.mxu0
      %852 = vmatprep.mubr.bf16.mxu0 0
      %853 = vmatmul.mubr.bf16.gmra.mxu0 %v762
      %v854 = vpop.f32.mrf.mxu0
      %v855 = vadd.f32 0.0, %v854
      %v856 = vpop.f32.mrf.mxu0
      %v857 = vpop.f32.mrf.mxu0
      %v858 = vadd.f32 0.0, %v857
      %v859 = vpop.f32.mrf.mxu0
      %860 = vdwg.mxu0
      %v861 = vld [vmem:[%s5] sm:$0x1]
      %v863 = vlaneseq
      %v864 = vshrl.u32 %v863, 7
      %v865 = vsub.s32 0, %v864
      %v866 = vrot.slane %v861, %v865
      %v868 = vmul.f32 %v799, %v866
      %v869 = vmul.f32 %v802, %v866
      %v870 = vmul.f32 %v807, %v866
      %v871 = vmul.f32 %v810, %v866
      %v872 = vmul.f32 %v815, %v866
      %v873 = vmul.f32 %v818, %v866
      %v874 = vmul.f32 %v823, %v866
      %v875 = vmul.f32 %v826, %v866
      %v876 = vmul.f32 %v831, %v866
      %v877 = vmul.f32 %v834, %v866
      %v878 = vmul.f32 %v839, %v866
      %v879 = vmul.f32 %v842, %v866
      %v880 = vmul.f32 %v847, %v866
      %v881 = vmul.f32 %v850, %v866
      %v882 = vmul.f32 %v855, %v866
      %v883 = vmul.f32 %v858, %v866
      %v884 = vld [vmem:[%s6] sm:$0x1]
      %v886 = vlaneseq
      %v887 = vshrl.u32 %v886, 7
      %v888 = vsub.s32 0, %v887
      %v889 = vrot.slane %v884, %v888
      %v891 = vadd.f32 %v868, %v889
      %v892 = vadd.f32 %v869, %v889
      %v893 = vadd.f32 %v870, %v889
      %v894 = vadd.f32 %v871, %v889
      %v895 = vadd.f32 %v872, %v889
      %v896 = vadd.f32 %v873, %v889
      %v897 = vadd.f32 %v874, %v889
      %v898 = vadd.f32 %v875, %v889
      %v899 = vadd.f32 %v876, %v889
      %v900 = vadd.f32 %v877, %v889
      %v901 = vadd.f32 %v878, %v889
      %v902 = vadd.f32 %v879, %v889
      %v903 = vadd.f32 %v880, %v889
      %v904 = vadd.f32 %v881, %v889
      %v905 = vadd.f32 %v882, %v889
      %v906 = vadd.f32 %v883, %v889
      %v907 = vmax.f32 %v891, 0.0
      %v908 = vmax.f32 %v892, 0.0
      %v909 = vmax.f32 %v893, 0.0
      %v910 = vmax.f32 %v894, 0.0
      %v911 = vmax.f32 %v895, 0.0
      %v912 = vmax.f32 %v896, 0.0
      %v913 = vmax.f32 %v897, 0.0
      %v914 = vmax.f32 %v898, 0.0
      %v915 = vmax.f32 %v899, 0.0
      %v916 = vmax.f32 %v900, 0.0
      %v917 = vmax.f32 %v901, 0.0
      %v918 = vmax.f32 %v902, 0.0
      %v919 = vmax.f32 %v903, 0.0
      %v920 = vmax.f32 %v904, 0.0
      %v921 = vmax.f32 %v905, 0.0
      %v922 = vmax.f32 %v906, 0.0
      %v923 = vpack.c.bf16 %v908, %v907
      %v924 = vpack.c.bf16 %v910, %v909
      %v925 = vpack.c.bf16 %v912, %v911
      %v926 = vpack.c.bf16 %v914, %v913
      %v927 = vpack.c.bf16 %v916, %v915
      %v928 = vpack.c.bf16 %v918, %v917
      %v929 = vpack.c.bf16 %v920, %v919
      %v930 = vpack.c.bf16 %v922, %v921
      %v931 = vld [vmem:[%s460] sm:$0xff]
      %v932 = vld [vmem:[%s460 + $0x20] sm:$0xff]
      %v933 = vld [vmem:[%s460 + $0x40] sm:$0xff]
      %v934 = vld [vmem:[%s460 + $0x60] sm:$0xff]
      %v935 = vld [vmem:[%s460 + $0x80] sm:$0xff]
      %v936 = vld [vmem:[%s460 + $0xa0] sm:$0xff]
      %v937 = vld [vmem:[%s460 + $0xc0] sm:$0xff]
      %v938 = vld [vmem:[%s460 + $0xe0] sm:$0xff]
      %v939 = vld [vmem:[%s460 + $0x100] sm:$0xff]
      %v940 = vld [vmem:[%s460 + $0x120] sm:$0xff]
      %v941 = vld [vmem:[%s460 + $0x140] sm:$0xff]
      %v942 = vld [vmem:[%s460 + $0x160] sm:$0xff]
      %v943 = vld [vmem:[%s460 + $0x180] sm:$0xff]
      %v944 = vld [vmem:[%s460 + $0x1a0] sm:$0xff]
      %v945 = vld [vmem:[%s460 + $0x1c0] sm:$0xff]
      %v946 = vld [vmem:[%s460 + $0x1e0] sm:$0xff]
      %v963 = vunpack.c.l.b16 %v931
      %v964 = vunpack.c.h.b16 %v931
      %v965 = vunpack.c.l.b16 %v932
      %v966 = vunpack.c.h.b16 %v932
      %v967 = vunpack.c.l.b16 %v933
      %v968 = vunpack.c.h.b16 %v933
      %v969 = vunpack.c.l.b16 %v934
      %v970 = vunpack.c.h.b16 %v934
      %v971 = vunpack.c.l.b16 %v935
      %v972 = vunpack.c.h.b16 %v935
      %v973 = vunpack.c.l.b16 %v936
      %v974 = vunpack.c.h.b16 %v936
      %v975 = vunpack.c.l.b16 %v937
      %v976 = vunpack.c.h.b16 %v937
      %v977 = vunpack.c.l.b16 %v938
      %v978 = vunpack.c.h.b16 %v938
      %v979 = vunpack.c.l.b16 %v939
      %v980 = vunpack.c.h.b16 %v939
      %v981 = vunpack.c.l.b16 %v940
      %v982 = vunpack.c.h.b16 %v940
      %v983 = vunpack.c.l.b16 %v941
      %v984 = vunpack.c.h.b16 %v941
      %v985 = vunpack.c.l.b16 %v942
      %v986 = vunpack.c.h.b16 %v942
      %v987 = vunpack.c.l.b16 %v943
      %v988 = vunpack.c.h.b16 %v943
      %v989 = vunpack.c.l.b16 %v944
      %v990 = vunpack.c.h.b16 %v944
      %v991 = vunpack.c.l.b16 %v945
      %v992 = vunpack.c.h.b16 %v945
      %v993 = vunpack.c.l.b16 %v946
      %v994 = vunpack.c.h.b16 %v946
      %v995 = vpack.c.b16 %v965, %v963
      %v996 = vpack.c.b16 %v966, %v964
      %v997 = vpack.c.b16 %v969, %v967
      %v998 = vpack.c.b16 %v970, %v968
      %v999 = vpack.c.b16 %v973, %v971
      %v1000 = vpack.c.b16 %v974, %v972
      %v1001 = vpack.c.b16 %v977, %v975
      %v1002 = vpack.c.b16 %v978, %v976
      %v1003 = vpack.c.b16 %v981, %v979
      %v1004 = vpack.c.b16 %v982, %v980
      %v1005 = vpack.c.b16 %v985, %v983
      %v1006 = vpack.c.b16 %v986, %v984
      %v1007 = vpack.c.b16 %v989, %v987
      %v1008 = vpack.c.b16 %v990, %v988
      %v1009 = vpack.c.b16 %v993, %v991
      %v1010 = vpack.c.b16 %v994, %v992
      %1027 = vmatprep.subr.bf16.mxu0 %v1010
      %1028 = vmatpush1.bf16.msra.mxu0 %v1009
      %1029 = vmatprep.subr.bf16.mxu0 %v1008
      %1030 = vmatpush1.bf16.msra.mxu0 %v1007
      %1031 = vmatprep.subr.bf16.mxu0 %v1006
      %1032 = vmatpush1.bf16.msra.mxu0 %v1005
      %1033 = vmatprep.subr.bf16.mxu0 %v1004
      %1034 = vmatpush1.bf16.msra.mxu0 %v1003
      %1035 = vmatprep.subr.bf16.mxu0 %v1002
      %1036 = vmatpush1.bf16.msra.mxu0 %v1001
      %1037 = vmatprep.subr.bf16.mxu0 %v1000
      %1038 = vmatpush1.bf16.msra.mxu0 %v999
      %1039 = vmatprep.subr.bf16.mxu0 %v998
      %1040 = vmatpush1.bf16.msra.mxu0 %v997
      %1041 = vmatprep.subr.bf16.mxu0 %v996
      %1042 = vmatpush1.bf16.msra.mxu0 %v995
      %1043 = vmatprep.subr.bf16.mxu0 0
      %1044 = vmatpush2.bf16.msra.mxu0 0
      %1045 = vmatprep.subr.bf16.mxu0 0
      %1046 = vmatpush2.bf16.msra.mxu0 0
      %1047 = vmatprep.subr.bf16.mxu0 0
      %1048 = vmatpush2.bf16.msra.mxu0 0
      %1049 = vmatprep.subr.bf16.mxu0 0
      %1050 = vmatpush2.bf16.msra.mxu0 0
      %1051 = vmatprep.subr.bf16.mxu0 0
      %1052 = vmatpush2.bf16.msra.mxu0 0
      %1053 = vmatprep.subr.bf16.mxu0 0
      %1054 = vmatpush2.bf16.msra.mxu0 0
      %1055 = vmatprep.subr.bf16.mxu0 0
      %1056 = vmatpush2.bf16.msra.mxu0 0
      %1057 = vmatprep.subr.bf16.mxu0 0
      %1058 = vmatpush2.bf16.msra.mxu0 0
      %1059 = vmatprep.mubr.bf16.mxu0 0
      %1060 = vmatmul.mubr.bf16.gmra.mxu0 %v923
      %v1061 = vpop.f32.mrf.mxu0
      %v1062 = vadd.f32 0.0, %v1061
      %v1063 = vpop.f32.mrf.mxu0
      %v1064 = vadd.f32 0.0, %v1063
      %v1065 = vpop.f32.mrf.mxu0
      %v1066 = vadd.f32 0.0, %v1065
      %v1067 = vpop.f32.mrf.mxu0
      %v1068 = vadd.f32 0.0, %v1067
      %1069 = vmatprep.mubr.bf16.mxu0 0
      %1070 = vmatmul.mubr.bf16.gmra.mxu0 %v924
      %v1071 = vpop.f32.mrf.mxu0
      %v1072 = vadd.f32 0.0, %v1071
      %v1073 = vpop.f32.mrf.mxu0
      %v1074 = vadd.f32 0.0, %v1073
      %v1075 = vpop.f32.mrf.mxu0
      %v1076 = vadd.f32 0.0, %v1075
      %v1077 = vpop.f32.mrf.mxu0
      %v1078 = vadd.f32 0.0, %v1077
      %1079 = vmatprep.mubr.bf16.mxu0 0
      %1080 = vmatmul.mubr.bf16.gmra.mxu0 %v925
      %v1081 = vpop.f32.mrf.mxu0
      %v1082 = vadd.f32 0.0, %v1081
      %v1083 = vpop.f32.mrf.mxu0
      %v1084 = vadd.f32 0.0, %v1083
      %v1085 = vpop.f32.mrf.mxu0
      %v1086 = vadd.f32 0.0, %v1085
      %v1087 = vpop.f32.mrf.mxu0
      %v1088 = vadd.f32 0.0, %v1087
      %1089 = vmatprep.mubr.bf16.mxu0 0
      %1090 = vmatmul.mubr.bf16.gmra.mxu0 %v926
      %v1091 = vpop.f32.mrf.mxu0
      %v1092 = vadd.f32 0.0, %v1091
      %v1093 = vpop.f32.mrf.mxu0
      %v1094 = vadd.f32 0.0, %v1093
      %v1095 = vpop.f32.mrf.mxu0
      %v1096 = vadd.f32 0.0, %v1095
      %v1097 = vpop.f32.mrf.mxu0
      %v1098 = vadd.f32 0.0, %v1097
      %1099 = vmatprep.mubr.bf16.mxu0 0
      %1100 = vmatmul.mubr.bf16.gmra.mxu0 %v927
      %v1101 = vpop.f32.mrf.mxu0
      %v1102 = vadd.f32 0.0, %v1101
      %v1103 = vpop.f32.mrf.mxu0
      %v1104 = vadd.f32 0.0, %v1103
      %v1105 = vpop.f32.mrf.mxu0
      %v1106 = vadd.f32 0.0, %v1105
      %v1107 = vpop.f32.mrf.mxu0
      %v1108 = vadd.f32 0.0, %v1107
      %1109 = vmatprep.mubr.bf16.mxu0 0
      %1110 = vmatmul.mubr.bf16.gmra.mxu0 %v928
      %v1111 = vpop.f32.mrf.mxu0
      %v1112 = vadd.f32 0.0, %v1111
      %v1113 = vpop.f32.mrf.mxu0
      %v1114 = vadd.f32 0.0, %v1113
      %v1115 = vpop.f32.mrf.mxu0
      %v1116 = vadd.f32 0.0, %v1115
      %v1117 = vpop.f32.mrf.mxu0
      %v1118 = vadd.f32 0.0, %v1117
      %1119 = vmatprep.mubr.bf16.mxu0 0
      %1120 = vmatmul.mubr.bf16.gmra.mxu0 %v929
      %v1121 = vpop.f32.mrf.mxu0
      %v1122 = vadd.f32 0.0, %v1121
      %v1123 = vpop.f32.mrf.mxu0
      %v1124 = vadd.f32 0.0, %v1123
      %v1125 = vpop.f32.mrf.mxu0
      %v1126 = vadd.f32 0.0, %v1125
      %v1127 = vpop.f32.mrf.mxu0
      %v1128 = vadd.f32 0.0, %v1127
      %1129 = vmatprep.mubr.bf16.mxu0 0
      %1130 = vmatmul.mubr.bf16.gmra.mxu0 %v930
      %v1131 = vpop.f32.mrf.mxu0
      %v1132 = vadd.f32 0.0, %v1131
      %v1133 = vpop.f32.mrf.mxu0
      %v1134 = vadd.f32 0.0, %v1133
      %v1135 = vpop.f32.mrf.mxu0
      %v1136 = vadd.f32 0.0, %v1135
      %v1137 = vpop.f32.mrf.mxu0
      %v1138 = vadd.f32 0.0, %v1137
      %1139 = vdwg.mxu0
      %v1140 = vmax.f32 %v1062, %v1072
      %v1141 = vmax.f32 %v1066, %v1076
      %v1142 = vmax.f32 %v1140, %v1082
      %v1143 = vmax.f32 %v1141, %v1086
      %v1144 = vmax.f32 %v1142, %v1092
      %v1145 = vmax.f32 %v1143, %v1096
      %v1146 = vmax.f32 %v1144, %v1102
      %v1147 = vmax.f32 %v1145, %v1106
      %v1148 = vmax.f32 %v1146, %v1112
      %v1149 = vmax.f32 %v1147, %v1116
      %v1150 = vmax.f32 %v1148, %v1122
      %v1151 = vmax.f32 %v1149, %v1126
      %v1152 = vmax.f32 %v1150, %v1132
      %v1153 = vmax.f32 %v1151, %v1136
      %v1154 = vmax.f32 %v1152, %v1153
      %v1155 = vrot.slane %v1154, 4
      %v1156 = vmax.f32 %v1154, %v1155
      %v1157 = vrot.slane %v1156, 2
      %v1158 = vmax.f32 %v1156, %v1157
      %v1159 = vrot.slane %v1158, 1
      %v1160 = vmax.f32 %v1158, %v1159
      %v1161 = vmax.f32 %v1064, %v1074
      %v1162 = vmax.f32 %v1068, %v1078
      %v1163 = vmax.f32 %v1161, %v1084
      %v1164 = vmax.f32 %v1162, %v1088
      %v1165 = vmax.f32 %v1163, %v1094
      %v1166 = vmax.f32 %v1164, %v1098
      %v1167 = vmax.f32 %v1165, %v1104
      %v1168 = vmax.f32 %v1166, %v1108
      %v1169 = vmax.f32 %v1167, %v1114
      %v1170 = vmax.f32 %v1168, %v1118
      %v1171 = vmax.f32 %v1169, %v1124
      %v1172 = vmax.f32 %v1170, %v1128
      %v1173 = vmax.f32 %v1171, %v1134
      %v1174 = vmax.f32 %v1172, %v1138
      %v1175 = vmax.f32 %v1173, %v1174
      %v1176 = vrot.slane %v1175, 4
      %v1177 = vmax.f32 %v1175, %v1176
      %v1178 = vrot.slane %v1177, 2
      %v1179 = vmax.f32 %v1177, %v1178
      %v1180 = vrot.slane %v1179, 1
      %v1181 = vmax.f32 %v1179, %v1180
      // Predicated region
      $region61: #{_lambda_.6} parent=59 // pred_check
        %p1182 = pneg %p482
      $region62: #{_lambda_.6} parent=59 // pred_check_branch
        %1184 = sbr.rel (%p1182) target = $region64
      $region63: #{_lambda_.6} parent=59 // pred_region
        %v1187 = vcombine.low %v1160, %v1181
        %v1189 = vunpack.c.l.s4 1966171168
        %v1190 = vunpack.c.0.s8 %v1189
        %v1191 = vlaneseq
        %v1192 = vshrl.u32 %v1191, 7
        %v1193 = vsub.s32 %v1190, %v1192
        %v1194 = vrot.slane %v1187, %v1193
        %v1196 = vunpack.c.l.s4 1966171168
        %v1197 = vunpack.c.0.s8 %v1196
        %v1198 = vlaneseq
        %v1199 = vshrl.u32 %v1198, 7
        %v1200 = vsub.s32 %v1197, %v1199
        %v1201 = vrot.slane %v1194, %v1200
        %v1203 = vlaneseq
        %vm1204 = vcmp.ge.s32.totalorder %v1203, 0
        %vm1205 = vcmp.lt.s32.totalorder %v1203, 256
        %vm1206 = vmand %vm1204, %vm1205
        %1207 = vst.msk [vmem:[%s479] sm:$0x3] %vm1206, %v1201
      $region64: #{_lambda_.6} parent=59 // pred_fallthru
        _
      %p1208 = scmp.ne.s32.totalorder %s28, 0
      // Predicated region
      $region65: #{_lambda_.6} parent=59 // pred_check
        %p1209 = pneg %p1208
      $region66: #{_lambda_.6} parent=59 // pred_check_branch
        %1211 = sbr.rel (%p1209) target = $region68
      $region67: #{_lambda_.6} parent=59 // pred_region
        %v1212 = vld [vmem:[%s479] sm:$0x3]
        %v1215 = vcombine.low %v1160, %v1181
        %v1217 = vunpack.c.l.s4 1966171168
        %v1218 = vunpack.c.0.s8 %v1217
        %v1219 = vlaneseq
        %v1220 = vshrl.u32 %v1219, 7
        %v1221 = vsub.s32 %v1218, %v1220
        %v1222 = vrot.slane %v1215, %v1221
        %v1224 = vunpack.c.l.s4 1966171168
        %v1225 = vunpack.c.0.s8 %v1224
        %v1226 = vlaneseq
        %v1227 = vshrl.u32 %v1226, 7
        %v1228 = vsub.s32 %v1225, %v1227
        %v1229 = vrot.slane %v1222, %v1228
        %v1231 = vmax.f32 %v1212, %v1229
        %v1232 = vlaneseq
        %vm1233 = vcmp.ge.s32.totalorder %v1232, 0
        %vm1234 = vcmp.lt.s32.totalorder %v1232, 256
        %vm1235 = vmand %vm1233, %vm1234
        %1236 = vst.msk [vmem:[%s479] sm:$0x3] %vm1235, %v1231
      $region68: #{_lambda_.6} parent=59 // pred_fallthru
        _
      %v1237 = vld [vmem:[%s460 + $0x8] sm:$0xff]
      %v1238 = vld [vmem:[%s460 + $0x28] sm:$0xff]
      %v1239 = vld [vmem:[%s460 + $0x48] sm:$0xff]
      %v1240 = vld [vmem:[%s460 + $0x68] sm:$0xff]
      %v1241 = vld [vmem:[%s460 + $0x88] sm:$0xff]
      %v1242 = vld [vmem:[%s460 + $0xa8] sm:$0xff]
      %v1243 = vld [vmem:[%s460 + $0xc8] sm:$0xff]
      %v1244 = vld [vmem:[%s460 + $0xe8] sm:$0xff]
      %v1245 = vld [vmem:[%s460 + $0x108] sm:$0xff]
      %v1246 = vld [vmem:[%s460 + $0x128] sm:$0xff]
      %v1247 = vld [vmem:[%s460 + $0x148] sm:$0xff]
      %v1248 = vld [vmem:[%s460 + $0x168] sm:$0xff]
      %v1249 = vld [vmem:[%s460 + $0x188] sm:$0xff]
      %v1250 = vld [vmem:[%s460 + $0x1a8] sm:$0xff]
      %v1251 = vld [vmem:[%s460 + $0x1c8] sm:$0xff]
      %v1252 = vld [vmem:[%s460 + $0x1e8] sm:$0xff]
      %v1269 = vunpack.c.l.b16 %v1237
      %v1270 = vunpack.c.h.b16 %v1237
      %v1271 = vunpack.c.l.b16 %v1238
      %v1272 = vunpack.c.h.b16 %v1238
      %v1273 = vunpack.c.l.b16 %v1239
      %v1274 = vunpack.c.h.b16 %v1239
      %v1275 = vunpack.c.l.b16 %v1240
      %v1276 = vunpack.c.h.b16 %v1240
      %v1277 = vunpack.c.l.b16 %v1241
      %v1278 = vunpack.c.h.b16 %v1241
      %v1279 = vunpack.c.l.b16 %v1242
      %v1280 = vunpack.c.h.b16 %v1242
      %v1281 = vunpack.c.l.b16 %v1243
      %v1282 = vunpack.c.h.b16 %v1243
      %v1283 = vunpack.c.l.b16 %v1244
      %v1284 = vunpack.c.h.b16 %v1244
      %v1285 = vunpack.c.l.b16 %v1245
      %v1286 = vunpack.c.h.b16 %v1245
      %v1287 = vunpack.c.l.b16 %v1246
      %v1288 = vunpack.c.h.b16 %v1246
      %v1289 = vunpack.c.l.b16 %v1247
      %v1290 = vunpack.c.h.b16 %v1247
      %v1291 = vunpack.c.l.b16 %v1248
      %v1292 = vunpack.c.h.b16 %v1248
      %v1293 = vunpack.c.l.b16 %v1249
      %v1294 = vunpack.c.h.b16 %v1249
      %v1295 = vunpack.c.l.b16 %v1250
      %v1296 = vunpack.c.h.b16 %v1250
      %v1297 = vunpack.c.l.b16 %v1251
      %v1298 = vunpack.c.h.b16 %v1251
      %v1299 = vunpack.c.l.b16 %v1252
      %v1300 = vunpack.c.h.b16 %v1252
      %v1301 = vpack.c.b16 %v1271, %v1269
      %v1302 = vpack.c.b16 %v1272, %v1270
      %v1303 = vpack.c.b16 %v1275, %v1273
      %v1304 = vpack.c.b16 %v1276, %v1274
      %v1305 = vpack.c.b16 %v1279, %v1277
      %v1306 = vpack.c.b16 %v1280, %v1278
      %v1307 = vpack.c.b16 %v1283, %v1281
      %v1308 = vpack.c.b16 %v1284, %v1282
      %v1309 = vpack.c.b16 %v1287, %v1285
      %v1310 = vpack.c.b16 %v1288, %v1286
      %v1311 = vpack.c.b16 %v1291, %v1289
      %v1312 = vpack.c.b16 %v1292, %v1290
      %v1313 = vpack.c.b16 %v1295, %v1293
      %v1314 = vpack.c.b16 %v1296, %v1294
      %v1315 = vpack.c.b16 %v1299, %v1297
      %v1316 = vpack.c.b16 %v1300, %v1298
      %1333 = vmatprep.subr.bf16.mxu0 %v1316
      %1334 = vmatpush1.bf16.msra.mxu0 %v1315
      %1335 = vmatprep.subr.bf16.mxu0 %v1314
      %1336 = vmatpush1.bf16.msra.mxu0 %v1313
      %1337 = vmatprep.subr.bf16.mxu0 %v1312
      %1338 = vmatpush1.bf16.msra.mxu0 %v1311
      %1339 = vmatprep.subr.bf16.mxu0 %v1310
      %1340 = vmatpush1.bf16.msra.mxu0 %v1309
      %1341 = vmatprep.subr.bf16.mxu0 %v1308
      %1342 = vmatpush1.bf16.msra.mxu0 %v1307
      %1343 = vmatprep.subr.bf16.mxu0 %v1306
      %1344 = vmatpush1.bf16.msra.mxu0 %v1305
      %1345 = vmatprep.subr.bf16.mxu0 %v1304
      %1346 = vmatpush1.bf16.msra.mxu0 %v1303
      %1347 = vmatprep.subr.bf16.mxu0 %v1302
      %1348 = vmatpush1.bf16.msra.mxu0 %v1301
      %1349 = vmatprep.subr.bf16.mxu0 0
      %1350 = vmatpush2.bf16.msra.mxu0 0
      %1351 = vmatprep.subr.bf16.mxu0 0
      %1352 = vmatpush2.bf16.msra.mxu0 0
      %1353 = vmatprep.subr.bf16.mxu0 0
      %1354 = vmatpush2.bf16.msra.mxu0 0
      %1355 = vmatprep.subr.bf16.mxu0 0
      %1356 = vmatpush2.bf16.msra.mxu0 0
      %1357 = vmatprep.subr.bf16.mxu0 0
      %1358 = vmatpush2.bf16.msra.mxu0 0
      %1359 = vmatprep.subr.bf16.mxu0 0
      %1360 = vmatpush2.bf16.msra.mxu0 0
      %1361 = vmatprep.subr.bf16.mxu0 0
      %1362 = vmatpush2.bf16.msra.mxu0 0
      %1363 = vmatprep.subr.bf16.mxu0 0
      %1364 = vmatpush2.bf16.msra.mxu0 0
      %1365 = vmatprep.mubr.bf16.mxu0 0
      %1366 = vmatmul.mubr.bf16.gmra.mxu0 %v923
      %v1367 = vpop.f32.mrf.mxu0
      %v1368 = vadd.f32 0.0, %v1367
      %v1369 = vpop.f32.mrf.mxu0
      %v1370 = vadd.f32 0.0, %v1369
      %v1371 = vpop.f32.mrf.mxu0
      %v1372 = vadd.f32 0.0, %v1371
      %v1373 = vpop.f32.mrf.mxu0
      %v1374 = vadd.f32 0.0, %v1373
      %1375 = vmatprep.mubr.bf16.mxu0 0
      %1376 = vmatmul.mubr.bf16.gmra.mxu0 %v924
      %v1377 = vpop.f32.mrf.mxu0
      %v1378 = vadd.f32 0.0, %v1377
      %v1379 = vpop.f32.mrf.mxu0
      %v1380 = vadd.f32 0.0, %v1379
      %v1381 = vpop.f32.mrf.mxu0
      %v1382 = vadd.f32 0.0, %v1381
      %v1383 = vpop.f32.mrf.mxu0
      %v1384 = vadd.f32 0.0, %v1383
      %1385 = vmatprep.mubr.bf16.mxu0 0
      %1386 = vmatmul.mubr.bf16.gmra.mxu0 %v925
      %v1387 = vpop.f32.mrf.mxu0
      %v1388 = vadd.f32 0.0, %v1387
      %v1389 = vpop.f32.mrf.mxu0
      %v1390 = vadd.f32 0.0, %v1389
      %v1391 = vpop.f32.mrf.mxu0
      %v1392 = vadd.f32 0.0, %v1391
      %v1393 = vpop.f32.mrf.mxu0
      %v1394 = vadd.f32 0.0, %v1393
      %1395 = vmatprep.mubr.bf16.mxu0 0
      %1396 = vmatmul.mubr.bf16.gmra.mxu0 %v926
      %v1397 = vpop.f32.mrf.mxu0
      %v1398 = vadd.f32 0.0, %v1397
      %v1399 = vpop.f32.mrf.mxu0
      %v1400 = vadd.f32 0.0, %v1399
      %v1401 = vpop.f32.mrf.mxu0
      %v1402 = vadd.f32 0.0, %v1401
      %v1403 = vpop.f32.mrf.mxu0
      %v1404 = vadd.f32 0.0, %v1403
      %1405 = vmatprep.mubr.bf16.mxu0 0
      %1406 = vmatmul.mubr.bf16.gmra.mxu0 %v927
      %v1407 = vpop.f32.mrf.mxu0
      %v1408 = vadd.f32 0.0, %v1407
      %v1409 = vpop.f32.mrf.mxu0
      %v1410 = vadd.f32 0.0, %v1409
      %v1411 = vpop.f32.mrf.mxu0
      %v1412 = vadd.f32 0.0, %v1411
      %v1413 = vpop.f32.mrf.mxu0
      %v1414 = vadd.f32 0.0, %v1413
      %1415 = vmatprep.mubr.bf16.mxu0 0
      %1416 = vmatmul.mubr.bf16.gmra.mxu0 %v928
      %v1417 = vpop.f32.mrf.mxu0
      %v1418 = vadd.f32 0.0, %v1417
      %v1419 = vpop.f32.mrf.mxu0
      %v1420 = vadd.f32 0.0, %v1419
      %v1421 = vpop.f32.mrf.mxu0
      %v1422 = vadd.f32 0.0, %v1421
      %v1423 = vpop.f32.mrf.mxu0
      %v1424 = vadd.f32 0.0, %v1423
      %1425 = vmatprep.mubr.bf16.mxu0 0
      %1426 = vmatmul.mubr.bf16.gmra.mxu0 %v929
      %v1427 = vpop.f32.mrf.mxu0
      %v1428 = vadd.f32 0.0, %v1427
      %v1429 = vpop.f32.mrf.mxu0
      %v1430 = vadd.f32 0.0, %v1429
      %v1431 = vpop.f32.mrf.mxu0
      %v1432 = vadd.f32 0.0, %v1431
      %v1433 = vpop.f32.mrf.mxu0
      %v1434 = vadd.f32 0.0, %v1433
      %1435 = vmatprep.mubr.bf16.mxu0 0
      %1436 = vmatmul.mubr.bf16.gmra.mxu0 %v930
      %v1437 = vpop.f32.mrf.mxu0
      %v1438 = vadd.f32 0.0, %v1437
      %v1439 = vpop.f32.mrf.mxu0
      %v1440 = vadd.f32 0.0, %v1439
      %v1441 = vpop.f32.mrf.mxu0
      %v1442 = vadd.f32 0.0, %v1441
      %v1443 = vpop.f32.mrf.mxu0
      %v1444 = vadd.f32 0.0, %v1443
      %1445 = vdwg.mxu0
      %v1446 = vmax.f32 %v1368, %v1378
      %v1447 = vmax.f32 %v1372, %v1382
      %v1448 = vmax.f32 %v1446, %v1388
      %v1449 = vmax.f32 %v1447, %v1392
      %v1450 = vmax.f32 %v1448, %v1398
      %v1451 = vmax.f32 %v1449, %v1402
      %v1452 = vmax.f32 %v1450, %v1408
      %v1453 = vmax.f32 %v1451, %v1412
      %v1454 = vmax.f32 %v1452, %v1418
      %v1455 = vmax.f32 %v1453, %v1422
      %v1456 = vmax.f32 %v1454, %v1428
      %v1457 = vmax.f32 %v1455, %v1432
      %v1458 = vmax.f32 %v1456, %v1438
      %v1459 = vmax.f32 %v1457, %v1442
      %v1460 = vmax.f32 %v1458, %v1459
      %v1461 = vrot.slane %v1460, 4
      %v1462 = vmax.f32 %v1460, %v1461
      %v1463 = vrot.slane %v1462, 2
      %v1464 = vmax.f32 %v1462, %v1463
      %v1465 = vrot.slane %v1464, 1
      %v1466 = vmax.f32 %v1464, %v1465
      %v1467 = vmax.f32 %v1370, %v1380
      %v1468 = vmax.f32 %v1374, %v1384
      %v1469 = vmax.f32 %v1467, %v1390
      %v1470 = vmax.f32 %v1468, %v1394
      %v1471 = vmax.f32 %v1469, %v1400
      %v1472 = vmax.f32 %v1470, %v1404
      %v1473 = vmax.f32 %v1471, %v1410
      %v1474 = vmax.f32 %v1472, %v1414
      %v1475 = vmax.f32 %v1473, %v1420
      %v1476 = vmax.f32 %v1474, %v1424
      %v1477 = vmax.f32 %v1475, %v1430
      %v1478 = vmax.f32 %v1476, %v1434
      %v1479 = vmax.f32 %v1477, %v1440
      %v1480 = vmax.f32 %v1478, %v1444
      %v1481 = vmax.f32 %v1479, %v1480
      %v1482 = vrot.slane %v1481, 4
      %v1483 = vmax.f32 %v1481, %v1482
      %v1484 = vrot.slane %v1483, 2
      %v1485 = vmax.f32 %v1483, %v1484
      %v1486 = vrot.slane %v1485, 1
      %v1487 = vmax.f32 %v1485, %v1486
      // Predicated region
      $region69: #{_lambda_.6} parent=59 // pred_check
        %p1488 = pneg %p482
      $region70: #{_lambda_.6} parent=59 // pred_check_branch
        %1490 = sbr.rel (%p1488) target = $region72
      $region71: #{_lambda_.6} parent=59 // pred_region
        %v1493 = vcombine.low %v1466, %v1487
        %v1495 = vunpack.c.l.s4 1966171168
        %v1496 = vunpack.c.0.s8 %v1495
        %v1497 = vlaneseq
        %v1498 = vshrl.u32 %v1497, 7
        %v1499 = vsub.s32 %v1496, %v1498
        %v1500 = vrot.slane %v1493, %v1499
        %v1502 = vunpack.c.l.s4 1966171168
        %v1503 = vunpack.c.0.s8 %v1502
        %v1504 = vlaneseq
        %v1505 = vshrl.u32 %v1504, 7
        %v1506 = vsub.s32 %v1503, %v1505
        %v1507 = vrot.slane %v1500, %v1506
        %v1509 = vlaneseq
        %vm1510 = vcmp.ge.s32.totalorder %v1509, 0
        %vm1511 = vcmp.lt.s32.totalorder %v1509, 256
        %vm1512 = vmand %vm1510, %vm1511
        %1513 = vst.msk [vmem:[%s479 + $0x2] sm:$0x3] %vm1512, %v1507
      $region72: #{_lambda_.6} parent=59 // pred_fallthru
        _
      // Predicated region
      $region73: #{_lambda_.6} parent=59 // pred_check
        %p1514 = pneg %p1208
      $region74: #{_lambda_.6} parent=59 // pred_check_branch
        %1516 = sbr.rel (%p1514) target = $region76
      $region75: #{_lambda_.6} parent=59 // pred_region
        %v1517 = vld [vmem:[%s479 + $0x2] sm:$0x3]
        %v1520 = vcombine.low %v1466, %v1487
        %v1522 = vunpack.c.l.s4 1966171168
        %v1523 = vunpack.c.0.s8 %v1522
        %v1524 = vlaneseq
        %v1525 = vshrl.u32 %v1524, 7
        %v1526 = vsub.s32 %v1523, %v1525
        %v1527 = vrot.slane %v1520, %v1526
        %v1529 = vunpack.c.l.s4 1966171168
        %v1530 = vunpack.c.0.s8 %v1529
        %v1531 = vlaneseq
        %v1532 = vshrl.u32 %v1531, 7
        %v1533 = vsub.s32 %v1530, %v1532
        %v1534 = vrot.slane %v1527, %v1533
        %v1536 = vmax.f32 %v1517, %v1534
        %v1537 = vlaneseq
        %vm1538 = vcmp.ge.s32.totalorder %v1537, 0
        %vm1539 = vcmp.lt.s32.totalorder %v1537, 256
        %vm1540 = vmand %vm1538, %vm1539
        %1541 = vst.msk [vmem:[%s479 + $0x2] sm:$0x3] %vm1540, %v1536
      $region76: #{_lambda_.6} parent=59 // pred_fallthru
        _
      %v1542 = vld [vmem:[%s460 + $0x10] sm:$0xff]
      %v1543 = vld [vmem:[%s460 + $0x30] sm:$0xff]
      %v1544 = vld [vmem:[%s460 + $0x50] sm:$0xff]
      %v1545 = vld [vmem:[%s460 + $0x70] sm:$0xff]
      %v1546 = vld [vmem:[%s460 + $0x90] sm:$0xff]
      %v1547 = vld [vmem:[%s460 + $0xb0] sm:$0xff]
      %v1548 = vld [vmem:[%s460 + $0xd0] sm:$0xff]
      %v1549 = vld [vmem:[%s460 + $0xf0] sm:$0xff]
      %v1550 = vld [vmem:[%s460 + $0x110] sm:$0xff]
      %v1551 = vld [vmem:[%s460 + $0x130] sm:$0xff]
      %v1552 = vld [vmem:[%s460 + $0x150] sm:$0xff]
      %v1553 = vld [vmem:[%s460 + $0x170] sm:$0xff]
      %v1554 = vld [vmem:[%s460 + $0x190] sm:$0xff]
      %v1555 = vld [vmem:[%s460 + $0x1b0] sm:$0xff]
      %v1556 = vld [vmem:[%s460 + $0x1d0] sm:$0xff]
      %v1557 = vld [vmem:[%s460 + $0x1f0] sm:$0xff]
      %v1574 = vunpack.c.l.b16 %v1542
      %v1575 = vunpack.c.h.b16 %v1542
      %v1576 = vunpack.c.l.b16 %v1543
      %v1577 = vunpack.c.h.b16 %v1543
      %v1578 = vunpack.c.l.b16 %v1544
      %v1579 = vunpack.c.h.b16 %v1544
      %v1580 = vunpack.c.l.b16 %v1545
      %v1581 = vunpack.c.h.b16 %v1545
      %v1582 = vunpack.c.l.b16 %v1546
      %v1583 = vunpack.c.h.b16 %v1546
      %v1584 = vunpack.c.l.b16 %v1547
      %v1585 = vunpack.c.h.b16 %v1547
      %v1586 = vunpack.c.l.b16 %v1548
      %v1587 = vunpack.c.h.b16 %v1548
      %v1588 = vunpack.c.l.b16 %v1549
      %v1589 = vunpack.c.h.b16 %v1549
      %v1590 = vunpack.c.l.b16 %v1550
      %v1591 = vunpack.c.h.b16 %v1550
      %v1592 = vunpack.c.l.b16 %v1551
      %v1593 = vunpack.c.h.b16 %v1551
      %v1594 = vunpack.c.l.b16 %v1552
      %v1595 = vunpack.c.h.b16 %v1552
      %v1596 = vunpack.c.l.b16 %v1553
      %v1597 = vunpack.c.h.b16 %v1553
      %v1598 = vunpack.c.l.b16 %v1554
      %v1599 = vunpack.c.h.b16 %v1554
      %v1600 = vunpack.c.l.b16 %v1555
      %v1601 = vunpack.c.h.b16 %v1555
      %v1602 = vunpack.c.l.b16 %v1556
      %v1603 = vunpack.c.h.b16 %v1556
      %v1604 = vunpack.c.l.b16 %v1557
      %v1605 = vunpack.c.h.b16 %v1557
      %v1606 = vpack.c.b16 %v1576, %v1574
      %v1607 = vpack.c.b16 %v1577, %v1575
      %v1608 = vpack.c.b16 %v1580, %v1578
      %v1609 = vpack.c.b16 %v1581, %v1579
      %v1610 = vpack.c.b16 %v1584, %v1582
      %v1611 = vpack.c.b16 %v1585, %v1583
      %v1612 = vpack.c.b16 %v1588, %v1586
      %v1613 = vpack.c.b16 %v1589, %v1587
      %v1614 = vpack.c.b16 %v1592, %v1590
      %v1615 = vpack.c.b16 %v1593, %v1591
      %v1616 = vpack.c.b16 %v1596, %v1594
      %v1617 = vpack.c.b16 %v1597, %v1595
      %v1618 = vpack.c.b16 %v1600, %v1598
      %v1619 = vpack.c.b16 %v1601, %v1599
      %v1620 = vpack.c.b16 %v1604, %v1602
      %v1621 = vpack.c.b16 %v1605, %v1603
      %1638 = vmatprep.subr.bf16.mxu0 %v1621
      %1639 = vmatpush1.bf16.msra.mxu0 %v1620
      %1640 = vmatprep.subr.bf16.mxu0 %v1619
      %1641 = vmatpush1.bf16.msra.mxu0 %v1618
      %1642 = vmatprep.subr.bf16.mxu0 %v1617
      %1643 = vmatpush1.bf16.msra.mxu0 %v1616
      %1644 = vmatprep.subr.bf16.mxu0 %v1615
      %1645 = vmatpush1.bf16.msra.mxu0 %v1614
      %1646 = vmatprep.subr.bf16.mxu0 %v1613
      %1647 = vmatpush1.bf16.msra.mxu0 %v1612
      %1648 = vmatprep.subr.bf16.mxu0 %v1611
      %1649 = vmatpush1.bf16.msra.mxu0 %v1610
      %1650 = vmatprep.subr.bf16.mxu0 %v1609
      %1651 = vmatpush1.bf16.msra.mxu0 %v1608
      %1652 = vmatprep.subr.bf16.mxu0 %v1607
      %1653 = vmatpush1.bf16.msra.mxu0 %v1606
      %1654 = vmatprep.subr.bf16.mxu0 0
      %1655 = vmatpush2.bf16.msra.mxu0 0
      %1656 = vmatprep.subr.bf16.mxu0 0
      %1657 = vmatpush2.bf16.msra.mxu0 0
      %1658 = vmatprep.subr.bf16.mxu0 0
      %1659 = vmatpush2.bf16.msra.mxu0 0
      %1660 = vmatprep.subr.bf16.mxu0 0
      %1661 = vmatpush2.bf16.msra.mxu0 0
      %1662 = vmatprep.subr.bf16.mxu0 0
      %1663 = vmatpush2.bf16.msra.mxu0 0
      %1664 = vmatprep.subr.bf16.mxu0 0
      %1665 = vmatpush2.bf16.msra.mxu0 0
      %1666 = vmatprep.subr.bf16.mxu0 0
      %1667 = vmatpush2.bf16.msra.mxu0 0
      %1668 = vmatprep.subr.bf16.mxu0 0
      %1669 = vmatpush2.bf16.msra.mxu0 0
      %1670 = vmatprep.mubr.bf16.mxu0 0
      %1671 = vmatmul.mubr.bf16.gmra.mxu0 %v923
      %v1672 = vpop.f32.mrf.mxu0
      %v1673 = vadd.f32 0.0, %v1672
      %v1674 = vpop.f32.mrf.mxu0
      %v1675 = vadd.f32 0.0, %v1674
      %v1676 = vpop.f32.mrf.mxu0
      %v1677 = vadd.f32 0.0, %v1676
      %v1678 = vpop.f32.mrf.mxu0
      %v1679 = vadd.f32 0.0, %v1678
      %1680 = vmatprep.mubr.bf16.mxu0 0
      %1681 = vmatmul.mubr.bf16.gmra.mxu0 %v924
      %v1682 = vpop.f32.mrf.mxu0
      %v1683 = vadd.f32 0.0, %v1682
      %v1684 = vpop.f32.mrf.mxu0
      %v1685 = vadd.f32 0.0, %v1684
      %v1686 = vpop.f32.mrf.mxu0
      %v1687 = vadd.f32 0.0, %v1686
      %v1688 = vpop.f32.mrf.mxu0
      %v1689 = vadd.f32 0.0, %v1688
      %1690 = vmatprep.mubr.bf16.mxu0 0
      %1691 = vmatmul.mubr.bf16.gmra.mxu0 %v925
      %v1692 = vpop.f32.mrf.mxu0
      %v1693 = vadd.f32 0.0, %v1692
      %v1694 = vpop.f32.mrf.mxu0
      %v1695 = vadd.f32 0.0, %v1694
      %v1696 = vpop.f32.mrf.mxu0
      %v1697 = vadd.f32 0.0, %v1696
      %v1698 = vpop.f32.mrf.mxu0
      %v1699 = vadd.f32 0.0, %v1698
      %1700 = vmatprep.mubr.bf16.mxu0 0
      %1701 = vmatmul.mubr.bf16.gmra.mxu0 %v926
      %v1702 = vpop.f32.mrf.mxu0
      %v1703 = vadd.f32 0.0, %v1702
      %v1704 = vpop.f32.mrf.mxu0
      %v1705 = vadd.f32 0.0, %v1704
      %v1706 = vpop.f32.mrf.mxu0
      %v1707 = vadd.f32 0.0, %v1706
      %v1708 = vpop.f32.mrf.mxu0
      %v1709 = vadd.f32 0.0, %v1708
      %1710 = vmatprep.mubr.bf16.mxu0 0
      %1711 = vmatmul.mubr.bf16.gmra.mxu0 %v927
      %v1712 = vpop.f32.mrf.mxu0
      %v1713 = vadd.f32 0.0, %v1712
      %v1714 = vpop.f32.mrf.mxu0
      %v1715 = vadd.f32 0.0, %v1714
      %v1716 = vpop.f32.mrf.mxu0
      %v1717 = vadd.f32 0.0, %v1716
      %v1718 = vpop.f32.mrf.mxu0
      %v1719 = vadd.f32 0.0, %v1718
      %1720 = vmatprep.mubr.bf16.mxu0 0
      %1721 = vmatmul.mubr.bf16.gmra.mxu0 %v928
      %v1722 = vpop.f32.mrf.mxu0
      %v1723 = vadd.f32 0.0, %v1722
      %v1724 = vpop.f32.mrf.mxu0
      %v1725 = vadd.f32 0.0, %v1724
      %v1726 = vpop.f32.mrf.mxu0
      %v1727 = vadd.f32 0.0, %v1726
      %v1728 = vpop.f32.mrf.mxu0
      %v1729 = vadd.f32 0.0, %v1728
      %1730 = vmatprep.mubr.bf16.mxu0 0
      %1731 = vmatmul.mubr.bf16.gmra.mxu0 %v929
      %v1732 = vpop.f32.mrf.mxu0
      %v1733 = vadd.f32 0.0, %v1732
      %v1734 = vpop.f32.mrf.mxu0
      %v1735 = vadd.f32 0.0, %v1734
      %v1736 = vpop.f32.mrf.mxu0
      %v1737 = vadd.f32 0.0, %v1736
      %v1738 = vpop.f32.mrf.mxu0
      %v1739 = vadd.f32 0.0, %v1738
      %1740 = vmatprep.mubr.bf16.mxu0 0
      %1741 = vmatmul.mubr.bf16.gmra.mxu0 %v930
      %v1742 = vpop.f32.mrf.mxu0
      %v1743 = vadd.f32 0.0, %v1742
      %v1744 = vpop.f32.mrf.mxu0
      %v1745 = vadd.f32 0.0, %v1744
      %v1746 = vpop.f32.mrf.mxu0
      %v1747 = vadd.f32 0.0, %v1746
      %v1748 = vpop.f32.mrf.mxu0
      %v1749 = vadd.f32 0.0, %v1748
      %1750 = vdwg.mxu0
      %v1751 = vmax.f32 %v1673, %v1683
      %v1752 = vmax.f32 %v1677, %v1687
      %v1753 = vmax.f32 %v1751, %v1693
      %v1754 = vmax.f32 %v1752, %v1697
      %v1755 = vmax.f32 %v1753, %v1703
      %v1756 = vmax.f32 %v1754, %v1707
      %v1757 = vmax.f32 %v1755, %v1713
      %v1758 = vmax.f32 %v1756, %v1717
      %v1759 = vmax.f32 %v1757, %v1723
      %v1760 = vmax.f32 %v1758, %v1727
      %v1761 = vmax.f32 %v1759, %v1733
      %v1762 = vmax.f32 %v1760, %v1737
      %v1763 = vmax.f32 %v1761, %v1743
      %v1764 = vmax.f32 %v1762, %v1747
      %v1765 = vmax.f32 %v1763, %v1764
      %v1766 = vrot.slane %v1765, 4
      %v1767 = vmax.f32 %v1765, %v1766
      %v1768 = vrot.slane %v1767, 2
      %v1769 = vmax.f32 %v1767, %v1768
      %v1770 = vrot.slane %v1769, 1
      %v1771 = vmax.f32 %v1769, %v1770
      %v1772 = vmax.f32 %v1675, %v1685
      %v1773 = vmax.f32 %v1679, %v1689
      %v1774 = vmax.f32 %v1772, %v1695
      %v1775 = vmax.f32 %v1773, %v1699
      %v1776 = vmax.f32 %v1774, %v1705
      %v1777 = vmax.f32 %v1775, %v1709
      %v1778 = vmax.f32 %v1776, %v1715
      %v1779 = vmax.f32 %v1777, %v1719
      %v1780 = vmax.f32 %v1778, %v1725
      %v1781 = vmax.f32 %v1779, %v1729
      %v1782 = vmax.f32 %v1780, %v1735
      %v1783 = vmax.f32 %v1781, %v1739
      %v1784 = vmax.f32 %v1782, %v1745
      %v1785 = vmax.f32 %v1783, %v1749
      %v1786 = vmax.f32 %v1784, %v1785
      %v1787 = vrot.slane %v1786, 4
      %v1788 = vmax.f32 %v1786, %v1787
      %v1789 = vrot.slane %v1788, 2
      %v1790 = vmax.f32 %v1788, %v1789
      %v1791 = vrot.slane %v1790, 1
      %v1792 = vmax.f32 %v1790, %v1791
      // Predicated region
      $region77: #{_lambda_.6} parent=59 // pred_check
        %p1793 = pneg %p482
      $region78: #{_lambda_.6} parent=59 // pred_check_branch
        %1795 = sbr.rel (%p1793) target = $region80
      $region79: #{_lambda_.6} parent=59 // pred_region
        %v1798 = vcombine.low %v1771, %v1792
        %v1800 = vunpack.c.l.s4 1966171168
        %v1801 = vunpack.c.0.s8 %v1800
        %v1802 = vlaneseq
        %v1803 = vshrl.u32 %v1802, 7
        %v1804 = vsub.s32 %v1801, %v1803
        %v1805 = vrot.slane %v1798, %v1804
        %v1807 = vunpack.c.l.s4 1966171168
        %v1808 = vunpack.c.0.s8 %v1807
        %v1809 = vlaneseq
        %v1810 = vshrl.u32 %v1809, 7
        %v1811 = vsub.s32 %v1808, %v1810
        %v1812 = vrot.slane %v1805, %v1811
        %v1814 = vlaneseq
        %vm1815 = vcmp.ge.s32.totalorder %v1814, 0
        %vm1816 = vcmp.lt.s32.totalorder %v1814, 256
        %vm1817 = vmand %vm1815, %vm1816
        %1818 = vst.msk [vmem:[%s479 + $0x4] sm:$0x3] %vm1817, %v1812
      $region80: #{_lambda_.6} parent=59 // pred_fallthru
        _
      // Predicated region
      $region81: #{_lambda_.6} parent=59 // pred_check
        %p1819 = pneg %p1208
      $region82: #{_lambda_.6} parent=59 // pred_check_branch
        %1821 = sbr.rel (%p1819) target = $region84
      $region83: #{_lambda_.6} parent=59 // pred_region
        %v1822 = vld [vmem:[%s479 + $0x4] sm:$0x3]
        %v1825 = vcombine.low %v1771, %v1792
        %v1827 = vunpack.c.l.s4 1966171168
        %v1828 = vunpack.c.0.s8 %v1827
        %v1829 = vlaneseq
        %v1830 = vshrl.u32 %v1829, 7
        %v1831 = vsub.s32 %v1828, %v1830
        %v1832 = vrot.slane %v1825, %v1831
        %v1834 = vunpack.c.l.s4 1966171168
        %v1835 = vunpack.c.0.s8 %v1834
        %v1836 = vlaneseq
        %v1837 = vshrl.u32 %v1836, 7
        %v1838 = vsub.s32 %v1835, %v1837
        %v1839 = vrot.slane %v1832, %v1838
        %v1841 = vmax.f32 %v1822, %v1839
        %v1842 = vlaneseq
        %vm1843 = vcmp.ge.s32.totalorder %v1842, 0
        %vm1844 = vcmp.lt.s32.totalorder %v1842, 256
        %vm1845 = vmand %vm1843, %vm1844
        %1846 = vst.msk [vmem:[%s479 + $0x4] sm:$0x3] %vm1845, %v1841
      $region84: #{_lambda_.6} parent=59 // pred_fallthru
        _
      %v1847 = vld [vmem:[%s460 + $0x18] sm:$0xff]
      %v1848 = vld [vmem:[%s460 + $0x38] sm:$0xff]
      %v1849 = vld [vmem:[%s460 + $0x58] sm:$0xff]
      %v1850 = vld [vmem:[%s460 + $0x78] sm:$0xff]
      %v1851 = vld [vmem:[%s460 + $0x98] sm:$0xff]
      %v1852 = vld [vmem:[%s460 + $0xb8] sm:$0xff]
      %v1853 = vld [vmem:[%s460 + $0xd8] sm:$0xff]
      %v1854 = vld [vmem:[%s460 + $0xf8] sm:$0xff]
      %v1855 = vld [vmem:[%s460 + $0x118] sm:$0xff]
      %v1856 = vld [vmem:[%s460 + $0x138] sm:$0xff]
      %v1857 = vld [vmem:[%s460 + $0x158] sm:$0xff]
      %v1858 = vld [vmem:[%s460 + $0x178] sm:$0xff]
      %v1859 = vld [vmem:[%s460 + $0x198] sm:$0xff]
      %v1860 = vld [vmem:[%s460 + $0x1b8] sm:$0xff]
      %v1861 = vld [vmem:[%s460 + $0x1d8] sm:$0xff]
      %v1862 = vld [vmem:[%s460 + $0x1f8] sm:$0xff]
      %v1879 = vunpack.c.l.b16 %v1847
      %v1880 = vunpack.c.h.b16 %v1847
      %v1881 = vunpack.c.l.b16 %v1848
      %v1882 = vunpack.c.h.b16 %v1848
      %v1883 = vunpack.c.l.b16 %v1849
      %v1884 = vunpack.c.h.b16 %v1849
      %v1885 = vunpack.c.l.b16 %v1850
      %v1886 = vunpack.c.h.b16 %v1850
      %v1887 = vunpack.c.l.b16 %v1851
      %v1888 = vunpack.c.h.b16 %v1851
      %v1889 = vunpack.c.l.b16 %v1852
      %v1890 = vunpack.c.h.b16 %v1852
      %v1891 = vunpack.c.l.b16 %v1853
      %v1892 = vunpack.c.h.b16 %v1853
      %v1893 = vunpack.c.l.b16 %v1854
      %v1894 = vunpack.c.h.b16 %v1854
      %v1895 = vunpack.c.l.b16 %v1855
      %v1896 = vunpack.c.h.b16 %v1855
      %v1897 = vunpack.c.l.b16 %v1856
      %v1898 = vunpack.c.h.b16 %v1856
      %v1899 = vunpack.c.l.b16 %v1857
      %v1900 = vunpack.c.h.b16 %v1857
      %v1901 = vunpack.c.l.b16 %v1858
      %v1902 = vunpack.c.h.b16 %v1858
      %v1903 = vunpack.c.l.b16 %v1859
      %v1904 = vunpack.c.h.b16 %v1859
      %v1905 = vunpack.c.l.b16 %v1860
      %v1906 = vunpack.c.h.b16 %v1860
      %v1907 = vunpack.c.l.b16 %v1861
      %v1908 = vunpack.c.h.b16 %v1861
      %v1909 = vunpack.c.l.b16 %v1862
      %v1910 = vunpack.c.h.b16 %v1862
      %v1911 = vpack.c.b16 %v1881, %v1879
      %v1912 = vpack.c.b16 %v1882, %v1880
      %v1913 = vpack.c.b16 %v1885, %v1883
      %v1914 = vpack.c.b16 %v1886, %v1884
      %v1915 = vpack.c.b16 %v1889, %v1887
      %v1916 = vpack.c.b16 %v1890, %v1888
      %v1917 = vpack.c.b16 %v1893, %v1891
      %v1918 = vpack.c.b16 %v1894, %v1892
      %v1919 = vpack.c.b16 %v1897, %v1895
      %v1920 = vpack.c.b16 %v1898, %v1896
      %v1921 = vpack.c.b16 %v1901, %v1899
      %v1922 = vpack.c.b16 %v1902, %v1900
      %v1923 = vpack.c.b16 %v1905, %v1903
      %v1924 = vpack.c.b16 %v1906, %v1904
      %v1925 = vpack.c.b16 %v1909, %v1907
      %v1926 = vpack.c.b16 %v1910, %v1908
      %1943 = vmatprep.subr.bf16.mxu0 %v1926
      %1944 = vmatpush1.bf16.msra.mxu0 %v1925
      %1945 = vmatprep.subr.bf16.mxu0 %v1924
      %1946 = vmatpush1.bf16.msra.mxu0 %v1923
      %1947 = vmatprep.subr.bf16.mxu0 %v1922
      %1948 = vmatpush1.bf16.msra.mxu0 %v1921
      %1949 = vmatprep.subr.bf16.mxu0 %v1920
      %1950 = vmatpush1.bf16.msra.mxu0 %v1919
      %1951 = vmatprep.subr.bf16.mxu0 %v1918
      %1952 = vmatpush1.bf16.msra.mxu0 %v1917
      %1953 = vmatprep.subr.bf16.mxu0 %v1916
      %1954 = vmatpush1.bf16.msra.mxu0 %v1915
      %1955 = vmatprep.subr.bf16.mxu0 %v1914
      %1956 = vmatpush1.bf16.msra.mxu0 %v1913
      %1957 = vmatprep.subr.bf16.mxu0 %v1912
      %1958 = vmatpush1.bf16.msra.mxu0 %v1911
      %1959 = vmatprep.subr.bf16.mxu0 0
      %1960 = vmatpush2.bf16.msra.mxu0 0
      %1961 = vmatprep.subr.bf16.mxu0 0
      %1962 = vmatpush2.bf16.msra.mxu0 0
      %1963 = vmatprep.subr.bf16.mxu0 0
      %1964 = vmatpush2.bf16.msra.mxu0 0
      %1965 = vmatprep.subr.bf16.mxu0 0
      %1966 = vmatpush2.bf16.msra.mxu0 0
      %1967 = vmatprep.subr.bf16.mxu0 0
      %1968 = vmatpush2.bf16.msra.mxu0 0
      %1969 = vmatprep.subr.bf16.mxu0 0
      %1970 = vmatpush2.bf16.msra.mxu0 0
      %1971 = vmatprep.subr.bf16.mxu0 0
      %1972 = vmatpush2.bf16.msra.mxu0 0
      %1973 = vmatprep.subr.bf16.mxu0 0
      %1974 = vmatpush2.bf16.msra.mxu0 0
      %1975 = vmatprep.mubr.bf16.mxu0 0
      %1976 = vmatmul.mubr.bf16.gmra.mxu0 %v923
      %v1977 = vpop.f32.mrf.mxu0
      %v1978 = vadd.f32 0.0, %v1977
      %v1979 = vpop.f32.mrf.mxu0
      %v1980 = vadd.f32 0.0, %v1979
      %v1981 = vpop.f32.mrf.mxu0
      %v1982 = vadd.f32 0.0, %v1981
      %v1983 = vpop.f32.mrf.mxu0
      %v1984 = vadd.f32 0.0, %v1983
      %1985 = vmatprep.mubr.bf16.mxu0 0
      %1986 = vmatmul.mubr.bf16.gmra.mxu0 %v924
      %v1987 = vpop.f32.mrf.mxu0
      %v1988 = vadd.f32 0.0, %v1987
      %v1989 = vpop.f32.mrf.mxu0
      %v1990 = vadd.f32 0.0, %v1989
      %v1991 = vpop.f32.mrf.mxu0
      %v1992 = vadd.f32 0.0, %v1991
      %v1993 = vpop.f32.mrf.mxu0
      %v1994 = vadd.f32 0.0, %v1993
      %1995 = vmatprep.mubr.bf16.mxu0 0
      %1996 = vmatmul.mubr.bf16.gmra.mxu0 %v925
      %v1997 = vpop.f32.mrf.mxu0
      %v1998 = vadd.f32 0.0, %v1997
      %v1999 = vpop.f32.mrf.mxu0
      %v2000 = vadd.f32 0.0, %v1999
      %v2001 = vpop.f32.mrf.mxu0
      %v2002 = vadd.f32 0.0, %v2001
      %v2003 = vpop.f32.mrf.mxu0
      %v2004 = vadd.f32 0.0, %v2003
      %2005 = vmatprep.mubr.bf16.mxu0 0
      %2006 = vmatmul.mubr.bf16.gmra.mxu0 %v926
      %v2007 = vpop.f32.mrf.mxu0
      %v2008 = vadd.f32 0.0, %v2007
      %v2009 = vpop.f32.mrf.mxu0
      %v2010 = vadd.f32 0.0, %v2009
      %v2011 = vpop.f32.mrf.mxu0
      %v2012 = vadd.f32 0.0, %v2011
      %v2013 = vpop.f32.mrf.mxu0
      %v2014 = vadd.f32 0.0, %v2013
      %2015 = vmatprep.mubr.bf16.mxu0 0
      %2016 = vmatmul.mubr.bf16.gmra.mxu0 %v927
      %v2017 = vpop.f32.mrf.mxu0
      %v2018 = vadd.f32 0.0, %v2017
      %v2019 = vpop.f32.mrf.mxu0
      %v2020 = vadd.f32 0.0, %v2019
      %v2021 = vpop.f32.mrf.mxu0
      %v2022 = vadd.f32 0.0, %v2021
      %v2023 = vpop.f32.mrf.mxu0
      %v2024 = vadd.f32 0.0, %v2023
      %2025 = vmatprep.mubr.bf16.mxu0 0
      %2026 = vmatmul.mubr.bf16.gmra.mxu0 %v928
      %v2027 = vpop.f32.mrf.mxu0
      %v2028 = vadd.f32 0.0, %v2027
      %v2029 = vpop.f32.mrf.mxu0
      %v2030 = vadd.f32 0.0, %v2029
      %v2031 = vpop.f32.mrf.mxu0
      %v2032 = vadd.f32 0.0, %v2031
      %v2033 = vpop.f32.mrf.mxu0
      %v2034 = vadd.f32 0.0, %v2033
      %2035 = vmatprep.mubr.bf16.mxu0 0
      %2036 = vmatmul.mubr.bf16.gmra.mxu0 %v929
      %v2037 = vpop.f32.mrf.mxu0
      %v2038 = vadd.f32 0.0, %v2037
      %v2039 = vpop.f32.mrf.mxu0
      %v2040 = vadd.f32 0.0, %v2039
      %v2041 = vpop.f32.mrf.mxu0
      %v2042 = vadd.f32 0.0, %v2041
      %v2043 = vpop.f32.mrf.mxu0
      %v2044 = vadd.f32 0.0, %v2043
      %2045 = vmatprep.mubr.bf16.mxu0 0
      %2046 = vmatmul.mubr.bf16.gmra.mxu0 %v930
      %v2047 = vpop.f32.mrf.mxu0
      %v2048 = vadd.f32 0.0, %v2047
      %v2049 = vpop.f32.mrf.mxu0
      %v2050 = vadd.f32 0.0, %v2049
      %v2051 = vpop.f32.mrf.mxu0
      %v2052 = vadd.f32 0.0, %v2051
      %v2053 = vpop.f32.mrf.mxu0
      %v2054 = vadd.f32 0.0, %v2053
      %2055 = vdwg.mxu0
      %v2056 = vmax.f32 %v1978, %v1988
      %v2057 = vmax.f32 %v1982, %v1992
      %v2058 = vmax.f32 %v2056, %v1998
      %v2059 = vmax.f32 %v2057, %v2002
      %v2060 = vmax.f32 %v2058, %v2008
      %v2061 = vmax.f32 %v2059, %v2012
      %v2062 = vmax.f32 %v2060, %v2018
      %v2063 = vmax.f32 %v2061, %v2022
      %v2064 = vmax.f32 %v2062, %v2028
      %v2065 = vmax.f32 %v2063, %v2032
      %v2066 = vmax.f32 %v2064, %v2038
      %v2067 = vmax.f32 %v2065, %v2042
      %v2068 = vmax.f32 %v2066, %v2048
      %v2069 = vmax.f32 %v2067, %v2052
      %v2070 = vmax.f32 %v2068, %v2069
      %v2071 = vrot.slane %v2070, 4
      %v2072 = vmax.f32 %v2070, %v2071
      %v2073 = vrot.slane %v2072, 2
      %v2074 = vmax.f32 %v2072, %v2073
      %v2075 = vrot.slane %v2074, 1
      %v2076 = vmax.f32 %v2074, %v2075
      %v2077 = vmax.f32 %v1980, %v1990
      %v2078 = vmax.f32 %v1984, %v1994
      %v2079 = vmax.f32 %v2077, %v2000
      %v2080 = vmax.f32 %v2078, %v2004
      %v2081 = vmax.f32 %v2079, %v2010
      %v2082 = vmax.f32 %v2080, %v2014
      %v2083 = vmax.f32 %v2081, %v2020
      %v2084 = vmax.f32 %v2082, %v2024
      %v2085 = vmax.f32 %v2083, %v2030
      %v2086 = vmax.f32 %v2084, %v2034
      %v2087 = vmax.f32 %v2085, %v2040
      %v2088 = vmax.f32 %v2086, %v2044
      %v2089 = vmax.f32 %v2087, %v2050
      %v2090 = vmax.f32 %v2088, %v2054
      %v2091 = vmax.f32 %v2089, %v2090
      %v2092 = vrot.slane %v2091, 4
      %v2093 = vmax.f32 %v2091, %v2092
      %v2094 = vrot.slane %v2093, 2
      %v2095 = vmax.f32 %v2093, %v2094
      %v2096 = vrot.slane %v2095, 1
      %v2097 = vmax.f32 %v2095, %v2096
      // Predicated region
      $region85: #{_lambda_.6} parent=59 // pred_check
        %p2098 = pneg %p482
      $region86: #{_lambda_.6} parent=59 // pred_check_branch
        %2100 = sbr.rel (%p2098) target = $region88
      $region87: #{_lambda_.6} parent=59 // pred_region
        %v2103 = vcombine.low %v2076, %v2097
        %v2105 = vunpack.c.l.s4 1966171168
        %v2106 = vunpack.c.0.s8 %v2105
        %v2107 = vlaneseq
        %v2108 = vshrl.u32 %v2107, 7
        %v2109 = vsub.s32 %v2106, %v2108
        %v2110 = vrot.slane %v2103, %v2109
        %v2112 = vunpack.c.l.s4 1966171168
        %v2113 = vunpack.c.0.s8 %v2112
        %v2114 = vlaneseq
        %v2115 = vshrl.u32 %v2114, 7
        %v2116 = vsub.s32 %v2113, %v2115
        %v2117 = vrot.slane %v2110, %v2116
        %v2119 = vlaneseq
        %vm2120 = vcmp.ge.s32.totalorder %v2119, 0
        %vm2121 = vcmp.lt.s32.totalorder %v2119, 256
        %vm2122 = vmand %vm2120, %vm2121
        %2123 = vst.msk [vmem:[%s479 + $0x6] sm:$0x3] %vm2122, %v2117
      $region88: #{_lambda_.6} parent=59 // pred_fallthru
        _
      // Predicated region
      $region89: #{_lambda_.6} parent=59 // pred_check
        %p2124 = pneg %p1208
      $region90: #{_lambda_.6} parent=59 // pred_check_branch
        %2126 = sbr.rel (%p2124) target = $region92
      $region91: #{_lambda_.6} parent=59 // pred_region
        %v2127 = vld [vmem:[%s479 + $0x6] sm:$0x3]
        %v2130 = vcombine.low %v2076, %v2097
        %v2132 = vunpack.c.l.s4 1966171168
        %v2133 = vunpack.c.0.s8 %v2132
        %v2134 = vlaneseq
        %v2135 = vshrl.u32 %v2134, 7
        %v2136 = vsub.s32 %v2133, %v2135
        %v2137 = vrot.slane %v2130, %v2136
        %v2139 = vunpack.c.l.s4 1966171168
        %v2140 = vunpack.c.0.s8 %v2139
        %v2141 = vlaneseq
        %v2142 = vshrl.u32 %v2141, 7
        %v2143 = vsub.s32 %v2140, %v2142
        %v2144 = vrot.slane %v2137, %v2143
        %v2146 = vmax.f32 %v2127, %v2144
        %v2147 = vlaneseq
        %vm2148 = vcmp.ge.s32.totalorder %v2147, 0
        %vm2149 = vcmp.lt.s32.totalorder %v2147, 256
        %vm2150 = vmand %vm2148, %vm2149
        %2151 = vst.msk [vmem:[%s479 + $0x6] sm:$0x3] %vm2150, %v2146
      $region92: #{_lambda_.6} parent=59 // pred_fallthru
        _
      // Predicated region
      $region93: #{_lambda_.6} parent=59 // pred_check
        %p2152 = pneg %p482
      $region94: #{_lambda_.6} parent=59 // pred_check_branch
        %2154 = sbr.rel (%p2152) target = $region96
      $region95: #{_lambda_.6} parent=59 // pred_region
        %v2155 = vld [vmem:[%s479] sm:$0xff]
        %v2156 = vld [vmem:[%s465] sm:$0xff]
        %v2157 = vmul.f32 %v2155, %v2156
        %v2158 = vld [vmem:[%s470] sm:$0xff]
        %v2159 = vadd.f32 %v2157, %v2158
        %2160 = vst [vmem:[%s479] sm:$0xff] %v2159
      $region96: #{_lambda_.6} parent=59 // pred_fallthru
        _
      %s2161 = smul.u32 8, %s27
      %p2162 = scmp.lt.s32.totalorder %s26, 1
      %s2163 = scalar_select %p2162, %s26, 1
      %p2164 = scmp.lt.s32.totalorder %s2161, 7
      %s2165 = scalar_select %p2164, %s2161, 7
      %s2166 = smul.addr %s2163, 8
      %s2167 = sadd.s32 %s2165, %s2166
      %s2168 = scalar_lea.vmem %s10, %s2167
      // Predicated region
      $region97: #{_lambda_.6} parent=59 // pred_check
        %p2169 = pneg %p297
      $region98: #{_lambda_.6} parent=59 // pred_check_branch
        %2171 = sbr.rel (%p2169) target = $region100
      $region99: #{_lambda_.6} parent=59 // pred_region
        %s2172 = smul.u32 8, %s27
      $region100: #{_lambda_.6} parent=59 // pred_fallthru
        _
    $region60: #{_lambda_.6} parent=5 // pred_fallthru
      _
    %p2173 = scmp.le.s32.totalorder 2, %s16
    // Predicated region
    $region101: #{_lambda_.6} parent=5 // pred_check
      %p2174 = pneg %p2173
    $region102: #{_lambda_.6} parent=5 // pred_check_branch
      %2176 = sbr.rel (%p2174) target = $region104
    $region103: #{_lambda_.6} parent=5 // pred_region
      %s2177 = ssub.s32 %s16, 2
      // Predicated region
      $region105: #{_lambda_.6} parent=103 // pred_check
        %p2178 = pneg %p303
      $region106: #{_lambda_.6} parent=103 // pred_check_branch
        %2180 = sbr.rel (%p2178) target = $region108
      $region107: #{_lambda_.6} parent=103 // pred_region
        %s2181 = smul.u32 8, %s30
        %p2182 = scmp.lt.s32.totalorder %s29, 1
        %s2183 = scalar_select %p2182, %s29, 1
        %p2184 = scmp.lt.s32.totalorder %s2181, 7
        %s2185 = scalar_select %p2184, %s2181, 7
        %s2186 = smul.addr %s2183, 8
        %s2187 = sadd.s32 %s2185, %s2186
        %s2188 = scalar_lea.vmem %s10, %s2187
      $region108: #{_lambda_.6} parent=103 // pred_fallthru
        _
    $region104: #{_lambda_.6} parent=5 // pred_fallthru
      _
  $region6: #{_lambda_.6} parent=0 // loop_footer
    %s20 = sadd.s32 1, %s16
  $region7: #{_lambda_.6} parent=0 // loop_footer_branch
    %15 = sbr.rel target = $region3
  $region8: #{_lambda_.6} parent=0 // loop_exit
    _

// kernel: _lambda_.7
$region0: #{_lambda_.7}
  #allocation0 [shape = 'u32[]', space=smem, size = 0x4, offset = 0x4, fixed_abs, tag = 'smem constant byte address 0x4 - core index']
  #allocation1 [shape = 'u32[144,128]{1,0:T(1,128)}', space=vmem, size = 0x12000, scoped, tag = 'internal scratch']
  %s0 = inlined_call_operand.vmem [shape: f32[2,1024], index: 0, kind: input, shape index: {}]
  %s1 = inlined_call_operand.vmem [shape: bf16[1024,512], index: 1, kind: input, shape index: {}]
  %s2 = inlined_call_operand.vmem [shape: f32[1,512], index: 2, kind: input, shape index: {}]
  %s3 = inlined_call_operand.vmem [shape: f32[1,512], index: 3, kind: input, shape index: {}]
  %s4 = inlined_call_operand.vmem [shape: bf16[512,256], index: 4, kind: input, shape index: {}]
  %s5 = inlined_call_operand.vmem [shape: f32[1,256], index: 5, kind: input, shape index: {}]
  %s6 = inlined_call_operand.vmem [shape: f32[1,256], index: 6, kind: input, shape index: {}]
  %s7 = inlined_call_operand.vmem [shape: bf16[256,2], index: 7, kind: input, shape index: {}]
  %s8 = inlined_call_operand.vmem [shape: f32[1,2], index: 8, kind: input, shape index: {}]
  %s9 = inlined_call_operand.hbm [shape: f32[2,2], index: 9, kind: output, shape index: {}]
  %s10 = sld [smem:[#allocation0]]
  $region46: #{_lambda_.7} parent=0
    _
  %s12 = ssub.s32 1, %s10
  %s13 = scalar_select 0, %s12, %s10
  $region1: #{_lambda_.7} parent=0
    #allocation2 [shape = 'u8[1024]{0}', space=vmem, size = 0x400, scoped, tag = 'output window, operand 0, single buffered']
    #allocation3 [shape = 's32[1]{0}', space=sflag, size = 0x4, scoped, tag = 'scoped memory for _lambda_.7']
    %14 = vsyncpa [#allocation3], 0
    // Predicated region
    $region2: #{_lambda_.7} parent=1 // pred_check
      _
    $region3: #{_lambda_.7} parent=1 // pred_check_branch
      %16 = sbr.rel (0) target = $region5
    $region4: #{_lambda_.7} parent=1 // pred_region
      _
    $region5: #{_lambda_.7} parent=1 // pred_fallthru
      _
    // Predicated region
    $region6: #{_lambda_.7} parent=1 // pred_check
      _
    $region7: #{_lambda_.7} parent=1 // pred_check_branch
      %18 = sbr.rel (0) target = $region9
    $region8: #{_lambda_.7} parent=1 // pred_region
      _
    $region9: #{_lambda_.7} parent=1 // pred_fallthru
      _
    // Predicated region
    $region10: #{_lambda_.7} parent=1 // pred_check
      _
    $region11: #{_lambda_.7} parent=1 // pred_check_branch
      %20 = sbr.rel (0) target = $region13
    $region12: #{_lambda_.7} parent=1 // pred_region
      _
    $region13: #{_lambda_.7} parent=1 // pred_fallthru
      _
    // Predicated region
    $region14: #{_lambda_.7} parent=1 // pred_check
      _
    $region15: #{_lambda_.7} parent=1 // pred_check_branch
      %22 = sbr.rel (0) target = $region17
    $region16: #{_lambda_.7} parent=1 // pred_region
      _
    $region17: #{_lambda_.7} parent=1 // pred_fallthru
      _
    // Predicated region
    $region18: #{_lambda_.7} parent=1 // pred_check
      _
    $region19: #{_lambda_.7} parent=1 // pred_check_branch
      %24 = sbr.rel (0) target = $region21
    $region20: #{_lambda_.7} parent=1 // pred_region
      _
    $region21: #{_lambda_.7} parent=1 // pred_fallthru
      _
    // Predicated region
    $region22: #{_lambda_.7} parent=1 // pred_check
      _
    $region23: #{_lambda_.7} parent=1 // pred_check_branch
      %26 = sbr.rel (0) target = $region25
    $region24: #{_lambda_.7} parent=1 // pred_region
      _
    $region25: #{_lambda_.7} parent=1 // pred_fallthru
      _
    // Predicated region
    $region26: #{_lambda_.7} parent=1 // pred_check
      _
    $region27: #{_lambda_.7} parent=1 // pred_check_branch
      %28 = sbr.rel (0) target = $region29
    $region28: #{_lambda_.7} parent=1 // pred_region
      _
    $region29: #{_lambda_.7} parent=1 // pred_fallthru
      _
    // Predicated region
    $region30: #{_lambda_.7} parent=1 // pred_check
      _
    $region31: #{_lambda_.7} parent=1 // pred_check_branch
      %30 = sbr.rel (0) target = $region33
    $region32: #{_lambda_.7} parent=1 // pred_region
      _
    $region33: #{_lambda_.7} parent=1 // pred_fallthru
      _
    // Predicated region
    $region34: #{_lambda_.7} parent=1 // pred_check
      _
    $region35: #{_lambda_.7} parent=1 // pred_check_branch
      %32 = sbr.rel (0) target = $region37
    $region36: #{_lambda_.7} parent=1 // pred_region
      _
    $region37: #{_lambda_.7} parent=1 // pred_fallthru
      _
    %v34 = vld [vmem:[%s0] sm:$0xff]
    %v35 = vld [vmem:[%s0 + $0x8] sm:$0xff]
    %v38 = vcombine.high %v34, %v34
    %v40 = vunpack.c.l.s4 1983009808
    %v41 = vunpack.c.0.s8 %v40
    %v42 = vlaneseq
    %v43 = vshrl.u32 %v42, 7
    %v44 = vsub.s32 %v41, %v43
    %v45 = vrot.slane %v34, %v44
    %v47 = vunpack.c.l.s4 1983009808
    %v48 = vunpack.c.0.s8 %v47
    %v49 = vlaneseq
    %v50 = vshrl.u32 %v49, 7
    %v51 = vsub.s32 %v48, %v50
    %v52 = vrot.slane %v38, %v51
    %v53 = vcombine.high %v45, %v45
    %v54 = vcombine.high %v52, %v52
    %v55 = vcombine.high %v35, %v35
    %v57 = vunpack.c.l.s4 1983009808
    %v58 = vunpack.c.0.s8 %v57
    %v59 = vlaneseq
    %v60 = vshrl.u32 %v59, 7
    %v61 = vsub.s32 %v58, %v60
    %v62 = vrot.slane %v35, %v61
    %v64 = vunpack.c.l.s4 1983009808
    %v65 = vunpack.c.0.s8 %v64
    %v66 = vlaneseq
    %v67 = vshrl.u32 %v66, 7
    %v68 = vsub.s32 %v65, %v67
    %v69 = vrot.slane %v55, %v68
    %v70 = vcombine.high %v62, %v62
    %v71 = vcombine.high %v69, %v69
    %v80 = vpack.c.bf16 %v45, %v45
    %v81 = vpack.c.bf16 %v53, %v53
    %v82 = vpack.c.bf16 %v52, %v52
    %v83 = vpack.c.bf16 %v54, %v54
    %v84 = vpack.c.bf16 %v62, %v62
    %v85 = vpack.c.bf16 %v70, %v70
    %v86 = vpack.c.bf16 %v69, %v69
    %v87 = vpack.c.bf16 %v71, %v71
    %v88 = vld [vmem:[%s1] sm:$0xff]
    %v89 = vld [vmem:[%s1 + $0x8] sm:$0xff]
    %v90 = vld [vmem:[%s1 + $0x10] sm:$0xff]
    %v91 = vld [vmem:[%s1 + $0x18] sm:$0xff]
    %v92 = vld [vmem:[%s1 + $0x20] sm:$0xff]
    %v93 = vld [vmem:[%s1 + $0x28] sm:$0xff]
    %v94 = vld [vmem:[%s1 + $0x30] sm:$0xff]
    %v95 = vld [vmem:[%s1 + $0x38] sm:$0xff]
    %v96 = vld [vmem:[%s1 + $0x40] sm:$0xff]
    %v97 = vld [vmem:[%s1 + $0x48] sm:$0xff]
    %v98 = vld [vmem:[%s1 + $0x50] sm:$0xff]
    %v99 = vld [vmem:[%s1 + $0x58] sm:$0xff]
    %v100 = vld [vmem:[%s1 + $0x60] sm:$0xff]
    %v101 = vld [vmem:[%s1 + $0x68] sm:$0xff]
    %v102 = vld [vmem:[%s1 + $0x70] sm:$0xff]
    %v103 = vld [vmem:[%s1 + $0x78] sm:$0xff]
    %v104 = vld [vmem:[%s1 + $0x80] sm:$0xff]
    %v105 = vld [vmem:[%s1 + $0x88] sm:$0xff]
    %v106 = vld [vmem:[%s1 + $0x90] sm:$0xff]
    %v107 = vld [vmem:[%s1 + $0x98] sm:$0xff]
    %v108 = vld [vmem:[%s1 + $0xa0] sm:$0xff]
    %v109 = vld [vmem:[%s1 + $0xa8] sm:$0xff]
    %v110 = vld [vmem:[%s1 + $0xb0] sm:$0xff]
    %v111 = vld [vmem:[%s1 + $0xb8] sm:$0xff]
    %v112 = vld [vmem:[%s1 + $0xc0] sm:$0xff]
    %v113 = vld [vmem:[%s1 + $0xc8] sm:$0xff]
    %v114 = vld [vmem:[%s1 + $0xd0] sm:$0xff]
    %v115 = vld [vmem:[%s1 + $0xd8] sm:$0xff]
    %v116 = vld [vmem:[%s1 + $0xe0] sm:$0xff]
    %v117 = vld [vmem:[%s1 + $0xe8] sm:$0xff]
    %v118 = vld [vmem:[%s1 + $0xf0] sm:$0xff]
    %v119 = vld [vmem:[%s1 + $0xf8] sm:$0xff]
    %v120 = vld [vmem:[%s1 + $0x100] sm:$0xff]
    %v121 = vld [vmem:[%s1 + $0x108] sm:$0xff]
    %v122 = vld [vmem:[%s1 + $0x110] sm:$0xff]
    %v123 = vld [vmem:[%s1 + $0x118] sm:$0xff]
    %v124 = vld [vmem:[%s1 + $0x120] sm:$0xff]
    %v125 = vld [vmem:[%s1 + $0x128] sm:$0xff]
    %v126 = vld [vmem:[%s1 + $0x130] sm:$0xff]
    %v127 = vld [vmem:[%s1 + $0x138] sm:$0xff]
    %v128 = vld [vmem:[%s1 + $0x140] sm:$0xff]
    %v129 = vld [vmem:[%s1 + $0x148] sm:$0xff]
    %v130 = vld [vmem:[%s1 + $0x150] sm:$0xff]
    %v131 = vld [vmem:[%s1 + $0x158] sm:$0xff]
    %v132 = vld [vmem:[%s1 + $0x160] sm:$0xff]
    %v133 = vld [vmem:[%s1 + $0x168] sm:$0xff]
    %v134 = vld [vmem:[%s1 + $0x170] sm:$0xff]
    %v135 = vld [vmem:[%s1 + $0x178] sm:$0xff]
    %v136 = vld [vmem:[%s1 + $0x180] sm:$0xff]
    %v137 = vld [vmem:[%s1 + $0x188] sm:$0xff]
    %v138 = vld [vmem:[%s1 + $0x190] sm:$0xff]
    %v139 = vld [vmem:[%s1 + $0x198] sm:$0xff]
    %v140 = vld [vmem:[%s1 + $0x1a0] sm:$0xff]
    %v141 = vld [vmem:[%s1 + $0x1a8] sm:$0xff]
    %v142 = vld [vmem:[%s1 + $0x1b0] sm:$0xff]
    %v143 = vld [vmem:[%s1 + $0x1b8] sm:$0xff]
    %v144 = vld [vmem:[%s1 + $0x1c0] sm:$0xff]
    %v145 = vld [vmem:[%s1 + $0x1c8] sm:$0xff]
    %v146 = vld [vmem:[%s1 + $0x1d0] sm:$0xff]
    %v147 = vld [vmem:[%s1 + $0x1d8] sm:$0xff]
    %v148 = vld [vmem:[%s1 + $0x1e0] sm:$0xff]
    %v149 = vld [vmem:[%s1 + $0x1e8] sm:$0xff]
    %v150 = vld [vmem:[%s1 + $0x1f0] sm:$0xff]
    %v151 = vld [vmem:[%s1 + $0x1f8] sm:$0xff]
    %v152 = vld [vmem:[%s1 + $0x200] sm:$0xff]
    %v153 = vld [vmem:[%s1 + $0x208] sm:$0xff]
    %v154 = vld [vmem:[%s1 + $0x210] sm:$0xff]
    %v155 = vld [vmem:[%s1 + $0x218] sm:$0xff]
    %v156 = vld [vmem:[%s1 + $0x220] sm:$0xff]
    %v157 = vld [vmem:[%s1 + $0x228] sm:$0xff]
    %v158 = vld [vmem:[%s1 + $0x230] sm:$0xff]
    %v159 = vld [vmem:[%s1 + $0x238] sm:$0xff]
    %v160 = vld [vmem:[%s1 + $0x240] sm:$0xff]
    %v161 = vld [vmem:[%s1 + $0x248] sm:$0xff]
    %v162 = vld [vmem:[%s1 + $0x250] sm:$0xff]
    %v163 = vld [vmem:[%s1 + $0x258] sm:$0xff]
    %v164 = vld [vmem:[%s1 + $0x260] sm:$0xff]
    %v165 = vld [vmem:[%s1 + $0x268] sm:$0xff]
    %v166 = vld [vmem:[%s1 + $0x270] sm:$0xff]
    %v167 = vld [vmem:[%s1 + $0x278] sm:$0xff]
    %v168 = vld [vmem:[%s1 + $0x280] sm:$0xff]
    %v169 = vld [vmem:[%s1 + $0x288] sm:$0xff]
    %v170 = vld [vmem:[%s1 + $0x290] sm:$0xff]
    %v171 = vld [vmem:[%s1 + $0x298] sm:$0xff]
    %v172 = vld [vmem:[%s1 + $0x2a0] sm:$0xff]
    %v173 = vld [vmem:[%s1 + $0x2a8] sm:$0xff]
    %v174 = vld [vmem:[%s1 + $0x2b0] sm:$0xff]
    %v175 = vld [vmem:[%s1 + $0x2b8] sm:$0xff]
    %v176 = vld [vmem:[%s1 + $0x2c0] sm:$0xff]
    %v177 = vld [vmem:[%s1 + $0x2c8] sm:$0xff]
    %v178 = vld [vmem:[%s1 + $0x2d0] sm:$0xff]
    %v179 = vld [vmem:[%s1 + $0x2d8] sm:$0xff]
    %v180 = vld [vmem:[%s1 + $0x2e0] sm:$0xff]
    %v181 = vld [vmem:[%s1 + $0x2e8] sm:$0xff]
    %v182 = vld [vmem:[%s1 + $0x2f0] sm:$0xff]
    %v183 = vld [vmem:[%s1 + $0x2f8] sm:$0xff]
    %v184 = vld [vmem:[%s1 + $0x300] sm:$0xff]
    %v185 = vld [vmem:[%s1 + $0x308] sm:$0xff]
    %v186 = vld [vmem:[%s1 + $0x310] sm:$0xff]
    %v187 = vld [vmem:[%s1 + $0x318] sm:$0xff]
    %v188 = vld [vmem:[%s1 + $0x320] sm:$0xff]
    %v189 = vld [vmem:[%s1 + $0x328] sm:$0xff]
    %v190 = vld [vmem:[%s1 + $0x330] sm:$0xff]
    %v191 = vld [vmem:[%s1 + $0x338] sm:$0xff]
    %v192 = vld [vmem:[%s1 + $0x340] sm:$0xff]
    %v193 = vld [vmem:[%s1 + $0x348] sm:$0xff]
    %v194 = vld [vmem:[%s1 + $0x350] sm:$0xff]
    %v195 = vld [vmem:[%s1 + $0x358] sm:$0xff]
    %v196 = vld [vmem:[%s1 + $0x360] sm:$0xff]
    %v197 = vld [vmem:[%s1 + $0x368] sm:$0xff]
    %v198 = vld [vmem:[%s1 + $0x370] sm:$0xff]
    %v199 = vld [vmem:[%s1 + $0x378] sm:$0xff]
    %v200 = vld [vmem:[%s1 + $0x380] sm:$0xff]
    %v201 = vld [vmem:[%s1 + $0x388] sm:$0xff]
    %v202 = vld [vmem:[%s1 + $0x390] sm:$0xff]
    %v203 = vld [vmem:[%s1 + $0x398] sm:$0xff]
    %v204 = vld [vmem:[%s1 + $0x3a0] sm:$0xff]
    %v205 = vld [vmem:[%s1 + $0x3a8] sm:$0xff]
    %v206 = vld [vmem:[%s1 + $0x3b0] sm:$0xff]
    %v207 = vld [vmem:[%s1 + $0x3b8] sm:$0xff]
    %v208 = vld [vmem:[%s1 + $0x3c0] sm:$0xff]
    %v209 = vld [vmem:[%s1 + $0x3c8] sm:$0xff]
    %v210 = vld [vmem:[%s1 + $0x3d0] sm:$0xff]
    %v211 = vld [vmem:[%s1 + $0x3d8] sm:$0xff]
    %v212 = vld [vmem:[%s1 + $0x3e0] sm:$0xff]
    %v213 = vld [vmem:[%s1 + $0x3e8] sm:$0xff]
    %v214 = vld [vmem:[%s1 + $0x3f0] sm:$0xff]
    %v215 = vld [vmem:[%s1 + $0x3f8] sm:$0xff]
    %v216 = vld [vmem:[%s1 + $0x400] sm:$0xff]
    %v217 = vld [vmem:[%s1 + $0x408] sm:$0xff]
    %v218 = vld [vmem:[%s1 + $0x410] sm:$0xff]
    %v219 = vld [vmem:[%s1 + $0x418] sm:$0xff]
    %v220 = vld [vmem:[%s1 + $0x420] sm:$0xff]
    %v221 = vld [vmem:[%s1 + $0x428] sm:$0xff]
    %v222 = vld [vmem:[%s1 + $0x430] sm:$0xff]
    %v223 = vld [vmem:[%s1 + $0x438] sm:$0xff]
    %v224 = vld [vmem:[%s1 + $0x440] sm:$0xff]
    %v225 = vld [vmem:[%s1 + $0x448] sm:$0xff]
    %v226 = vld [vmem:[%s1 + $0x450] sm:$0xff]
    %v227 = vld [vmem:[%s1 + $0x458] sm:$0xff]
    %v228 = vld [vmem:[%s1 + $0x460] sm:$0xff]
    %v229 = vld [vmem:[%s1 + $0x468] sm:$0xff]
    %v230 = vld [vmem:[%s1 + $0x470] sm:$0xff]
    %v231 = vld [vmem:[%s1 + $0x478] sm:$0xff]
    %v232 = vld [vmem:[%s1 + $0x480] sm:$0xff]
    %v233 = vld [vmem:[%s1 + $0x488] sm:$0xff]
    %v234 = vld [vmem:[%s1 + $0x490] sm:$0xff]
    %v235 = vld [vmem:[%s1 + $0x498] sm:$0xff]
    %v236 = vld [vmem:[%s1 + $0x4a0] sm:$0xff]
    %v237 = vld [vmem:[%s1 + $0x4a8] sm:$0xff]
    %v238 = vld [vmem:[%s1 + $0x4b0] sm:$0xff]
    %v239 = vld [vmem:[%s1 + $0x4b8] sm:$0xff]
    %v240 = vld [vmem:[%s1 + $0x4c0] sm:$0xff]
    %v241 = vld [vmem:[%s1 + $0x4c8] sm:$0xff]
    %v242 = vld [vmem:[%s1 + $0x4d0] sm:$0xff]
    %v243 = vld [vmem:[%s1 + $0x4d8] sm:$0xff]
    %v244 = vld [vmem:[%s1 + $0x4e0] sm:$0xff]
    %v245 = vld [vmem:[%s1 + $0x4e8] sm:$0xff]
    %v246 = vld [vmem:[%s1 + $0x4f0] sm:$0xff]
    %v247 = vld [vmem:[%s1 + $0x4f8] sm:$0xff]
    %v248 = vld [vmem:[%s1 + $0x500] sm:$0xff]
    %v249 = vld [vmem:[%s1 + $0x508] sm:$0xff]
    %v250 = vld [vmem:[%s1 + $0x510] sm:$0xff]
    %v251 = vld [vmem:[%s1 + $0x518] sm:$0xff]
    %v252 = vld [vmem:[%s1 + $0x520] sm:$0xff]
    %v253 = vld [vmem:[%s1 + $0x528] sm:$0xff]
    %v254 = vld [vmem:[%s1 + $0x530] sm:$0xff]
    %v255 = vld [vmem:[%s1 + $0x538] sm:$0xff]
    %v256 = vld [vmem:[%s1 + $0x540] sm:$0xff]
    %v257 = vld [vmem:[%s1 + $0x548] sm:$0xff]
    %v258 = vld [vmem:[%s1 + $0x550] sm:$0xff]
    %v259 = vld [vmem:[%s1 + $0x558] sm:$0xff]
    %v260 = vld [vmem:[%s1 + $0x560] sm:$0xff]
    %v261 = vld [vmem:[%s1 + $0x568] sm:$0xff]
    %v262 = vld [vmem:[%s1 + $0x570] sm:$0xff]
    %v263 = vld [vmem:[%s1 + $0x578] sm:$0xff]
    %v264 = vld [vmem:[%s1 + $0x580] sm:$0xff]
    %v265 = vld [vmem:[%s1 + $0x588] sm:$0xff]
    %v266 = vld [vmem:[%s1 + $0x590] sm:$0xff]
    %v267 = vld [vmem:[%s1 + $0x598] sm:$0xff]
    %v268 = vld [vmem:[%s1 + $0x5a0] sm:$0xff]
    %v269 = vld [vmem:[%s1 + $0x5a8] sm:$0xff]
    %v270 = vld [vmem:[%s1 + $0x5b0] sm:$0xff]
    %v271 = vld [vmem:[%s1 + $0x5b8] sm:$0xff]
    %v272 = vld [vmem:[%s1 + $0x5c0] sm:$0xff]
    %v273 = vld [vmem:[%s1 + $0x5c8] sm:$0xff]
    %v274 = vld [vmem:[%s1 + $0x5d0] sm:$0xff]
    %v275 = vld [vmem:[%s1 + $0x5d8] sm:$0xff]
    %v276 = vld [vmem:[%s1 + $0x5e0] sm:$0xff]
    %v277 = vld [vmem:[%s1 + $0x5e8] sm:$0xff]
    %v278 = vld [vmem:[%s1 + $0x5f0] sm:$0xff]
    %v279 = vld [vmem:[%s1 + $0x5f8] sm:$0xff]
    %v280 = vld [vmem:[%s1 + $0x600] sm:$0xff]
    %v281 = vld [vmem:[%s1 + $0x608] sm:$0xff]
    %v282 = vld [vmem:[%s1 + $0x610] sm:$0xff]
    %v283 = vld [vmem:[%s1 + $0x618] sm:$0xff]
    %v284 = vld [vmem:[%s1 + $0x620] sm:$0xff]
    %v285 = vld [vmem:[%s1 + $0x628] sm:$0xff]
    %v286 = vld [vmem:[%s1 + $0x630] sm:$0xff]
    %v287 = vld [vmem:[%s1 + $0x638] sm:$0xff]
    %v288 = vld [vmem:[%s1 + $0x640] sm:$0xff]
    %v289 = vld [vmem:[%s1 + $0x648] sm:$0xff]
    %v290 = vld [vmem:[%s1 + $0x650] sm:$0xff]
    %v291 = vld [vmem:[%s1 + $0x658] sm:$0xff]
    %v292 = vld [vmem:[%s1 + $0x660] sm:$0xff]
    %v293 = vld [vmem:[%s1 + $0x668] sm:$0xff]
    %v294 = vld [vmem:[%s1 + $0x670] sm:$0xff]
    %v295 = vld [vmem:[%s1 + $0x678] sm:$0xff]
    %v296 = vld [vmem:[%s1 + $0x680] sm:$0xff]
    %v297 = vld [vmem:[%s1 + $0x688] sm:$0xff]
    %v298 = vld [vmem:[%s1 + $0x690] sm:$0xff]
    %v299 = vld [vmem:[%s1 + $0x698] sm:$0xff]
    %v300 = vld [vmem:[%s1 + $0x6a0] sm:$0xff]
    %v301 = vld [vmem:[%s1 + $0x6a8] sm:$0xff]
    %v302 = vld [vmem:[%s1 + $0x6b0] sm:$0xff]
    %v303 = vld [vmem:[%s1 + $0x6b8] sm:$0xff]
    %v304 = vld [vmem:[%s1 + $0x6c0] sm:$0xff]
    %v305 = vld [vmem:[%s1 + $0x6c8] sm:$0xff]
    %v306 = vld [vmem:[%s1 + $0x6d0] sm:$0xff]
    %v307 = vld [vmem:[%s1 + $0x6d8] sm:$0xff]
    %v308 = vld [vmem:[%s1 + $0x6e0] sm:$0xff]
    %v309 = vld [vmem:[%s1 + $0x6e8] sm:$0xff]
    %v310 = vld [vmem:[%s1 + $0x6f0] sm:$0xff]
    %v311 = vld [vmem:[%s1 + $0x6f8] sm:$0xff]
    %v312 = vld [vmem:[%s1 + $0x700] sm:$0xff]
    %v313 = vld [vmem:[%s1 + $0x708] sm:$0xff]
    %v314 = vld [vmem:[%s1 + $0x710] sm:$0xff]
    %v315 = vld [vmem:[%s1 + $0x718] sm:$0xff]
    %v316 = vld [vmem:[%s1 + $0x720] sm:$0xff]
    %v317 = vld [vmem:[%s1 + $0x728] sm:$0xff]
    %v318 = vld [vmem:[%s1 + $0x730] sm:$0xff]
    %v319 = vld [vmem:[%s1 + $0x738] sm:$0xff]
    %v320 = vld [vmem:[%s1 + $0x740] sm:$0xff]
    %v321 = vld [vmem:[%s1 + $0x748] sm:$0xff]
    %v322 = vld [vmem:[%s1 + $0x750] sm:$0xff]
    %v323 = vld [vmem:[%s1 + $0x758] sm:$0xff]
    %v324 = vld [vmem:[%s1 + $0x760] sm:$0xff]
    %v325 = vld [vmem:[%s1 + $0x768] sm:$0xff]
    %v326 = vld [vmem:[%s1 + $0x770] sm:$0xff]
    %v327 = vld [vmem:[%s1 + $0x778] sm:$0xff]
    %v328 = vld [vmem:[%s1 + $0x780] sm:$0xff]
    %v329 = vld [vmem:[%s1 + $0x788] sm:$0xff]
    %v330 = vld [vmem:[%s1 + $0x790] sm:$0xff]
    %v331 = vld [vmem:[%s1 + $0x798] sm:$0xff]
    %v332 = vld [vmem:[%s1 + $0x7a0] sm:$0xff]
    %v333 = vld [vmem:[%s1 + $0x7a8] sm:$0xff]
    %v334 = vld [vmem:[%s1 + $0x7b0] sm:$0xff]
    %v335 = vld [vmem:[%s1 + $0x7b8] sm:$0xff]
    %v336 = vld [vmem:[%s1 + $0x7c0] sm:$0xff]
    %v337 = vld [vmem:[%s1 + $0x7c8] sm:$0xff]
    %v338 = vld [vmem:[%s1 + $0x7d0] sm:$0xff]
    %v339 = vld [vmem:[%s1 + $0x7d8] sm:$0xff]
    %v340 = vld [vmem:[%s1 + $0x7e0] sm:$0xff]
    %v341 = vld [vmem:[%s1 + $0x7e8] sm:$0xff]
    %v342 = vld [vmem:[%s1 + $0x7f0] sm:$0xff]
    %v343 = vld [vmem:[%s1 + $0x7f8] sm:$0xff]
    %v600 = vunpack.c.l.b16 %v88
    %v601 = vunpack.c.h.b16 %v88
    %v602 = vunpack.c.l.b16 %v89
    %v603 = vunpack.c.h.b16 %v89
    %v604 = vunpack.c.l.b16 %v90
    %v605 = vunpack.c.h.b16 %v90
    %v606 = vunpack.c.l.b16 %v91
    %v607 = vunpack.c.h.b16 %v91
    %v608 = vunpack.c.l.b16 %v92
    %v609 = vunpack.c.h.b16 %v92
    %v610 = vunpack.c.l.b16 %v93
    %v611 = vunpack.c.h.b16 %v93
    %v612 = vunpack.c.l.b16 %v94
    %v613 = vunpack.c.h.b16 %v94
    %v614 = vunpack.c.l.b16 %v95
    %v615 = vunpack.c.h.b16 %v95
    %v616 = vunpack.c.l.b16 %v96
    %v617 = vunpack.c.h.b16 %v96
    %v618 = vunpack.c.l.b16 %v97
    %v619 = vunpack.c.h.b16 %v97
    %v620 = vunpack.c.l.b16 %v98
    %v621 = vunpack.c.h.b16 %v98
    %v622 = vunpack.c.l.b16 %v99
    %v623 = vunpack.c.h.b16 %v99
    %v624 = vunpack.c.l.b16 %v100
    %v625 = vunpack.c.h.b16 %v100
    %v626 = vunpack.c.l.b16 %v101
    %v627 = vunpack.c.h.b16 %v101
    %v628 = vunpack.c.l.b16 %v102
    %v629 = vunpack.c.h.b16 %v102
    %v630 = vunpack.c.l.b16 %v103
    %v631 = vunpack.c.h.b16 %v103
    %v632 = vunpack.c.l.b16 %v104
    %v633 = vunpack.c.h.b16 %v104
    %v634 = vunpack.c.l.b16 %v105
    %v635 = vunpack.c.h.b16 %v105
    %v636 = vunpack.c.l.b16 %v106
    %v637 = vunpack.c.h.b16 %v106
    %v638 = vunpack.c.l.b16 %v107
    %v639 = vunpack.c.h.b16 %v107
    %v640 = vunpack.c.l.b16 %v108
    %v641 = vunpack.c.h.b16 %v108
    %v642 = vunpack.c.l.b16 %v109
    %v643 = vunpack.c.h.b16 %v109
    %v644 = vunpack.c.l.b16 %v110
    %v645 = vunpack.c.h.b16 %v110
    %v646 = vunpack.c.l.b16 %v111
    %v647 = vunpack.c.h.b16 %v111
    %v648 = vunpack.c.l.b16 %v112
    %v649 = vunpack.c.h.b16 %v112
    %v650 = vunpack.c.l.b16 %v113
    %v651 = vunpack.c.h.b16 %v113
    %v652 = vunpack.c.l.b16 %v114
    %v653 = vunpack.c.h.b16 %v114
    %v654 = vunpack.c.l.b16 %v115
    %v655 = vunpack.c.h.b16 %v115
    %v656 = vunpack.c.l.b16 %v116
    %v657 = vunpack.c.h.b16 %v116
    %v658 = vunpack.c.l.b16 %v117
    %v659 = vunpack.c.h.b16 %v117
    %v660 = vunpack.c.l.b16 %v118
    %v661 = vunpack.c.h.b16 %v118
    %v662 = vunpack.c.l.b16 %v119
    %v663 = vunpack.c.h.b16 %v119
    %v664 = vunpack.c.l.b16 %v120
    %v665 = vunpack.c.h.b16 %v120
    %v666 = vunpack.c.l.b16 %v121
    %v667 = vunpack.c.h.b16 %v121
    %v668 = vunpack.c.l.b16 %v122
    %v669 = vunpack.c.h.b16 %v122
    %v670 = vunpack.c.l.b16 %v123
    %v671 = vunpack.c.h.b16 %v123
    %v672 = vunpack.c.l.b16 %v124
    %v673 = vunpack.c.h.b16 %v124
    %v674 = vunpack.c.l.b16 %v125
    %v675 = vunpack.c.h.b16 %v125
    %v676 = vunpack.c.l.b16 %v126
    %v677 = vunpack.c.h.b16 %v126
    %v678 = vunpack.c.l.b16 %v127
    %v679 = vunpack.c.h.b16 %v127
    %v680 = vunpack.c.l.b16 %v128
    %v681 = vunpack.c.h.b16 %v128
    %v682 = vunpack.c.l.b16 %v129
    %v683 = vunpack.c.h.b16 %v129
    %v684 = vunpack.c.l.b16 %v130
    %v685 = vunpack.c.h.b16 %v130
    %v686 = vunpack.c.l.b16 %v131
    %v687 = vunpack.c.h.b16 %v131
    %v688 = vunpack.c.l.b16 %v132
    %v689 = vunpack.c.h.b16 %v132
    %v690 = vunpack.c.l.b16 %v133
    %v691 = vunpack.c.h.b16 %v133
    %v692 = vunpack.c.l.b16 %v134
    %v693 = vunpack.c.h.b16 %v134
    %v694 = vunpack.c.l.b16 %v135
    %v695 = vunpack.c.h.b16 %v135
    %v696 = vunpack.c.l.b16 %v136
    %v697 = vunpack.c.h.b16 %v136
    %v698 = vunpack.c.l.b16 %v137
    %v699 = vunpack.c.h.b16 %v137
    %v700 = vunpack.c.l.b16 %v138
    %v701 = vunpack.c.h.b16 %v138
    %v702 = vunpack.c.l.b16 %v139
    %v703 = vunpack.c.h.b16 %v139
    %v704 = vunpack.c.l.b16 %v140
    %v705 = vunpack.c.h.b16 %v140
    %v706 = vunpack.c.l.b16 %v141
    %v707 = vunpack.c.h.b16 %v141
    %v708 = vunpack.c.l.b16 %v142
    %v709 = vunpack.c.h.b16 %v142
    %v710 = vunpack.c.l.b16 %v143
    %v711 = vunpack.c.h.b16 %v143
    %v712 = vunpack.c.l.b16 %v144
    %v713 = vunpack.c.h.b16 %v144
    %v714 = vunpack.c.l.b16 %v145
    %v715 = vunpack.c.h.b16 %v145
    %v716 = vunpack.c.l.b16 %v146
    %v717 = vunpack.c.h.b16 %v146
    %v718 = vunpack.c.l.b16 %v147
    %v719 = vunpack.c.h.b16 %v147
    %v720 = vunpack.c.l.b16 %v148
    %v721 = vunpack.c.h.b16 %v148
    %v722 = vunpack.c.l.b16 %v149
    %v723 = vunpack.c.h.b16 %v149
    %v724 = vunpack.c.l.b16 %v150
    %v725 = vunpack.c.h.b16 %v150
    %v726 = vunpack.c.l.b16 %v151
    %v727 = vunpack.c.h.b16 %v151
    %v728 = vunpack.c.l.b16 %v152
    %v729 = vunpack.c.h.b16 %v152
    %v730 = vunpack.c.l.b16 %v153
    %v731 = vunpack.c.h.b16 %v153
    %v732 = vunpack.c.l.b16 %v154
    %v733 = vunpack.c.h.b16 %v154
    %v734 = vunpack.c.l.b16 %v155
    %v735 = vunpack.c.h.b16 %v155
    %v736 = vunpack.c.l.b16 %v156
    %v737 = vunpack.c.h.b16 %v156
    %v738 = vunpack.c.l.b16 %v157
    %v739 = vunpack.c.h.b16 %v157
    %v740 = vunpack.c.l.b16 %v158
    %v741 = vunpack.c.h.b16 %v158
    %v742 = vunpack.c.l.b16 %v159
    %v743 = vunpack.c.h.b16 %v159
    %v744 = vunpack.c.l.b16 %v160
    %v745 = vunpack.c.h.b16 %v160
    %v746 = vunpack.c.l.b16 %v161
    %v747 = vunpack.c.h.b16 %v161
    %v748 = vunpack.c.l.b16 %v162
    %v749 = vunpack.c.h.b16 %v162
    %v750 = vunpack.c.l.b16 %v163
    %v751 = vunpack.c.h.b16 %v163
    %v752 = vunpack.c.l.b16 %v164
    %v753 = vunpack.c.h.b16 %v164
    %v754 = vunpack.c.l.b16 %v165
    %v755 = vunpack.c.h.b16 %v165
    %v756 = vunpack.c.l.b16 %v166
    %v757 = vunpack.c.h.b16 %v166
    %v758 = vunpack.c.l.b16 %v167
    %v759 = vunpack.c.h.b16 %v167
    %v760 = vunpack.c.l.b16 %v168
    %v761 = vunpack.c.h.b16 %v168
    %v762 = vunpack.c.l.b16 %v169
    %v763 = vunpack.c.h.b16 %v169
    %v764 = vunpack.c.l.b16 %v170
    %v765 = vunpack.c.h.b16 %v170
    %v766 = vunpack.c.l.b16 %v171
    %v767 = vunpack.c.h.b16 %v171
    %v768 = vunpack.c.l.b16 %v172
    %v769 = vunpack.c.h.b16 %v172
    %v770 = vunpack.c.l.b16 %v173
    %v771 = vunpack.c.h.b16 %v173
    %v772 = vunpack.c.l.b16 %v174
    %v773 = vunpack.c.h.b16 %v174
    %v774 = vunpack.c.l.b16 %v175
    %v775 = vunpack.c.h.b16 %v175
    %v776 = vunpack.c.l.b16 %v176
    %v777 = vunpack.c.h.b16 %v176
    %v778 = vunpack.c.l.b16 %v177
    %v779 = vunpack.c.h.b16 %v177
    %v780 = vunpack.c.l.b16 %v178
    %v781 = vunpack.c.h.b16 %v178
    %v782 = vunpack.c.l.b16 %v179
    %v783 = vunpack.c.h.b16 %v179
    %v784 = vunpack.c.l.b16 %v180
    %v785 = vunpack.c.h.b16 %v180
    %v786 = vunpack.c.l.b16 %v181
    %v787 = vunpack.c.h.b16 %v181
    %v788 = vunpack.c.l.b16 %v182
    %v789 = vunpack.c.h.b16 %v182
    %v790 = vunpack.c.l.b16 %v183
    %v791 = vunpack.c.h.b16 %v183
    %v792 = vunpack.c.l.b16 %v184
    %v793 = vunpack.c.h.b16 %v184
    %v794 = vunpack.c.l.b16 %v185
    %v795 = vunpack.c.h.b16 %v185
    %v796 = vunpack.c.l.b16 %v186
    %v797 = vunpack.c.h.b16 %v186
    %v798 = vunpack.c.l.b16 %v187
    %v799 = vunpack.c.h.b16 %v187
    %v800 = vunpack.c.l.b16 %v188
    %v801 = vunpack.c.h.b16 %v188
    %v802 = vunpack.c.l.b16 %v189
    %v803 = vunpack.c.h.b16 %v189
    %v804 = vunpack.c.l.b16 %v190
    %v805 = vunpack.c.h.b16 %v190
    %v806 = vunpack.c.l.b16 %v191
    %v807 = vunpack.c.h.b16 %v191
    %v808 = vunpack.c.l.b16 %v192
    %v809 = vunpack.c.h.b16 %v192
    %v810 = vunpack.c.l.b16 %v193
    %v811 = vunpack.c.h.b16 %v193
    %v812 = vunpack.c.l.b16 %v194
    %v813 = vunpack.c.h.b16 %v194
    %v814 = vunpack.c.l.b16 %v195
    %v815 = vunpack.c.h.b16 %v195
    %v816 = vunpack.c.l.b16 %v196
    %v817 = vunpack.c.h.b16 %v196
    %v818 = vunpack.c.l.b16 %v197
    %v819 = vunpack.c.h.b16 %v197
    %v820 = vunpack.c.l.b16 %v198
    %v821 = vunpack.c.h.b16 %v198
    %v822 = vunpack.c.l.b16 %v199
    %v823 = vunpack.c.h.b16 %v199
    %v824 = vunpack.c.l.b16 %v200
    %v825 = vunpack.c.h.b16 %v200
    %v826 = vunpack.c.l.b16 %v201
    %v827 = vunpack.c.h.b16 %v201
    %v828 = vunpack.c.l.b16 %v202
    %v829 = vunpack.c.h.b16 %v202
    %v830 = vunpack.c.l.b16 %v203
    %v831 = vunpack.c.h.b16 %v203
    %v832 = vunpack.c.l.b16 %v204
    %v833 = vunpack.c.h.b16 %v204
    %v834 = vunpack.c.l.b16 %v205
    %v835 = vunpack.c.h.b16 %v205
    %v836 = vunpack.c.l.b16 %v206
    %v837 = vunpack.c.h.b16 %v206
    %v838 = vunpack.c.l.b16 %v207
    %v839 = vunpack.c.h.b16 %v207
    %v840 = vunpack.c.l.b16 %v208
    %v841 = vunpack.c.h.b16 %v208
    %v842 = vunpack.c.l.b16 %v209
    %v843 = vunpack.c.h.b16 %v209
    %v844 = vunpack.c.l.b16 %v210
    %v845 = vunpack.c.h.b16 %v210
    %v846 = vunpack.c.l.b16 %v211
    %v847 = vunpack.c.h.b16 %v211
    %v848 = vunpack.c.l.b16 %v212
    %v849 = vunpack.c.h.b16 %v212
    %v850 = vunpack.c.l.b16 %v213
    %v851 = vunpack.c.h.b16 %v213
    %v852 = vunpack.c.l.b16 %v214
    %v853 = vunpack.c.h.b16 %v214
    %v854 = vunpack.c.l.b16 %v215
    %v855 = vunpack.c.h.b16 %v215
    %v856 = vunpack.c.l.b16 %v216
    %v857 = vunpack.c.h.b16 %v216
    %v858 = vunpack.c.l.b16 %v217
    %v859 = vunpack.c.h.b16 %v217
    %v860 = vunpack.c.l.b16 %v218
    %v861 = vunpack.c.h.b16 %v218
    %v862 = vunpack.c.l.b16 %v219
    %v863 = vunpack.c.h.b16 %v219
    %v864 = vunpack.c.l.b16 %v220
    %v865 = vunpack.c.h.b16 %v220
    %v866 = vunpack.c.l.b16 %v221
    %v867 = vunpack.c.h.b16 %v221
    %v868 = vunpack.c.l.b16 %v222
    %v869 = vunpack.c.h.b16 %v222
    %v870 = vunpack.c.l.b16 %v223
    %v871 = vunpack.c.h.b16 %v223
    %v872 = vunpack.c.l.b16 %v224
    %v873 = vunpack.c.h.b16 %v224
    %v874 = vunpack.c.l.b16 %v225
    %v875 = vunpack.c.h.b16 %v225
    %v876 = vunpack.c.l.b16 %v226
    %v877 = vunpack.c.h.b16 %v226
    %v878 = vunpack.c.l.b16 %v227
    %v879 = vunpack.c.h.b16 %v227
    %v880 = vunpack.c.l.b16 %v228
    %v881 = vunpack.c.h.b16 %v228
    %v882 = vunpack.c.l.b16 %v229
    %v883 = vunpack.c.h.b16 %v229
    %v884 = vunpack.c.l.b16 %v230
    %v885 = vunpack.c.h.b16 %v230
    %v886 = vunpack.c.l.b16 %v231
    %v887 = vunpack.c.h.b16 %v231
    %v888 = vunpack.c.l.b16 %v232
    %v889 = vunpack.c.h.b16 %v232
    %v890 = vunpack.c.l.b16 %v233
    %v891 = vunpack.c.h.b16 %v233
    %v892 = vunpack.c.l.b16 %v234
    %v893 = vunpack.c.h.b16 %v234
    %v894 = vunpack.c.l.b16 %v235
    %v895 = vunpack.c.h.b16 %v235
    %v896 = vunpack.c.l.b16 %v236
    %v897 = vunpack.c.h.b16 %v236
    %v898 = vunpack.c.l.b16 %v237
    %v899 = vunpack.c.h.b16 %v237
    %v900 = vunpack.c.l.b16 %v238
    %v901 = vunpack.c.h.b16 %v238
    %v902 = vunpack.c.l.b16 %v239
    %v903 = vunpack.c.h.b16 %v239
    %v904 = vunpack.c.l.b16 %v240
    %v905 = vunpack.c.h.b16 %v240
    %v906 = vunpack.c.l.b16 %v241
    %v907 = vunpack.c.h.b16 %v241
    %v908 = vunpack.c.l.b16 %v242
    %v909 = vunpack.c.h.b16 %v242
    %v910 = vunpack.c.l.b16 %v243
    %v911 = vunpack.c.h.b16 %v243
    %v912 = vunpack.c.l.b16 %v244
    %v913 = vunpack.c.h.b16 %v244
    %v914 = vunpack.c.l.b16 %v245
    %v915 = vunpack.c.h.b16 %v245
    %v916 = vunpack.c.l.b16 %v246
    %v917 = vunpack.c.h.b16 %v246
    %v918 = vunpack.c.l.b16 %v247
    %v919 = vunpack.c.h.b16 %v247
    %v920 = vunpack.c.l.b16 %v248
    %v921 = vunpack.c.h.b16 %v248
    %v922 = vunpack.c.l.b16 %v249
    %v923 = vunpack.c.h.b16 %v249
    %v924 = vunpack.c.l.b16 %v250
    %v925 = vunpack.c.h.b16 %v250
    %v926 = vunpack.c.l.b16 %v251
    %v927 = vunpack.c.h.b16 %v251
    %v928 = vunpack.c.l.b16 %v252
    %v929 = vunpack.c.h.b16 %v252
    %v930 = vunpack.c.l.b16 %v253
    %v931 = vunpack.c.h.b16 %v253
    %v932 = vunpack.c.l.b16 %v254
    %v933 = vunpack.c.h.b16 %v254
    %v934 = vunpack.c.l.b16 %v255
    %v935 = vunpack.c.h.b16 %v255
    %v936 = vunpack.c.l.b16 %v256
    %v937 = vunpack.c.h.b16 %v256
    %v938 = vunpack.c.l.b16 %v257
    %v939 = vunpack.c.h.b16 %v257
    %v940 = vunpack.c.l.b16 %v258
    %v941 = vunpack.c.h.b16 %v258
    %v942 = vunpack.c.l.b16 %v259
    %v943 = vunpack.c.h.b16 %v259
    %v944 = vunpack.c.l.b16 %v260
    %v945 = vunpack.c.h.b16 %v260
    %v946 = vunpack.c.l.b16 %v261
    %v947 = vunpack.c.h.b16 %v261
    %v948 = vunpack.c.l.b16 %v262
    %v949 = vunpack.c.h.b16 %v262
    %v950 = vunpack.c.l.b16 %v263
    %v951 = vunpack.c.h.b16 %v263
    %v952 = vunpack.c.l.b16 %v264
    %v953 = vunpack.c.h.b16 %v264
    %v954 = vunpack.c.l.b16 %v265
    %v955 = vunpack.c.h.b16 %v265
    %v956 = vunpack.c.l.b16 %v266
    %v957 = vunpack.c.h.b16 %v266
    %v958 = vunpack.c.l.b16 %v267
    %v959 = vunpack.c.h.b16 %v267
    %v960 = vunpack.c.l.b16 %v268
    %v961 = vunpack.c.h.b16 %v268
    %v962 = vunpack.c.l.b16 %v269
    %v963 = vunpack.c.h.b16 %v269
    %v964 = vunpack.c.l.b16 %v270
    %v965 = vunpack.c.h.b16 %v270
    %v966 = vunpack.c.l.b16 %v271
    %v967 = vunpack.c.h.b16 %v271
    %v968 = vunpack.c.l.b16 %v272
    %v969 = vunpack.c.h.b16 %v272
    %v970 = vunpack.c.l.b16 %v273
    %v971 = vunpack.c.h.b16 %v273
    %v972 = vunpack.c.l.b16 %v274
    %v973 = vunpack.c.h.b16 %v274
    %v974 = vunpack.c.l.b16 %v275
    %v975 = vunpack.c.h.b16 %v275
    %v976 = vunpack.c.l.b16 %v276
    %v977 = vunpack.c.h.b16 %v276
    %v978 = vunpack.c.l.b16 %v277
    %v979 = vunpack.c.h.b16 %v277
    %v980 = vunpack.c.l.b16 %v278
    %v981 = vunpack.c.h.b16 %v278
    %v982 = vunpack.c.l.b16 %v279
    %v983 = vunpack.c.h.b16 %v279
    %v984 = vunpack.c.l.b16 %v280
    %v985 = vunpack.c.h.b16 %v280
    %v986 = vunpack.c.l.b16 %v281
    %v987 = vunpack.c.h.b16 %v281
    %v988 = vunpack.c.l.b16 %v282
    %v989 = vunpack.c.h.b16 %v282
    %v990 = vunpack.c.l.b16 %v283
    %v991 = vunpack.c.h.b16 %v283
    %v992 = vunpack.c.l.b16 %v284
    %v993 = vunpack.c.h.b16 %v284
    %v994 = vunpack.c.l.b16 %v285
    %v995 = vunpack.c.h.b16 %v285
    %v996 = vunpack.c.l.b16 %v286
    %v997 = vunpack.c.h.b16 %v286
    %v998 = vunpack.c.l.b16 %v287
    %v999 = vunpack.c.h.b16 %v287
    %v1000 = vunpack.c.l.b16 %v288
    %v1001 = vunpack.c.h.b16 %v288
    %v1002 = vunpack.c.l.b16 %v289
    %v1003 = vunpack.c.h.b16 %v289
    %v1004 = vunpack.c.l.b16 %v290
    %v1005 = vunpack.c.h.b16 %v290
    %v1006 = vunpack.c.l.b16 %v291
    %v1007 = vunpack.c.h.b16 %v291
    %v1008 = vunpack.c.l.b16 %v292
    %v1009 = vunpack.c.h.b16 %v292
    %v1010 = vunpack.c.l.b16 %v293
    %v1011 = vunpack.c.h.b16 %v293
    %v1012 = vunpack.c.l.b16 %v294
    %v1013 = vunpack.c.h.b16 %v294
    %v1014 = vunpack.c.l.b16 %v295
    %v1015 = vunpack.c.h.b16 %v295
    %v1016 = vunpack.c.l.b16 %v296
    %v1017 = vunpack.c.h.b16 %v296
    %v1018 = vunpack.c.l.b16 %v297
    %v1019 = vunpack.c.h.b16 %v297
    %v1020 = vunpack.c.l.b16 %v298
    %v1021 = vunpack.c.h.b16 %v298
    %v1022 = vunpack.c.l.b16 %v299
    %v1023 = vunpack.c.h.b16 %v299
    %v1024 = vunpack.c.l.b16 %v300
    %v1025 = vunpack.c.h.b16 %v300
    %v1026 = vunpack.c.l.b16 %v301
    %v1027 = vunpack.c.h.b16 %v301
    %v1028 = vunpack.c.l.b16 %v302
    %v1029 = vunpack.c.h.b16 %v302
    %v1030 = vunpack.c.l.b16 %v303
    %v1031 = vunpack.c.h.b16 %v303
    %v1032 = vunpack.c.l.b16 %v304
    %v1033 = vunpack.c.h.b16 %v304
    %v1034 = vunpack.c.l.b16 %v305
    %v1035 = vunpack.c.h.b16 %v305
    %v1036 = vunpack.c.l.b16 %v306
    %v1037 = vunpack.c.h.b16 %v306
    %v1038 = vunpack.c.l.b16 %v307
    %v1039 = vunpack.c.h.b16 %v307
    %v1040 = vunpack.c.l.b16 %v308
    %v1041 = vunpack.c.h.b16 %v308
    %v1042 = vunpack.c.l.b16 %v309
    %v1043 = vunpack.c.h.b16 %v309
    %v1044 = vunpack.c.l.b16 %v310
    %v1045 = vunpack.c.h.b16 %v310
    %v1046 = vunpack.c.l.b16 %v311
    %v1047 = vunpack.c.h.b16 %v311
    %v1048 = vunpack.c.l.b16 %v312
    %v1049 = vunpack.c.h.b16 %v312
    %v1050 = vunpack.c.l.b16 %v313
    %v1051 = vunpack.c.h.b16 %v313
    %v1052 = vunpack.c.l.b16 %v314
    %v1053 = vunpack.c.h.b16 %v314
    %v1054 = vunpack.c.l.b16 %v315
    %v1055 = vunpack.c.h.b16 %v315
    %v1056 = vunpack.c.l.b16 %v316
    %v1057 = vunpack.c.h.b16 %v316
    %v1058 = vunpack.c.l.b16 %v317
    %v1059 = vunpack.c.h.b16 %v317
    %v1060 = vunpack.c.l.b16 %v318
    %v1061 = vunpack.c.h.b16 %v318
    %v1062 = vunpack.c.l.b16 %v319
    %v1063 = vunpack.c.h.b16 %v319
    %v1064 = vunpack.c.l.b16 %v320
    %v1065 = vunpack.c.h.b16 %v320
    %v1066 = vunpack.c.l.b16 %v321
    %v1067 = vunpack.c.h.b16 %v321
    %v1068 = vunpack.c.l.b16 %v322
    %v1069 = vunpack.c.h.b16 %v322
    %v1070 = vunpack.c.l.b16 %v323
    %v1071 = vunpack.c.h.b16 %v323
    %v1072 = vunpack.c.l.b16 %v324
    %v1073 = vunpack.c.h.b16 %v324
    %v1074 = vunpack.c.l.b16 %v325
    %v1075 = vunpack.c.h.b16 %v325
    %v1076 = vunpack.c.l.b16 %v326
    %v1077 = vunpack.c.h.b16 %v326
    %v1078 = vunpack.c.l.b16 %v327
    %v1079 = vunpack.c.h.b16 %v327
    %v1080 = vunpack.c.l.b16 %v328
    %v1081 = vunpack.c.h.b16 %v328
    %v1082 = vunpack.c.l.b16 %v329
    %v1083 = vunpack.c.h.b16 %v329
    %v1084 = vunpack.c.l.b16 %v330
    %v1085 = vunpack.c.h.b16 %v330
    %v1086 = vunpack.c.l.b16 %v331
    %v1087 = vunpack.c.h.b16 %v331
    %v1088 = vunpack.c.l.b16 %v332
    %v1089 = vunpack.c.h.b16 %v332
    %v1090 = vunpack.c.l.b16 %v333
    %v1091 = vunpack.c.h.b16 %v333
    %v1092 = vunpack.c.l.b16 %v334
    %v1093 = vunpack.c.h.b16 %v334
    %v1094 = vunpack.c.l.b16 %v335
    %v1095 = vunpack.c.h.b16 %v335
    %v1096 = vunpack.c.l.b16 %v336
    %v1097 = vunpack.c.h.b16 %v336
    %v1098 = vunpack.c.l.b16 %v337
    %v1099 = vunpack.c.h.b16 %v337
    %v1100 = vunpack.c.l.b16 %v338
    %v1101 = vunpack.c.h.b16 %v338
    %v1102 = vunpack.c.l.b16 %v339
    %v1103 = vunpack.c.h.b16 %v339
    %v1104 = vunpack.c.l.b16 %v340
    %v1105 = vunpack.c.h.b16 %v340
    %v1106 = vunpack.c.l.b16 %v341
    %v1107 = vunpack.c.h.b16 %v341
    %v1108 = vunpack.c.l.b16 %v342
    %v1109 = vunpack.c.h.b16 %v342
    %v1110 = vunpack.c.l.b16 %v343
    %v1111 = vunpack.c.h.b16 %v343
    %v1112 = vpack.c.b16 %v604, %v600
    %v1113 = vpack.c.b16 %v605, %v601
    %v1114 = vpack.c.b16 %v606, %v602
    %v1115 = vpack.c.b16 %v607, %v603
    %v1116 = vpack.c.b16 %v612, %v608
    %v1117 = vpack.c.b16 %v613, %v609
    %v1118 = vpack.c.b16 %v614, %v610
    %v1119 = vpack.c.b16 %v615, %v611
    %v1120 = vpack.c.b16 %v620, %v616
    %v1121 = vpack.c.b16 %v621, %v617
    %v1122 = vpack.c.b16 %v622, %v618
    %v1123 = vpack.c.b16 %v623, %v619
    %v1124 = vpack.c.b16 %v628, %v624
    %v1125 = vpack.c.b16 %v629, %v625
    %v1126 = vpack.c.b16 %v630, %v626
    %v1127 = vpack.c.b16 %v631, %v627
    %v1128 = vpack.c.b16 %v636, %v632
    %v1129 = vpack.c.b16 %v637, %v633
    %v1130 = vpack.c.b16 %v638, %v634
    %v1131 = vpack.c.b16 %v639, %v635
    %v1132 = vpack.c.b16 %v644, %v640
    %v1133 = vpack.c.b16 %v645, %v641
    %v1134 = vpack.c.b16 %v646, %v642
    %v1135 = vpack.c.b16 %v647, %v643
    %v1136 = vpack.c.b16 %v652, %v648
    %v1137 = vpack.c.b16 %v653, %v649
    %v1138 = vpack.c.b16 %v654, %v650
    %v1139 = vpack.c.b16 %v655, %v651
    %v1140 = vpack.c.b16 %v660, %v656
    %v1141 = vpack.c.b16 %v661, %v657
    %v1142 = vpack.c.b16 %v662, %v658
    %v1143 = vpack.c.b16 %v663, %v659
    %v1144 = vpack.c.b16 %v668, %v664
    %v1145 = vpack.c.b16 %v669, %v665
    %v1146 = vpack.c.b16 %v670, %v666
    %v1147 = vpack.c.b16 %v671, %v667
    %v1148 = vpack.c.b16 %v676, %v672
    %v1149 = vpack.c.b16 %v677, %v673
    %v1150 = vpack.c.b16 %v678, %v674
    %v1151 = vpack.c.b16 %v679, %v675
    %v1152 = vpack.c.b16 %v684, %v680
    %v1153 = vpack.c.b16 %v685, %v681
    %v1154 = vpack.c.b16 %v686, %v682
    %v1155 = vpack.c.b16 %v687, %v683
    %v1156 = vpack.c.b16 %v692, %v688
    %v1157 = vpack.c.b16 %v693, %v689
    %v1158 = vpack.c.b16 %v694, %v690
    %v1159 = vpack.c.b16 %v695, %v691
    %v1160 = vpack.c.b16 %v700, %v696
    %v1161 = vpack.c.b16 %v701, %v697
    %v1162 = vpack.c.b16 %v702, %v698
    %v1163 = vpack.c.b16 %v703, %v699
    %v1164 = vpack.c.b16 %v708, %v704
    %v1165 = vpack.c.b16 %v709, %v705
    %v1166 = vpack.c.b16 %v710, %v706
    %v1167 = vpack.c.b16 %v711, %v707
    %v1168 = vpack.c.b16 %v716, %v712
    %v1169 = vpack.c.b16 %v717, %v713
    %v1170 = vpack.c.b16 %v718, %v714
    %v1171 = vpack.c.b16 %v719, %v715
    %v1172 = vpack.c.b16 %v724, %v720
    %v1173 = vpack.c.b16 %v725, %v721
    %v1174 = vpack.c.b16 %v726, %v722
    %v1175 = vpack.c.b16 %v727, %v723
    %v1176 = vpack.c.b16 %v732, %v728
    %v1177 = vpack.c.b16 %v733, %v729
    %v1178 = vpack.c.b16 %v734, %v730
    %v1179 = vpack.c.b16 %v735, %v731
    %v1180 = vpack.c.b16 %v740, %v736
    %v1181 = vpack.c.b16 %v741, %v737
    %v1182 = vpack.c.b16 %v742, %v738
    %v1183 = vpack.c.b16 %v743, %v739
    %v1184 = vpack.c.b16 %v748, %v744
    %v1185 = vpack.c.b16 %v749, %v745
    %v1186 = vpack.c.b16 %v750, %v746
    %v1187 = vpack.c.b16 %v751, %v747
    %v1188 = vpack.c.b16 %v756, %v752
    %v1189 = vpack.c.b16 %v757, %v753
    %v1190 = vpack.c.b16 %v758, %v754
    %v1191 = vpack.c.b16 %v759, %v755
    %v1192 = vpack.c.b16 %v764, %v760
    %v1193 = vpack.c.b16 %v765, %v761
    %v1194 = vpack.c.b16 %v766, %v762
    %v1195 = vpack.c.b16 %v767, %v763
    %v1196 = vpack.c.b16 %v772, %v768
    %v1197 = vpack.c.b16 %v773, %v769
    %v1198 = vpack.c.b16 %v774, %v770
    %v1199 = vpack.c.b16 %v775, %v771
    %v1200 = vpack.c.b16 %v780, %v776
    %v1201 = vpack.c.b16 %v781, %v777
    %v1202 = vpack.c.b16 %v782, %v778
    %v1203 = vpack.c.b16 %v783, %v779
    %v1204 = vpack.c.b16 %v788, %v784
    %v1205 = vpack.c.b16 %v789, %v785
    %v1206 = vpack.c.b16 %v790, %v786
    %v1207 = vpack.c.b16 %v791, %v787
    %v1208 = vpack.c.b16 %v796, %v792
    %v1209 = vpack.c.b16 %v797, %v793
    %v1210 = vpack.c.b16 %v798, %v794
    %v1211 = vpack.c.b16 %v799, %v795
    %v1212 = vpack.c.b16 %v804, %v800
    %v1213 = vpack.c.b16 %v805, %v801
    %v1214 = vpack.c.b16 %v806, %v802
    %v1215 = vpack.c.b16 %v807, %v803
    %v1216 = vpack.c.b16 %v812, %v808
    %v1217 = vpack.c.b16 %v813, %v809
    %v1218 = vpack.c.b16 %v814, %v810
    %v1219 = vpack.c.b16 %v815, %v811
    %v1220 = vpack.c.b16 %v820, %v816
    %v1221 = vpack.c.b16 %v821, %v817
    %v1222 = vpack.c.b16 %v822, %v818
    %v1223 = vpack.c.b16 %v823, %v819
    %v1224 = vpack.c.b16 %v828, %v824
    %v1225 = vpack.c.b16 %v829, %v825
    %v1226 = vpack.c.b16 %v830, %v826
    %v1227 = vpack.c.b16 %v831, %v827
    %v1228 = vpack.c.b16 %v836, %v832
    %v1229 = vpack.c.b16 %v837, %v833
    %v1230 = vpack.c.b16 %v838, %v834
    %v1231 = vpack.c.b16 %v839, %v835
    %v1232 = vpack.c.b16 %v844, %v840
    %v1233 = vpack.c.b16 %v845, %v841
    %v1234 = vpack.c.b16 %v846, %v842
    %v1235 = vpack.c.b16 %v847, %v843
    %v1236 = vpack.c.b16 %v852, %v848
    %v1237 = vpack.c.b16 %v853, %v849
    %v1238 = vpack.c.b16 %v854, %v850
    %v1239 = vpack.c.b16 %v855, %v851
    %v1240 = vpack.c.b16 %v860, %v856
    %v1241 = vpack.c.b16 %v861, %v857
    %v1242 = vpack.c.b16 %v862, %v858
    %v1243 = vpack.c.b16 %v863, %v859
    %v1244 = vpack.c.b16 %v868, %v864
    %v1245 = vpack.c.b16 %v869, %v865
    %v1246 = vpack.c.b16 %v870, %v866
    %v1247 = vpack.c.b16 %v871, %v867
    %v1248 = vpack.c.b16 %v876, %v872
    %v1249 = vpack.c.b16 %v877, %v873
    %v1250 = vpack.c.b16 %v878, %v874
    %v1251 = vpack.c.b16 %v879, %v875
    %v1252 = vpack.c.b16 %v884, %v880
    %v1253 = vpack.c.b16 %v885, %v881
    %v1254 = vpack.c.b16 %v886, %v882
    %v1255 = vpack.c.b16 %v887, %v883
    %v1256 = vpack.c.b16 %v892, %v888
    %v1257 = vpack.c.b16 %v893, %v889
    %v1258 = vpack.c.b16 %v894, %v890
    %v1259 = vpack.c.b16 %v895, %v891
    %v1260 = vpack.c.b16 %v900, %v896
    %v1261 = vpack.c.b16 %v901, %v897
    %v1262 = vpack.c.b16 %v902, %v898
    %v1263 = vpack.c.b16 %v903, %v899
    %v1264 = vpack.c.b16 %v908, %v904
    %v1265 = vpack.c.b16 %v909, %v905
    %v1266 = vpack.c.b16 %v910, %v906
    %v1267 = vpack.c.b16 %v911, %v907
    %v1268 = vpack.c.b16 %v916, %v912
    %v1269 = vpack.c.b16 %v917, %v913
    %v1270 = vpack.c.b16 %v918, %v914
    %v1271 = vpack.c.b16 %v919, %v915
    %v1272 = vpack.c.b16 %v924, %v920
    %v1273 = vpack.c.b16 %v925, %v921
    %v1274 = vpack.c.b16 %v926, %v922
    %v1275 = vpack.c.b16 %v927, %v923
    %v1276 = vpack.c.b16 %v932, %v928
    %v1277 = vpack.c.b16 %v933, %v929
    %v1278 = vpack.c.b16 %v934, %v930
    %v1279 = vpack.c.b16 %v935, %v931
    %v1280 = vpack.c.b16 %v940, %v936
    %v1281 = vpack.c.b16 %v941, %v937
    %v1282 = vpack.c.b16 %v942, %v938
    %v1283 = vpack.c.b16 %v943, %v939
    %v1284 = vpack.c.b16 %v948, %v944
    %v1285 = vpack.c.b16 %v949, %v945
    %v1286 = vpack.c.b16 %v950, %v946
    %v1287 = vpack.c.b16 %v951, %v947
    %v1288 = vpack.c.b16 %v956, %v952
    %v1289 = vpack.c.b16 %v957, %v953
    %v1290 = vpack.c.b16 %v958, %v954
    %v1291 = vpack.c.b16 %v959, %v955
    %v1292 = vpack.c.b16 %v964, %v960
    %v1293 = vpack.c.b16 %v965, %v961
    %v1294 = vpack.c.b16 %v966, %v962
    %v1295 = vpack.c.b16 %v967, %v963
    %v1296 = vpack.c.b16 %v972, %v968
    %v1297 = vpack.c.b16 %v973, %v969
    %v1298 = vpack.c.b16 %v974, %v970
    %v1299 = vpack.c.b16 %v975, %v971
    %v1300 = vpack.c.b16 %v980, %v976
    %v1301 = vpack.c.b16 %v981, %v977
    %v1302 = vpack.c.b16 %v982, %v978
    %v1303 = vpack.c.b16 %v983, %v979
    %v1304 = vpack.c.b16 %v988, %v984
    %v1305 = vpack.c.b16 %v989, %v985
    %v1306 = vpack.c.b16 %v990, %v986
    %v1307 = vpack.c.b16 %v991, %v987
    %v1308 = vpack.c.b16 %v996, %v992
    %v1309 = vpack.c.b16 %v997, %v993
    %v1310 = vpack.c.b16 %v998, %v994
    %v1311 = vpack.c.b16 %v999, %v995
    %v1312 = vpack.c.b16 %v1004, %v1000
    %v1313 = vpack.c.b16 %v1005, %v1001
    %v1314 = vpack.c.b16 %v1006, %v1002
    %v1315 = vpack.c.b16 %v1007, %v1003
    %v1316 = vpack.c.b16 %v1012, %v1008
    %v1317 = vpack.c.b16 %v1013, %v1009
    %v1318 = vpack.c.b16 %v1014, %v1010
    %v1319 = vpack.c.b16 %v1015, %v1011
    %v1320 = vpack.c.b16 %v1020, %v1016
    %v1321 = vpack.c.b16 %v1021, %v1017
    %v1322 = vpack.c.b16 %v1022, %v1018
    %v1323 = vpack.c.b16 %v1023, %v1019
    %v1324 = vpack.c.b16 %v1028, %v1024
    %v1325 = vpack.c.b16 %v1029, %v1025
    %v1326 = vpack.c.b16 %v1030, %v1026
    %v1327 = vpack.c.b16 %v1031, %v1027
    %v1328 = vpack.c.b16 %v1036, %v1032
    %v1329 = vpack.c.b16 %v1037, %v1033
    %v1330 = vpack.c.b16 %v1038, %v1034
    %v1331 = vpack.c.b16 %v1039, %v1035
    %v1332 = vpack.c.b16 %v1044, %v1040
    %v1333 = vpack.c.b16 %v1045, %v1041
    %v1334 = vpack.c.b16 %v1046, %v1042
    %v1335 = vpack.c.b16 %v1047, %v1043
    %v1336 = vpack.c.b16 %v1052, %v1048
    %v1337 = vpack.c.b16 %v1053, %v1049
    %v1338 = vpack.c.b16 %v1054, %v1050
    %v1339 = vpack.c.b16 %v1055, %v1051
    %v1340 = vpack.c.b16 %v1060, %v1056
    %v1341 = vpack.c.b16 %v1061, %v1057
    %v1342 = vpack.c.b16 %v1062, %v1058
    %v1343 = vpack.c.b16 %v1063, %v1059
    %v1344 = vpack.c.b16 %v1068, %v1064
    %v1345 = vpack.c.b16 %v1069, %v1065
    %v1346 = vpack.c.b16 %v1070, %v1066
    %v1347 = vpack.c.b16 %v1071, %v1067
    %v1348 = vpack.c.b16 %v1076, %v1072
    %v1349 = vpack.c.b16 %v1077, %v1073
    %v1350 = vpack.c.b16 %v1078, %v1074
    %v1351 = vpack.c.b16 %v1079, %v1075
    %v1352 = vpack.c.b16 %v1084, %v1080
    %v1353 = vpack.c.b16 %v1085, %v1081
    %v1354 = vpack.c.b16 %v1086, %v1082
    %v1355 = vpack.c.b16 %v1087, %v1083
    %v1356 = vpack.c.b16 %v1092, %v1088
    %v1357 = vpack.c.b16 %v1093, %v1089
    %v1358 = vpack.c.b16 %v1094, %v1090
    %v1359 = vpack.c.b16 %v1095, %v1091
    %v1360 = vpack.c.b16 %v1100, %v1096
    %v1361 = vpack.c.b16 %v1101, %v1097
    %v1362 = vpack.c.b16 %v1102, %v1098
    %v1363 = vpack.c.b16 %v1103, %v1099
    %v1364 = vpack.c.b16 %v1108, %v1104
    %v1365 = vpack.c.b16 %v1109, %v1105
    %v1366 = vpack.c.b16 %v1110, %v1106
    %v1367 = vpack.c.b16 %v1111, %v1107
    %1624 = vmatprep.subr.bf16.mxu0 %v1141
    %1625 = vmatpush1.bf16.msra.mxu0 %v1140
    %1626 = vmatprep.subr.bf16.mxu0 %v1137
    %1627 = vmatpush1.bf16.msra.mxu0 %v1136
    %1628 = vmatprep.subr.bf16.mxu0 %v1133
    %1629 = vmatpush1.bf16.msra.mxu0 %v1132
    %1630 = vmatprep.subr.bf16.mxu0 %v1129
    %1631 = vmatpush1.bf16.msra.mxu0 %v1128
    %1632 = vmatprep.subr.bf16.mxu0 %v1125
    %1633 = vmatpush1.bf16.msra.mxu0 %v1124
    %1634 = vmatprep.subr.bf16.mxu0 %v1121
    %1635 = vmatpush1.bf16.msra.mxu0 %v1120
    %1636 = vmatprep.subr.bf16.mxu0 %v1117
    %1637 = vmatpush1.bf16.msra.mxu0 %v1116
    %1638 = vmatprep.subr.bf16.mxu0 %v1113
    %1639 = vmatpush1.bf16.msra.mxu0 %v1112
    %1640 = vmatprep.subr.bf16.mxu0 %v1173
    %1641 = vmatpush2.bf16.msra.mxu0 %v1172
    %1642 = vmatprep.subr.bf16.mxu0 %v1169
    %1643 = vmatpush2.bf16.msra.mxu0 %v1168
    %1644 = vmatprep.subr.bf16.mxu0 %v1165
    %1645 = vmatpush2.bf16.msra.mxu0 %v1164
    %1646 = vmatprep.subr.bf16.mxu0 %v1161
    %1647 = vmatpush2.bf16.msra.mxu0 %v1160
    %1648 = vmatprep.subr.bf16.mxu0 %v1157
    %1649 = vmatpush2.bf16.msra.mxu0 %v1156
    %1650 = vmatprep.subr.bf16.mxu0 %v1153
    %1651 = vmatpush2.bf16.msra.mxu0 %v1152
    %1652 = vmatprep.subr.bf16.mxu0 %v1149
    %1653 = vmatpush2.bf16.msra.mxu0 %v1148
    %1654 = vmatprep.subr.bf16.mxu0 %v1145
    %1655 = vmatpush2.bf16.msra.mxu0 %v1144
    %1656 = vmatprep.mubr.bf16.mxu0 %v81
    %1657 = vmatmul.mubr.bf16.gmra.mxu0 %v80
    %v1658 = vpop.f32.mrf.mxu0
    %v1659 = vadd.f32 0.0, %v1658
    %v1660 = vpop.f32.mrf.mxu0
    %v1661 = vadd.f32 0.0, %v1660
    %v1662 = vpop.f32.mrf.mxu0
    %v1663 = vpop.f32.mrf.mxu0
    %1664 = vdwg.mxu0
    %1665 = vmatprep.subr.bf16.mxu0 %v1205
    %1666 = vmatpush1.bf16.msra.mxu0 %v1204
    %1667 = vmatprep.subr.bf16.mxu0 %v1201
    %1668 = vmatpush1.bf16.msra.mxu0 %v1200
    %1669 = vmatprep.subr.bf16.mxu0 %v1197
    %1670 = vmatpush1.bf16.msra.mxu0 %v1196
    %1671 = vmatprep.subr.bf16.mxu0 %v1193
    %1672 = vmatpush1.bf16.msra.mxu0 %v1192
    %1673 = vmatprep.subr.bf16.mxu0 %v1189
    %1674 = vmatpush1.bf16.msra.mxu0 %v1188
    %1675 = vmatprep.subr.bf16.mxu0 %v1185
    %1676 = vmatpush1.bf16.msra.mxu0 %v1184
    %1677 = vmatprep.subr.bf16.mxu0 %v1181
    %1678 = vmatpush1.bf16.msra.mxu0 %v1180
    %1679 = vmatprep.subr.bf16.mxu0 %v1177
    %1680 = vmatpush1.bf16.msra.mxu0 %v1176
    %1681 = vmatprep.subr.bf16.mxu0 %v1237
    %1682 = vmatpush2.bf16.msra.mxu0 %v1236
    %1683 = vmatprep.subr.bf16.mxu0 %v1233
    %1684 = vmatpush2.bf16.msra.mxu0 %v1232
    %1685 = vmatprep.subr.bf16.mxu0 %v1229
    %1686 = vmatpush2.bf16.msra.mxu0 %v1228
    %1687 = vmatprep.subr.bf16.mxu0 %v1225
    %1688 = vmatpush2.bf16.msra.mxu0 %v1224
    %1689 = vmatprep.subr.bf16.mxu0 %v1221
    %1690 = vmatpush2.bf16.msra.mxu0 %v1220
    %1691 = vmatprep.subr.bf16.mxu0 %v1217
    %1692 = vmatpush2.bf16.msra.mxu0 %v1216
    %1693 = vmatprep.subr.bf16.mxu0 %v1213
    %1694 = vmatpush2.bf16.msra.mxu0 %v1212
    %1695 = vmatprep.subr.bf16.mxu0 %v1209
    %1696 = vmatpush2.bf16.msra.mxu0 %v1208
    %1697 = vmatprep.mubr.bf16.mxu0 %v83
    %1698 = vmatmul.mubr.bf16.gmra.mxu0 %v82
    %v1699 = vpop.f32.mrf.mxu0
    %v1700 = vadd.f32 %v1659, %v1699
    %v1701 = vpop.f32.mrf.mxu0
    %v1702 = vadd.f32 %v1661, %v1701
    %v1703 = vpop.f32.mrf.mxu0
    %v1704 = vpop.f32.mrf.mxu0
    %1705 = vdwg.mxu0
    %1706 = vmatprep.subr.bf16.mxu0 %v1269
    %1707 = vmatpush1.bf16.msra.mxu0 %v1268
    %1708 = vmatprep.subr.bf16.mxu0 %v1265
    %1709 = vmatpush1.bf16.msra.mxu0 %v1264
    %1710 = vmatprep.subr.bf16.mxu0 %v1261
    %1711 = vmatpush1.bf16.msra.mxu0 %v1260
    %1712 = vmatprep.subr.bf16.mxu0 %v1257
    %1713 = vmatpush1.bf16.msra.mxu0 %v1256
    %1714 = vmatprep.subr.bf16.mxu0 %v1253
    %1715 = vmatpush1.bf16.msra.mxu0 %v1252
    %1716 = vmatprep.subr.bf16.mxu0 %v1249
    %1717 = vmatpush1.bf16.msra.mxu0 %v1248
    %1718 = vmatprep.subr.bf16.mxu0 %v1245
    %1719 = vmatpush1.bf16.msra.mxu0 %v1244
    %1720 = vmatprep.subr.bf16.mxu0 %v1241
    %1721 = vmatpush1.bf16.msra.mxu0 %v1240
    %1722 = vmatprep.subr.bf16.mxu0 %v1301
    %1723 = vmatpush2.bf16.msra.mxu0 %v1300
    %1724 = vmatprep.subr.bf16.mxu0 %v1297
    %1725 = vmatpush2.bf16.msra.mxu0 %v1296
    %1726 = vmatprep.subr.bf16.mxu0 %v1293
    %1727 = vmatpush2.bf16.msra.mxu0 %v1292
    %1728 = vmatprep.subr.bf16.mxu0 %v1289
    %1729 = vmatpush2.bf16.msra.mxu0 %v1288
    %1730 = vmatprep.subr.bf16.mxu0 %v1285
    %1731 = vmatpush2.bf16.msra.mxu0 %v1284
    %1732 = vmatprep.subr.bf16.mxu0 %v1281
    %1733 = vmatpush2.bf16.msra.mxu0 %v1280
    %1734 = vmatprep.subr.bf16.mxu0 %v1277
    %1735 = vmatpush2.bf16.msra.mxu0 %v1276
    %1736 = vmatprep.subr.bf16.mxu0 %v1273
    %1737 = vmatpush2.bf16.msra.mxu0 %v1272
    %1738 = vmatprep.mubr.bf16.mxu0 %v85
    %1739 = vmatmul.mubr.bf16.gmra.mxu0 %v84
    %v1740 = vpop.f32.mrf.mxu0
    %v1741 = vadd.f32 %v1700, %v1740
    %v1742 = vpop.f32.mrf.mxu0
    %v1743 = vadd.f32 %v1702, %v1742
    %v1744 = vpop.f32.mrf.mxu0
    %v1745 = vpop.f32.mrf.mxu0
    %1746 = vdwg.mxu0
    %1747 = vmatprep.subr.bf16.mxu0 %v1333
    %1748 = vmatpush1.bf16.msra.mxu0 %v1332
    %1749 = vmatprep.subr.bf16.mxu0 %v1329
    %1750 = vmatpush1.bf16.msra.mxu0 %v1328
    %1751 = vmatprep.subr.bf16.mxu0 %v1325
    %1752 = vmatpush1.bf16.msra.mxu0 %v1324
    %1753 = vmatprep.subr.bf16.mxu0 %v1321
    %1754 = vmatpush1.bf16.msra.mxu0 %v1320
    %1755 = vmatprep.subr.bf16.mxu0 %v1317
    %1756 = vmatpush1.bf16.msra.mxu0 %v1316
    %1757 = vmatprep.subr.bf16.mxu0 %v1313
    %1758 = vmatpush1.bf16.msra.mxu0 %v1312
    %1759 = vmatprep.subr.bf16.mxu0 %v1309
    %1760 = vmatpush1.bf16.msra.mxu0 %v1308
    %1761 = vmatprep.subr.bf16.mxu0 %v1305
    %1762 = vmatpush1.bf16.msra.mxu0 %v1304
    %1763 = vmatprep.subr.bf16.mxu0 %v1365
    %1764 = vmatpush2.bf16.msra.mxu0 %v1364
    %1765 = vmatprep.subr.bf16.mxu0 %v1361
    %1766 = vmatpush2.bf16.msra.mxu0 %v1360
    %1767 = vmatprep.subr.bf16.mxu0 %v1357
    %1768 = vmatpush2.bf16.msra.mxu0 %v1356
    %1769 = vmatprep.subr.bf16.mxu0 %v1353
    %1770 = vmatpush2.bf16.msra.mxu0 %v1352
    %1771 = vmatprep.subr.bf16.mxu0 %v1349
    %1772 = vmatpush2.bf16.msra.mxu0 %v1348
    %1773 = vmatprep.subr.bf16.mxu0 %v1345
    %1774 = vmatpush2.bf16.msra.mxu0 %v1344
    %1775 = vmatprep.subr.bf16.mxu0 %v1341
    %1776 = vmatpush2.bf16.msra.mxu0 %v1340
    %1777 = vmatprep.subr.bf16.mxu0 %v1337
    %1778 = vmatpush2.bf16.msra.mxu0 %v1336
    %1779 = vmatprep.mubr.bf16.mxu0 %v87
    %1780 = vmatmul.mubr.bf16.gmra.mxu0 %v86
    %v1781 = vpop.f32.mrf.mxu0
    %v1782 = vadd.f32 %v1741, %v1781
    %v1783 = vpop.f32.mrf.mxu0
    %v1784 = vadd.f32 %v1743, %v1783
    %v1785 = vpop.f32.mrf.mxu0
    %v1786 = vpop.f32.mrf.mxu0
    %1787 = vdwg.mxu0
    %1788 = vmatprep.subr.bf16.mxu0 %v1143
    %1789 = vmatpush1.bf16.msra.mxu0 %v1142
    %1790 = vmatprep.subr.bf16.mxu0 %v1139
    %1791 = vmatpush1.bf16.msra.mxu0 %v1138
    %1792 = vmatprep.subr.bf16.mxu0 %v1135
    %1793 = vmatpush1.bf16.msra.mxu0 %v1134
    %1794 = vmatprep.subr.bf16.mxu0 %v1131
    %1795 = vmatpush1.bf16.msra.mxu0 %v1130
    %1796 = vmatprep.subr.bf16.mxu0 %v1127
    %1797 = vmatpush1.bf16.msra.mxu0 %v1126
    %1798 = vmatprep.subr.bf16.mxu0 %v1123
    %1799 = vmatpush1.bf16.msra.mxu0 %v1122
    %1800 = vmatprep.subr.bf16.mxu0 %v1119
    %1801 = vmatpush1.bf16.msra.mxu0 %v1118
    %1802 = vmatprep.subr.bf16.mxu0 %v1115
    %1803 = vmatpush1.bf16.msra.mxu0 %v1114
    %1804 = vmatprep.subr.bf16.mxu0 %v1175
    %1805 = vmatpush2.bf16.msra.mxu0 %v1174
    %1806 = vmatprep.subr.bf16.mxu0 %v1171
    %1807 = vmatpush2.bf16.msra.mxu0 %v1170
    %1808 = vmatprep.subr.bf16.mxu0 %v1167
    %1809 = vmatpush2.bf16.msra.mxu0 %v1166
    %1810 = vmatprep.subr.bf16.mxu0 %v1163
    %1811 = vmatpush2.bf16.msra.mxu0 %v1162
    %1812 = vmatprep.subr.bf16.mxu0 %v1159
    %1813 = vmatpush2.bf16.msra.mxu0 %v1158
    %1814 = vmatprep.subr.bf16.mxu0 %v1155
    %1815 = vmatpush2.bf16.msra.mxu0 %v1154
    %1816 = vmatprep.subr.bf16.mxu0 %v1151
    %1817 = vmatpush2.bf16.msra.mxu0 %v1150
    %1818 = vmatprep.subr.bf16.mxu0 %v1147
    %1819 = vmatpush2.bf16.msra.mxu0 %v1146
    %1820 = vmatprep.mubr.bf16.mxu0 %v81
    %1821 = vmatmul.mubr.bf16.gmra.mxu0 %v80
    %v1822 = vpop.f32.mrf.mxu0
    %v1823 = vadd.f32 0.0, %v1822
    %v1824 = vpop.f32.mrf.mxu0
    %v1825 = vadd.f32 0.0, %v1824
    %v1826 = vpop.f32.mrf.mxu0
    %v1827 = vpop.f32.mrf.mxu0
    %1828 = vdwg.mxu0
    %1829 = vmatprep.subr.bf16.mxu0 %v1207
    %1830 = vmatpush1.bf16.msra.mxu0 %v1206
    %1831 = vmatprep.subr.bf16.mxu0 %v1203
    %1832 = vmatpush1.bf16.msra.mxu0 %v1202
    %1833 = vmatprep.subr.bf16.mxu0 %v1199
    %1834 = vmatpush1.bf16.msra.mxu0 %v1198
    %1835 = vmatprep.subr.bf16.mxu0 %v1195
    %1836 = vmatpush1.bf16.msra.mxu0 %v1194
    %1837 = vmatprep.subr.bf16.mxu0 %v1191
    %1838 = vmatpush1.bf16.msra.mxu0 %v1190
    %1839 = vmatprep.subr.bf16.mxu0 %v1187
    %1840 = vmatpush1.bf16.msra.mxu0 %v1186
    %1841 = vmatprep.subr.bf16.mxu0 %v1183
    %1842 = vmatpush1.bf16.msra.mxu0 %v1182
    %1843 = vmatprep.subr.bf16.mxu0 %v1179
    %1844 = vmatpush1.bf16.msra.mxu0 %v1178
    %1845 = vmatprep.subr.bf16.mxu0 %v1239
    %1846 = vmatpush2.bf16.msra.mxu0 %v1238
    %1847 = vmatprep.subr.bf16.mxu0 %v1235
    %1848 = vmatpush2.bf16.msra.mxu0 %v1234
    %1849 = vmatprep.subr.bf16.mxu0 %v1231
    %1850 = vmatpush2.bf16.msra.mxu0 %v1230
    %1851 = vmatprep.subr.bf16.mxu0 %v1227
    %1852 = vmatpush2.bf16.msra.mxu0 %v1226
    %1853 = vmatprep.subr.bf16.mxu0 %v1223
    %1854 = vmatpush2.bf16.msra.mxu0 %v1222
    %1855 = vmatprep.subr.bf16.mxu0 %v1219
    %1856 = vmatpush2.bf16.msra.mxu0 %v1218
    %1857 = vmatprep.subr.bf16.mxu0 %v1215
    %1858 = vmatpush2.bf16.msra.mxu0 %v1214
    %1859 = vmatprep.subr.bf16.mxu0 %v1211
    %1860 = vmatpush2.bf16.msra.mxu0 %v1210
    %1861 = vmatprep.mubr.bf16.mxu0 %v83
    %1862 = vmatmul.mubr.bf16.gmra.mxu0 %v82
    %v1863 = vpop.f32.mrf.mxu0
    %v1864 = vadd.f32 %v1823, %v1863
    %v1865 = vpop.f32.mrf.mxu0
    %v1866 = vadd.f32 %v1825, %v1865
    %v1867 = vpop.f32.mrf.mxu0
    %v1868 = vpop.f32.mrf.mxu0
    %1869 = vdwg.mxu0
    %1870 = vmatprep.subr.bf16.mxu0 %v1271
    %1871 = vmatpush1.bf16.msra.mxu0 %v1270
    %1872 = vmatprep.subr.bf16.mxu0 %v1267
    %1873 = vmatpush1.bf16.msra.mxu0 %v1266
    %1874 = vmatprep.subr.bf16.mxu0 %v1263
    %1875 = vmatpush1.bf16.msra.mxu0 %v1262
    %1876 = vmatprep.subr.bf16.mxu0 %v1259
    %1877 = vmatpush1.bf16.msra.mxu0 %v1258
    %1878 = vmatprep.subr.bf16.mxu0 %v1255
    %1879 = vmatpush1.bf16.msra.mxu0 %v1254
    %1880 = vmatprep.subr.bf16.mxu0 %v1251
    %1881 = vmatpush1.bf16.msra.mxu0 %v1250
    %1882 = vmatprep.subr.bf16.mxu0 %v1247
    %1883 = vmatpush1.bf16.msra.mxu0 %v1246
    %1884 = vmatprep.subr.bf16.mxu0 %v1243
    %1885 = vmatpush1.bf16.msra.mxu0 %v1242
    %1886 = vmatprep.subr.bf16.mxu0 %v1303
    %1887 = vmatpush2.bf16.msra.mxu0 %v1302
    %1888 = vmatprep.subr.bf16.mxu0 %v1299
    %1889 = vmatpush2.bf16.msra.mxu0 %v1298
    %1890 = vmatprep.subr.bf16.mxu0 %v1295
    %1891 = vmatpush2.bf16.msra.mxu0 %v1294
    %1892 = vmatprep.subr.bf16.mxu0 %v1291
    %1893 = vmatpush2.bf16.msra.mxu0 %v1290
    %1894 = vmatprep.subr.bf16.mxu0 %v1287
    %1895 = vmatpush2.bf16.msra.mxu0 %v1286
    %1896 = vmatprep.subr.bf16.mxu0 %v1283
    %1897 = vmatpush2.bf16.msra.mxu0 %v1282
    %1898 = vmatprep.subr.bf16.mxu0 %v1279
    %1899 = vmatpush2.bf16.msra.mxu0 %v1278
    %1900 = vmatprep.subr.bf16.mxu0 %v1275
    %1901 = vmatpush2.bf16.msra.mxu0 %v1274
    %1902 = vmatprep.mubr.bf16.mxu0 %v85
    %1903 = vmatmul.mubr.bf16.gmra.mxu0 %v84
    %v1904 = vpop.f32.mrf.mxu0
    %v1905 = vadd.f32 %v1864, %v1904
    %v1906 = vpop.f32.mrf.mxu0
    %v1907 = vadd.f32 %v1866, %v1906
    %v1908 = vpop.f32.mrf.mxu0
    %v1909 = vpop.f32.mrf.mxu0
    %1910 = vdwg.mxu0
    %1911 = vmatprep.subr.bf16.mxu0 %v1335
    %1912 = vmatpush1.bf16.msra.mxu0 %v1334
    %1913 = vmatprep.subr.bf16.mxu0 %v1331
    %1914 = vmatpush1.bf16.msra.mxu0 %v1330
    %1915 = vmatprep.subr.bf16.mxu0 %v1327
    %1916 = vmatpush1.bf16.msra.mxu0 %v1326
    %1917 = vmatprep.subr.bf16.mxu0 %v1323
    %1918 = vmatpush1.bf16.msra.mxu0 %v1322
    %1919 = vmatprep.subr.bf16.mxu0 %v1319
    %1920 = vmatpush1.bf16.msra.mxu0 %v1318
    %1921 = vmatprep.subr.bf16.mxu0 %v1315
    %1922 = vmatpush1.bf16.msra.mxu0 %v1314
    %1923 = vmatprep.subr.bf16.mxu0 %v1311
    %1924 = vmatpush1.bf16.msra.mxu0 %v1310
    %1925 = vmatprep.subr.bf16.mxu0 %v1307
    %1926 = vmatpush1.bf16.msra.mxu0 %v1306
    %1927 = vmatprep.subr.bf16.mxu0 %v1367
    %1928 = vmatpush2.bf16.msra.mxu0 %v1366
    %1929 = vmatprep.subr.bf16.mxu0 %v1363
    %1930 = vmatpush2.bf16.msra.mxu0 %v1362
    %1931 = vmatprep.subr.bf16.mxu0 %v1359
    %1932 = vmatpush2.bf16.msra.mxu0 %v1358
    %1933 = vmatprep.subr.bf16.mxu0 %v1355
    %1934 = vmatpush2.bf16.msra.mxu0 %v1354
    %1935 = vmatprep.subr.bf16.mxu0 %v1351
    %1936 = vmatpush2.bf16.msra.mxu0 %v1350
    %1937 = vmatprep.subr.bf16.mxu0 %v1347
    %1938 = vmatpush2.bf16.msra.mxu0 %v1346
    %1939 = vmatprep.subr.bf16.mxu0 %v1343
    %1940 = vmatpush2.bf16.msra.mxu0 %v1342
    %1941 = vmatprep.subr.bf16.mxu0 %v1339
    %1942 = vmatpush2.bf16.msra.mxu0 %v1338
    %1943 = vmatprep.mubr.bf16.mxu0 %v87
    %1944 = vmatmul.mubr.bf16.gmra.mxu0 %v86
    %v1945 = vpop.f32.mrf.mxu0
    %v1946 = vadd.f32 %v1905, %v1945
    %v1947 = vpop.f32.mrf.mxu0
    %v1948 = vadd.f32 %v1907, %v1947
    %v1949 = vpop.f32.mrf.mxu0
    %v1950 = vpop.f32.mrf.mxu0
    %1951 = vdwg.mxu0
    %v1952 = vld [vmem:[%s2] sm:$0xf]
    %v1954 = vlaneseq
    %v1955 = vshrl.u32 %v1954, 7
    %v1956 = vsub.s32 0, %v1955
    %v1957 = vrot.slane %v1952, %v1956
    %v1958 = vlaneseq
    %v1959 = vshrl.u32 %v1958, 7
    %v1960 = vsub.s32 1, %v1959
    %v1961 = vrot.slane %v1952, %v1960
    %v1962 = vlaneseq
    %v1963 = vshrl.u32 %v1962, 7
    %v1964 = vsub.s32 2, %v1963
    %v1965 = vrot.slane %v1952, %v1964
    %v1966 = vlaneseq
    %v1967 = vshrl.u32 %v1966, 7
    %v1968 = vsub.s32 3, %v1967
    %v1969 = vrot.slane %v1952, %v1968
    %v1974 = vmul.f32 %v1782, %v1957
    %v1975 = vmul.f32 %v1784, %v1961
    %v1976 = vmul.f32 %v1946, %v1965
    %v1977 = vmul.f32 %v1948, %v1969
    %v1978 = vld [vmem:[%s3] sm:$0xf]
    %v1980 = vlaneseq
    %v1981 = vshrl.u32 %v1980, 7
    %v1982 = vsub.s32 0, %v1981
    %v1983 = vrot.slane %v1978, %v1982
    %v1984 = vlaneseq
    %v1985 = vshrl.u32 %v1984, 7
    %v1986 = vsub.s32 1, %v1985
    %v1987 = vrot.slane %v1978, %v1986
    %v1988 = vlaneseq
    %v1989 = vshrl.u32 %v1988, 7
    %v1990 = vsub.s32 2, %v1989
    %v1991 = vrot.slane %v1978, %v1990
    %v1992 = vlaneseq
    %v1993 = vshrl.u32 %v1992, 7
    %v1994 = vsub.s32 3, %v1993
    %v1995 = vrot.slane %v1978, %v1994
    %v2000 = vadd.f32 %v1974, %v1983
    %v2001 = vadd.f32 %v1975, %v1987
    %v2002 = vadd.f32 %v1976, %v1991
    %v2003 = vadd.f32 %v1977, %v1995
    %v2004 = vmax.f32 %v2000, 0.0
    %v2005 = vmax.f32 %v2001, 0.0
    %v2006 = vmax.f32 %v2002, 0.0
    %v2007 = vmax.f32 %v2003, 0.0
    %v2008 = vpack.c.bf16 %v2004, %v2004
    %v2009 = vpack.c.bf16 %v2005, %v2005
    %v2010 = vpack.c.bf16 %v2006, %v2006
    %v2011 = vpack.c.bf16 %v2007, %v2007
    %v2012 = vld [vmem:[%s4] sm:$0xff]
    %v2013 = vld [vmem:[%s4 + $0x8] sm:$0xff]
    %v2014 = vld [vmem:[%s4 + $0x10] sm:$0xff]
    %v2015 = vld [vmem:[%s4 + $0x18] sm:$0xff]
    %v2016 = vld [vmem:[%s4 + $0x20] sm:$0xff]
    %v2017 = vld [vmem:[%s4 + $0x28] sm:$0xff]
    %v2018 = vld [vmem:[%s4 + $0x30] sm:$0xff]
    %v2019 = vld [vmem:[%s4 + $0x38] sm:$0xff]
    %v2020 = vld [vmem:[%s4 + $0x40] sm:$0xff]
    %v2021 = vld [vmem:[%s4 + $0x48] sm:$0xff]
    %v2022 = vld [vmem:[%s4 + $0x50] sm:$0xff]
    %v2023 = vld [vmem:[%s4 + $0x58] sm:$0xff]
    %v2024 = vld [vmem:[%s4 + $0x60] sm:$0xff]
    %v2025 = vld [vmem:[%s4 + $0x68] sm:$0xff]
    %v2026 = vld [vmem:[%s4 + $0x70] sm:$0xff]
    %v2027 = vld [vmem:[%s4 + $0x78] sm:$0xff]
    %v2028 = vld [vmem:[%s4 + $0x80] sm:$0xff]
    %v2029 = vld [vmem:[%s4 + $0x88] sm:$0xff]
    %v2030 = vld [vmem:[%s4 + $0x90] sm:$0xff]
    %v2031 = vld [vmem:[%s4 + $0x98] sm:$0xff]
    %v2032 = vld [vmem:[%s4 + $0xa0] sm:$0xff]
    %v2033 = vld [vmem:[%s4 + $0xa8] sm:$0xff]
    %v2034 = vld [vmem:[%s4 + $0xb0] sm:$0xff]
    %v2035 = vld [vmem:[%s4 + $0xb8] sm:$0xff]
    %v2036 = vld [vmem:[%s4 + $0xc0] sm:$0xff]
    %v2037 = vld [vmem:[%s4 + $0xc8] sm:$0xff]
    %v2038 = vld [vmem:[%s4 + $0xd0] sm:$0xff]
    %v2039 = vld [vmem:[%s4 + $0xd8] sm:$0xff]
    %v2040 = vld [vmem:[%s4 + $0xe0] sm:$0xff]
    %v2041 = vld [vmem:[%s4 + $0xe8] sm:$0xff]
    %v2042 = vld [vmem:[%s4 + $0xf0] sm:$0xff]
    %v2043 = vld [vmem:[%s4 + $0xf8] sm:$0xff]
    %v2044 = vld [vmem:[%s4 + $0x100] sm:$0xff]
    %v2045 = vld [vmem:[%s4 + $0x108] sm:$0xff]
    %v2046 = vld [vmem:[%s4 + $0x110] sm:$0xff]
    %v2047 = vld [vmem:[%s4 + $0x118] sm:$0xff]
    %v2048 = vld [vmem:[%s4 + $0x120] sm:$0xff]
    %v2049 = vld [vmem:[%s4 + $0x128] sm:$0xff]
    %v2050 = vld [vmem:[%s4 + $0x130] sm:$0xff]
    %v2051 = vld [vmem:[%s4 + $0x138] sm:$0xff]
    %v2052 = vld [vmem:[%s4 + $0x140] sm:$0xff]
    %v2053 = vld [vmem:[%s4 + $0x148] sm:$0xff]
    %v2054 = vld [vmem:[%s4 + $0x150] sm:$0xff]
    %v2055 = vld [vmem:[%s4 + $0x158] sm:$0xff]
    %v2056 = vld [vmem:[%s4 + $0x160] sm:$0xff]
    %v2057 = vld [vmem:[%s4 + $0x168] sm:$0xff]
    %v2058 = vld [vmem:[%s4 + $0x170] sm:$0xff]
    %v2059 = vld [vmem:[%s4 + $0x178] sm:$0xff]
    %v2060 = vld [vmem:[%s4 + $0x180] sm:$0xff]
    %v2061 = vld [vmem:[%s4 + $0x188] sm:$0xff]
    %v2062 = vld [vmem:[%s4 + $0x190] sm:$0xff]
    %v2063 = vld [vmem:[%s4 + $0x198] sm:$0xff]
    %v2064 = vld [vmem:[%s4 + $0x1a0] sm:$0xff]
    %v2065 = vld [vmem:[%s4 + $0x1a8] sm:$0xff]
    %v2066 = vld [vmem:[%s4 + $0x1b0] sm:$0xff]
    %v2067 = vld [vmem:[%s4 + $0x1b8] sm:$0xff]
    %v2068 = vld [vmem:[%s4 + $0x1c0] sm:$0xff]
    %v2069 = vld [vmem:[%s4 + $0x1c8] sm:$0xff]
    %v2070 = vld [vmem:[%s4 + $0x1d0] sm:$0xff]
    %v2071 = vld [vmem:[%s4 + $0x1d8] sm:$0xff]
    %v2072 = vld [vmem:[%s4 + $0x1e0] sm:$0xff]
    %v2073 = vld [vmem:[%s4 + $0x1e8] sm:$0xff]
    %v2074 = vld [vmem:[%s4 + $0x1f0] sm:$0xff]
    %v2075 = vld [vmem:[%s4 + $0x1f8] sm:$0xff]
    %v2140 = vunpack.c.l.b16 %v2012
    %v2141 = vunpack.c.h.b16 %v2012
    %v2142 = vunpack.c.l.b16 %v2013
    %v2143 = vunpack.c.h.b16 %v2013
    %v2144 = vunpack.c.l.b16 %v2014
    %v2145 = vunpack.c.h.b16 %v2014
    %v2146 = vunpack.c.l.b16 %v2015
    %v2147 = vunpack.c.h.b16 %v2015
    %v2148 = vunpack.c.l.b16 %v2016
    %v2149 = vunpack.c.h.b16 %v2016
    %v2150 = vunpack.c.l.b16 %v2017
    %v2151 = vunpack.c.h.b16 %v2017
    %v2152 = vunpack.c.l.b16 %v2018
    %v2153 = vunpack.c.h.b16 %v2018
    %v2154 = vunpack.c.l.b16 %v2019
    %v2155 = vunpack.c.h.b16 %v2019
    %v2156 = vunpack.c.l.b16 %v2020
    %v2157 = vunpack.c.h.b16 %v2020
    %v2158 = vunpack.c.l.b16 %v2021
    %v2159 = vunpack.c.h.b16 %v2021
    %v2160 = vunpack.c.l.b16 %v2022
    %v2161 = vunpack.c.h.b16 %v2022
    %v2162 = vunpack.c.l.b16 %v2023
    %v2163 = vunpack.c.h.b16 %v2023
    %v2164 = vunpack.c.l.b16 %v2024
    %v2165 = vunpack.c.h.b16 %v2024
    %v2166 = vunpack.c.l.b16 %v2025
    %v2167 = vunpack.c.h.b16 %v2025
    %v2168 = vunpack.c.l.b16 %v2026
    %v2169 = vunpack.c.h.b16 %v2026
    %v2170 = vunpack.c.l.b16 %v2027
    %v2171 = vunpack.c.h.b16 %v2027
    %v2172 = vunpack.c.l.b16 %v2028
    %v2173 = vunpack.c.h.b16 %v2028
    %v2174 = vunpack.c.l.b16 %v2029
    %v2175 = vunpack.c.h.b16 %v2029
    %v2176 = vunpack.c.l.b16 %v2030
    %v2177 = vunpack.c.h.b16 %v2030
    %v2178 = vunpack.c.l.b16 %v2031
    %v2179 = vunpack.c.h.b16 %v2031
    %v2180 = vunpack.c.l.b16 %v2032
    %v2181 = vunpack.c.h.b16 %v2032
    %v2182 = vunpack.c.l.b16 %v2033
    %v2183 = vunpack.c.h.b16 %v2033
    %v2184 = vunpack.c.l.b16 %v2034
    %v2185 = vunpack.c.h.b16 %v2034
    %v2186 = vunpack.c.l.b16 %v2035
    %v2187 = vunpack.c.h.b16 %v2035
    %v2188 = vunpack.c.l.b16 %v2036
    %v2189 = vunpack.c.h.b16 %v2036
    %v2190 = vunpack.c.l.b16 %v2037
    %v2191 = vunpack.c.h.b16 %v2037
    %v2192 = vunpack.c.l.b16 %v2038
    %v2193 = vunpack.c.h.b16 %v2038
    %v2194 = vunpack.c.l.b16 %v2039
    %v2195 = vunpack.c.h.b16 %v2039
    %v2196 = vunpack.c.l.b16 %v2040
    %v2197 = vunpack.c.h.b16 %v2040
    %v2198 = vunpack.c.l.b16 %v2041
    %v2199 = vunpack.c.h.b16 %v2041
    %v2200 = vunpack.c.l.b16 %v2042
    %v2201 = vunpack.c.h.b16 %v2042
    %v2202 = vunpack.c.l.b16 %v2043
    %v2203 = vunpack.c.h.b16 %v2043
    %v2204 = vunpack.c.l.b16 %v2044
    %v2205 = vunpack.c.h.b16 %v2044
    %v2206 = vunpack.c.l.b16 %v2045
    %v2207 = vunpack.c.h.b16 %v2045
    %v2208 = vunpack.c.l.b16 %v2046
    %v2209 = vunpack.c.h.b16 %v2046
    %v2210 = vunpack.c.l.b16 %v2047
    %v2211 = vunpack.c.h.b16 %v2047
    %v2212 = vunpack.c.l.b16 %v2048
    %v2213 = vunpack.c.h.b16 %v2048
    %v2214 = vunpack.c.l.b16 %v2049
    %v2215 = vunpack.c.h.b16 %v2049
    %v2216 = vunpack.c.l.b16 %v2050
    %v2217 = vunpack.c.h.b16 %v2050
    %v2218 = vunpack.c.l.b16 %v2051
    %v2219 = vunpack.c.h.b16 %v2051
    %v2220 = vunpack.c.l.b16 %v2052
    %v2221 = vunpack.c.h.b16 %v2052
    %v2222 = vunpack.c.l.b16 %v2053
    %v2223 = vunpack.c.h.b16 %v2053
    %v2224 = vunpack.c.l.b16 %v2054
    %v2225 = vunpack.c.h.b16 %v2054
    %v2226 = vunpack.c.l.b16 %v2055
    %v2227 = vunpack.c.h.b16 %v2055
    %v2228 = vunpack.c.l.b16 %v2056
    %v2229 = vunpack.c.h.b16 %v2056
    %v2230 = vunpack.c.l.b16 %v2057
    %v2231 = vunpack.c.h.b16 %v2057
    %v2232 = vunpack.c.l.b16 %v2058
    %v2233 = vunpack.c.h.b16 %v2058
    %v2234 = vunpack.c.l.b16 %v2059
    %v2235 = vunpack.c.h.b16 %v2059
    %v2236 = vunpack.c.l.b16 %v2060
    %v2237 = vunpack.c.h.b16 %v2060
    %v2238 = vunpack.c.l.b16 %v2061
    %v2239 = vunpack.c.h.b16 %v2061
    %v2240 = vunpack.c.l.b16 %v2062
    %v2241 = vunpack.c.h.b16 %v2062
    %v2242 = vunpack.c.l.b16 %v2063
    %v2243 = vunpack.c.h.b16 %v2063
    %v2244 = vunpack.c.l.b16 %v2064
    %v2245 = vunpack.c.h.b16 %v2064
    %v2246 = vunpack.c.l.b16 %v2065
    %v2247 = vunpack.c.h.b16 %v2065
    %v2248 = vunpack.c.l.b16 %v2066
    %v2249 = vunpack.c.h.b16 %v2066
    %v2250 = vunpack.c.l.b16 %v2067
    %v2251 = vunpack.c.h.b16 %v2067
    %v2252 = vunpack.c.l.b16 %v2068
    %v2253 = vunpack.c.h.b16 %v2068
    %v2254 = vunpack.c.l.b16 %v2069
    %v2255 = vunpack.c.h.b16 %v2069
    %v2256 = vunpack.c.l.b16 %v2070
    %v2257 = vunpack.c.h.b16 %v2070
    %v2258 = vunpack.c.l.b16 %v2071
    %v2259 = vunpack.c.h.b16 %v2071
    %v2260 = vunpack.c.l.b16 %v2072
    %v2261 = vunpack.c.h.b16 %v2072
    %v2262 = vunpack.c.l.b16 %v2073
    %v2263 = vunpack.c.h.b16 %v2073
    %v2264 = vunpack.c.l.b16 %v2074
    %v2265 = vunpack.c.h.b16 %v2074
    %v2266 = vunpack.c.l.b16 %v2075
    %v2267 = vunpack.c.h.b16 %v2075
    %v2268 = vpack.c.b16 %v2142, %v2140
    %v2269 = vpack.c.b16 %v2143, %v2141
    %v2270 = vpack.c.b16 %v2146, %v2144
    %v2271 = vpack.c.b16 %v2147, %v2145
    %v2272 = vpack.c.b16 %v2150, %v2148
    %v2273 = vpack.c.b16 %v2151, %v2149
    %v2274 = vpack.c.b16 %v2154, %v2152
    %v2275 = vpack.c.b16 %v2155, %v2153
    %v2276 = vpack.c.b16 %v2158, %v2156
    %v2277 = vpack.c.b16 %v2159, %v2157
    %v2278 = vpack.c.b16 %v2162, %v2160
    %v2279 = vpack.c.b16 %v2163, %v2161
    %v2280 = vpack.c.b16 %v2166, %v2164
    %v2281 = vpack.c.b16 %v2167, %v2165
    %v2282 = vpack.c.b16 %v2170, %v2168
    %v2283 = vpack.c.b16 %v2171, %v2169
    %v2284 = vpack.c.b16 %v2174, %v2172
    %v2285 = vpack.c.b16 %v2175, %v2173
    %v2286 = vpack.c.b16 %v2178, %v2176
    %v2287 = vpack.c.b16 %v2179, %v2177
    %v2288 = vpack.c.b16 %v2182, %v2180
    %v2289 = vpack.c.b16 %v2183, %v2181
    %v2290 = vpack.c.b16 %v2186, %v2184
    %v2291 = vpack.c.b16 %v2187, %v2185
    %v2292 = vpack.c.b16 %v2190, %v2188
    %v2293 = vpack.c.b16 %v2191, %v2189
    %v2294 = vpack.c.b16 %v2194, %v2192
    %v2295 = vpack.c.b16 %v2195, %v2193
    %v2296 = vpack.c.b16 %v2198, %v2196
    %v2297 = vpack.c.b16 %v2199, %v2197
    %v2298 = vpack.c.b16 %v2202, %v2200
    %v2299 = vpack.c.b16 %v2203, %v2201
    %v2300 = vpack.c.b16 %v2206, %v2204
    %v2301 = vpack.c.b16 %v2207, %v2205
    %v2302 = vpack.c.b16 %v2210, %v2208
    %v2303 = vpack.c.b16 %v2211, %v2209
    %v2304 = vpack.c.b16 %v2214, %v2212
    %v2305 = vpack.c.b16 %v2215, %v2213
    %v2306 = vpack.c.b16 %v2218, %v2216
    %v2307 = vpack.c.b16 %v2219, %v2217
    %v2308 = vpack.c.b16 %v2222, %v2220
    %v2309 = vpack.c.b16 %v2223, %v2221
    %v2310 = vpack.c.b16 %v2226, %v2224
    %v2311 = vpack.c.b16 %v2227, %v2225
    %v2312 = vpack.c.b16 %v2230, %v2228
    %v2313 = vpack.c.b16 %v2231, %v2229
    %v2314 = vpack.c.b16 %v2234, %v2232
    %v2315 = vpack.c.b16 %v2235, %v2233
    %v2316 = vpack.c.b16 %v2238, %v2236
    %v2317 = vpack.c.b16 %v2239, %v2237
    %v2318 = vpack.c.b16 %v2242, %v2240
    %v2319 = vpack.c.b16 %v2243, %v2241
    %v2320 = vpack.c.b16 %v2246, %v2244
    %v2321 = vpack.c.b16 %v2247, %v2245
    %v2322 = vpack.c.b16 %v2250, %v2248
    %v2323 = vpack.c.b16 %v2251, %v2249
    %v2324 = vpack.c.b16 %v2254, %v2252
    %v2325 = vpack.c.b16 %v2255, %v2253
    %v2326 = vpack.c.b16 %v2258, %v2256
    %v2327 = vpack.c.b16 %v2259, %v2257
    %v2328 = vpack.c.b16 %v2262, %v2260
    %v2329 = vpack.c.b16 %v2263, %v2261
    %v2330 = vpack.c.b16 %v2266, %v2264
    %v2331 = vpack.c.b16 %v2267, %v2265
    %2396 = vmatprep.subr.bf16.mxu0 %v2283
    %2397 = vmatpush1.bf16.msra.mxu0 %v2282
    %2398 = vmatprep.subr.bf16.mxu0 %v2281
    %2399 = vmatpush1.bf16.msra.mxu0 %v2280
    %2400 = vmatprep.subr.bf16.mxu0 %v2279
    %2401 = vmatpush1.bf16.msra.mxu0 %v2278
    %2402 = vmatprep.subr.bf16.mxu0 %v2277
    %2403 = vmatpush1.bf16.msra.mxu0 %v2276
    %2404 = vmatprep.subr.bf16.mxu0 %v2275
    %2405 = vmatpush1.bf16.msra.mxu0 %v2274
    %2406 = vmatprep.subr.bf16.mxu0 %v2273
    %2407 = vmatpush1.bf16.msra.mxu0 %v2272
    %2408 = vmatprep.subr.bf16.mxu0 %v2271
    %2409 = vmatpush1.bf16.msra.mxu0 %v2270
    %2410 = vmatprep.subr.bf16.mxu0 %v2269
    %2411 = vmatpush1.bf16.msra.mxu0 %v2268
    %2412 = vmatprep.subr.bf16.mxu0 %v2299
    %2413 = vmatpush2.bf16.msra.mxu0 %v2298
    %2414 = vmatprep.subr.bf16.mxu0 %v2297
    %2415 = vmatpush2.bf16.msra.mxu0 %v2296
    %2416 = vmatprep.subr.bf16.mxu0 %v2295
    %2417 = vmatpush2.bf16.msra.mxu0 %v2294
    %2418 = vmatprep.subr.bf16.mxu0 %v2293
    %2419 = vmatpush2.bf16.msra.mxu0 %v2292
    %2420 = vmatprep.subr.bf16.mxu0 %v2291
    %2421 = vmatpush2.bf16.msra.mxu0 %v2290
    %2422 = vmatprep.subr.bf16.mxu0 %v2289
    %2423 = vmatpush2.bf16.msra.mxu0 %v2288
    %2424 = vmatprep.subr.bf16.mxu0 %v2287
    %2425 = vmatpush2.bf16.msra.mxu0 %v2286
    %2426 = vmatprep.subr.bf16.mxu0 %v2285
    %2427 = vmatpush2.bf16.msra.mxu0 %v2284
    %2428 = vmatprep.mubr.bf16.mxu0 %v2009
    %2429 = vmatmul.mubr.bf16.gmra.mxu0 %v2008
    %v2430 = vpop.f32.mrf.mxu0
    %v2431 = vadd.f32 0.0, %v2430
    %v2432 = vpop.f32.mrf.mxu0
    %v2433 = vadd.f32 0.0, %v2432
    %v2434 = vpop.f32.mrf.mxu0
    %v2435 = vpop.f32.mrf.mxu0
    %2436 = vdwg.mxu0
    %2437 = vmatprep.subr.bf16.mxu0 %v2315
    %2438 = vmatpush1.bf16.msra.mxu0 %v2314
    %2439 = vmatprep.subr.bf16.mxu0 %v2313
    %2440 = vmatpush1.bf16.msra.mxu0 %v2312
    %2441 = vmatprep.subr.bf16.mxu0 %v2311
    %2442 = vmatpush1.bf16.msra.mxu0 %v2310
    %2443 = vmatprep.subr.bf16.mxu0 %v2309
    %2444 = vmatpush1.bf16.msra.mxu0 %v2308
    %2445 = vmatprep.subr.bf16.mxu0 %v2307
    %2446 = vmatpush1.bf16.msra.mxu0 %v2306
    %2447 = vmatprep.subr.bf16.mxu0 %v2305
    %2448 = vmatpush1.bf16.msra.mxu0 %v2304
    %2449 = vmatprep.subr.bf16.mxu0 %v2303
    %2450 = vmatpush1.bf16.msra.mxu0 %v2302
    %2451 = vmatprep.subr.bf16.mxu0 %v2301
    %2452 = vmatpush1.bf16.msra.mxu0 %v2300
    %2453 = vmatprep.subr.bf16.mxu0 %v2331
    %2454 = vmatpush2.bf16.msra.mxu0 %v2330
    %2455 = vmatprep.subr.bf16.mxu0 %v2329
    %2456 = vmatpush2.bf16.msra.mxu0 %v2328
    %2457 = vmatprep.subr.bf16.mxu0 %v2327
    %2458 = vmatpush2.bf16.msra.mxu0 %v2326
    %2459 = vmatprep.subr.bf16.mxu0 %v2325
    %2460 = vmatpush2.bf16.msra.mxu0 %v2324
    %2461 = vmatprep.subr.bf16.mxu0 %v2323
    %2462 = vmatpush2.bf16.msra.mxu0 %v2322
    %2463 = vmatprep.subr.bf16.mxu0 %v2321
    %2464 = vmatpush2.bf16.msra.mxu0 %v2320
    %2465 = vmatprep.subr.bf16.mxu0 %v2319
    %2466 = vmatpush2.bf16.msra.mxu0 %v2318
    %2467 = vmatprep.subr.bf16.mxu0 %v2317
    %2468 = vmatpush2.bf16.msra.mxu0 %v2316
    %2469 = vmatprep.mubr.bf16.mxu0 %v2011
    %2470 = vmatmul.mubr.bf16.gmra.mxu0 %v2010
    %v2471 = vpop.f32.mrf.mxu0
    %v2472 = vadd.f32 %v2431, %v2471
    %v2473 = vpop.f32.mrf.mxu0
    %v2474 = vadd.f32 %v2433, %v2473
    %v2475 = vpop.f32.mrf.mxu0
    %v2476 = vpop.f32.mrf.mxu0
    %2477 = vdwg.mxu0
    %v2478 = vld [vmem:[%s5] sm:$0x3]
    %v2480 = vlaneseq
    %v2481 = vshrl.u32 %v2480, 7
    %v2482 = vsub.s32 0, %v2481
    %v2483 = vrot.slane %v2478, %v2482
    %v2484 = vlaneseq
    %v2485 = vshrl.u32 %v2484, 7
    %v2486 = vsub.s32 1, %v2485
    %v2487 = vrot.slane %v2478, %v2486
    %v2490 = vmul.f32 %v2472, %v2483
    %v2491 = vmul.f32 %v2474, %v2487
    %v2492 = vld [vmem:[%s6] sm:$0x3]
    %v2494 = vlaneseq
    %v2495 = vshrl.u32 %v2494, 7
    %v2496 = vsub.s32 0, %v2495
    %v2497 = vrot.slane %v2492, %v2496
    %v2498 = vlaneseq
    %v2499 = vshrl.u32 %v2498, 7
    %v2500 = vsub.s32 1, %v2499
    %v2501 = vrot.slane %v2492, %v2500
    %v2504 = vadd.f32 %v2490, %v2497
    %v2505 = vadd.f32 %v2491, %v2501
    %v2506 = vmax.f32 %v2504, 0.0
    %v2507 = vmax.f32 %v2505, 0.0
    %v2508 = vpack.c.bf16 %v2506, %v2506
    %v2509 = vpack.c.bf16 %v2507, %v2507
    %v2510 = vld [vmem:[%s7] sm:$0xf]
    %v2511 = vld [vmem:[%s7 + $0x4] sm:$0xf]
    %v2512 = vld [vmem:[%s7 + $0x8] sm:$0xf]
    %v2513 = vld [vmem:[%s7 + $0xc] sm:$0xf]
    %v2514 = vld [vmem:[%s7 + $0x10] sm:$0xf]
    %v2515 = vld [vmem:[%s7 + $0x14] sm:$0xf]
    %v2516 = vld [vmem:[%s7 + $0x18] sm:$0xf]
    %v2517 = vld [vmem:[%s7 + $0x1c] sm:$0xf]
    %v2518 = vld [vmem:[%s7 + $0x20] sm:$0xf]
    %v2519 = vld [vmem:[%s7 + $0x24] sm:$0xf]
    %v2520 = vld [vmem:[%s7 + $0x28] sm:$0xf]
    %v2521 = vld [vmem:[%s7 + $0x2c] sm:$0xf]
    %v2522 = vld [vmem:[%s7 + $0x30] sm:$0xf]
    %v2523 = vld [vmem:[%s7 + $0x34] sm:$0xf]
    %v2524 = vld [vmem:[%s7 + $0x38] sm:$0xf]
    %v2525 = vld [vmem:[%s7 + $0x3c] sm:$0xf]
    %v2526 = vld [vmem:[%s7 + $0x40] sm:$0xf]
    %v2527 = vld [vmem:[%s7 + $0x44] sm:$0xf]
    %v2528 = vld [vmem:[%s7 + $0x48] sm:$0xf]
    %v2529 = vld [vmem:[%s7 + $0x4c] sm:$0xf]
    %v2530 = vld [vmem:[%s7 + $0x50] sm:$0xf]
    %v2531 = vld [vmem:[%s7 + $0x54] sm:$0xf]
    %v2532 = vld [vmem:[%s7 + $0x58] sm:$0xf]
    %v2533 = vld [vmem:[%s7 + $0x5c] sm:$0xf]
    %v2534 = vld [vmem:[%s7 + $0x60] sm:$0xf]
    %v2535 = vld [vmem:[%s7 + $0x64] sm:$0xf]
    %v2536 = vld [vmem:[%s7 + $0x68] sm:$0xf]
    %v2537 = vld [vmem:[%s7 + $0x6c] sm:$0xf]
    %v2538 = vld [vmem:[%s7 + $0x70] sm:$0xf]
    %v2539 = vld [vmem:[%s7 + $0x74] sm:$0xf]
    %v2540 = vld [vmem:[%s7 + $0x78] sm:$0xf]
    %v2541 = vld [vmem:[%s7 + $0x7c] sm:$0xf]
    %v2542 = vld [vmem:[%s8] sm:$0x1]
    %v2544 = vlaneseq
    %v2545 = vshrl.u32 %v2544, 7
    %v2546 = vsub.s32 0, %v2545
    %v2547 = vrot.slane %v2542, %v2546
    %v2581 = vunpack.c.l.b16 %v2510
    %v2582 = vunpack.c.l.b16 %v2511
    %v2583 = vunpack.c.l.b16 %v2512
    %v2584 = vunpack.c.l.b16 %v2513
    %v2585 = vunpack.c.l.b16 %v2514
    %v2586 = vunpack.c.l.b16 %v2515
    %v2587 = vunpack.c.l.b16 %v2516
    %v2588 = vunpack.c.l.b16 %v2517
    %v2589 = vunpack.c.l.b16 %v2518
    %v2590 = vunpack.c.l.b16 %v2519
    %v2591 = vunpack.c.l.b16 %v2520
    %v2592 = vunpack.c.l.b16 %v2521
    %v2593 = vunpack.c.l.b16 %v2522
    %v2594 = vunpack.c.l.b16 %v2523
    %v2595 = vunpack.c.l.b16 %v2524
    %v2596 = vunpack.c.l.b16 %v2525
    %v2597 = vunpack.c.l.b16 %v2526
    %v2598 = vunpack.c.l.b16 %v2527
    %v2599 = vunpack.c.l.b16 %v2528
    %v2600 = vunpack.c.l.b16 %v2529
    %v2601 = vunpack.c.l.b16 %v2530
    %v2602 = vunpack.c.l.b16 %v2531
    %v2603 = vunpack.c.l.b16 %v2532
    %v2604 = vunpack.c.l.b16 %v2533
    %v2605 = vunpack.c.l.b16 %v2534
    %v2606 = vunpack.c.l.b16 %v2535
    %v2607 = vunpack.c.l.b16 %v2536
    %v2608 = vunpack.c.l.b16 %v2537
    %v2609 = vunpack.c.l.b16 %v2538
    %v2610 = vunpack.c.l.b16 %v2539
    %v2611 = vunpack.c.l.b16 %v2540
    %v2612 = vunpack.c.l.b16 %v2541
    %v2613 = vpack.c.b16 %v2582, %v2581
    %v2614 = vpack.c.b16 %v2584, %v2583
    %v2615 = vpack.c.b16 %v2586, %v2585
    %v2616 = vpack.c.b16 %v2588, %v2587
    %v2617 = vpack.c.b16 %v2590, %v2589
    %v2618 = vpack.c.b16 %v2592, %v2591
    %v2619 = vpack.c.b16 %v2594, %v2593
    %v2620 = vpack.c.b16 %v2596, %v2595
    %v2621 = vpack.c.b16 %v2598, %v2597
    %v2622 = vpack.c.b16 %v2600, %v2599
    %v2623 = vpack.c.b16 %v2602, %v2601
    %v2624 = vpack.c.b16 %v2604, %v2603
    %v2625 = vpack.c.b16 %v2606, %v2605
    %v2626 = vpack.c.b16 %v2608, %v2607
    %v2627 = vpack.c.b16 %v2610, %v2609
    %v2628 = vpack.c.b16 %v2612, %v2611
    %2645 = vmatprep.subr.bf16.mxu0 0
    %2646 = vmatpush1.bf16.msra.mxu0 %v2620
    %2647 = vmatprep.subr.bf16.mxu0 0
    %2648 = vmatpush1.bf16.msra.mxu0 %v2619
    %2649 = vmatprep.subr.bf16.mxu0 0
    %2650 = vmatpush1.bf16.msra.mxu0 %v2618
    %2651 = vmatprep.subr.bf16.mxu0 0
    %2652 = vmatpush1.bf16.msra.mxu0 %v2617
    %2653 = vmatprep.subr.bf16.mxu0 0
    %2654 = vmatpush1.bf16.msra.mxu0 %v2616
    %2655 = vmatprep.subr.bf16.mxu0 0
    %2656 = vmatpush1.bf16.msra.mxu0 %v2615
    %2657 = vmatprep.subr.bf16.mxu0 0
    %2658 = vmatpush1.bf16.msra.mxu0 %v2614
    %2659 = vmatprep.subr.bf16.mxu0 0
    %2660 = vmatpush1.bf16.msra.mxu0 %v2613
    %2661 = vmatprep.subr.bf16.mxu0 0
    %2662 = vmatpush2.bf16.msra.mxu0 %v2628
    %2663 = vmatprep.subr.bf16.mxu0 0
    %2664 = vmatpush2.bf16.msra.mxu0 %v2627
    %2665 = vmatprep.subr.bf16.mxu0 0
    %2666 = vmatpush2.bf16.msra.mxu0 %v2626
    %2667 = vmatprep.subr.bf16.mxu0 0
    %2668 = vmatpush2.bf16.msra.mxu0 %v2625
    %2669 = vmatprep.subr.bf16.mxu0 0
    %2670 = vmatpush2.bf16.msra.mxu0 %v2624
    %2671 = vmatprep.subr.bf16.mxu0 0
    %2672 = vmatpush2.bf16.msra.mxu0 %v2623
    %2673 = vmatprep.subr.bf16.mxu0 0
    %2674 = vmatpush2.bf16.msra.mxu0 %v2622
    %2675 = vmatprep.subr.bf16.mxu0 0
    %2676 = vmatpush2.bf16.msra.mxu0 %v2621
    %2677 = vmatprep.mubr.bf16.mxu0 %v2509
    %2678 = vmatmul.mubr.bf16.gmra.mxu0 %v2508
    %v2679 = vpop.f32.mrf.mxu0
    %v2680 = vadd.f32 %v2547, %v2679
    %v2681 = vpop.f32.mrf.mxu0
    %v2682 = vpop.f32.mrf.mxu0
    %v2683 = vpop.f32.mrf.mxu0
    %2684 = vdwg.mxu0
    %vm2685 = vcmask 9216
    %v2686 = vsel %vm2685, %v2680, -inf
    %2687 = vmax.xlane.f32.xlu0 %v2686
    %v2688 = vpop.xlane.xlu0 %2687
    %v2689 = vsub.f32 %v2680, %v2688
    %v2690 = vmul.f32 %v2689, 1.442695
    %v2691 = vpow.pop %v2690
    %v2692 = vsel %vm2685, %v2691, 0.0
    %2693 = vadd.xlane.f32.xlu0 %v2692
    %v2694 = vpop.xlane.xlu0 %2693
    %v2695 = vlog2.pop %v2694
    %v2696 = vmul.f32 %v2695, 0.6931472
    %v2697 = vsub.f32 %v2689, %v2696
    %2698 = vst.msk [vmem:[#allocation2] sm:$0x3] %vm2685, %v2697
    // Predicated region
    $region38: #{_lambda_.7} parent=1 // pred_check
      _
    $region39: #{_lambda_.7} parent=1 // pred_check_branch
      %2700 = sbr.rel (0) target = $region41
    $region40: #{_lambda_.7} parent=1 // pred_region
      %s2702 = ssub.s32 32, 32
      %2703 = vsyncadd [#allocation3], %s2702
      %s2705 = sshll.u32 [#allocation2], 4
      %s2706 = int_to_ptr.vmem [resolvable:$true] %s2705
      %2708 = dma.vmem_to_hbm [thread:$0]  %s2706, 32, %s9, [#allocation3]
    $region41: #{_lambda_.7} parent=1 // pred_fallthru
      _
    // Predicated region
    $region42: #{_lambda_.7} parent=1 // pred_check
      _
    $region43: #{_lambda_.7} parent=1 // pred_check_branch
      %2710 = sbr.rel (0) target = $region45
    $region44: #{_lambda_.7} parent=1 // pred_region
      %2711 = dma.done [#allocation3], 32
    $region45: #{_lambda_.7} parent=1 // pred_fallthru
      _
    %2712 = vsyncpa [#allocation3], 1

</llo_original>
